<compile_context>
chip_gen: v5e
topology: v5e:2x2
jax: 0.10.0
libtpu: 0.0.40
codegen_flags: <defaults>
</compile_context>

<pallas_src>
import numpy as np
import jax
import jax.numpy as jnp
from jax.experimental import pallas as pl
from jax.experimental.pallas import tpu as pltpu

EPS = 1e-5  # PyTorch BatchNorm3d default eps


# --------------------------------------------------------------------------------------
# Kernel helpers (shared by stage-1 and stage-2 conv kernels)
# --------------------------------------------------------------------------------------
def _conv_taps(pad_ref, wb_ref, D, H):
    """9 (kd, kh) taps; kw + W padding live in the banded weight -> 9 full MXU matmuls."""
    WCi = pad_ref.shape[2]
    WCo = wb_ref.shape[2]
    acc = jnp.zeros((D * H, WCo), jnp.float32)
    for kd in range(3):
        for kh in range(3):
            t = kd * 3 + kh
            patch = pad_ref[kd:kd + D, kh:kh + H, :].reshape(D * H, WCi)
            acc = acc + jnp.dot(patch, wb_ref[t],
                                preferred_element_type=jnp.float32)
    return acc


def _write_conv_and_stats(acc, conv_ref, stats_ref):
    conv_ref[0] = acc
    # Single-pass per-(w, c) partial sums in f32 (folded to per-channel in the wrapper).
    stats_ref[0, 0:1, :] = jnp.sum(acc, axis=0, keepdims=True)
    stats_ref[0, 1:2, :] = jnp.sum(acc * acc, axis=0, keepdims=True)


# --------------------------------------------------------------------------------------
# Kernels
# --------------------------------------------------------------------------------------
def _conv_stats_kernel(x_ref, wb_ref, conv_ref, stats_ref, pad_ref):
    """Stage 1: zero-pad(D,H) into VMEM scratch -> conv3x3x3 -> BN partial stats.

    x_ref    : (1, D*H, W*Cin)       bf16  unpadded input rows (row = d*H + h)
    wb_ref   : (9, W*Cin, W*Cout)    bf16  banded taps, tap index t = kd*3 + kh
    conv_ref : (1, D*H, W*Cout)      f32   conv output rows
    stats_ref: (1, 2, W*Cout)        f32   [sum, sum-of-squares] over the D*H rows
    pad_ref  : (D+2, H+2, W*Cin)     bf16  VMEM scratch (zero-padded activations)
    """
    D = pad_ref.shape[0] - 2
    H = pad_ref.shape[1] - 2
    WCi = pad_ref.shape[2]
    pad_ref[...] = jnp.zeros_like(pad_ref)
    pad_ref[1:D + 1, 1:H + 1, :] = x_ref[0].reshape(D, H, WCi)
    acc = _conv_taps(pad_ref, wb_ref, D, H)
    _write_conv_and_stats(acc, conv_ref, stats_ref)


def _bn_relu_conv_stats_kernel(cin_ref, scale_ref, shift_ref, wb_ref,
                               conv_ref, stats_ref, pad_ref):
    """Stage 2 (fused): y = relu(conv1*scale + shift) -> zero-pad(D,H) into VMEM scratch
    -> conv3x3x3 -> BN partial stats.  No HBM round trip for the padded activations."""
    D = pad_ref.shape[0] - 2
    H = pad_ref.shape[1] - 2
    WCi = pad_ref.shape[2]
    y = jnp.maximum(cin_ref[0] * scale_ref[...] + shift_ref[...], 0.0)
    pad_ref[...] = jnp.zeros_like(pad_ref)
    pad_ref[1:D + 1, 1:H + 1, :] = y.reshape(D, H, WCi).astype(pad_ref.dtype)
    acc = _conv_taps(pad_ref, wb_ref, D, H)
    _write_conv_and_stats(acc, conv_ref, stats_ref)


def _bn_res_relu_kernel(conv_ref, scale_ref, shift_ref, res_ref, out_ref):
    """y = relu(conv*scale + shift + residual)  (fully lane-dense f32)."""
    y = conv_ref[0] * scale_ref[...] + shift_ref[...] + res_ref[0]
    out_ref[0] = jnp.maximum(y, 0.0)


# --------------------------------------------------------------------------------------
# pallas_call wrappers
# --------------------------------------------------------------------------------------
def conv1_stats(x_rows, wb, D, H):
    N, DH, WCi = x_rows.shape
    WCo = wb.shape[2]
    return pl.pallas_call(
        _conv_stats_kernel,
        out_shape=(jax.ShapeDtypeStruct((N, DH, WCo), jnp.float32),
                   jax.ShapeDtypeStruct((N, 2, WCo), jnp.float32)),
        grid=(N,),
        in_specs=[
            pl.BlockSpec((1, DH, WCi), lambda i: (i, 0, 0)),
            pl.BlockSpec((9, WCi, WCo), lambda i: (0, 0, 0)),
        ],
        out_specs=(
            pl.BlockSpec((1, DH, WCo), lambda i: (i, 0, 0)),
            pl.BlockSpec((1, 2, WCo), lambda i: (i, 0, 0)),
        ),
        scratch_shapes=[pltpu.VMEM((D + 2, H + 2, WCi), jnp.bfloat16)],
        compiler_params=pltpu.CompilerParams(
            dimension_semantics=("parallel",)),
    )(x_rows, wb)


def bn_relu_conv2_stats(conv1, scale, shift, wb, D, H):
    N, DH, WCin = conv1.shape
    WCi, WCo = wb.shape[1], wb.shape[2]
    return pl.pallas_call(
        _bn_relu_conv_stats_kernel,
        out_shape=(jax.ShapeDtypeStruct((N, DH, WCo), jnp.float32),
                   jax.ShapeDtypeStruct((N, 2, WCo), jnp.float32)),
        grid=(N,),
        in_specs=[
            pl.BlockSpec((1, DH, WCin), lambda i: (i, 0, 0)),
            pl.BlockSpec((1, WCin), lambda i: (0, 0)),
            pl.BlockSpec((1, WCin), lambda i: (0, 0)),
            pl.BlockSpec((9, WCi, WCo), lambda i: (0, 0, 0)),
        ],
        out_specs=(
            pl.BlockSpec((1, DH, WCo), lambda i: (i, 0, 0)),
            pl.BlockSpec((1, 2, WCo), lambda i: (i, 0, 0)),
        ),
        scratch_shapes=[pltpu.VMEM((D + 2, H + 2, WCi), jnp.bfloat16)],
        compiler_params=pltpu.CompilerParams(
            dimension_semantics=("parallel",)),
    )(conv1, scale, shift, wb)


def bn_res_relu(conv, scale_t, shift_t, res):
    N, DH, WCo = conv.shape
    return pl.pallas_call(
        _bn_res_relu_kernel,
        out_shape=jax.ShapeDtypeStruct((N, DH, WCo), jnp.float32),
        grid=(N,),
        in_specs=[
            pl.BlockSpec((1, DH, WCo), lambda i: (i, 0, 0)),
            pl.BlockSpec((1, WCo), lambda i: (0, 0)),
            pl.BlockSpec((1, WCo), lambda i: (0, 0)),
            pl.BlockSpec((1, DH, WCo), lambda i: (i, 0, 0)),
        ],
        out_specs=pl.BlockSpec((1, DH, WCo), lambda i: (i, 0, 0)),
        compiler_params=pltpu.CompilerParams(
            dimension_semantics=("parallel",)),
    )(conv, scale_t, shift_t, res)


# --------------------------------------------------------------------------------------
# Parameter / weight preparation and BN folding (tiny O(C) work)
# --------------------------------------------------------------------------------------
def _make_banded(w, W):
    """Fold the kw taps + W-boundary zero padding of a (3,3,3,Cin,Cout) conv weight into
    a banded (9, W*Cin, W*Cout) bf16 matrix (tap index = kd*3 + kh)."""
    m = np.zeros((3, W, W), np.float32)          # m[kw, w_in, w_out]
    for kw in range(3):
        for wo in range(W):
            wi = wo + kw - 1
            if 0 <= wi < W:
                m[kw, wi, wo] = 1.0
    Cin, Cout = w.shape[3], w.shape[4]
    band = jnp.einsum("abkio,kxy->abxiyo", w.astype(jnp.float32), jnp.asarray(m))
    return band.reshape(9, W * Cin, W * Cout).astype(jnp.bfloat16)


def prepare_block_params(params, W):
    """One-time (outside jit) packing of conv weights into banded MXU-ready form."""
    return dict(
        wb1=_make_banded(params["w1"], W),
        wb2=_make_banded(params["w2"], W),
        gamma1=params["gamma1"], beta1=params["beta1"],
        gamma2=params["gamma2"], beta2=params["beta2"],
    )


def _fold_bn(stats, gamma, beta, count, W, C):
    """Per-sample partial sums -> per-channel affine y = x*scale + shift (training-mode
    BN, biased variance), tiled to the lane-dense (1, W*C) layout used by the kernels."""
    s = jnp.sum(stats[:, 0, :], axis=0).reshape(W, C).sum(axis=0)
    ss = jnp.sum(stats[:, 1, :], axis=0).reshape(W, C).sum(axis=0)
    mean = s / count
    var = jnp.maximum(ss / count - mean * mean, 0.0)
    inv = jax.lax.rsqrt(var + EPS)
    scale = gamma * inv
    shift = beta - mean * scale
    return (jnp.tile(scale, W)[None, :].astype(jnp.float32),
            jnp.tile(shift, W)[None, :].astype(jnp.float32))


def init_basic_block_params(key, inplanes, planes):
    k1, k2 = jax.random.split(key)
    return dict(
        w1=0.05 * jax.random.normal(k1, (3, 3, 3, inplanes, planes), jnp.float32),
        w2=0.05 * jax.random.normal(k2, (3, 3, 3, planes, planes), jnp.float32),
        gamma1=jnp.ones((planes,), jnp.float32),   # BN affine init: weight=1
        beta1=jnp.zeros((planes,), jnp.float32),   #                 bias=0
        gamma2=jnp.ones((planes,), jnp.float32),
        beta2=jnp.zeros((planes,), jnp.float32),
    )


# --------------------------------------------------------------------------------------
# Forward pass
# --------------------------------------------------------------------------------------
@jax.jit
def basic_block_forward(x_ncdhw, prepared):
    """BasicBlock.forward with stride=1, downsample=None (identity residual)."""
    # TODO(synk): stride>1 / downsample branch not implemented (this config has none).
    N, Cin, D, H, W = x_ncdhw.shape
    Cout = prepared["gamma1"].shape[0]
    x = jnp.transpose(x_ncdhw, (0, 2, 3, 4, 1)).astype(jnp.float32)   # NCDHW -> NDHWC
    x_rows = x.reshape(N, D * H, W * Cin)                             # lane-dense slab

    # ---- stage 1: conv1 (pad fused in-kernel) + bn1 partial stats ----
    conv1, stats1 = conv1_stats(x_rows.astype(jnp.bfloat16), prepared["wb1"], D, H)
    scale1, shift1 = _fold_bn(stats1, prepared["gamma1"], prepared["beta1"],
                              N * D * H * W, W, Cout)

    # ---- stage 2 (fused): bn1 -> relu -> pad -> conv2 + bn2 partial stats ----
    conv2, stats2 = bn_relu_conv2_stats(conv1, scale1, shift1, prepared["wb2"], D, H)
    scale2, shift2 = _fold_bn(stats2, prepared["gamma2"], prepared["beta2"],
                              N * D * H * W, W, Cout)

    # ---- stage 3: bn2 -> + identity residual -> relu ----
    y2 = bn_res_relu(conv2, scale2, shift2, x_rows)        # (N, D*H, W*Cout) f32
    return jnp.transpose(y2.reshape(N, D, H, W, Cout), (0, 4, 1, 2, 3))  # -> NCDHW


# --------------------------------------------------------------------------------------
# Pure-JAX f32 reference (PyTorch semantics: training-mode BN, biased variance)
# --------------------------------------------------------------------------------------
def _reference_forward(x_ncdhw, params):
    x = jnp.transpose(x_ncdhw, (0, 2, 3, 4, 1)).astype(jnp.float32)

    def conv(h, w):
        return jax.lax.conv_general_dilated(
            h, w, window_strides=(1, 1, 1), padding=((1, 1),) * 3,
            dimension_numbers=("NDHWC", "DHWIO", "NDHWC"))

    def bn(h, g, b):
        mean = jnp.mean(h, axis=(0, 1, 2, 3))
        var = jnp.mean((h - mean) ** 2, axis=(0, 1, 2, 3))
        return (h - mean) * jax.lax.rsqrt(var + EPS) * g + b

    y = jax.nn.relu(bn(conv(x, params["w1"]), params["gamma1"], params["beta1"]))
    y = jax.nn.relu(bn(conv(y, params["w2"]), params["gamma2"], params["beta2"]) + x)
    return jnp.transpose(y, (0, 4, 1, 2, 3))


if __name__ == "__main__":
    key = jax.random.PRNGKey(0)
    kx, kp = jax.random.split(key)

    N, C, D, H, W = 2, 32, 8, 8, 8        # inplanes = planes = 32, stride = 1
    x = jax.random.normal(kx, (N, C, D, H, W), jnp.float32)
    params = init_basic_block_params(kp, inplanes=C, planes=C)
    prepared = prepare_block_params(params, W)           # one-time weight packing

    out = jax.block_until_ready(basic_block_forward(x, prepared))

    assert out.shape == (N, C, D, H, W)
    assert bool(jnp.all(jnp.isfinite(out)))
    assert bool(jnp.all(out >= 0.0))      # final ReLU

    # bf16 matmul inputs / f32 accumulation vs. the all-f32 reference -> relaxed tolerance.
    ref = jax.block_until_ready(_reference_forward(x, params))
    max_err = float(jnp.max(jnp.abs(out - ref)))
    assert max_err < 0.2, f"max abs err vs reference too large: {max_err}"

    print("KERNEL_OK")
</pallas_src>

<mosaic_0001>
module attributes {stable_mosaic.version = 11 : i64} {
  func.func @_conv_stats_kernel(%arg0: i32, %arg1: memref<1x64x256xbf16, #tpu.memory_space<vmem>>, %arg2: memref<9x256x256xbf16, #tpu.memory_space<vmem>>, %arg3: memref<1x64x256xf32, #tpu.memory_space<vmem>>, %arg4: memref<1x2x256xf32, #tpu.memory_space<vmem>>, %arg5: memref<10x10x256xbf16, #tpu.memory_space<vmem>>) attributes {dimension_semantics = [#tpu.dimension_semantics<parallel>], iteration_bounds = array<i64: 2>, scalar_prefetch = 0 : i64, scratch_operands = 1 : i64, tpu.core_type = #tpu.core_type<tc>, window_params = [{transform_indices = @transform_0, window_bounds = array<i64: 1, 64, 256>}, {pipeline_mode = #tpu.pipeline_mode<synchronous>, transform_indices = @transform_1, window_bounds = array<i64: 9, 256, 256>}, {transform_indices = @transform_2, window_bounds = array<i64: 1, 64, 256>}, {transform_indices = @transform_3, window_bounds = array<i64: 1, 2, 256>}]} {
    %cst = arith.constant 0.000000e+00 : bf16
    %0 = vector.broadcast %cst : bf16 to vector<10x10x256xbf16>
    %c0 = arith.constant 0 : index
    %c0_0 = arith.constant 0 : index
    %c0_1 = arith.constant 0 : index
    %1 = vector.load %arg5[%c0, %c0_0, %c0_1] : memref<10x10x256xbf16, #tpu.memory_space<vmem>>, vector<10x10x256xbf16>
    tpu.vector_store %arg5[%c0, %c0_0, %c0_1], %0 {strides = array<i32>} : memref<10x10x256xbf16, #tpu.memory_space<vmem>>, vector<10x10x256xbf16>,
    %c0_2 = arith.constant 0 : index
    %c0_3 = arith.constant 0 : index
    %c0_4 = arith.constant 0 : index
    %2 = vector.load %arg1[%c0_2, %c0_3, %c0_4] : memref<1x64x256xbf16, #tpu.memory_space<vmem>>, vector<1x64x256xbf16>
    %3 = vector.shape_cast %2 : vector<1x64x256xbf16> to vector<64x256xbf16>
    %4 = vector.shape_cast %3 : vector<64x256xbf16> to vector<8x8x256xbf16>
    %c1 = arith.constant 1 : index
    %c1_5 = arith.constant 1 : index
    %c0_6 = arith.constant 0 : index
    %5 = vector.load %arg5[%c1, %c1_5, %c0_6] : memref<10x10x256xbf16, #tpu.memory_space<vmem>>, vector<8x8x256xbf16>
    tpu.vector_store %arg5[%c1, %c1_5, %c0_6], %4 {strides = array<i32>} : memref<10x10x256xbf16, #tpu.memory_space<vmem>>, vector<8x8x256xbf16>,
    %cst_7 = arith.constant 0.000000e+00 : f32
    %6 = vector.broadcast %cst_7 : f32 to vector<64x256xf32>
    %c0_8 = arith.constant 0 : index
    %c0_9 = arith.constant 0 : index
    %c0_10 = arith.constant 0 : index
    %7 = vector.load %arg5[%c0_8, %c0_9, %c0_10] : memref<10x10x256xbf16, #tpu.memory_space<vmem>>, vector<8x8x256xbf16>
    %8 = vector.shape_cast %7 : vector<8x8x256xbf16> to vector<64x256xbf16>
    %c0_11 = arith.constant 0 : index
    %c0_12 = arith.constant 0 : index
    %c0_13 = arith.constant 0 : index
    %9 = vector.load %arg2[%c0_11, %c0_12, %c0_13] : memref<9x256x256xbf16, #tpu.memory_space<vmem>>, vector<1x256x256xbf16>
    %10 = vector.shape_cast %9 : vector<1x256x256xbf16> to vector<256x256xbf16>
    %cst_14 = arith.constant dense<0.000000e+00> : vector<64x256xf32>
    %11 = tpu.matmul %8, %10, %cst_14 {dimension_numbers = #tpu.dot_dimension_numbers<[1], [0], [0], [1], [0, 0, 1, 1], [], []>} : vector<64x256xbf16>, vector<256x256xbf16>, vector<64x256xf32> -> vector<64x256xf32>
    %12 = arith.addf %6, %11 : vector<64x256xf32>
    %c0_15 = arith.constant 0 : index
    %c1_16 = arith.constant 1 : index
    %c0_17 = arith.constant 0 : index
    %13 = vector.load %arg5[%c0_15, %c1_16, %c0_17] : memref<10x10x256xbf16, #tpu.memory_space<vmem>>, vector<8x8x256xbf16>
    %14 = vector.shape_cast %13 : vector<8x8x256xbf16> to vector<64x256xbf16>
    %c1_18 = arith.constant 1 : index
    %c0_19 = arith.constant 0 : index
    %c0_20 = arith.constant 0 : index
    %15 = vector.load %arg2[%c1_18, %c0_19, %c0_20] : memref<9x256x256xbf16, #tpu.memory_space<vmem>>, vector<1x256x256xbf16>
    %16 = vector.shape_cast %15 : vector<1x256x256xbf16> to vector<256x256xbf16>
    %cst_21 = arith.constant dense<0.000000e+00> : vector<64x256xf32>
    %17 = tpu.matmul %14, %16, %cst_21 {dimension_numbers = #tpu.dot_dimension_numbers<[1], [0], [0], [1], [0, 0, 1, 1], [], []>} : vector<64x256xbf16>, vector<256x256xbf16>, vector<64x256xf32> -> vector<64x256xf32>
    %18 = arith.addf %12, %17 : vector<64x256xf32>
    %c0_22 = arith.constant 0 : index
    %c2 = arith.constant 2 : index
    %c0_23 = arith.constant 0 : index
    %19 = vector.load %arg5[%c0_22, %c2, %c0_23] : memref<10x10x256xbf16, #tpu.memory_space<vmem>>, vector<8x8x256xbf16>
    %20 = vector.shape_cast %19 : vector<8x8x256xbf16> to vector<64x256xbf16>
    %c2_24 = arith.constant 2 : index
    %c0_25 = arith.constant 0 : index
    %c0_26 = arith.constant 0 : index
    %21 = vector.load %arg2[%c2_24, %c0_25, %c0_26] : memref<9x256x256xbf16, #tpu.memory_space<vmem>>, vector<1x256x256xbf16>
    %22 = vector.shape_cast %21 : vector<1x256x256xbf16> to vector<256x256xbf16>
    %cst_27 = arith.constant dense<0.000000e+00> : vector<64x256xf32>
    %23 = tpu.matmul %20, %22, %cst_27 {dimension_numbers = #tpu.dot_dimension_numbers<[1], [0], [0], [1], [0, 0, 1, 1], [], []>} : vector<64x256xbf16>, vector<256x256xbf16>, vector<64x256xf32> -> vector<64x256xf32>
    %24 = arith.addf %18, %23 : vector<64x256xf32>
    %c1_28 = arith.constant 1 : index
    %c0_29 = arith.constant 0 : index
    %c0_30 = arith.constant 0 : index
    %25 = vector.load %arg5[%c1_28, %c0_29, %c0_30] : memref<10x10x256xbf16, #tpu.memory_space<vmem>>, vector<8x8x256xbf16>
    %26 = vector.shape_cast %25 : vector<8x8x256xbf16> to vector<64x256xbf16>
    %c3 = arith.constant 3 : index
    %c0_31 = arith.constant 0 : index
    %c0_32 = arith.constant 0 : index
    %27 = vector.load %arg2[%c3, %c0_31, %c0_32] : memref<9x256x256xbf16, #tpu.memory_space<vmem>>, vector<1x256x256xbf16>
    %28 = vector.shape_cast %27 : vector<1x256x256xbf16> to vector<256x256xbf16>
    %cst_33 = arith.constant dense<0.000000e+00> : vector<64x256xf32>
    %29 = tpu.matmul %26, %28, %cst_33 {dimension_numbers = #tpu.dot_dimension_numbers<[1], [0], [0], [1], [0, 0, 1, 1], [], []>} : vector<64x256xbf16>, vector<256x256xbf16>, vector<64x256xf32> -> vector<64x256xf32>
    %30 = arith.addf %24, %29 : vector<64x256xf32>
    %c1_34 = arith.constant 1 : index
    %c1_35 = arith.constant 1 : index
    %c0_36 = arith.constant 0 : index
    %31 = vector.load %arg5[%c1_34, %c1_35, %c0_36] : memref<10x10x256xbf16, #tpu.memory_space<vmem>>, vector<8x8x256xbf16>
    %32 = vector.shape_cast %31 : vector<8x8x256xbf16> to vector<64x256xbf16>
    %c4 = arith.constant 4 : index
    %c0_37 = arith.constant 0 : index
    %c0_38 = arith.constant 0 : index
    %33 = vector.load %arg2[%c4, %c0_37, %c0_38] : memref<9x256x256xbf16, #tpu.memory_space<vmem>>, vector<1x256x256xbf16>
    %34 = vector.shape_cast %33 : vector<1x256x256xbf16> to vector<256x256xbf16>
    %cst_39 = arith.constant dense<0.000000e+00> : vector<64x256xf32>
    %35 = tpu.matmul %32, %34, %cst_39 {dimension_numbers = #tpu.dot_dimension_numbers<[1], [0], [0], [1], [0, 0, 1, 1], [], []>} : vector<64x256xbf16>, vector<256x256xbf16>, vector<64x256xf32> -> vector<64x256xf32>
    %36 = arith.addf %30, %35 : vector<64x256xf32>
    %c1_40 = arith.constant 1 : index
    %c2_41 = arith.constant 2 : index
    %c0_42 = arith.constant 0 : index
    %37 = vector.load %arg5[%c1_40, %c2_41, %c0_42] : memref<10x10x256xbf16, #tpu.memory_space<vmem>>, vector<8x8x256xbf16>
    %38 = vector.shape_cast %37 : vector<8x8x256xbf16> to vector<64x256xbf16>
    %c5 = arith.constant 5 : index
    %c0_43 = arith.constant 0 : index
    %c0_44 = arith.constant 0 : index
    %39 = vector.load %arg2[%c5, %c0_43, %c0_44] : memref<9x256x256xbf16, #tpu.memory_space<vmem>>, vector<1x256x256xbf16>
    %40 = vector.shape_cast %39 : vector<1x256x256xbf16> to vector<256x256xbf16>
    %cst_45 = arith.constant dense<0.000000e+00> : vector<64x256xf32>
    %41 = tpu.matmul %38, %40, %cst_45 {dimension_numbers = #tpu.dot_dimension_numbers<[1], [0], [0], [1], [0, 0, 1, 1], [], []>} : vector<64x256xbf16>, vector<256x256xbf16>, vector<64x256xf32> -> vector<64x256xf32>
    %42 = arith.addf %36, %41 : vector<64x256xf32>
    %c2_46 = arith.constant 2 : index
    %c0_47 = arith.constant 0 : index
    %c0_48 = arith.constant 0 : index
    %43 = vector.load %arg5[%c2_46, %c0_47, %c0_48] : memref<10x10x256xbf16, #tpu.memory_space<vmem>>, vector<8x8x256xbf16>
    %44 = vector.shape_cast %43 : vector<8x8x256xbf16> to vector<64x256xbf16>
    %c6 = arith.constant 6 : index
    %c0_49 = arith.constant 0 : index
    %c0_50 = arith.constant 0 : index
    %45 = vector.load %arg2[%c6, %c0_49, %c0_50] : memref<9x256x256xbf16, #tpu.memory_space<vmem>>, vector<1x256x256xbf16>
    %46 = vector.shape_cast %45 : vector<1x256x256xbf16> to vector<256x256xbf16>
    %cst_51 = arith.constant dense<0.000000e+00> : vector<64x256xf32>
    %47 = tpu.matmul %44, %46, %cst_51 {dimension_numbers = #tpu.dot_dimension_numbers<[1], [0], [0], [1], [0, 0, 1, 1], [], []>} : vector<64x256xbf16>, vector<256x256xbf16>, vector<64x256xf32> -> vector<64x256xf32>
    %48 = arith.addf %42, %47 : vector<64x256xf32>
    %c2_52 = arith.constant 2 : index
    %c1_53 = arith.constant 1 : index
    %c0_54 = arith.constant 0 : index
    %49 = vector.load %arg5[%c2_52, %c1_53, %c0_54] : memref<10x10x256xbf16, #tpu.memory_space<vmem>>, vector<8x8x256xbf16>
    %50 = vector.shape_cast %49 : vector<8x8x256xbf16> to vector<64x256xbf16>
    %c7 = arith.constant 7 : index
    %c0_55 = arith.constant 0 : index
    %c0_56 = arith.constant 0 : index
    %51 = vector.load %arg2[%c7, %c0_55, %c0_56] : memref<9x256x256xbf16, #tpu.memory_space<vmem>>, vector<1x256x256xbf16>
    %52 = vector.shape_cast %51 : vector<1x256x256xbf16> to vector<256x256xbf16>
    %cst_57 = arith.constant dense<0.000000e+00> : vector<64x256xf32>
    %53 = tpu.matmul %50, %52, %cst_57 {dimension_numbers = #tpu.dot_dimension_numbers<[1], [0], [0], [1], [0, 0, 1, 1], [], []>} : vector<64x256xbf16>, vector<256x256xbf16>, vector<64x256xf32> -> vector<64x256xf32>
    %54 = arith.addf %48, %53 : vector<64x256xf32>
    %c2_58 = arith.constant 2 : index
    %c2_59 = arith.constant 2 : index
    %c0_60 = arith.constant 0 : index
    %55 = vector.load %arg5[%c2_58, %c2_59, %c0_60] : memref<10x10x256xbf16, #tpu.memory_space<vmem>>, vector<8x8x256xbf16>
    %56 = vector.shape_cast %55 : vector<8x8x256xbf16> to vector<64x256xbf16>
    %c8 = arith.constant 8 : index
    %c0_61 = arith.constant 0 : index
    %c0_62 = arith.constant 0 : index
    %57 = vector.load %arg2[%c8, %c0_61, %c0_62] : memref<9x256x256xbf16, #tpu.memory_space<vmem>>, vector<1x256x256xbf16>
    %58 = vector.shape_cast %57 : vector<1x256x256xbf16> to vector<256x256xbf16>
    %cst_63 = arith.constant dense<0.000000e+00> : vector<64x256xf32>
    %59 = tpu.matmul %56, %58, %cst_63 {dimension_numbers = #tpu.dot_dimension_numbers<[1], [0], [0], [1], [0, 0, 1, 1], [], []>} : vector<64x256xbf16>, vector<256x256xbf16>, vector<64x256xf32> -> vector<64x256xf32>
    %60 = arith.addf %54, %59 : vector<64x256xf32>
    %c0_64 = arith.constant 0 : index
    %c0_65 = arith.constant 0 : index
    %c0_66 = arith.constant 0 : index
    %61 = vector.load %arg3[%c0_64, %c0_65, %c0_66] : memref<1x64x256xf32, #tpu.memory_space<vmem>>, vector<1x64x256xf32>
    %62 = vector.shape_cast %61 : vector<1x64x256xf32> to vector<64x256xf32>
    %63 = vector.shape_cast %60 : vector<64x256xf32> to vector<1x64x256xf32>
    tpu.vector_store %arg3[%c0_64, %c0_65, %c0_66], %63 {strides = array<i32>} : memref<1x64x256xf32, #tpu.memory_space<vmem>>, vector<1x64x256xf32>,
    %cst_67 = arith.constant dense<0.000000e+00> : vector<256xf32>
    %64 = vector.multi_reduction <add>, %60, %cst_67 [0] : vector<64x256xf32> to vector<256xf32>
    %65 = vector.shape_cast %64 : vector<256xf32> to vector<1x256xf32>
    %c0_68 = arith.constant 0 : index
    %c0_69 = arith.constant 0 : index
    %c0_70 = arith.constant 0 : index
    %66 = vector.load %arg4[%c0_68, %c0_69, %c0_70] : memref<1x2x256xf32, #tpu.memory_space<vmem>>, vector<1x1x256xf32>
    %67 = vector.shape_cast %66 : vector<1x1x256xf32> to vector<1x256xf32>
    %68 = vector.shape_cast %65 : vector<1x256xf32> to vector<1x1x256xf32>
    tpu.vector_store %arg4[%c0_68, %c0_69, %c0_70], %68 {strides = array<i32>} : memref<1x2x256xf32, #tpu.memory_space<vmem>>, vector<1x1x256xf32>,
    %69 = arith.mulf %60, %60 : vector<64x256xf32>
    %cst_71 = arith.constant dense<0.000000e+00> : vector<256xf32>
    %70 = vector.multi_reduction <add>, %69, %cst_71 [0] : vector<64x256xf32> to vector<256xf32>
    %71 = vector.shape_cast %70 : vector<256xf32> to vector<1x256xf32>
    %c0_72 = arith.constant 0 : index
    %c1_73 = arith.constant 1 : index
    %c0_74 = arith.constant 0 : index
    %72 = vector.load %arg4[%c0_72, %c1_73, %c0_74] : memref<1x2x256xf32, #tpu.memory_space<vmem>>, vector<1x1x256xf32>
    %73 = vector.shape_cast %72 : vector<1x1x256xf32> to vector<1x256xf32>
    %74 = vector.shape_cast %71 : vector<1x256xf32> to vector<1x1x256xf32>
    tpu.vector_store %arg4[%c0_72, %c1_73, %c0_74], %74 {strides = array<i32>} : memref<1x2x256xf32, #tpu.memory_space<vmem>>, vector<1x1x256xf32>,
    return
  }
  func.func @transform_0(%arg0: i32) -> (i32, i32, i32) {
    %c0_i32 = arith.constant 0 : i32
    %c0_i32_0 = arith.constant 0 : i32
    %c0_i32_1 = arith.constant 0 : i32
    return %arg0, %c0_i32, %c0_i32_0 : i32, i32, i32
  }
  func.func @transform_1(%arg0: i32) -> (i32, i32, i32) {
    %c0_i32 = arith.constant 0 : i32
    %c0_i32_0 = arith.constant 0 : i32
    %c0_i32_1 = arith.constant 0 : i32
    %c0_i32_2 = arith.constant 0 : i32
    return %c0_i32, %c0_i32_0, %c0_i32_1 : i32, i32, i32
  }
  func.func @transform_2(%arg0: i32) -> (i32, i32, i32) {
    %c0_i32 = arith.constant 0 : i32
    %c0_i32_0 = arith.constant 0 : i32
    %c0_i32_1 = arith.constant 0 : i32
    return %arg0, %c0_i32, %c0_i32_0 : i32, i32, i32
  }
  func.func @transform_3(%arg0: i32) -> (i32, i32, i32) {
    %c0_i32 = arith.constant 0 : i32
    %c0_i32_0 = arith.constant 0 : i32
    %c0_i32_1 = arith.constant 0 : i32
    return %arg0, %c0_i32, %c0_i32_0 : i32, i32, i32
  }
}

module attributes {stable_mosaic.version = 11 : i64} {
  func.func @_bn_relu_conv_stats_kernel(%arg0: i32, %arg1: memref<1x64x256xf32, #tpu.memory_space<vmem>>, %arg2: memref<1x256xf32, #tpu.memory_space<vmem>>, %arg3: memref<1x256xf32, #tpu.memory_space<vmem>>, %arg4: memref<9x256x256xbf16, #tpu.memory_space<vmem>>, %arg5: memref<1x64x256xf32, #tpu.memory_space<vmem>>, %arg6: memref<1x2x256xf32, #tpu.memory_space<vmem>>, %arg7: memref<10x10x256xbf16, #tpu.memory_space<vmem>>) attributes {dimension_semantics = [#tpu.dimension_semantics<parallel>], iteration_bounds = array<i64: 2>, scalar_prefetch = 0 : i64, scratch_operands = 1 : i64, tpu.core_type = #tpu.core_type<tc>, window_params = [{transform_indices = @transform_0, window_bounds = array<i64: 1, 64, 256>}, {pipeline_mode = #tpu.pipeline_mode<synchronous>, transform_indices = @transform_1, window_bounds = array<i64: 1, 256>}, {pipeline_mode = #tpu.pipeline_mode<synchronous>, transform_indices = @transform_2, window_bounds = array<i64: 1, 256>}, {pipeline_mode = #tpu.pipeline_mode<synchronous>, transform_indices = @transform_3, window_bounds = array<i64: 9, 256, 256>}, {transform_indices = @transform_4, window_bounds = array<i64: 1, 64, 256>}, {transform_indices = @transform_5, window_bounds = array<i64: 1, 2, 256>}]} {
    %c0 = arith.constant 0 : index
    %c0_0 = arith.constant 0 : index
    %c0_1 = arith.constant 0 : index
    %0 = vector.load %arg1[%c0, %c0_0, %c0_1] : memref<1x64x256xf32, #tpu.memory_space<vmem>>, vector<1x64x256xf32>
    %1 = vector.shape_cast %0 : vector<1x64x256xf32> to vector<64x256xf32>
    %c0_2 = arith.constant 0 : index
    %c0_3 = arith.constant 0 : index
    %2 = vector.load %arg2[%c0_2, %c0_3] : memref<1x256xf32, #tpu.memory_space<vmem>>, vector<1x256xf32>
    %3 = vector.broadcast %2 : vector<1x256xf32> to vector<64x256xf32>
    %4 = arith.mulf %1, %3 : vector<64x256xf32>
    %c0_4 = arith.constant 0 : index
    %c0_5 = arith.constant 0 : index
    %5 = vector.load %arg3[%c0_4, %c0_5] : memref<1x256xf32, #tpu.memory_space<vmem>>, vector<1x256xf32>
    %6 = vector.broadcast %5 : vector<1x256xf32> to vector<64x256xf32>
    %7 = arith.addf %4, %6 : vector<64x256xf32>
    %cst = arith.constant 0.000000e+00 : f32
    %8 = vector.broadcast %cst : f32 to vector<64x256xf32>
    %9 = arith.maximumf %7, %8 : vector<64x256xf32>
    %cst_6 = arith.constant 0.000000e+00 : bf16
    %10 = vector.broadcast %cst_6 : bf16 to vector<10x10x256xbf16>
    %c0_7 = arith.constant 0 : index
    %c0_8 = arith.constant 0 : index
    %c0_9 = arith.constant 0 : index
    %11 = vector.load %arg7[%c0_7, %c0_8, %c0_9] : memref<10x10x256xbf16, #tpu.memory_space<vmem>>, vector<10x10x256xbf16>
    tpu.vector_store %arg7[%c0_7, %c0_8, %c0_9], %10 {strides = array<i32>} : memref<10x10x256xbf16, #tpu.memory_space<vmem>>, vector<10x10x256xbf16>,
    %12 = vector.shape_cast %9 : vector<64x256xf32> to vector<8x8x256xf32>
    %13 = arith.truncf %12 : vector<8x8x256xf32> to vector<8x8x256xbf16>
    %c1 = arith.constant 1 : index
    %c1_10 = arith.constant 1 : index
    %c0_11 = arith.constant 0 : index
    %14 = vector.load %arg7[%c1, %c1_10, %c0_11] : memref<10x10x256xbf16, #tpu.memory_space<vmem>>, vector<8x8x256xbf16>
    tpu.vector_store %arg7[%c1, %c1_10, %c0_11], %13 {strides = array<i32>} : memref<10x10x256xbf16, #tpu.memory_space<vmem>>, vector<8x8x256xbf16>,
    %cst_12 = arith.constant 0.000000e+00 : f32
    %15 = vector.broadcast %cst_12 : f32 to vector<64x256xf32>
    %c0_13 = arith.constant 0 : index
    %c0_14 = arith.constant 0 : index
    %c0_15 = arith.constant 0 : index
    %16 = vector.load %arg7[%c0_13, %c0_14, %c0_15] : memref<10x10x256xbf16, #tpu.memory_space<vmem>>, vector<8x8x256xbf16>
    %17 = vector.shape_cast %16 : vector<8x8x256xbf16> to vector<64x256xbf16>
    %c0_16 = arith.constant 0 : index
    %c0_17 = arith.constant 0 : index
    %c0_18 = arith.constant 0 : index
    %18 = vector.load %arg4[%c0_16, %c0_17, %c0_18] : memref<9x256x256xbf16, #tpu.memory_space<vmem>>, vector<1x256x256xbf16>
    %19 = vector.shape_cast %18 : vector<1x256x256xbf16> to vector<256x256xbf16>
    %cst_19 = arith.constant dense<0.000000e+00> : vector<64x256xf32>
    %20 = tpu.matmul %17, %19, %cst_19 {dimension_numbers = #tpu.dot_dimension_numbers<[1], [0], [0], [1], [0, 0, 1, 1], [], []>} : vector<64x256xbf16>, vector<256x256xbf16>, vector<64x256xf32> -> vector<64x256xf32>
    %21 = arith.addf %15, %20 : vector<64x256xf32>
    %c0_20 = arith.constant 0 : index
    %c1_21 = arith.constant 1 : index
    %c0_22 = arith.constant 0 : index
    %22 = vector.load %arg7[%c0_20, %c1_21, %c0_22] : memref<10x10x256xbf16, #tpu.memory_space<vmem>>, vector<8x8x256xbf16>
    %23 = vector.shape_cast %22 : vector<8x8x256xbf16> to vector<64x256xbf16>
    %c1_23 = arith.constant 1 : index
    %c0_24 = arith.constant 0 : index
    %c0_25 = arith.constant 0 : index
    %24 = vector.load %arg4[%c1_23, %c0_24, %c0_25] : memref<9x256x256xbf16, #tpu.memory_space<vmem>>, vector<1x256x256xbf16>
    %25 = vector.shape_cast %24 : vector<1x256x256xbf16> to vector<256x256xbf16>
    %cst_26 = arith.constant dense<0.000000e+00> : vector<64x256xf32>
    %26 = tpu.matmul %23, %25, %cst_26 {dimension_numbers = #tpu.dot_dimension_numbers<[1], [0], [0], [1], [0, 0, 1, 1], [], []>} : vector<64x256xbf16>, vector<256x256xbf16>, vector<64x256xf32> -> vector<64x256xf32>
    %27 = arith.addf %21, %26 : vector<64x256xf32>
    %c0_27 = arith.constant 0 : index
    %c2 = arith.constant 2 : index
    %c0_28 = arith.constant 0 : index
    %28 = vector.load %arg7[%c0_27, %c2, %c0_28] : memref<10x10x256xbf16, #tpu.memory_space<vmem>>, vector<8x8x256xbf16>
    %29 = vector.shape_cast %28 : vector<8x8x256xbf16> to vector<64x256xbf16>
    %c2_29 = arith.constant 2 : index
    %c0_30 = arith.constant 0 : index
    %c0_31 = arith.constant 0 : index
    %30 = vector.load %arg4[%c2_29, %c0_30, %c0_31] : memref<9x256x256xbf16, #tpu.memory_space<vmem>>, vector<1x256x256xbf16>
    %31 = vector.shape_cast %30 : vector<1x256x256xbf16> to vector<256x256xbf16>
    %cst_32 = arith.constant dense<0.000000e+00> : vector<64x256xf32>
    %32 = tpu.matmul %29, %31, %cst_32 {dimension_numbers = #tpu.dot_dimension_numbers<[1], [0], [0], [1], [0, 0, 1, 1], [], []>} : vector<64x256xbf16>, vector<256x256xbf16>, vector<64x256xf32> -> vector<64x256xf32>
    %33 = arith.addf %27, %32 : vector<64x256xf32>
    %c1_33 = arith.constant 1 : index
    %c0_34 = arith.constant 0 : index
    %c0_35 = arith.constant 0 : index
    %34 = vector.load %arg7[%c1_33, %c0_34, %c0_35] : memref<10x10x256xbf16, #tpu.memory_space<vmem>>, vector<8x8x256xbf16>
    %35 = vector.shape_cast %34 : vector<8x8x256xbf16> to vector<64x256xbf16>
    %c3 = arith.constant 3 : index
    %c0_36 = arith.constant 0 : index
    %c0_37 = arith.constant 0 : index
    %36 = vector.load %arg4[%c3, %c0_36, %c0_37] : memref<9x256x256xbf16, #tpu.memory_space<vmem>>, vector<1x256x256xbf16>
    %37 = vector.shape_cast %36 : vector<1x256x256xbf16> to vector<256x256xbf16>
    %cst_38 = arith.constant dense<0.000000e+00> : vector<64x256xf32>
    %38 = tpu.matmul %35, %37, %cst_38 {dimension_numbers = #tpu.dot_dimension_numbers<[1], [0], [0], [1], [0, 0, 1, 1], [], []>} : vector<64x256xbf16>, vector<256x256xbf16>, vector<64x256xf32> -> vector<64x256xf32>
    %39 = arith.addf %33, %38 : vector<64x256xf32>
    %c1_39 = arith.constant 1 : index
    %c1_40 = arith.constant 1 : index
    %c0_41 = arith.constant 0 : index
    %40 = vector.load %arg7[%c1_39, %c1_40, %c0_41] : memref<10x10x256xbf16, #tpu.memory_space<vmem>>, vector<8x8x256xbf16>
    %41 = vector.shape_cast %40 : vector<8x8x256xbf16> to vector<64x256xbf16>
    %c4 = arith.constant 4 : index
    %c0_42 = arith.constant 0 : index
    %c0_43 = arith.constant 0 : index
    %42 = vector.load %arg4[%c4, %c0_42, %c0_43] : memref<9x256x256xbf16, #tpu.memory_space<vmem>>, vector<1x256x256xbf16>
    %43 = vector.shape_cast %42 : vector<1x256x256xbf16> to vector<256x256xbf16>
    %cst_44 = arith.constant dense<0.000000e+00> : vector<64x256xf32>
    %44 = tpu.matmul %41, %43, %cst_44 {dimension_numbers = #tpu.dot_dimension_numbers<[1], [0], [0], [1], [0, 0, 1, 1], [], []>} : vector<64x256xbf16>, vector<256x256xbf16>, vector<64x256xf32> -> vector<64x256xf32>
    %45 = arith.addf %39, %44 : vector<64x256xf32>
    %c1_45 = arith.constant 1 : index
    %c2_46 = arith.constant 2 : index
    %c0_47 = arith.constant 0 : index
    %46 = vector.load %arg7[%c1_45, %c2_46, %c0_47] : memref<10x10x256xbf16, #tpu.memory_space<vmem>>, vector<8x8x256xbf16>
    %47 = vector.shape_cast %46 : vector<8x8x256xbf16> to vector<64x256xbf16>
    %c5 = arith.constant 5 : index
    %c0_48 = arith.constant 0 : index
    %c0_49 = arith.constant 0 : index
    %48 = vector.load %arg4[%c5, %c0_48, %c0_49] : memref<9x256x256xbf16, #tpu.memory_space<vmem>>, vector<1x256x256xbf16>
    %49 = vector.shape_cast %48 : vector<1x256x256xbf16> to vector<256x256xbf16>
    %cst_50 = arith.constant dense<0.000000e+00> : vector<64x256xf32>
    %50 = tpu.matmul %47, %49, %cst_50 {dimension_numbers = #tpu.dot_dimension_numbers<[1], [0], [0], [1], [0, 0, 1, 1], [], []>} : vector<64x256xbf16>, vector<256x256xbf16>, vector<64x256xf32> -> vector<64x256xf32>
    %51 = arith.addf %45, %50 : vector<64x256xf32>
    %c2_51 = arith.constant 2 : index
    %c0_52 = arith.constant 0 : index
    %c0_53 = arith.constant 0 : index
    %52 = vector.load %arg7[%c2_51, %c0_52, %c0_53] : memref<10x10x256xbf16, #tpu.memory_space<vmem>>, vector<8x8x256xbf16>
    %53 = vector.shape_cast %52 : vector<8x8x256xbf16> to vector<64x256xbf16>
    %c6 = arith.constant 6 : index
    %c0_54 = arith.constant 0 : index
    %c0_55 = arith.constant 0 : index
    %54 = vector.load %arg4[%c6, %c0_54, %c0_55] : memref<9x256x256xbf16, #tpu.memory_space<vmem>>, vector<1x256x256xbf16>
    %55 = vector.shape_cast %54 : vector<1x256x256xbf16> to vector<256x256xbf16>
    %cst_56 = arith.constant dense<0.000000e+00> : vector<64x256xf32>
    %56 = tpu.matmul %53, %55, %cst_56 {dimension_numbers = #tpu.dot_dimension_numbers<[1], [0], [0], [1], [0, 0, 1, 1], [], []>} : vector<64x256xbf16>, vector<256x256xbf16>, vector<64x256xf32> -> vector<64x256xf32>
    %57 = arith.addf %51, %56 : vector<64x256xf32>
    %c2_57 = arith.constant 2 : index
    %c1_58 = arith.constant 1 : index
    %c0_59 = arith.constant 0 : index
    %58 = vector.load %arg7[%c2_57, %c1_58, %c0_59] : memref<10x10x256xbf16, #tpu.memory_space<vmem>>, vector<8x8x256xbf16>
    %59 = vector.shape_cast %58 : vector<8x8x256xbf16> to vector<64x256xbf16>
    %c7 = arith.constant 7 : index
    %c0_60 = arith.constant 0 : index
    %c0_61 = arith.constant 0 : index
    %60 = vector.load %arg4[%c7, %c0_60, %c0_61] : memref<9x256x256xbf16, #tpu.memory_space<vmem>>, vector<1x256x256xbf16>
    %61 = vector.shape_cast %60 : vector<1x256x256xbf16> to vector<256x256xbf16>
    %cst_62 = arith.constant dense<0.000000e+00> : vector<64x256xf32>
    %62 = tpu.matmul %59, %61, %cst_62 {dimension_numbers = #tpu.dot_dimension_numbers<[1], [0], [0], [1], [0, 0, 1, 1], [], []>} : vector<64x256xbf16>, vector<256x256xbf16>, vector<64x256xf32> -> vector<64x256xf32>
    %63 = arith.addf %57, %62 : vector<64x256xf32>
    %c2_63 = arith.constant 2 : index
    %c2_64 = arith.constant 2 : index
    %c0_65 = arith.constant 0 : index
    %64 = vector.load %arg7[%c2_63, %c2_64, %c0_65] : memref<10x10x256xbf16, #tpu.memory_space<vmem>>, vector<8x8x256xbf16>
    %65 = vector.shape_cast %64 : vector<8x8x256xbf16> to vector<64x256xbf16>
    %c8 = arith.constant 8 : index
    %c0_66 = arith.constant 0 : index
    %c0_67 = arith.constant 0 : index
    %66 = vector.load %arg4[%c8, %c0_66, %c0_67] : memref<9x256x256xbf16, #tpu.memory_space<vmem>>, vector<1x256x256xbf16>
    %67 = vector.shape_cast %66 : vector<1x256x256xbf16> to vector<256x256xbf16>
    %cst_68 = arith.constant dense<0.000000e+00> : vector<64x256xf32>
    %68 = tpu.matmul %65, %67, %cst_68 {dimension_numbers = #tpu.dot_dimension_numbers<[1], [0], [0], [1], [0, 0, 1, 1], [], []>} : vector<64x256xbf16>, vector<256x256xbf16>, vector<64x256xf32> -> vector<64x256xf32>
    %69 = arith.addf %63, %68 : vector<64x256xf32>
    %c0_69 = arith.constant 0 : index
    %c0_70 = arith.constant 0 : index
    %c0_71 = arith.constant 0 : index
    %70 = vector.load %arg5[%c0_69, %c0_70, %c0_71] : memref<1x64x256xf32, #tpu.memory_space<vmem>>, vector<1x64x256xf32>
    %71 = vector.shape_cast %70 : vector<1x64x256xf32> to vector<64x256xf32>
    %72 = vector.shape_cast %69 : vector<64x256xf32> to vector<1x64x256xf32>
    tpu.vector_store %arg5[%c0_69, %c0_70, %c0_71], %72 {strides = array<i32>} : memref<1x64x256xf32, #tpu.memory_space<vmem>>, vector<1x64x256xf32>,
    %cst_72 = arith.constant dense<0.000000e+00> : vector<256xf32>
    %73 = vector.multi_reduction <add>, %69, %cst_72 [0] : vector<64x256xf32> to vector<256xf32>
    %74 = vector.shape_cast %73 : vector<256xf32> to vector<1x256xf32>
    %c0_73 = arith.constant 0 : index
    %c0_74 = arith.constant 0 : index
    %c0_75 = arith.constant 0 : index
    %75 = vector.load %arg6[%c0_73, %c0_74, %c0_75] : memref<1x2x256xf32, #tpu.memory_space<vmem>>, vector<1x1x256xf32>
    %76 = vector.shape_cast %75 : vector<1x1x256xf32> to vector<1x256xf32>
    %77 = vector.shape_cast %74 : vector<1x256xf32> to vector<1x1x256xf32>
    tpu.vector_store %arg6[%c0_73, %c0_74, %c0_75], %77 {strides = array<i32>} : memref<1x2x256xf32, #tpu.memory_space<vmem>>, vector<1x1x256xf32>,
    %78 = arith.mulf %69, %69 : vector<64x256xf32>
    %cst_76 = arith.constant dense<0.000000e+00> : vector<256xf32>
    %79 = vector.multi_reduction <add>, %78, %cst_76 [0] : vector<64x256xf32> to vector<256xf32>
    %80 = vector.shape_cast %79 : vector<256xf32> to vector<1x256xf32>
    %c0_77 = arith.constant 0 : index
    %c1_78 = arith.constant 1 : index
    %c0_79 = arith.constant 0 : index
    %81 = vector.load %arg6[%c0_77, %c1_78, %c0_79] : memref<1x2x256xf32, #tpu.memory_space<vmem>>, vector<1x1x256xf32>
    %82 = vector.shape_cast %81 : vector<1x1x256xf32> to vector<1x256xf32>
    %83 = vector.shape_cast %80 : vector<1x256xf32> to vector<1x1x256xf32>
    tpu.vector_store %arg6[%c0_77, %c1_78, %c0_79], %83 {strides = array<i32>} : memref<1x2x256xf32, #tpu.memory_space<vmem>>, vector<1x1x256xf32>,
    return
  }
  func.func @transform_0(%arg0: i32) -> (i32, i32, i32) {
    %c0_i32 = arith.constant 0 : i32
    %c0_i32_0 = arith.constant 0 : i32
    %c0_i32_1 = arith.constant 0 : i32
    return %arg0, %c0_i32, %c0_i32_0 : i32, i32, i32
  }
  func.func @transform_1(%arg0: i32) -> (i32, i32) {
    %c0_i32 = arith.constant 0 : i32
    %c0_i32_0 = arith.constant 0 : i32
    %c0_i32_1 = arith.constant 0 : i32
    return %c0_i32, %c0_i32_0 : i32, i32
  }
  func.func @transform_2(%arg0: i32) -> (i32, i32) {
    %c0_i32 = arith.constant 0 : i32
    %c0_i32_0 = arith.constant 0 : i32
    %c0_i32_1 = arith.constant 0 : i32
    return %c0_i32, %c0_i32_0 : i32, i32
  }
  func.func @transform_3(%arg0: i32) -> (i32, i32, i32) {
    %c0_i32 = arith.constant 0 : i32
    %c0_i32_0 = arith.constant 0 : i32
    %c0_i32_1 = arith.constant 0 : i32
    %c0_i32_2 = arith.constant 0 : i32
    return %c0_i32, %c0_i32_0, %c0_i32_1 : i32, i32, i32
  }
  func.func @transform_4(%arg0: i32) -> (i32, i32, i32) {
    %c0_i32 = arith.constant 0 : i32
    %c0_i32_0 = arith.constant 0 : i32
    %c0_i32_1 = arith.constant 0 : i32
    return %arg0, %c0_i32, %c0_i32_0 : i32, i32, i32
  }
  func.func @transform_5(%arg0: i32) -> (i32, i32, i32) {
    %c0_i32 = arith.constant 0 : i32
    %c0_i32_0 = arith.constant 0 : i32
    %c0_i32_1 = arith.constant 0 : i32
    return %arg0, %c0_i32, %c0_i32_0 : i32, i32, i32
  }
}

module attributes {stable_mosaic.version = 11 : i64} {
  func.func @_bn_res_relu_kernel(%arg0: i32, %arg1: memref<1x64x256xf32, #tpu.memory_space<vmem>>, %arg2: memref<1x256xf32, #tpu.memory_space<vmem>>, %arg3: memref<1x256xf32, #tpu.memory_space<vmem>>, %arg4: memref<1x64x256xf32, #tpu.memory_space<vmem>>, %arg5: memref<1x64x256xf32, #tpu.memory_space<vmem>>) attributes {dimension_semantics = [#tpu.dimension_semantics<parallel>], iteration_bounds = array<i64: 2>, scalar_prefetch = 0 : i64, scratch_operands = 0 : i64, tpu.core_type = #tpu.core_type<tc>, window_params = [{transform_indices = @transform_0, window_bounds = array<i64: 1, 64, 256>}, {pipeline_mode = #tpu.pipeline_mode<synchronous>, transform_indices = @transform_1, window_bounds = array<i64: 1, 256>}, {pipeline_mode = #tpu.pipeline_mode<synchronous>, transform_indices = @transform_2, window_bounds = array<i64: 1, 256>}, {transform_indices = @transform_3, window_bounds = array<i64: 1, 64, 256>}, {transform_indices = @transform_4, window_bounds = array<i64: 1, 64, 256>}]} {
    %c0 = arith.constant 0 : index
    %c0_0 = arith.constant 0 : index
    %c0_1 = arith.constant 0 : index
    %0 = vector.load %arg1[%c0, %c0_0, %c0_1] : memref<1x64x256xf32, #tpu.memory_space<vmem>>, vector<1x64x256xf32>
    %1 = vector.shape_cast %0 : vector<1x64x256xf32> to vector<64x256xf32>
    %c0_2 = arith.constant 0 : index
    %c0_3 = arith.constant 0 : index
    %2 = vector.load %arg2[%c0_2, %c0_3] : memref<1x256xf32, #tpu.memory_space<vmem>>, vector<1x256xf32>
    %3 = vector.broadcast %2 : vector<1x256xf32> to vector<64x256xf32>
    %4 = arith.mulf %1, %3 : vector<64x256xf32>
    %c0_4 = arith.constant 0 : index
    %c0_5 = arith.constant 0 : index
    %5 = vector.load %arg3[%c0_4, %c0_5] : memref<1x256xf32, #tpu.memory_space<vmem>>, vector<1x256xf32>
    %6 = vector.broadcast %5 : vector<1x256xf32> to vector<64x256xf32>
    %7 = arith.addf %4, %6 : vector<64x256xf32>
    %c0_6 = arith.constant 0 : index
    %c0_7 = arith.constant 0 : index
    %c0_8 = arith.constant 0 : index
    %8 = vector.load %arg4[%c0_6, %c0_7, %c0_8] : memref<1x64x256xf32, #tpu.memory_space<vmem>>, vector<1x64x256xf32>
    %9 = vector.shape_cast %8 : vector<1x64x256xf32> to vector<64x256xf32>
    %10 = arith.addf %7, %9 : vector<64x256xf32>
    %cst = arith.constant 0.000000e+00 : f32
    %11 = vector.broadcast %cst : f32 to vector<64x256xf32>
    %12 = arith.maximumf %10, %11 : vector<64x256xf32>
    %c0_9 = arith.constant 0 : index
    %c0_10 = arith.constant 0 : index
    %c0_11 = arith.constant 0 : index
    %13 = vector.load %arg5[%c0_9, %c0_10, %c0_11] : memref<1x64x256xf32, #tpu.memory_space<vmem>>, vector<1x64x256xf32>
    %14 = vector.shape_cast %13 : vector<1x64x256xf32> to vector<64x256xf32>
    %15 = vector.shape_cast %12 : vector<64x256xf32> to vector<1x64x256xf32>
    tpu.vector_store %arg5[%c0_9, %c0_10, %c0_11], %15 {strides = array<i32>} : memref<1x64x256xf32, #tpu.memory_space<vmem>>, vector<1x64x256xf32>,
    return
  }
  func.func @transform_0(%arg0: i32) -> (i32, i32, i32) {
    %c0_i32 = arith.constant 0 : i32
    %c0_i32_0 = arith.constant 0 : i32
    %c0_i32_1 = arith.constant 0 : i32
    return %arg0, %c0_i32, %c0_i32_0 : i32, i32, i32
  }
  func.func @transform_1(%arg0: i32) -> (i32, i32) {
    %c0_i32 = arith.constant 0 : i32
    %c0_i32_0 = arith.constant 0 : i32
    %c0_i32_1 = arith.constant 0 : i32
    return %c0_i32, %c0_i32_0 : i32, i32
  }
  func.func @transform_2(%arg0: i32) -> (i32, i32) {
    %c0_i32 = arith.constant 0 : i32
    %c0_i32_0 = arith.constant 0 : i32
    %c0_i32_1 = arith.constant 0 : i32
    return %c0_i32, %c0_i32_0 : i32, i32
  }
  func.func @transform_3(%arg0: i32) -> (i32, i32, i32) {
    %c0_i32 = arith.constant 0 : i32
    %c0_i32_0 = arith.constant 0 : i32
    %c0_i32_1 = arith.constant 0 : i32
    return %arg0, %c0_i32, %c0_i32_0 : i32, i32, i32
  }
  func.func @transform_4(%arg0: i32) -> (i32, i32, i32) {
    %c0_i32 = arith.constant 0 : i32
    %c0_i32_0 = arith.constant 0 : i32
    %c0_i32_1 = arith.constant 0 : i32
    return %arg0, %c0_i32, %c0_i32_0 : i32, i32, i32
  }
}

</mosaic_0001>

<llo_original>
// kernel: tile.28
$region0: #{tile.28}
  #allocation0 [shape = 's32[1]{0}', space=sflag, size = 0x4, scoped, tag = 'scoped memory for tile.28']
  %s0 = inlined_call_operand.vmem [shape: f32[32], index: 0, kind: input, shape index: {}]
  %s1 = inlined_call_operand.vmem [shape: f32[8,32], index: 1, kind: output, shape index: {}]
  // Predicated region
  $region2: #{tile.28} parent=0 // pred_check
    _
  $region3: #{tile.28} parent=0 // pred_check_branch
    %3 = sbr.rel (0) target = $region5
  $region4: #{tile.28} parent=0 // pred_region
    _
  $region5: #{tile.28} parent=0 // pred_fallthru
    _
  %v4 = vld [vmem:[%s0] ss:$0 sm:$0xff]
  %5 = vst [vmem:[%s1] sm:$0xff] %v4

// kernel: tile.29
$region0: #{tile.29}
  %s0 = inlined_call_operand.vmem [shape: f32[8,32], index: 0, kind: input, shape index: {}]
  %s1 = inlined_call_operand.vmem [shape: f32[1,256], index: 1, kind: output, shape index: {}]
  $region1: #{tile.29} parent=0
    #allocation0 [shape = 'u8[8192]{0}', space=vmem, size = 0x2000, scoped, tag = 'scoped mem for output reshape']
    %s2 = smov 3
    %v3 = vld [vmem:[%s0] ss:$4 sm:%s2]
    %vm4 = vcmask 261120
    %5 = vst.msk [vmem:[#allocation0] ss:$8 sm:$0x3] %vm4, %v3
    %s6 = scalar_lea.vmem %s0, 3
    %s7 = smov 3
    %v8 = vld [vmem:[%s6] ss:$4 sm:%s7]
    %9 = vrot.lane.b32.xlu0 %v8, 96
    %v10 = vpop.permute.xlu0 %9
    %vm11 = vcmask 1048320
    %12 = vst.msk [vmem:[#allocation0] ss:$8 sm:$0x3] %vm11, %v10
    %s13 = scalar_lea.vmem %s0, 2
    %s14 = smov 3
    %v15 = vld [vmem:[%s13] ss:$4 sm:%s14]
    %16 = vrot.lane.b32.xlu0 %v15, 64
    %v17 = vpop.permute.xlu0 %16
    %vm18 = vcmask 785920
    %19 = vst.msk [vmem:[#allocation0] ss:$8 sm:$0x3] %vm18, %v17
    %s20 = scalar_lea.vmem %s0, 1
    %s21 = smov 3
    %v22 = vld [vmem:[%s20] ss:$4 sm:%s21]
    %23 = vrot.lane.b32.xlu0 %v22, 32
    %v24 = vpop.permute.xlu0 %23
    %vm25 = vcmask 523520
    %26 = vst.msk [vmem:[#allocation0] ss:$8 sm:$0x3] %vm25, %v24
    %s28 = ssub.s32 2, 1
    %v29 = vld [vmem:[#allocation0] sm:%s28]
    %s31 = ssub.s32 2, 1
    %32 = vst [vmem:[%s1] sm:%s31] %v29
    %s33 = scalar_lea.vmem [#allocation0], 8
    %v34 = vld [vmem:[%s33] sm:%s28]
    %s36 = ssub.s32 2, 1
    %s37 = scalar_lea.vmem %s1, 1
    %38 = vst [vmem:[%s37] sm:%s36] %v34

// kernel: basic_block_forward.5
$region0: #{basic_block_forward.5}
  #allocation0 [shape = 'u32[]', space=smem, size = 0x4, offset = 0x4, fixed_abs, tag = 'smem constant byte address 0x4 - core index']
  #allocation1 [shape = 'u32[72,128]{1,0:T(1,128)}', space=vmem, size = 0x9000, scoped, tag = 'internal scratch']
  %s0 = inlined_call_operand.vmem [shape: f32[2,64,256], index: 0, kind: input, shape index: {}]
  %s1 = inlined_call_operand.vmem [shape: f32[1,256], index: 1, kind: input, shape index: {}]
  %s2 = inlined_call_operand.vmem [shape: f32[1,256], index: 2, kind: input, shape index: {}]
  %s3 = inlined_call_operand.vmem [shape: f32[2,64,256], index: 3, kind: input, shape index: {}]
  %s4 = inlined_call_operand.vmem [shape: f32[2,64,256], index: 4, kind: output, shape index: {}]
  %s5 = sld [smem:[#allocation0]]
  $region49: #{basic_block_forward.5} parent=0
    _
  %s7 = ssub.s32 1, %s5
  %s8 = scalar_select 0, %s7, %s5
  loop: start=0, step=1, limit=4
  $region2: #{basic_block_forward.5} parent=0 // loop_pre_header
    _
  $region3: #{basic_block_forward.5} parent=0 // loop_header
    %s10 = sphi 0, %s14
    %p11 = scmp.ge.s32.totalorder %s10, 4
    %s20 = sphi 0, %s22
    %s23 = sphi 0, %s20
    %s24 = sphi 0, %s23
    %s40 = sphi 0, %s24
    %s44 = sphi 0, %s44
    %s46 = sphi 0, %s44
    %s47 = sphi 0, %s46
    %s61 = sphi 0, %s47
    %s65 = sphi 0, %s65
    %s67 = sphi 0, %s65
    %s68 = sphi 0, %s67
    %s82 = sphi 0, %s68
    %s88 = sphi 0, %s90
    %s91 = sphi 0, %s88
    %s92 = sphi 0, %s91
    %s108 = sphi 0, %s92
    %s114 = sphi 0, %s116
    %s117 = sphi 0, %s114
    %s118 = sphi 0, %s117
    %s134 = sphi 0, %s118
  $region4: #{basic_block_forward.5} parent=0 // loop_header_branch
    %13 = sbr.rel (%p11) target = $region8
  $region5: #{basic_block_forward.5} parent=0 // loop_body
    %s15 = ssub.s32 %s10, 1
    %s16 = ssub.s32 %s10, 2
    %s17 = sadd.s32 %s10, 1
    %s18 = ssub.s32 %s10, %s17
    %p19 = scmp.eq.s32.totalorder %s18, 0
    %s21 = sadd.s32 %s20, 1
    %s22 = scalar_select %p19, %s20, %s21
    %p25 = pneg %p19
    %p26 = scmp.eq.s32.totalorder %s10, 1
    %p27 = por %p25, %p26
    %p28 = scmp.ne.s32.totalorder %s20, %s23
    %p29 = scmp.eq.s32.totalorder %s10, 0
    %p30 = por %p28, %p29
    %p31 = scmp.ne.s32.totalorder %s20, %s23
    %p32 = scmp.eq.s32.totalorder %s15, 1
    %p33 = por %p31, %p32
    %p34 = scmp.ne.s32.totalorder %s23, %s24
    %p35 = scmp.eq.s32.totalorder %s15, 0
    %p36 = por %p34, %p35
    %p37 = scmp.ne.s32.totalorder %s23, %s24
    %p38 = scmp.eq.s32.totalorder %s16, 1
    %p39 = por %p37, %p38
    %p41 = scmp.ne.s32.totalorder %s24, %s40
    %p42 = scmp.eq.s32.totalorder %s16, 0
    %p43 = por %p41, %p42
    %s45 = sadd.s32 %s44, 1
    %p48 = scmp.eq.s32.totalorder %s10, 1
    %p49 = scmp.ne.s32.totalorder %s44, %s46
    %p50 = scmp.eq.s32.totalorder %s10, 0
    %p51 = por %p49, %p50
    %p52 = scmp.ne.s32.totalorder %s44, %s46
    %p53 = scmp.eq.s32.totalorder %s15, 1
    %p54 = por %p52, %p53
    %p55 = scmp.ne.s32.totalorder %s46, %s47
    %p56 = scmp.eq.s32.totalorder %s15, 0
    %p57 = por %p55, %p56
    %p58 = scmp.ne.s32.totalorder %s46, %s47
    %p59 = scmp.eq.s32.totalorder %s16, 1
    %p60 = por %p58, %p59
    %p62 = scmp.ne.s32.totalorder %s47, %s61
    %p63 = scmp.eq.s32.totalorder %s16, 0
    %p64 = por %p62, %p63
    %s66 = sadd.s32 %s65, 1
    %p69 = scmp.eq.s32.totalorder %s10, 1
    %p70 = scmp.ne.s32.totalorder %s65, %s67
    %p71 = scmp.eq.s32.totalorder %s10, 0
    %p72 = por %p70, %p71
    %p73 = scmp.ne.s32.totalorder %s65, %s67
    %p74 = scmp.eq.s32.totalorder %s15, 1
    %p75 = por %p73, %p74
    %p76 = scmp.ne.s32.totalorder %s67, %s68
    %p77 = scmp.eq.s32.totalorder %s15, 0
    %p78 = por %p76, %p77
    %p79 = scmp.ne.s32.totalorder %s67, %s68
    %p80 = scmp.eq.s32.totalorder %s16, 1
    %p81 = por %p79, %p80
    %p83 = scmp.ne.s32.totalorder %s68, %s82
    %p84 = scmp.eq.s32.totalorder %s16, 0
    %p85 = por %p83, %p84
    %s86 = ssub.s32 %s10, %s17
    %p87 = scmp.eq.s32.totalorder %s86, 0
    %s89 = sadd.s32 %s88, 1
    %s90 = scalar_select %p87, %s88, %s89
    %p93 = pneg %p87
    %p94 = scmp.eq.s32.totalorder %s10, 1
    %p95 = por %p93, %p94
    %p96 = scmp.ne.s32.totalorder %s88, %s91
    %p97 = scmp.eq.s32.totalorder %s10, 0
    %p98 = por %p96, %p97
    %p99 = scmp.ne.s32.totalorder %s88, %s91
    %p100 = scmp.eq.s32.totalorder %s15, 1
    %p101 = por %p99, %p100
    %p102 = scmp.ne.s32.totalorder %s91, %s92
    %p103 = scmp.eq.s32.totalorder %s15, 0
    %p104 = por %p102, %p103
    %p105 = scmp.ne.s32.totalorder %s91, %s92
    %p106 = scmp.eq.s32.totalorder %s16, 1
    %p107 = por %p105, %p106
    %p109 = scmp.ne.s32.totalorder %s92, %s108
    %p110 = scmp.eq.s32.totalorder %s16, 0
    %p111 = por %p109, %p110
    %s112 = ssub.s32 %s10, %s17
    %p113 = scmp.eq.s32.totalorder %s112, 0
    %s115 = sadd.s32 %s114, 1
    %s116 = scalar_select %p113, %s114, %s115
    %p119 = pneg %p113
    %p120 = scmp.eq.s32.totalorder %s10, 1
    %p121 = por %p119, %p120
    %p122 = scmp.ne.s32.totalorder %s114, %s117
    %p123 = scmp.eq.s32.totalorder %s10, 0
    %p124 = por %p122, %p123
    %p125 = scmp.ne.s32.totalorder %s114, %s117
    %p126 = scmp.eq.s32.totalorder %s15, 1
    %p127 = por %p125, %p126
    %p128 = scmp.ne.s32.totalorder %s117, %s118
    %p129 = scmp.eq.s32.totalorder %s15, 0
    %p130 = por %p128, %p129
    %p131 = scmp.ne.s32.totalorder %s117, %s118
    %p132 = scmp.eq.s32.totalorder %s16, 1
    %p133 = por %p131, %p132
    %p135 = scmp.ne.s32.totalorder %s118, %s134
    %p136 = scmp.eq.s32.totalorder %s16, 0
    %p137 = por %p135, %p136
    %p138 = scmp.le.s32.totalorder 1, %s10
    %p139 = scmp.lt.s32.totalorder %s10, 3
    %p140 = pnand %p138, %p139
    %p141 = pneg %p140
    // Predicated region
    $region9: #{basic_block_forward.5} parent=5 // pred_check
      _
    $region10: #{basic_block_forward.5} parent=5 // pred_check_branch
      %143 = sbr.rel (%p140) target = $region12
    $region11: #{basic_block_forward.5} parent=5 // pred_region
      %s144 = ssub.s32 %s10, 1
      // Predicated region
      $region13: #{basic_block_forward.5} parent=11 // pred_check
        %p145 = pneg %p57
      $region14: #{basic_block_forward.5} parent=11 // pred_check_branch
        %147 = sbr.rel (%p145) target = $region16
      $region15: #{basic_block_forward.5} parent=11 // pred_region
        _
      $region16: #{basic_block_forward.5} parent=11 // pred_fallthru
        _
      // Predicated region
      $region17: #{basic_block_forward.5} parent=11 // pred_check
        %p148 = pneg %p78
      $region18: #{basic_block_forward.5} parent=11 // pred_check_branch
        %150 = sbr.rel (%p148) target = $region20
      $region19: #{basic_block_forward.5} parent=11 // pred_region
        _
      $region20: #{basic_block_forward.5} parent=11 // pred_fallthru
        _
    $region12: #{basic_block_forward.5} parent=5 // pred_fallthru
      _
    %p151 = scmp.lt.s32.totalorder %s10, 2
    // Predicated region
    $region21: #{basic_block_forward.5} parent=5 // pred_check
      %p152 = pneg %p151
    $region22: #{basic_block_forward.5} parent=5 // pred_check_branch
      %154 = sbr.rel (%p152) target = $region24
    $region23: #{basic_block_forward.5} parent=5 // pred_region
      // Predicated region
      $region25: #{basic_block_forward.5} parent=23 // pred_check
        %p155 = pneg %p30
      $region26: #{basic_block_forward.5} parent=23 // pred_check_branch
        %157 = sbr.rel (%p155) target = $region28
      $region27: #{basic_block_forward.5} parent=23 // pred_region
        %p158 = scmp.lt.s32.totalorder %s10, 1
        %s159 = scalar_select %p158, %s10, 1
        %s160 = smul.addr %s159, 16
        %s161 = smul.addr %s160, 8
        %s162 = scalar_lea.vmem %s0, %s161
      $region28: #{basic_block_forward.5} parent=23 // pred_fallthru
        _
      // Predicated region
      $region29: #{basic_block_forward.5} parent=23 // pred_check
        %p163 = pneg %p98
      $region30: #{basic_block_forward.5} parent=23 // pred_check_branch
        %165 = sbr.rel (%p163) target = $region32
      $region31: #{basic_block_forward.5} parent=23 // pred_region
        %p166 = scmp.lt.s32.totalorder %s10, 1
        %s167 = scalar_select %p166, %s10, 1
        %s168 = smul.addr %s167, 16
        %s169 = smul.addr %s168, 8
        %s170 = scalar_lea.vmem %s3, %s169
      $region32: #{basic_block_forward.5} parent=23 // pred_fallthru
        _
    $region24: #{basic_block_forward.5} parent=5 // pred_fallthru
      _
    %p171 = scmp.le.s32.totalorder 1, %s10
    %p172 = scmp.lt.s32.totalorder %s10, 3
    %p173 = pnand %p171, %p172
    %p174 = pneg %p173
    // Predicated region
    $region33: #{basic_block_forward.5} parent=5 // pred_check
      _
    $region34: #{basic_block_forward.5} parent=5 // pred_check_branch
      %176 = sbr.rel (%p173) target = $region36
    $region35: #{basic_block_forward.5} parent=5 // pred_region
      %s177 = ssub.s32 %s10, 1
      %p178 = scmp.lt.s32.totalorder %s15, 1
      %s179 = scalar_select %p178, %s15, 1
      %s180 = smul.addr %s179, 16
      %s181 = smul.addr %s180, 8
      %s182 = scalar_lea.vmem %s0, %s181
      %p183 = pneg %p36
      %p184 = pneg %p33
      %p185 = pneg %p57
      %p186 = pneg %p54
      %p187 = pneg %p78
      %p188 = pneg %p75
      %p189 = scmp.lt.s32.totalorder %s15, 1
      %s190 = scalar_select %p189, %s15, 1
      %s191 = smul.addr %s190, 16
      %s192 = smul.addr %s191, 8
      %s193 = scalar_lea.vmem %s3, %s192
      %p194 = pneg %p104
      %p195 = pneg %p101
      %p196 = pneg %p130
      %p197 = pneg %p127
      %p198 = scmp.lt.s32.totalorder %s15, 1
      %s199 = scalar_select %p198, %s15, 1
      %s200 = smul.addr %s199, 16
      %s201 = smul.addr %s200, 8
      %s202 = scalar_lea.vmem %s4, %s201
      %p203 = scmp.lt.s32.totalorder %s15, 1
      %s204 = scalar_select %p203, %s15, 1
      %s205 = smul.addr %s204, 16
      %s206 = smul.addr %s205, 8
      %s207 = scalar_lea.vmem %s0, %s206
      %p208 = scmp.lt.s32.totalorder %s15, 1
      %s209 = scalar_select %p208, %s15, 1
      %s210 = smul.addr %s209, 16
      %s211 = smul.addr %s210, 8
      %s212 = scalar_lea.vmem %s3, %s211
      %p213 = scmp.lt.s32.totalorder %s15, 1
      %s214 = scalar_select %p213, %s15, 1
      %s215 = smul.addr %s214, 16
      %s216 = smul.addr %s215, 8
      %s217 = scalar_lea.vmem %s4, %s216
      %v218 = vld [vmem:[%s207] sm:$0xff]
      %v219 = vld [vmem:[%s207 + $0x8] sm:$0xff]
      %v220 = vld [vmem:[%s207 + $0x10] sm:$0xff]
      %v221 = vld [vmem:[%s207 + $0x18] sm:$0xff]
      %v222 = vld [vmem:[%s207 + $0x20] sm:$0xff]
      %v223 = vld [vmem:[%s207 + $0x28] sm:$0xff]
      %v224 = vld [vmem:[%s207 + $0x30] sm:$0xff]
      %v225 = vld [vmem:[%s207 + $0x38] sm:$0xff]
      %v226 = vld [vmem:[%s207 + $0x40] sm:$0xff]
      %v227 = vld [vmem:[%s207 + $0x48] sm:$0xff]
      %v228 = vld [vmem:[%s207 + $0x50] sm:$0xff]
      %v229 = vld [vmem:[%s207 + $0x58] sm:$0xff]
      %v230 = vld [vmem:[%s207 + $0x60] sm:$0xff]
      %v231 = vld [vmem:[%s207 + $0x68] sm:$0xff]
      %v232 = vld [vmem:[%s207 + $0x70] sm:$0xff]
      %v233 = vld [vmem:[%s207 + $0x78] sm:$0xff]
      %v234 = vld [vmem:[%s1] sm:$0x3]
      %v236 = vperm.slane %v234, 0
      %v237 = vperm.slane %v234, 1
      %v240 = vmul.f32 %v218, %v236
      %v241 = vmul.f32 %v219, %v237
      %v242 = vmul.f32 %v220, %v236
      %v243 = vmul.f32 %v221, %v237
      %v244 = vmul.f32 %v222, %v236
      %v245 = vmul.f32 %v223, %v237
      %v246 = vmul.f32 %v224, %v236
      %v247 = vmul.f32 %v225, %v237
      %v248 = vmul.f32 %v226, %v236
      %v249 = vmul.f32 %v227, %v237
      %v250 = vmul.f32 %v228, %v236
      %v251 = vmul.f32 %v229, %v237
      %v252 = vmul.f32 %v230, %v236
      %v253 = vmul.f32 %v231, %v237
      %v254 = vmul.f32 %v232, %v236
      %v255 = vmul.f32 %v233, %v237
      %v256 = vld [vmem:[%s2] sm:$0x3]
      %v258 = vperm.slane %v256, 0
      %v259 = vperm.slane %v256, 1
      %v262 = vadd.f32 %v240, %v258
      %v263 = vadd.f32 %v241, %v259
      %v264 = vadd.f32 %v242, %v258
      %v265 = vadd.f32 %v243, %v259
      %v266 = vadd.f32 %v244, %v258
      %v267 = vadd.f32 %v245, %v259
      %v268 = vadd.f32 %v246, %v258
      %v269 = vadd.f32 %v247, %v259
      %v270 = vadd.f32 %v248, %v258
      %v271 = vadd.f32 %v249, %v259
      %v272 = vadd.f32 %v250, %v258
      %v273 = vadd.f32 %v251, %v259
      %v274 = vadd.f32 %v252, %v258
      %v275 = vadd.f32 %v253, %v259
      %v276 = vadd.f32 %v254, %v258
      %v277 = vadd.f32 %v255, %v259
      %v278 = vld [vmem:[%s212] sm:$0xff]
      %v279 = vld [vmem:[%s212 + $0x8] sm:$0xff]
      %v280 = vld [vmem:[%s212 + $0x10] sm:$0xff]
      %v281 = vld [vmem:[%s212 + $0x18] sm:$0xff]
      %v282 = vld [vmem:[%s212 + $0x20] sm:$0xff]
      %v283 = vld [vmem:[%s212 + $0x28] sm:$0xff]
      %v284 = vld [vmem:[%s212 + $0x30] sm:$0xff]
      %v285 = vld [vmem:[%s212 + $0x38] sm:$0xff]
      %v286 = vld [vmem:[%s212 + $0x40] sm:$0xff]
      %v287 = vld [vmem:[%s212 + $0x48] sm:$0xff]
      %v288 = vld [vmem:[%s212 + $0x50] sm:$0xff]
      %v289 = vld [vmem:[%s212 + $0x58] sm:$0xff]
      %v290 = vld [vmem:[%s212 + $0x60] sm:$0xff]
      %v291 = vld [vmem:[%s212 + $0x68] sm:$0xff]
      %v292 = vld [vmem:[%s212 + $0x70] sm:$0xff]
      %v293 = vld [vmem:[%s212 + $0x78] sm:$0xff]
      %v294 = vadd.f32 %v262, %v278
      %v295 = vadd.f32 %v263, %v279
      %v296 = vadd.f32 %v264, %v280
      %v297 = vadd.f32 %v265, %v281
      %v298 = vadd.f32 %v266, %v282
      %v299 = vadd.f32 %v267, %v283
      %v300 = vadd.f32 %v268, %v284
      %v301 = vadd.f32 %v269, %v285
      %v302 = vadd.f32 %v270, %v286
      %v303 = vadd.f32 %v271, %v287
      %v304 = vadd.f32 %v272, %v288
      %v305 = vadd.f32 %v273, %v289
      %v306 = vadd.f32 %v274, %v290
      %v307 = vadd.f32 %v275, %v291
      %v308 = vadd.f32 %v276, %v292
      %v309 = vadd.f32 %v277, %v293
      %v310 = vmax.f32 %v294, 0.0
      %v311 = vmax.f32 %v295, 0.0
      %v312 = vmax.f32 %v296, 0.0
      %v313 = vmax.f32 %v297, 0.0
      %v314 = vmax.f32 %v298, 0.0
      %v315 = vmax.f32 %v299, 0.0
      %v316 = vmax.f32 %v300, 0.0
      %v317 = vmax.f32 %v301, 0.0
      %v318 = vmax.f32 %v302, 0.0
      %v319 = vmax.f32 %v303, 0.0
      %v320 = vmax.f32 %v304, 0.0
      %v321 = vmax.f32 %v305, 0.0
      %v322 = vmax.f32 %v306, 0.0
      %v323 = vmax.f32 %v307, 0.0
      %v324 = vmax.f32 %v308, 0.0
      %v325 = vmax.f32 %v309, 0.0
      %326 = vst [vmem:[%s217] sm:$0xff] %v310
      %327 = vst [vmem:[%s217 + $0x8] sm:$0xff] %v311
      %328 = vst [vmem:[%s217 + $0x10] sm:$0xff] %v312
      %329 = vst [vmem:[%s217 + $0x18] sm:$0xff] %v313
      %330 = vst [vmem:[%s217 + $0x20] sm:$0xff] %v314
      %331 = vst [vmem:[%s217 + $0x28] sm:$0xff] %v315
      %332 = vst [vmem:[%s217 + $0x30] sm:$0xff] %v316
      %333 = vst [vmem:[%s217 + $0x38] sm:$0xff] %v317
      %334 = vst [vmem:[%s217 + $0x40] sm:$0xff] %v318
      %335 = vst [vmem:[%s217 + $0x48] sm:$0xff] %v319
      %336 = vst [vmem:[%s217 + $0x50] sm:$0xff] %v320
      %337 = vst [vmem:[%s217 + $0x58] sm:$0xff] %v321
      %338 = vst [vmem:[%s217 + $0x60] sm:$0xff] %v322
      %339 = vst [vmem:[%s217 + $0x68] sm:$0xff] %v323
      %340 = vst [vmem:[%s217 + $0x70] sm:$0xff] %v324
      %341 = vst [vmem:[%s217 + $0x78] sm:$0xff] %v325
      %p342 = scmp.lt.s32.totalorder %s15, 1
      %s343 = scalar_select %p342, %s15, 1
      %s344 = smul.addr %s343, 16
      %s345 = smul.addr %s344, 8
      %s346 = scalar_lea.vmem %s4, %s345
      // Predicated region
      $region37: #{basic_block_forward.5} parent=35 // pred_check
        %p347 = pneg %p127
      $region38: #{basic_block_forward.5} parent=35 // pred_check_branch
        %349 = sbr.rel (%p347) target = $region40
      $region39: #{basic_block_forward.5} parent=35 // pred_region
        _
      $region40: #{basic_block_forward.5} parent=35 // pred_fallthru
        _
    $region36: #{basic_block_forward.5} parent=5 // pred_fallthru
      _
    %p350 = scmp.le.s32.totalorder 2, %s10
    // Predicated region
    $region41: #{basic_block_forward.5} parent=5 // pred_check
      %p351 = pneg %p350
    $region42: #{basic_block_forward.5} parent=5 // pred_check_branch
      %353 = sbr.rel (%p351) target = $region44
    $region43: #{basic_block_forward.5} parent=5 // pred_region
      %s354 = ssub.s32 %s10, 2
      // Predicated region
      $region45: #{basic_block_forward.5} parent=43 // pred_check
        %p355 = pneg %p133
      $region46: #{basic_block_forward.5} parent=43 // pred_check_branch
        %357 = sbr.rel (%p355) target = $region48
      $region47: #{basic_block_forward.5} parent=43 // pred_region
        %p358 = scmp.lt.s32.totalorder %s16, 1
        %s359 = scalar_select %p358, %s16, 1
        %s360 = smul.addr %s359, 16
        %s361 = smul.addr %s360, 8
        %s362 = scalar_lea.vmem %s4, %s361
      $region48: #{basic_block_forward.5} parent=43 // pred_fallthru
        _
    $region44: #{basic_block_forward.5} parent=5 // pred_fallthru
      _
  $region6: #{basic_block_forward.5} parent=0 // loop_footer
    %s14 = sadd.s32 1, %s10
  $region7: #{basic_block_forward.5} parent=0 // loop_footer_branch
    %9 = sbr.rel target = $region3
  $region8: #{basic_block_forward.5} parent=0 // loop_exit
    _

// kernel: basic_block_forward.4
$region0: #{basic_block_forward.4}
  #allocation0 [shape = 'u32[]', space=smem, size = 0x4, offset = 0x4, fixed_abs, tag = 'smem constant byte address 0x4 - core index']
  #allocation1 [shape = 'u32[72,128]{1,0:T(1,128)}', space=vmem, size = 0x9000, scoped, tag = 'internal scratch']
  #allocation2 [shape = 'bf16[10,10,256]{2,1,0:T(8,128)(2,1)}', space=vmem, size = 0x14000, scoped, tag = 'scratch operand']
  %s0 = inlined_call_operand.vmem [shape: f32[2,64,256], index: 0, kind: input, shape index: {}]
  %s1 = inlined_call_operand.vmem [shape: f32[1,256], index: 1, kind: input, shape index: {}]
  %s2 = inlined_call_operand.vmem [shape: f32[1,256], index: 2, kind: input, shape index: {}]
  %s3 = inlined_call_operand.hbm [shape: bf16[9,256,256], index: 3, kind: input, shape index: {}]
  %s4 = inlined_call_operand.vmem [shape: f32[2,64,256], index: 4, kind: output, shape index: {0}]
  %s5 = inlined_call_operand.vmem [shape: f32[2,2,256], index: 5, kind: output, shape index: {1}]
  %6 = xla_tuple %s4, %s5
  %s7 = sld [smem:[#allocation0]]
  $region61: #{basic_block_forward.4} parent=0
    _
  %s9 = ssub.s32 1, %s7
  %s10 = scalar_select 0, %s9, %s7
  $region1: #{basic_block_forward.4} parent=0
    #allocation3 [shape = 'u8[1179648]{0}', space=vmem, size = 0x120000, scoped, tag = 'input window, operand 3, single buffered']
    #allocation4 [shape = 's32[2]{0}', space=sflag, size = 0x8, scoped, tag = 'scoped memory for basic_block_forward.4']
    %11 = vsyncpa [#allocation4], 0
    loop: start=0, step=1, limit=4
    $region2: #{basic_block_forward.4} parent=1 // loop_pre_header
      _
    $region3: #{basic_block_forward.4} parent=1 // loop_header
      %s13 = sphi 0, %s17
      %p14 = scmp.ge.s32.totalorder %s13, 4
      %s23 = sphi 0, %s25
      %s26 = sphi 0, %s23
      %s27 = sphi 0, %s26
      %s43 = sphi 0, %s27
      %s47 = sphi 0, %s47
      %s49 = sphi 0, %s47
      %s50 = sphi 0, %s49
      %s64 = sphi 0, %s50
      %s68 = sphi 0, %s68
      %s70 = sphi 0, %s68
      %s71 = sphi 0, %s70
      %s85 = sphi 0, %s71
      %s89 = sphi 0, %s89
      %s91 = sphi 0, %s89
      %s92 = sphi 0, %s91
      %s106 = sphi 0, %s92
      %s112 = sphi 0, %s114
      %s115 = sphi 0, %s112
      %s116 = sphi 0, %s115
      %s132 = sphi 0, %s116
      %s138 = sphi 0, %s140
      %s141 = sphi 0, %s138
      %s142 = sphi 0, %s141
      %s158 = sphi 0, %s142
    $region4: #{basic_block_forward.4} parent=1 // loop_header_branch
      %16 = sbr.rel (%p14) target = $region8
    $region5: #{basic_block_forward.4} parent=1 // loop_body
      %s18 = ssub.s32 %s13, 1
      %s19 = ssub.s32 %s13, 2
      %s20 = sadd.s32 %s13, 1
      %s21 = ssub.s32 %s13, %s20
      %p22 = scmp.eq.s32.totalorder %s21, 0
      %s24 = sadd.s32 %s23, 1
      %s25 = scalar_select %p22, %s23, %s24
      %p28 = pneg %p22
      %p29 = scmp.eq.s32.totalorder %s13, 1
      %p30 = por %p28, %p29
      %p31 = scmp.ne.s32.totalorder %s23, %s26
      %p32 = scmp.eq.s32.totalorder %s13, 0
      %p33 = por %p31, %p32
      %p34 = scmp.ne.s32.totalorder %s23, %s26
      %p35 = scmp.eq.s32.totalorder %s18, 1
      %p36 = por %p34, %p35
      %p37 = scmp.ne.s32.totalorder %s26, %s27
      %p38 = scmp.eq.s32.totalorder %s18, 0
      %p39 = por %p37, %p38
      %p40 = scmp.ne.s32.totalorder %s26, %s27
      %p41 = scmp.eq.s32.totalorder %s19, 1
      %p42 = por %p40, %p41
      %p44 = scmp.ne.s32.totalorder %s27, %s43
      %p45 = scmp.eq.s32.totalorder %s19, 0
      %p46 = por %p44, %p45
      %s48 = sadd.s32 %s47, 1
      %p51 = scmp.eq.s32.totalorder %s13, 1
      %p52 = scmp.ne.s32.totalorder %s47, %s49
      %p53 = scmp.eq.s32.totalorder %s13, 0
      %p54 = por %p52, %p53
      %p55 = scmp.ne.s32.totalorder %s47, %s49
      %p56 = scmp.eq.s32.totalorder %s18, 1
      %p57 = por %p55, %p56
      %p58 = scmp.ne.s32.totalorder %s49, %s50
      %p59 = scmp.eq.s32.totalorder %s18, 0
      %p60 = por %p58, %p59
      %p61 = scmp.ne.s32.totalorder %s49, %s50
      %p62 = scmp.eq.s32.totalorder %s19, 1
      %p63 = por %p61, %p62
      %p65 = scmp.ne.s32.totalorder %s50, %s64
      %p66 = scmp.eq.s32.totalorder %s19, 0
      %p67 = por %p65, %p66
      %s69 = sadd.s32 %s68, 1
      %p72 = scmp.eq.s32.totalorder %s13, 1
      %p73 = scmp.ne.s32.totalorder %s68, %s70
      %p74 = scmp.eq.s32.totalorder %s13, 0
      %p75 = por %p73, %p74
      %p76 = scmp.ne.s32.totalorder %s68, %s70
      %p77 = scmp.eq.s32.totalorder %s18, 1
      %p78 = por %p76, %p77
      %p79 = scmp.ne.s32.totalorder %s70, %s71
      %p80 = scmp.eq.s32.totalorder %s18, 0
      %p81 = por %p79, %p80
      %p82 = scmp.ne.s32.totalorder %s70, %s71
      %p83 = scmp.eq.s32.totalorder %s19, 1
      %p84 = por %p82, %p83
      %p86 = scmp.ne.s32.totalorder %s71, %s85
      %p87 = scmp.eq.s32.totalorder %s19, 0
      %p88 = por %p86, %p87
      %s90 = sadd.s32 %s89, 1
      %p93 = scmp.eq.s32.totalorder %s13, 1
      %p94 = scmp.ne.s32.totalorder %s89, %s91
      %p95 = scmp.eq.s32.totalorder %s13, 0
      %p96 = por %p94, %p95
      %p97 = scmp.ne.s32.totalorder %s89, %s91
      %p98 = scmp.eq.s32.totalorder %s18, 1
      %p99 = por %p97, %p98
      %p100 = scmp.ne.s32.totalorder %s91, %s92
      %p101 = scmp.eq.s32.totalorder %s18, 0
      %p102 = por %p100, %p101
      %p103 = scmp.ne.s32.totalorder %s91, %s92
      %p104 = scmp.eq.s32.totalorder %s19, 1
      %p105 = por %p103, %p104
      %p107 = scmp.ne.s32.totalorder %s92, %s106
      %p108 = scmp.eq.s32.totalorder %s19, 0
      %p109 = por %p107, %p108
      %s110 = ssub.s32 %s13, %s20
      %p111 = scmp.eq.s32.totalorder %s110, 0
      %s113 = sadd.s32 %s112, 1
      %s114 = scalar_select %p111, %s112, %s113
      %p117 = pneg %p111
      %p118 = scmp.eq.s32.totalorder %s13, 1
      %p119 = por %p117, %p118
      %p120 = scmp.ne.s32.totalorder %s112, %s115
      %p121 = scmp.eq.s32.totalorder %s13, 0
      %p122 = por %p120, %p121
      %p123 = scmp.ne.s32.totalorder %s112, %s115
      %p124 = scmp.eq.s32.totalorder %s18, 1
      %p125 = por %p123, %p124
      %p126 = scmp.ne.s32.totalorder %s115, %s116
      %p127 = scmp.eq.s32.totalorder %s18, 0
      %p128 = por %p126, %p127
      %p129 = scmp.ne.s32.totalorder %s115, %s116
      %p130 = scmp.eq.s32.totalorder %s19, 1
      %p131 = por %p129, %p130
      %p133 = scmp.ne.s32.totalorder %s116, %s132
      %p134 = scmp.eq.s32.totalorder %s19, 0
      %p135 = por %p133, %p134
      %s136 = ssub.s32 %s13, %s20
      %p137 = scmp.eq.s32.totalorder %s136, 0
      %s139 = sadd.s32 %s138, 1
      %s140 = scalar_select %p137, %s138, %s139
      %p143 = pneg %p137
      %p144 = scmp.eq.s32.totalorder %s13, 1
      %p145 = por %p143, %p144
      %p146 = scmp.ne.s32.totalorder %s138, %s141
      %p147 = scmp.eq.s32.totalorder %s13, 0
      %p148 = por %p146, %p147
      %p149 = scmp.ne.s32.totalorder %s138, %s141
      %p150 = scmp.eq.s32.totalorder %s18, 1
      %p151 = por %p149, %p150
      %p152 = scmp.ne.s32.totalorder %s141, %s142
      %p153 = scmp.eq.s32.totalorder %s18, 0
      %p154 = por %p152, %p153
      %p155 = scmp.ne.s32.totalorder %s141, %s142
      %p156 = scmp.eq.s32.totalorder %s19, 1
      %p157 = por %p155, %p156
      %p159 = scmp.ne.s32.totalorder %s142, %s158
      %p160 = scmp.eq.s32.totalorder %s19, 0
      %p161 = por %p159, %p160
      %p162 = scmp.le.s32.totalorder 1, %s13
      %p163 = scmp.lt.s32.totalorder %s13, 3
      %p164 = pnand %p162, %p163
      %p165 = pneg %p164
      // Predicated region
      $region9: #{basic_block_forward.4} parent=5 // pred_check
        _
      $region10: #{basic_block_forward.4} parent=5 // pred_check_branch
        %167 = sbr.rel (%p164) target = $region12
      $region11: #{basic_block_forward.4} parent=5 // pred_region
        %s168 = ssub.s32 %s13, 1
        // Predicated region
        $region13: #{basic_block_forward.4} parent=11 // pred_check
          %p169 = pneg %p60
        $region14: #{basic_block_forward.4} parent=11 // pred_check_branch
          %171 = sbr.rel (%p169) target = $region16
        $region15: #{basic_block_forward.4} parent=11 // pred_region
          _
        $region16: #{basic_block_forward.4} parent=11 // pred_fallthru
          _
        // Predicated region
        $region17: #{basic_block_forward.4} parent=11 // pred_check
          %p172 = pneg %p81
        $region18: #{basic_block_forward.4} parent=11 // pred_check_branch
          %174 = sbr.rel (%p172) target = $region20
        $region19: #{basic_block_forward.4} parent=11 // pred_region
          _
        $region20: #{basic_block_forward.4} parent=11 // pred_fallthru
          _
        // Predicated region
        $region21: #{basic_block_forward.4} parent=11 // pred_check
          %p175 = pneg %p102
        $region22: #{basic_block_forward.4} parent=11 // pred_check_branch
          %177 = sbr.rel (%p175) target = $region24
        $region23: #{basic_block_forward.4} parent=11 // pred_region
          %179 = vsyncadd [#allocation4], 0
          %s180 = sshll.u32 %s3, 4
          %s181 = int_to_ptr.hbm [resolvable:$true] %s180
          %s182 = sshll.u32 [#allocation3], 4
          %s183 = int_to_ptr.vmem [resolvable:$true] %s182
          %188 = dma.hbm_to_vmem [thread:$0]  %s181, 36864, %s183, [#allocation4], 128, 128, 8
        $region24: #{basic_block_forward.4} parent=11 // pred_fallthru
          _
      $region12: #{basic_block_forward.4} parent=5 // pred_fallthru
        _
      %p189 = scmp.lt.s32.totalorder %s13, 2
      // Predicated region
      $region25: #{basic_block_forward.4} parent=5 // pred_check
        %p190 = pneg %p189
      $region26: #{basic_block_forward.4} parent=5 // pred_check_branch
        %192 = sbr.rel (%p190) target = $region28
      $region27: #{basic_block_forward.4} parent=5 // pred_region
        // Predicated region
        $region29: #{basic_block_forward.4} parent=27 // pred_check
          %p193 = pneg %p33
        $region30: #{basic_block_forward.4} parent=27 // pred_check_branch
          %195 = sbr.rel (%p193) target = $region32
        $region31: #{basic_block_forward.4} parent=27 // pred_region
          %p196 = scmp.lt.s32.totalorder %s13, 1
          %s197 = scalar_select %p196, %s13, 1
          %s198 = smul.addr %s197, 16
          %s199 = smul.addr %s198, 8
          %s200 = scalar_lea.vmem %s0, %s199
        $region32: #{basic_block_forward.4} parent=27 // pred_fallthru
          _
      $region28: #{basic_block_forward.4} parent=5 // pred_fallthru
        _
      %p201 = scmp.le.s32.totalorder 1, %s13
      %p202 = scmp.lt.s32.totalorder %s13, 3
      %p203 = pnand %p201, %p202
      %p204 = pneg %p203
      // Predicated region
      $region33: #{basic_block_forward.4} parent=5 // pred_check
        _
      $region34: #{basic_block_forward.4} parent=5 // pred_check_branch
        %206 = sbr.rel (%p203) target = $region36
      $region35: #{basic_block_forward.4} parent=5 // pred_region
        %s207 = ssub.s32 %s13, 1
        // Predicated region
        $region37: #{basic_block_forward.4} parent=35 // pred_check
          %p208 = pneg %p102
        $region38: #{basic_block_forward.4} parent=35 // pred_check_branch
          %210 = sbr.rel (%p208) target = $region40
        $region39: #{basic_block_forward.4} parent=35 // pred_region
          %212 = dma.done [#allocation4], 36864
        $region40: #{basic_block_forward.4} parent=35 // pred_fallthru
          _
        %p213 = scmp.lt.s32.totalorder %s18, 1
        %s214 = scalar_select %p213, %s18, 1
        %s215 = smul.addr %s214, 16
        %s216 = smul.addr %s215, 8
        %s217 = scalar_lea.vmem %s0, %s216
        %p218 = pneg %p39
        %p219 = pneg %p36
        %p220 = pneg %p60
        %p221 = pneg %p57
        %p222 = pneg %p81
        %p223 = pneg %p78
        %p224 = pneg %p102
        %p225 = pneg %p99
        %p226 = pneg %p128
        %p227 = pneg %p125
        %p228 = scmp.lt.s32.totalorder %s18, 1
        %s229 = scalar_select %p228, %s18, 1
        %s230 = smul.addr %s229, 16
        %s231 = smul.addr %s230, 8
        %s232 = scalar_lea.vmem %s4, %s231
        %p233 = pneg %p154
        %p234 = pneg %p151
        %p235 = scmp.lt.s32.totalorder %s18, 1
        %s236 = scalar_select %p235, %s18, 1
        %s237 = smul.addr %s236, 2
        %s238 = smul.addr %s237, 2
        %s239 = scalar_lea.vmem %s5, %s238
        %p240 = scmp.lt.s32.totalorder %s18, 1
        %s241 = scalar_select %p240, %s18, 1
        %s242 = smul.addr %s241, 16
        %s243 = smul.addr %s242, 8
        %s244 = scalar_lea.vmem %s0, %s243
        %p245 = scmp.lt.s32.totalorder %s18, 1
        %s246 = scalar_select %p245, %s18, 1
        %s247 = smul.addr %s246, 16
        %s248 = smul.addr %s247, 8
        %s249 = scalar_lea.vmem %s4, %s248
        %p250 = scmp.lt.s32.totalorder %s18, 1
        %s251 = scalar_select %p250, %s18, 1
        %s252 = smul.addr %s251, 2
        %s253 = smul.addr %s252, 2
        %s254 = scalar_lea.vmem %s5, %s253
        %v256 = vld [vmem:[%s244] sm:$0xff]
        %v257 = vld [vmem:[%s244 + $0x8] sm:$0xff]
        %v258 = vld [vmem:[%s244 + $0x10] sm:$0xff]
        %v259 = vld [vmem:[%s244 + $0x18] sm:$0xff]
        %v260 = vld [vmem:[%s244 + $0x20] sm:$0xff]
        %v261 = vld [vmem:[%s244 + $0x28] sm:$0xff]
        %v262 = vld [vmem:[%s244 + $0x30] sm:$0xff]
        %v263 = vld [vmem:[%s244 + $0x38] sm:$0xff]
        %v264 = vld [vmem:[%s244 + $0x40] sm:$0xff]
        %v265 = vld [vmem:[%s244 + $0x48] sm:$0xff]
        %v266 = vld [vmem:[%s244 + $0x50] sm:$0xff]
        %v267 = vld [vmem:[%s244 + $0x58] sm:$0xff]
        %v268 = vld [vmem:[%s244 + $0x60] sm:$0xff]
        %v269 = vld [vmem:[%s244 + $0x68] sm:$0xff]
        %v270 = vld [vmem:[%s244 + $0x70] sm:$0xff]
        %v271 = vld [vmem:[%s244 + $0x78] sm:$0xff]
        %v272 = vld [vmem:[%s1] sm:$0x3]
        %v274 = vperm.slane %v272, 0
        %v275 = vperm.slane %v272, 1
        %v278 = vmul.f32 %v256, %v274
        %v279 = vmul.f32 %v257, %v275
        %v280 = vmul.f32 %v258, %v274
        %v281 = vmul.f32 %v259, %v275
        %v282 = vmul.f32 %v260, %v274
        %v283 = vmul.f32 %v261, %v275
        %v284 = vmul.f32 %v262, %v274
        %v285 = vmul.f32 %v263, %v275
        %v286 = vmul.f32 %v264, %v274
        %v287 = vmul.f32 %v265, %v275
        %v288 = vmul.f32 %v266, %v274
        %v289 = vmul.f32 %v267, %v275
        %v290 = vmul.f32 %v268, %v274
        %v291 = vmul.f32 %v269, %v275
        %v292 = vmul.f32 %v270, %v274
        %v293 = vmul.f32 %v271, %v275
        %v294 = vld [vmem:[%s2] sm:$0x3]
        %v296 = vperm.slane %v294, 0
        %v297 = vperm.slane %v294, 1
        %v300 = vadd.f32 %v278, %v296
        %v301 = vadd.f32 %v279, %v297
        %v302 = vadd.f32 %v280, %v296
        %v303 = vadd.f32 %v281, %v297
        %v304 = vadd.f32 %v282, %v296
        %v305 = vadd.f32 %v283, %v297
        %v306 = vadd.f32 %v284, %v296
        %v307 = vadd.f32 %v285, %v297
        %v308 = vadd.f32 %v286, %v296
        %v309 = vadd.f32 %v287, %v297
        %v310 = vadd.f32 %v288, %v296
        %v311 = vadd.f32 %v289, %v297
        %v312 = vadd.f32 %v290, %v296
        %v313 = vadd.f32 %v291, %v297
        %v314 = vadd.f32 %v292, %v296
        %v315 = vadd.f32 %v293, %v297
        %v316 = vmax.f32 %v300, 0.0
        %v317 = vmax.f32 %v301, 0.0
        %v318 = vmax.f32 %v302, 0.0
        %v319 = vmax.f32 %v303, 0.0
        %v320 = vmax.f32 %v304, 0.0
        %v321 = vmax.f32 %v305, 0.0
        %v322 = vmax.f32 %v306, 0.0
        %v323 = vmax.f32 %v307, 0.0
        %v324 = vmax.f32 %v308, 0.0
        %v325 = vmax.f32 %v309, 0.0
        %v326 = vmax.f32 %v310, 0.0
        %v327 = vmax.f32 %v311, 0.0
        %v328 = vmax.f32 %v312, 0.0
        %v329 = vmax.f32 %v313, 0.0
        %v330 = vmax.f32 %v314, 0.0
        %v331 = vmax.f32 %v315, 0.0
        %332 = vst [vmem:[#allocation2] sm:$0xff] 0
        %333 = vst [vmem:[#allocation2 + $0x8] sm:$0x11] 0
        %334 = vst [vmem:[#allocation2 + $0x10] sm:$0xff] 0
        %335 = vst [vmem:[#allocation2 + $0x18] sm:$0x11] 0
        %336 = vst [vmem:[#allocation2 + $0x20] sm:$0xff] 0
        %337 = vst [vmem:[#allocation2 + $0x28] sm:$0x11] 0
        %338 = vst [vmem:[#allocation2 + $0x30] sm:$0xff] 0
        %339 = vst [vmem:[#allocation2 + $0x38] sm:$0x11] 0
        %340 = vst [vmem:[#allocation2 + $0x40] sm:$0xff] 0
        %341 = vst [vmem:[#allocation2 + $0x48] sm:$0x11] 0
        %342 = vst [vmem:[#allocation2 + $0x50] sm:$0xff] 0
        %343 = vst [vmem:[#allocation2 + $0x58] sm:$0x11] 0
        %344 = vst [vmem:[#allocation2 + $0x60] sm:$0xff] 0
        %345 = vst [vmem:[#allocation2 + $0x68] sm:$0x11] 0
        %346 = vst [vmem:[#allocation2 + $0x70] sm:$0xff] 0
        %347 = vst [vmem:[#allocation2 + $0x78] sm:$0x11] 0
        %348 = vst [vmem:[#allocation2 + $0x80] sm:$0xff] 0
        %349 = vst [vmem:[#allocation2 + $0x88] sm:$0x11] 0
        %350 = vst [vmem:[#allocation2 + $0x90] sm:$0xff] 0
        %351 = vst [vmem:[#allocation2 + $0x98] sm:$0x11] 0
        %v352 = vpack.c.bf16 %v317, %v316
        %v353 = vpack.c.bf16 %v319, %v318
        %v354 = vpack.c.bf16 %v321, %v320
        %v355 = vpack.c.bf16 %v323, %v322
        %v356 = vpack.c.bf16 %v325, %v324
        %v357 = vpack.c.bf16 %v327, %v326
        %v358 = vpack.c.bf16 %v329, %v328
        %v359 = vpack.c.bf16 %v331, %v330
        %v361 = vshrl.u32 %v352, 16
        %v363 = vrot.slane %v361, 7
        %v364 = vshll.u32 %v352, 16
        %v366 = vor.u32 %v363, %v364
        %v367 = vrot.slane %v363, 4
        %v369 = vshrl.u32 %v353, 16
        %v371 = vrot.slane %v369, 7
        %v372 = vshll.u32 %v353, 16
        %v374 = vor.u32 %v371, %v372
        %v375 = vrot.slane %v371, 4
        %v377 = vshrl.u32 %v354, 16
        %v379 = vrot.slane %v377, 7
        %v380 = vshll.u32 %v354, 16
        %v382 = vor.u32 %v379, %v380
        %v383 = vrot.slane %v379, 4
        %v385 = vshrl.u32 %v355, 16
        %v387 = vrot.slane %v385, 7
        %v388 = vshll.u32 %v355, 16
        %v390 = vor.u32 %v387, %v388
        %v391 = vrot.slane %v387, 4
        %v393 = vshrl.u32 %v356, 16
        %v395 = vrot.slane %v393, 7
        %v396 = vshll.u32 %v356, 16
        %v398 = vor.u32 %v395, %v396
        %v399 = vrot.slane %v395, 4
        %v401 = vshrl.u32 %v357, 16
        %v403 = vrot.slane %v401, 7
        %v404 = vshll.u32 %v357, 16
        %v406 = vor.u32 %v403, %v404
        %v407 = vrot.slane %v403, 4
        %v409 = vshrl.u32 %v358, 16
        %v411 = vrot.slane %v409, 7
        %v412 = vshll.u32 %v358, 16
        %v414 = vor.u32 %v411, %v412
        %v415 = vrot.slane %v411, 4
        %v417 = vshrl.u32 %v359, 16
        %v419 = vrot.slane %v417, 7
        %v420 = vshll.u32 %v359, 16
        %v422 = vor.u32 %v419, %v420
        %v423 = vrot.slane %v419, 4
        %s440 = scalar_lea.vmem [#allocation2], 16
        %vm441 = vcmask 1043456
        %vm442 = vsmask.f32 7938
        %vm443 = vmand %vm441, %vm442
        %vm444 = vcmask 1047556
        %vm445 = vsmask.f32 7954
        %vm446 = vmand %vm444, %vm445
        %vm447 = vmor %vm446, %vm443
        %v448 = vld [vmem:[%s440] sm:$0xff]
        %v449 = vsel %vm447, %v366, %v448
        %450 = vst [vmem:[%s440] sm:$0xff] %v449
        %vm451 = vcmask 1040384
        %vm452 = vsmask.f32 256
        %vm453 = vmand %vm451, %vm452
        %vm454 = vcmask 1044484
        %vm455 = vsmask.f32 4352
        %vm456 = vmand %vm454, %vm455
        %vm457 = vmor %vm456, %vm453
        %v458 = vld [vmem:[%s440 + $0x8] sm:$0x11]
        %v459 = vsel %vm457, %v367, %v458
        %460 = vst [vmem:[%s440 + $0x8] sm:$0x11] %v459
        %v461 = vld [vmem:[%s440 + $0x10] sm:$0xff]
        %v462 = vsel %vm447, %v374, %v461
        %463 = vst [vmem:[%s440 + $0x10] sm:$0xff] %v462
        %v464 = vld [vmem:[%s440 + $0x18] sm:$0x11]
        %v465 = vsel %vm457, %v375, %v464
        %466 = vst [vmem:[%s440 + $0x18] sm:$0x11] %v465
        %v467 = vld [vmem:[%s440 + $0x20] sm:$0xff]
        %v468 = vsel %vm447, %v382, %v467
        %469 = vst [vmem:[%s440 + $0x20] sm:$0xff] %v468
        %v470 = vld [vmem:[%s440 + $0x28] sm:$0x11]
        %v471 = vsel %vm457, %v383, %v470
        %472 = vst [vmem:[%s440 + $0x28] sm:$0x11] %v471
        %v473 = vld [vmem:[%s440 + $0x30] sm:$0xff]
        %v474 = vsel %vm447, %v390, %v473
        %475 = vst [vmem:[%s440 + $0x30] sm:$0xff] %v474
        %v476 = vld [vmem:[%s440 + $0x38] sm:$0x11]
        %v477 = vsel %vm457, %v391, %v476
        %478 = vst [vmem:[%s440 + $0x38] sm:$0x11] %v477
        %v479 = vld [vmem:[%s440 + $0x40] sm:$0xff]
        %v480 = vsel %vm447, %v398, %v479
        %481 = vst [vmem:[%s440 + $0x40] sm:$0xff] %v480
        %v482 = vld [vmem:[%s440 + $0x48] sm:$0x11]
        %v483 = vsel %vm457, %v399, %v482
        %484 = vst [vmem:[%s440 + $0x48] sm:$0x11] %v483
        %v485 = vld [vmem:[%s440 + $0x50] sm:$0xff]
        %v486 = vsel %vm447, %v406, %v485
        %487 = vst [vmem:[%s440 + $0x50] sm:$0xff] %v486
        %v488 = vld [vmem:[%s440 + $0x58] sm:$0x11]
        %v489 = vsel %vm457, %v407, %v488
        %490 = vst [vmem:[%s440 + $0x58] sm:$0x11] %v489
        %v491 = vld [vmem:[%s440 + $0x60] sm:$0xff]
        %v492 = vsel %vm447, %v414, %v491
        %493 = vst [vmem:[%s440 + $0x60] sm:$0xff] %v492
        %v494 = vld [vmem:[%s440 + $0x68] sm:$0x11]
        %v495 = vsel %vm457, %v415, %v494
        %496 = vst [vmem:[%s440 + $0x68] sm:$0x11] %v495
        %v497 = vld [vmem:[%s440 + $0x70] sm:$0xff]
        %v498 = vsel %vm447, %v422, %v497
        %499 = vst [vmem:[%s440 + $0x70] sm:$0xff] %v498
        %v500 = vld [vmem:[%s440 + $0x78] sm:$0x11]
        %v501 = vsel %vm457, %v423, %v500
        %502 = vst [vmem:[%s440 + $0x78] sm:$0x11] %v501
        %v503 = vld [vmem:[#allocation2] sm:$0xff]
        %v504 = vld [vmem:[#allocation2 + $0x10] sm:$0xff]
        %v505 = vld [vmem:[#allocation2 + $0x20] sm:$0xff]
        %v506 = vld [vmem:[#allocation2 + $0x30] sm:$0xff]
        %v507 = vld [vmem:[#allocation2 + $0x40] sm:$0xff]
        %v508 = vld [vmem:[#allocation2 + $0x50] sm:$0xff]
        %v509 = vld [vmem:[#allocation2 + $0x60] sm:$0xff]
        %v510 = vld [vmem:[#allocation2 + $0x70] sm:$0xff]
        %v511 = vld [vmem:[#allocation3] sm:$0xff]
        %v512 = vld [vmem:[#allocation3 + $0x8] sm:$0xff]
        %v513 = vld [vmem:[#allocation3 + $0x10] sm:$0xff]
        %v514 = vld [vmem:[#allocation3 + $0x18] sm:$0xff]
        %v515 = vld [vmem:[#allocation3 + $0x20] sm:$0xff]
        %v516 = vld [vmem:[#allocation3 + $0x28] sm:$0xff]
        %v517 = vld [vmem:[#allocation3 + $0x30] sm:$0xff]
        %v518 = vld [vmem:[#allocation3 + $0x38] sm:$0xff]
        %v519 = vld [vmem:[#allocation3 + $0x40] sm:$0xff]
        %v520 = vld [vmem:[#allocation3 + $0x48] sm:$0xff]
        %v521 = vld [vmem:[#allocation3 + $0x50] sm:$0xff]
        %v522 = vld [vmem:[#allocation3 + $0x58] sm:$0xff]
        %v523 = vld [vmem:[#allocation3 + $0x60] sm:$0xff]
        %v524 = vld [vmem:[#allocation3 + $0x68] sm:$0xff]
        %v525 = vld [vmem:[#allocation3 + $0x70] sm:$0xff]
        %v526 = vld [vmem:[#allocation3 + $0x78] sm:$0xff]
        %v527 = vld [vmem:[#allocation3 + $0x80] sm:$0xff]
        %v528 = vld [vmem:[#allocation3 + $0x88] sm:$0xff]
        %v529 = vld [vmem:[#allocation3 + $0x90] sm:$0xff]
        %v530 = vld [vmem:[#allocation3 + $0x98] sm:$0xff]
        %v531 = vld [vmem:[#allocation3 + $0xa0] sm:$0xff]
        %v532 = vld [vmem:[#allocation3 + $0xa8] sm:$0xff]
        %v533 = vld [vmem:[#allocation3 + $0xb0] sm:$0xff]
        %v534 = vld [vmem:[#allocation3 + $0xb8] sm:$0xff]
        %v535 = vld [vmem:[#allocation3 + $0xc0] sm:$0xff]
        %v536 = vld [vmem:[#allocation3 + $0xc8] sm:$0xff]
        %v537 = vld [vmem:[#allocation3 + $0xd0] sm:$0xff]
        %v538 = vld [vmem:[#allocation3 + $0xd8] sm:$0xff]
        %v539 = vld [vmem:[#allocation3 + $0xe0] sm:$0xff]
        %v540 = vld [vmem:[#allocation3 + $0xe8] sm:$0xff]
        %v541 = vld [vmem:[#allocation3 + $0xf0] sm:$0xff]
        %v542 = vld [vmem:[#allocation3 + $0xf8] sm:$0xff]
        %v543 = vld [vmem:[#allocation2 + $0x8] sm:$0x11]
        %v544 = vld [vmem:[#allocation2 + $0x18] sm:$0x11]
        %v545 = vld [vmem:[#allocation2 + $0x28] sm:$0x11]
        %v546 = vld [vmem:[#allocation2 + $0x38] sm:$0x11]
        %v547 = vld [vmem:[#allocation2 + $0x48] sm:$0x11]
        %v548 = vld [vmem:[#allocation2 + $0x58] sm:$0x11]
        %v549 = vld [vmem:[#allocation2 + $0x68] sm:$0x11]
        %v550 = vld [vmem:[#allocation2 + $0x78] sm:$0x11]
        %vm551 = vsmask.f32 3328
        %vm552 = vsmask.f32 7440
        %vm553 = vmor %vm551, %vm552
        %v555 = vshrl.u32 %v503, 16
        %v557 = vrot.slane %v555, 4
        %v558 = vshll.u32 %v503, 16
        %v560 = vrot.slane %v558, 5
        %v561 = vor.u32 %v557, %v560
        %v562 = vrot.slane %v561, 4
        %v564 = vshll.u32 %v543, 16
        %v566 = vrot.slane %v564, 5
        %v567 = vsel %vm553, %v562, %v566
        %v569 = vshrl.u32 %v504, 16
        %v571 = vrot.slane %v569, 4
        %v572 = vshll.u32 %v504, 16
        %v574 = vrot.slane %v572, 5
        %v575 = vor.u32 %v571, %v574
        %v576 = vrot.slane %v575, 4
        %v578 = vshll.u32 %v544, 16
        %v580 = vrot.slane %v578, 5
        %v581 = vsel %vm553, %v576, %v580
        %v583 = vshrl.u32 %v505, 16
        %v585 = vrot.slane %v583, 4
        %v586 = vshll.u32 %v505, 16
        %v588 = vrot.slane %v586, 5
        %v589 = vor.u32 %v585, %v588
        %v590 = vrot.slane %v589, 4
        %v592 = vshll.u32 %v545, 16
        %v594 = vrot.slane %v592, 5
        %v595 = vsel %vm553, %v590, %v594
        %v597 = vshrl.u32 %v506, 16
        %v599 = vrot.slane %v597, 4
        %v600 = vshll.u32 %v506, 16
        %v602 = vrot.slane %v600, 5
        %v603 = vor.u32 %v599, %v602
        %v604 = vrot.slane %v603, 4
        %v606 = vshll.u32 %v546, 16
        %v608 = vrot.slane %v606, 5
        %v609 = vsel %vm553, %v604, %v608
        %v611 = vshrl.u32 %v507, 16
        %v613 = vrot.slane %v611, 4
        %v614 = vshll.u32 %v507, 16
        %v616 = vrot.slane %v614, 5
        %v617 = vor.u32 %v613, %v616
        %v618 = vrot.slane %v617, 4
        %v620 = vshll.u32 %v547, 16
        %v622 = vrot.slane %v620, 5
        %v623 = vsel %vm553, %v618, %v622
        %v625 = vshrl.u32 %v508, 16
        %v627 = vrot.slane %v625, 4
        %v628 = vshll.u32 %v508, 16
        %v630 = vrot.slane %v628, 5
        %v631 = vor.u32 %v627, %v630
        %v632 = vrot.slane %v631, 4
        %v634 = vshll.u32 %v548, 16
        %v636 = vrot.slane %v634, 5
        %v637 = vsel %vm553, %v632, %v636
        %v639 = vshrl.u32 %v509, 16
        %v641 = vrot.slane %v639, 4
        %v642 = vshll.u32 %v509, 16
        %v644 = vrot.slane %v642, 5
        %v645 = vor.u32 %v641, %v644
        %v646 = vrot.slane %v645, 4
        %v648 = vshll.u32 %v549, 16
        %v650 = vrot.slane %v648, 5
        %v651 = vsel %vm553, %v646, %v650
        %v653 = vshrl.u32 %v510, 16
        %v655 = vrot.slane %v653, 4
        %v656 = vshll.u32 %v510, 16
        %v658 = vrot.slane %v656, 5
        %v659 = vor.u32 %v655, %v658
        %v660 = vrot.slane %v659, 4
        %v662 = vshll.u32 %v550, 16
        %v664 = vrot.slane %v662, 5
        %v665 = vsel %vm553, %v660, %v664
        %s666 = scalar_lea.vmem [#allocation3], 256
        %v667 = vld [vmem:[%s666] sm:$0xff]
        %v668 = vld [vmem:[%s666 + $0x8] sm:$0xff]
        %v669 = vld [vmem:[%s666 + $0x10] sm:$0xff]
        %v670 = vld [vmem:[%s666 + $0x18] sm:$0xff]
        %v671 = vld [vmem:[%s666 + $0x20] sm:$0xff]
        %v672 = vld [vmem:[%s666 + $0x28] sm:$0xff]
        %v673 = vld [vmem:[%s666 + $0x30] sm:$0xff]
        %v674 = vld [vmem:[%s666 + $0x38] sm:$0xff]
        %v675 = vld [vmem:[%s666 + $0x40] sm:$0xff]
        %v676 = vld [vmem:[%s666 + $0x48] sm:$0xff]
        %v677 = vld [vmem:[%s666 + $0x50] sm:$0xff]
        %v678 = vld [vmem:[%s666 + $0x58] sm:$0xff]
        %v679 = vld [vmem:[%s666 + $0x60] sm:$0xff]
        %v680 = vld [vmem:[%s666 + $0x68] sm:$0xff]
        %v681 = vld [vmem:[%s666 + $0x70] sm:$0xff]
        %v682 = vld [vmem:[%s666 + $0x78] sm:$0xff]
        %v683 = vld [vmem:[%s666 + $0x80] sm:$0xff]
        %v684 = vld [vmem:[%s666 + $0x88] sm:$0xff]
        %v685 = vld [vmem:[%s666 + $0x90] sm:$0xff]
        %v686 = vld [vmem:[%s666 + $0x98] sm:$0xff]
        %v687 = vld [vmem:[%s666 + $0xa0] sm:$0xff]
        %v688 = vld [vmem:[%s666 + $0xa8] sm:$0xff]
        %v689 = vld [vmem:[%s666 + $0xb0] sm:$0xff]
        %v690 = vld [vmem:[%s666 + $0xb8] sm:$0xff]
        %v691 = vld [vmem:[%s666 + $0xc0] sm:$0xff]
        %v692 = vld [vmem:[%s666 + $0xc8] sm:$0xff]
        %v693 = vld [vmem:[%s666 + $0xd0] sm:$0xff]
        %v694 = vld [vmem:[%s666 + $0xd8] sm:$0xff]
        %v695 = vld [vmem:[%s666 + $0xe0] sm:$0xff]
        %v696 = vld [vmem:[%s666 + $0xe8] sm:$0xff]
        %v697 = vld [vmem:[%s666 + $0xf0] sm:$0xff]
        %v698 = vld [vmem:[%s666 + $0xf8] sm:$0xff]
        %v699 = vunpack.c.l.b16 %v567
        %v700 = vunpack.c.h.b16 %v567
        %v701 = vunpack.c.l.b16 %v581
        %v702 = vunpack.c.h.b16 %v581
        %v703 = vunpack.c.l.b16 %v595
        %v704 = vunpack.c.h.b16 %v595
        %v705 = vunpack.c.l.b16 %v609
        %v706 = vunpack.c.h.b16 %v609
        %v707 = vunpack.c.l.b16 %v623
        %v708 = vunpack.c.h.b16 %v623
        %v709 = vunpack.c.l.b16 %v637
        %v710 = vunpack.c.h.b16 %v637
        %v711 = vunpack.c.l.b16 %v651
        %v712 = vunpack.c.h.b16 %v651
        %v713 = vunpack.c.l.b16 %v665
        %v714 = vunpack.c.h.b16 %v665
        %v715 = vpack.c.b16 %v701, %v699
        %v716 = vpack.c.b16 %v702, %v700
        %v717 = vpack.c.b16 %v705, %v703
        %v718 = vpack.c.b16 %v706, %v704
        %v719 = vpack.c.b16 %v709, %v707
        %v720 = vpack.c.b16 %v710, %v708
        %v721 = vpack.c.b16 %v713, %v711
        %v722 = vpack.c.b16 %v714, %v712
        %v763 = vunpack.c.l.b16 %v667
        %v764 = vunpack.c.h.b16 %v667
        %v765 = vunpack.c.l.b16 %v668
        %v766 = vunpack.c.h.b16 %v668
        %v767 = vunpack.c.l.b16 %v669
        %v768 = vunpack.c.h.b16 %v669
        %v769 = vunpack.c.l.b16 %v670
        %v770 = vunpack.c.h.b16 %v670
        %v771 = vunpack.c.l.b16 %v671
        %v772 = vunpack.c.h.b16 %v671
        %v773 = vunpack.c.l.b16 %v672
        %v774 = vunpack.c.h.b16 %v672
        %v775 = vunpack.c.l.b16 %v673
        %v776 = vunpack.c.h.b16 %v673
        %v777 = vunpack.c.l.b16 %v674
        %v778 = vunpack.c.h.b16 %v674
        %v779 = vunpack.c.l.b16 %v675
        %v780 = vunpack.c.h.b16 %v675
        %v781 = vunpack.c.l.b16 %v676
        %v782 = vunpack.c.h.b16 %v676
        %v783 = vunpack.c.l.b16 %v677
        %v784 = vunpack.c.h.b16 %v677
        %v785 = vunpack.c.l.b16 %v678
        %v786 = vunpack.c.h.b16 %v678
        %v787 = vunpack.c.l.b16 %v679
        %v788 = vunpack.c.h.b16 %v679
        %v789 = vunpack.c.l.b16 %v680
        %v790 = vunpack.c.h.b16 %v680
        %v791 = vunpack.c.l.b16 %v681
        %v792 = vunpack.c.h.b16 %v681
        %v793 = vunpack.c.l.b16 %v682
        %v794 = vunpack.c.h.b16 %v682
        %v795 = vunpack.c.l.b16 %v683
        %v796 = vunpack.c.h.b16 %v683
        %v797 = vunpack.c.l.b16 %v684
        %v798 = vunpack.c.h.b16 %v684
        %v799 = vunpack.c.l.b16 %v685
        %v800 = vunpack.c.h.b16 %v685
        %v801 = vunpack.c.l.b16 %v686
        %v802 = vunpack.c.h.b16 %v686
        %v803 = vunpack.c.l.b16 %v687
        %v804 = vunpack.c.h.b16 %v687
        %v805 = vunpack.c.l.b16 %v688
        %v806 = vunpack.c.h.b16 %v688
        %v807 = vunpack.c.l.b16 %v689
        %v808 = vunpack.c.h.b16 %v689
        %v809 = vunpack.c.l.b16 %v690
        %v810 = vunpack.c.h.b16 %v690
        %v811 = vunpack.c.l.b16 %v691
        %v812 = vunpack.c.h.b16 %v691
        %v813 = vunpack.c.l.b16 %v692
        %v814 = vunpack.c.h.b16 %v692
        %v815 = vunpack.c.l.b16 %v693
        %v816 = vunpack.c.h.b16 %v693
        %v817 = vunpack.c.l.b16 %v694
        %v818 = vunpack.c.h.b16 %v694
        %v819 = vunpack.c.l.b16 %v695
        %v820 = vunpack.c.h.b16 %v695
        %v821 = vunpack.c.l.b16 %v696
        %v822 = vunpack.c.h.b16 %v696
        %v823 = vunpack.c.l.b16 %v697
        %v824 = vunpack.c.h.b16 %v697
        %v825 = vunpack.c.l.b16 %v698
        %v826 = vunpack.c.h.b16 %v698
        %v827 = vpack.c.b16 %v765, %v763
        %v828 = vpack.c.b16 %v766, %v764
        %v829 = vpack.c.b16 %v769, %v767
        %v830 = vpack.c.b16 %v770, %v768
        %v831 = vpack.c.b16 %v773, %v771
        %v832 = vpack.c.b16 %v774, %v772
        %v833 = vpack.c.b16 %v777, %v775
        %v834 = vpack.c.b16 %v778, %v776
        %v835 = vpack.c.b16 %v781, %v779
        %v836 = vpack.c.b16 %v782, %v780
        %v837 = vpack.c.b16 %v785, %v783
        %v838 = vpack.c.b16 %v786, %v784
        %v839 = vpack.c.b16 %v789, %v787
        %v840 = vpack.c.b16 %v790, %v788
        %v841 = vpack.c.b16 %v793, %v791
        %v842 = vpack.c.b16 %v794, %v792
        %v843 = vpack.c.b16 %v797, %v795
        %v844 = vpack.c.b16 %v798, %v796
        %v845 = vpack.c.b16 %v801, %v799
        %v846 = vpack.c.b16 %v802, %v800
        %v847 = vpack.c.b16 %v805, %v803
        %v848 = vpack.c.b16 %v806, %v804
        %v849 = vpack.c.b16 %v809, %v807
        %v850 = vpack.c.b16 %v810, %v808
        %v851 = vpack.c.b16 %v813, %v811
        %v852 = vpack.c.b16 %v814, %v812
        %v853 = vpack.c.b16 %v817, %v815
        %v854 = vpack.c.b16 %v818, %v816
        %v855 = vpack.c.b16 %v821, %v819
        %v856 = vpack.c.b16 %v822, %v820
        %v857 = vpack.c.b16 %v825, %v823
        %v858 = vpack.c.b16 %v826, %v824
        %891 = vmatpush.bf16.msra.mxu0 %v841
        %892 = vmatpush.bf16.msra.mxu0 %v839
        %893 = vmatpush.bf16.msra.mxu0 %v837
        %894 = vmatpush.bf16.msra.mxu0 %v835
        %895 = vmatpush.bf16.msra.mxu0 %v833
        %896 = vmatpush.bf16.msra.mxu0 %v831
        %897 = vmatpush.bf16.msra.mxu0 %v829
        %898 = vmatpush.bf16.msra.mxu0 %v827
        %899 = vmatmul.bf16.gmra.mxu0 %v715
        %v900 = vpop.f32.mrf.mxu0
        %v901 = vadd.f32 0.0, %v900
        %v902 = vpop.f32.mrf.mxu0
        %v903 = vadd.f32 0.0, %v902
        %904 = vmatmul.bf16.gmra.mxu0 %v717
        %v905 = vpop.f32.mrf.mxu0
        %v906 = vadd.f32 0.0, %v905
        %v907 = vpop.f32.mrf.mxu0
        %v908 = vadd.f32 0.0, %v907
        %909 = vmatmul.bf16.gmra.mxu0 %v719
        %v910 = vpop.f32.mrf.mxu0
        %v911 = vadd.f32 0.0, %v910
        %v912 = vpop.f32.mrf.mxu0
        %v913 = vadd.f32 0.0, %v912
        %914 = vmatmul.bf16.gmra.mxu0 %v721
        %v915 = vpop.f32.mrf.mxu0
        %v916 = vadd.f32 0.0, %v915
        %v917 = vpop.f32.mrf.mxu0
        %v918 = vadd.f32 0.0, %v917
        %919 = vdwg.mxu0
        %920 = vmatpush.bf16.msra.mxu0 %v857
        %921 = vmatpush.bf16.msra.mxu0 %v855
        %922 = vmatpush.bf16.msra.mxu0 %v853
        %923 = vmatpush.bf16.msra.mxu0 %v851
        %924 = vmatpush.bf16.msra.mxu0 %v849
        %925 = vmatpush.bf16.msra.mxu0 %v847
        %926 = vmatpush.bf16.msra.mxu0 %v845
        %927 = vmatpush.bf16.msra.mxu0 %v843
        %928 = vmatmul.bf16.gmra.mxu0 %v716
        %v929 = vpop.f32.mrf.mxu0
        %v930 = vadd.f32 %v901, %v929
        %v931 = vpop.f32.mrf.mxu0
        %v932 = vadd.f32 %v903, %v931
        %933 = vmatmul.bf16.gmra.mxu0 %v718
        %v934 = vpop.f32.mrf.mxu0
        %v935 = vadd.f32 %v906, %v934
        %v936 = vpop.f32.mrf.mxu0
        %v937 = vadd.f32 %v908, %v936
        %938 = vmatmul.bf16.gmra.mxu0 %v720
        %v939 = vpop.f32.mrf.mxu0
        %v940 = vadd.f32 %v911, %v939
        %v941 = vpop.f32.mrf.mxu0
        %v942 = vadd.f32 %v913, %v941
        %943 = vmatmul.bf16.gmra.mxu0 %v722
        %v944 = vpop.f32.mrf.mxu0
        %v945 = vadd.f32 %v916, %v944
        %v946 = vpop.f32.mrf.mxu0
        %v947 = vadd.f32 %v918, %v946
        %948 = vdwg.mxu0
        %949 = vmatpush.bf16.msra.mxu0 %v842
        %950 = vmatpush.bf16.msra.mxu0 %v840
        %951 = vmatpush.bf16.msra.mxu0 %v838
        %952 = vmatpush.bf16.msra.mxu0 %v836
        %953 = vmatpush.bf16.msra.mxu0 %v834
        %954 = vmatpush.bf16.msra.mxu0 %v832
        %955 = vmatpush.bf16.msra.mxu0 %v830
        %956 = vmatpush.bf16.msra.mxu0 %v828
        %957 = vmatmul.bf16.gmra.mxu0 %v715
        %v958 = vpop.f32.mrf.mxu0
        %v959 = vadd.f32 0.0, %v958
        %v960 = vpop.f32.mrf.mxu0
        %v961 = vadd.f32 0.0, %v960
        %962 = vmatmul.bf16.gmra.mxu0 %v717
        %v963 = vpop.f32.mrf.mxu0
        %v964 = vadd.f32 0.0, %v963
        %v965 = vpop.f32.mrf.mxu0
        %v966 = vadd.f32 0.0, %v965
        %967 = vmatmul.bf16.gmra.mxu0 %v719
        %v968 = vpop.f32.mrf.mxu0
        %v969 = vadd.f32 0.0, %v968
        %v970 = vpop.f32.mrf.mxu0
        %v971 = vadd.f32 0.0, %v970
        %972 = vmatmul.bf16.gmra.mxu0 %v721
        %v973 = vpop.f32.mrf.mxu0
        %v974 = vadd.f32 0.0, %v973
        %v975 = vpop.f32.mrf.mxu0
        %v976 = vadd.f32 0.0, %v975
        %977 = vdwg.mxu0
        %978 = vmatpush.bf16.msra.mxu0 %v858
        %979 = vmatpush.bf16.msra.mxu0 %v856
        %980 = vmatpush.bf16.msra.mxu0 %v854
        %981 = vmatpush.bf16.msra.mxu0 %v852
        %982 = vmatpush.bf16.msra.mxu0 %v850
        %983 = vmatpush.bf16.msra.mxu0 %v848
        %984 = vmatpush.bf16.msra.mxu0 %v846
        %985 = vmatpush.bf16.msra.mxu0 %v844
        %986 = vmatmul.bf16.gmra.mxu0 %v716
        %v987 = vpop.f32.mrf.mxu0
        %v988 = vadd.f32 %v959, %v987
        %v989 = vpop.f32.mrf.mxu0
        %v990 = vadd.f32 %v961, %v989
        %991 = vmatmul.bf16.gmra.mxu0 %v718
        %v992 = vpop.f32.mrf.mxu0
        %v993 = vadd.f32 %v964, %v992
        %v994 = vpop.f32.mrf.mxu0
        %v995 = vadd.f32 %v966, %v994
        %996 = vmatmul.bf16.gmra.mxu0 %v720
        %v997 = vpop.f32.mrf.mxu0
        %v998 = vadd.f32 %v969, %v997
        %v999 = vpop.f32.mrf.mxu0
        %v1000 = vadd.f32 %v971, %v999
        %1001 = vmatmul.bf16.gmra.mxu0 %v722
        %v1002 = vpop.f32.mrf.mxu0
        %v1003 = vadd.f32 %v974, %v1002
        %v1004 = vpop.f32.mrf.mxu0
        %v1005 = vadd.f32 %v976, %v1004
        %1006 = vdwg.mxu0
        %v1015 = vunpack.c.l.b16 %v503
        %v1016 = vunpack.c.h.b16 %v503
        %v1017 = vunpack.c.l.b16 %v504
        %v1018 = vunpack.c.h.b16 %v504
        %v1019 = vunpack.c.l.b16 %v505
        %v1020 = vunpack.c.h.b16 %v505
        %v1021 = vunpack.c.l.b16 %v506
        %v1022 = vunpack.c.h.b16 %v506
        %v1023 = vunpack.c.l.b16 %v507
        %v1024 = vunpack.c.h.b16 %v507
        %v1025 = vunpack.c.l.b16 %v508
        %v1026 = vunpack.c.h.b16 %v508
        %v1027 = vunpack.c.l.b16 %v509
        %v1028 = vunpack.c.h.b16 %v509
        %v1029 = vunpack.c.l.b16 %v510
        %v1030 = vunpack.c.h.b16 %v510
        %v1031 = vpack.c.b16 %v1017, %v1015
        %v1032 = vpack.c.b16 %v1018, %v1016
        %v1033 = vpack.c.b16 %v1021, %v1019
        %v1034 = vpack.c.b16 %v1022, %v1020
        %v1035 = vpack.c.b16 %v1025, %v1023
        %v1036 = vpack.c.b16 %v1026, %v1024
        %v1037 = vpack.c.b16 %v1029, %v1027
        %v1038 = vpack.c.b16 %v1030, %v1028
        %v1079 = vunpack.c.l.b16 %v511
        %v1080 = vunpack.c.h.b16 %v511
        %v1081 = vunpack.c.l.b16 %v512
        %v1082 = vunpack.c.h.b16 %v512
        %v1083 = vunpack.c.l.b16 %v513
        %v1084 = vunpack.c.h.b16 %v513
        %v1085 = vunpack.c.l.b16 %v514
        %v1086 = vunpack.c.h.b16 %v514
        %v1087 = vunpack.c.l.b16 %v515
        %v1088 = vunpack.c.h.b16 %v515
        %v1089 = vunpack.c.l.b16 %v516
        %v1090 = vunpack.c.h.b16 %v516
        %v1091 = vunpack.c.l.b16 %v517
        %v1092 = vunpack.c.h.b16 %v517
        %v1093 = vunpack.c.l.b16 %v518
        %v1094 = vunpack.c.h.b16 %v518
        %v1095 = vunpack.c.l.b16 %v519
        %v1096 = vunpack.c.h.b16 %v519
        %v1097 = vunpack.c.l.b16 %v520
        %v1098 = vunpack.c.h.b16 %v520
        %v1099 = vunpack.c.l.b16 %v521
        %v1100 = vunpack.c.h.b16 %v521
        %v1101 = vunpack.c.l.b16 %v522
        %v1102 = vunpack.c.h.b16 %v522
        %v1103 = vunpack.c.l.b16 %v523
        %v1104 = vunpack.c.h.b16 %v523
        %v1105 = vunpack.c.l.b16 %v524
        %v1106 = vunpack.c.h.b16 %v524
        %v1107 = vunpack.c.l.b16 %v525
        %v1108 = vunpack.c.h.b16 %v525
        %v1109 = vunpack.c.l.b16 %v526
        %v1110 = vunpack.c.h.b16 %v526
        %v1111 = vunpack.c.l.b16 %v527
        %v1112 = vunpack.c.h.b16 %v527
        %v1113 = vunpack.c.l.b16 %v528
        %v1114 = vunpack.c.h.b16 %v528
        %v1115 = vunpack.c.l.b16 %v529
        %v1116 = vunpack.c.h.b16 %v529
        %v1117 = vunpack.c.l.b16 %v530
        %v1118 = vunpack.c.h.b16 %v530
        %v1119 = vunpack.c.l.b16 %v531
        %v1120 = vunpack.c.h.b16 %v531
        %v1121 = vunpack.c.l.b16 %v532
        %v1122 = vunpack.c.h.b16 %v532
        %v1123 = vunpack.c.l.b16 %v533
        %v1124 = vunpack.c.h.b16 %v533
        %v1125 = vunpack.c.l.b16 %v534
        %v1126 = vunpack.c.h.b16 %v534
        %v1127 = vunpack.c.l.b16 %v535
        %v1128 = vunpack.c.h.b16 %v535
        %v1129 = vunpack.c.l.b16 %v536
        %v1130 = vunpack.c.h.b16 %v536
        %v1131 = vunpack.c.l.b16 %v537
        %v1132 = vunpack.c.h.b16 %v537
        %v1133 = vunpack.c.l.b16 %v538
        %v1134 = vunpack.c.h.b16 %v538
        %v1135 = vunpack.c.l.b16 %v539
        %v1136 = vunpack.c.h.b16 %v539
        %v1137 = vunpack.c.l.b16 %v540
        %v1138 = vunpack.c.h.b16 %v540
        %v1139 = vunpack.c.l.b16 %v541
        %v1140 = vunpack.c.h.b16 %v541
        %v1141 = vunpack.c.l.b16 %v542
        %v1142 = vunpack.c.h.b16 %v542
        %v1143 = vpack.c.b16 %v1081, %v1079
        %v1144 = vpack.c.b16 %v1082, %v1080
        %v1145 = vpack.c.b16 %v1085, %v1083
        %v1146 = vpack.c.b16 %v1086, %v1084
        %v1147 = vpack.c.b16 %v1089, %v1087
        %v1148 = vpack.c.b16 %v1090, %v1088
        %v1149 = vpack.c.b16 %v1093, %v1091
        %v1150 = vpack.c.b16 %v1094, %v1092
        %v1151 = vpack.c.b16 %v1097, %v1095
        %v1152 = vpack.c.b16 %v1098, %v1096
        %v1153 = vpack.c.b16 %v1101, %v1099
        %v1154 = vpack.c.b16 %v1102, %v1100
        %v1155 = vpack.c.b16 %v1105, %v1103
        %v1156 = vpack.c.b16 %v1106, %v1104
        %v1157 = vpack.c.b16 %v1109, %v1107
        %v1158 = vpack.c.b16 %v1110, %v1108
        %v1159 = vpack.c.b16 %v1113, %v1111
        %v1160 = vpack.c.b16 %v1114, %v1112
        %v1161 = vpack.c.b16 %v1117, %v1115
        %v1162 = vpack.c.b16 %v1118, %v1116
        %v1163 = vpack.c.b16 %v1121, %v1119
        %v1164 = vpack.c.b16 %v1122, %v1120
        %v1165 = vpack.c.b16 %v1125, %v1123
        %v1166 = vpack.c.b16 %v1126, %v1124
        %v1167 = vpack.c.b16 %v1129, %v1127
        %v1168 = vpack.c.b16 %v1130, %v1128
        %v1169 = vpack.c.b16 %v1133, %v1131
        %v1170 = vpack.c.b16 %v1134, %v1132
        %v1171 = vpack.c.b16 %v1137, %v1135
        %v1172 = vpack.c.b16 %v1138, %v1136
        %v1173 = vpack.c.b16 %v1141, %v1139
        %v1174 = vpack.c.b16 %v1142, %v1140
        %1207 = vmatpush.bf16.msra.mxu0 %v1157
        %1208 = vmatpush.bf16.msra.mxu0 %v1155
        %1209 = vmatpush.bf16.msra.mxu0 %v1153
        %1210 = vmatpush.bf16.msra.mxu0 %v1151
        %1211 = vmatpush.bf16.msra.mxu0 %v1149
        %1212 = vmatpush.bf16.msra.mxu0 %v1147
        %1213 = vmatpush.bf16.msra.mxu0 %v1145
        %1214 = vmatpush.bf16.msra.mxu0 %v1143
        %1215 = vmatmul.bf16.gmra.mxu0 %v1031
        %v1216 = vpop.f32.mrf.mxu0
        %v1217 = vadd.f32 %v930, %v1216
        %v1218 = vpop.f32.mrf.mxu0
        %v1219 = vadd.f32 %v932, %v1218
        %1220 = vmatmul.bf16.gmra.mxu0 %v1033
        %v1221 = vpop.f32.mrf.mxu0
        %v1222 = vadd.f32 %v935, %v1221
        %v1223 = vpop.f32.mrf.mxu0
        %v1224 = vadd.f32 %v937, %v1223
        %1225 = vmatmul.bf16.gmra.mxu0 %v1035
        %v1226 = vpop.f32.mrf.mxu0
        %v1227 = vadd.f32 %v940, %v1226
        %v1228 = vpop.f32.mrf.mxu0
        %v1229 = vadd.f32 %v942, %v1228
        %1230 = vmatmul.bf16.gmra.mxu0 %v1037
        %v1231 = vpop.f32.mrf.mxu0
        %v1232 = vadd.f32 %v945, %v1231
        %v1233 = vpop.f32.mrf.mxu0
        %v1234 = vadd.f32 %v947, %v1233
        %1235 = vdwg.mxu0
        %1236 = vmatpush.bf16.msra.mxu0 %v1173
        %1237 = vmatpush.bf16.msra.mxu0 %v1171
        %1238 = vmatpush.bf16.msra.mxu0 %v1169
        %1239 = vmatpush.bf16.msra.mxu0 %v1167
        %1240 = vmatpush.bf16.msra.mxu0 %v1165
        %1241 = vmatpush.bf16.msra.mxu0 %v1163
        %1242 = vmatpush.bf16.msra.mxu0 %v1161
        %1243 = vmatpush.bf16.msra.mxu0 %v1159
        %1244 = vmatmul.bf16.gmra.mxu0 %v1032
        %v1245 = vpop.f32.mrf.mxu0
        %v1246 = vadd.f32 %v1217, %v1245
        %v1247 = vpop.f32.mrf.mxu0
        %v1248 = vadd.f32 %v1219, %v1247
        %1249 = vmatmul.bf16.gmra.mxu0 %v1034
        %v1250 = vpop.f32.mrf.mxu0
        %v1251 = vadd.f32 %v1222, %v1250
        %v1252 = vpop.f32.mrf.mxu0
        %v1253 = vadd.f32 %v1224, %v1252
        %1254 = vmatmul.bf16.gmra.mxu0 %v1036
        %v1255 = vpop.f32.mrf.mxu0
        %v1256 = vadd.f32 %v1227, %v1255
        %v1257 = vpop.f32.mrf.mxu0
        %v1258 = vadd.f32 %v1229, %v1257
        %1259 = vmatmul.bf16.gmra.mxu0 %v1038
        %v1260 = vpop.f32.mrf.mxu0
        %v1261 = vadd.f32 %v1232, %v1260
        %v1262 = vpop.f32.mrf.mxu0
        %v1263 = vadd.f32 %v1234, %v1262
        %1264 = vdwg.mxu0
        %1265 = vmatpush.bf16.msra.mxu0 %v1158
        %1266 = vmatpush.bf16.msra.mxu0 %v1156
        %1267 = vmatpush.bf16.msra.mxu0 %v1154
        %1268 = vmatpush.bf16.msra.mxu0 %v1152
        %1269 = vmatpush.bf16.msra.mxu0 %v1150
        %1270 = vmatpush.bf16.msra.mxu0 %v1148
        %1271 = vmatpush.bf16.msra.mxu0 %v1146
        %1272 = vmatpush.bf16.msra.mxu0 %v1144
        %1273 = vmatmul.bf16.gmra.mxu0 %v1031
        %v1274 = vpop.f32.mrf.mxu0
        %v1275 = vadd.f32 %v988, %v1274
        %v1276 = vpop.f32.mrf.mxu0
        %v1277 = vadd.f32 %v990, %v1276
        %1278 = vmatmul.bf16.gmra.mxu0 %v1033
        %v1279 = vpop.f32.mrf.mxu0
        %v1280 = vadd.f32 %v993, %v1279
        %v1281 = vpop.f32.mrf.mxu0
        %v1282 = vadd.f32 %v995, %v1281
        %1283 = vmatmul.bf16.gmra.mxu0 %v1035
        %v1284 = vpop.f32.mrf.mxu0
        %v1285 = vadd.f32 %v998, %v1284
        %v1286 = vpop.f32.mrf.mxu0
        %v1287 = vadd.f32 %v1000, %v1286
        %1288 = vmatmul.bf16.gmra.mxu0 %v1037
        %v1289 = vpop.f32.mrf.mxu0
        %v1290 = vadd.f32 %v1003, %v1289
        %v1291 = vpop.f32.mrf.mxu0
        %v1292 = vadd.f32 %v1005, %v1291
        %1293 = vdwg.mxu0
        %1294 = vmatpush.bf16.msra.mxu0 %v1174
        %1295 = vmatpush.bf16.msra.mxu0 %v1172
        %1296 = vmatpush.bf16.msra.mxu0 %v1170
        %1297 = vmatpush.bf16.msra.mxu0 %v1168
        %1298 = vmatpush.bf16.msra.mxu0 %v1166
        %1299 = vmatpush.bf16.msra.mxu0 %v1164
        %1300 = vmatpush.bf16.msra.mxu0 %v1162
        %1301 = vmatpush.bf16.msra.mxu0 %v1160
        %1302 = vmatmul.bf16.gmra.mxu0 %v1032
        %v1303 = vpop.f32.mrf.mxu0
        %v1304 = vadd.f32 %v1275, %v1303
        %v1305 = vpop.f32.mrf.mxu0
        %v1306 = vadd.f32 %v1277, %v1305
        %1307 = vmatmul.bf16.gmra.mxu0 %v1034
        %v1308 = vpop.f32.mrf.mxu0
        %v1309 = vadd.f32 %v1280, %v1308
        %v1310 = vpop.f32.mrf.mxu0
        %v1311 = vadd.f32 %v1282, %v1310
        %1312 = vmatmul.bf16.gmra.mxu0 %v1036
        %v1313 = vpop.f32.mrf.mxu0
        %v1314 = vadd.f32 %v1285, %v1313
        %v1315 = vpop.f32.mrf.mxu0
        %v1316 = vadd.f32 %v1287, %v1315
        %1317 = vmatmul.bf16.gmra.mxu0 %v1038
        %v1318 = vpop.f32.mrf.mxu0
        %v1319 = vadd.f32 %v1290, %v1318
        %v1320 = vpop.f32.mrf.mxu0
        %v1321 = vadd.f32 %v1292, %v1320
        %1322 = vdwg.mxu0
        %v1323 = vld [vmem:[#allocation2] sm:$0xee]
        %v1324 = vld [vmem:[#allocation2 + $0x10] sm:$0xee]
        %v1325 = vld [vmem:[#allocation2 + $0x20] sm:$0xee]
        %v1326 = vld [vmem:[#allocation2 + $0x30] sm:$0xee]
        %v1327 = vld [vmem:[#allocation2 + $0x40] sm:$0xee]
        %v1328 = vld [vmem:[#allocation2 + $0x50] sm:$0xee]
        %v1329 = vld [vmem:[#allocation2 + $0x60] sm:$0xee]
        %v1330 = vld [vmem:[#allocation2 + $0x70] sm:$0xee]
        %vm1347 = vcmask 1042432
        %vm1348 = vcmask 1046532
        %vm1349 = vmor %vm1347, %vm1348
        %v1350 = vrot.slane %v1323, 5
        %v1351 = vrot.slane %v1350, 4
        %v1352 = vrot.slane %v543, 5
        %v1353 = vsel %vm1349, %v1351, %v1352
        %v1354 = vrot.slane %v1324, 5
        %v1355 = vrot.slane %v1354, 4
        %v1356 = vrot.slane %v544, 5
        %v1357 = vsel %vm1349, %v1355, %v1356
        %v1358 = vrot.slane %v1325, 5
        %v1359 = vrot.slane %v1358, 4
        %v1360 = vrot.slane %v545, 5
        %v1361 = vsel %vm1349, %v1359, %v1360
        %v1362 = vrot.slane %v1326, 5
        %v1363 = vrot.slane %v1362, 4
        %v1364 = vrot.slane %v546, 5
        %v1365 = vsel %vm1349, %v1363, %v1364
        %v1366 = vrot.slane %v1327, 5
        %v1367 = vrot.slane %v1366, 4
        %v1368 = vrot.slane %v547, 5
        %v1369 = vsel %vm1349, %v1367, %v1368
        %v1370 = vrot.slane %v1328, 5
        %v1371 = vrot.slane %v1370, 4
        %v1372 = vrot.slane %v548, 5
        %v1373 = vsel %vm1349, %v1371, %v1372
        %v1374 = vrot.slane %v1329, 5
        %v1375 = vrot.slane %v1374, 4
        %v1376 = vrot.slane %v549, 5
        %v1377 = vsel %vm1349, %v1375, %v1376
        %v1378 = vrot.slane %v1330, 5
        %v1379 = vrot.slane %v1378, 4
        %v1380 = vrot.slane %v550, 5
        %v1381 = vsel %vm1349, %v1379, %v1380
        %s1382 = scalar_lea.vmem [#allocation3], 512
        %v1383 = vld [vmem:[%s1382] sm:$0xff]
        %v1384 = vld [vmem:[%s1382 + $0x8] sm:$0xff]
        %v1385 = vld [vmem:[%s1382 + $0x10] sm:$0xff]
        %v1386 = vld [vmem:[%s1382 + $0x18] sm:$0xff]
        %v1387 = vld [vmem:[%s1382 + $0x20] sm:$0xff]
        %v1388 = vld [vmem:[%s1382 + $0x28] sm:$0xff]
        %v1389 = vld [vmem:[%s1382 + $0x30] sm:$0xff]
        %v1390 = vld [vmem:[%s1382 + $0x38] sm:$0xff]
        %v1391 = vld [vmem:[%s1382 + $0x40] sm:$0xff]
        %v1392 = vld [vmem:[%s1382 + $0x48] sm:$0xff]
        %v1393 = vld [vmem:[%s1382 + $0x50] sm:$0xff]
        %v1394 = vld [vmem:[%s1382 + $0x58] sm:$0xff]
        %v1395 = vld [vmem:[%s1382 + $0x60] sm:$0xff]
        %v1396 = vld [vmem:[%s1382 + $0x68] sm:$0xff]
        %v1397 = vld [vmem:[%s1382 + $0x70] sm:$0xff]
        %v1398 = vld [vmem:[%s1382 + $0x78] sm:$0xff]
        %v1399 = vld [vmem:[%s1382 + $0x80] sm:$0xff]
        %v1400 = vld [vmem:[%s1382 + $0x88] sm:$0xff]
        %v1401 = vld [vmem:[%s1382 + $0x90] sm:$0xff]
        %v1402 = vld [vmem:[%s1382 + $0x98] sm:$0xff]
        %v1403 = vld [vmem:[%s1382 + $0xa0] sm:$0xff]
        %v1404 = vld [vmem:[%s1382 + $0xa8] sm:$0xff]
        %v1405 = vld [vmem:[%s1382 + $0xb0] sm:$0xff]
        %v1406 = vld [vmem:[%s1382 + $0xb8] sm:$0xff]
        %v1407 = vld [vmem:[%s1382 + $0xc0] sm:$0xff]
        %v1408 = vld [vmem:[%s1382 + $0xc8] sm:$0xff]
        %v1409 = vld [vmem:[%s1382 + $0xd0] sm:$0xff]
        %v1410 = vld [vmem:[%s1382 + $0xd8] sm:$0xff]
        %v1411 = vld [vmem:[%s1382 + $0xe0] sm:$0xff]
        %v1412 = vld [vmem:[%s1382 + $0xe8] sm:$0xff]
        %v1413 = vld [vmem:[%s1382 + $0xf0] sm:$0xff]
        %v1414 = vld [vmem:[%s1382 + $0xf8] sm:$0xff]
        %v1415 = vunpack.c.l.b16 %v1353
        %v1416 = vunpack.c.h.b16 %v1353
        %v1417 = vunpack.c.l.b16 %v1357
        %v1418 = vunpack.c.h.b16 %v1357
        %v1419 = vunpack.c.l.b16 %v1361
        %v1420 = vunpack.c.h.b16 %v1361
        %v1421 = vunpack.c.l.b16 %v1365
        %v1422 = vunpack.c.h.b16 %v1365
        %v1423 = vunpack.c.l.b16 %v1369
        %v1424 = vunpack.c.h.b16 %v1369
        %v1425 = vunpack.c.l.b16 %v1373
        %v1426 = vunpack.c.h.b16 %v1373
        %v1427 = vunpack.c.l.b16 %v1377
        %v1428 = vunpack.c.h.b16 %v1377
        %v1429 = vunpack.c.l.b16 %v1381
        %v1430 = vunpack.c.h.b16 %v1381
        %v1431 = vpack.c.b16 %v1417, %v1415
        %v1432 = vpack.c.b16 %v1418, %v1416
        %v1433 = vpack.c.b16 %v1421, %v1419
        %v1434 = vpack.c.b16 %v1422, %v1420
        %v1435 = vpack.c.b16 %v1425, %v1423
        %v1436 = vpack.c.b16 %v1426, %v1424
        %v1437 = vpack.c.b16 %v1429, %v1427
        %v1438 = vpack.c.b16 %v1430, %v1428
        %v1479 = vunpack.c.l.b16 %v1383
        %v1480 = vunpack.c.h.b16 %v1383
        %v1481 = vunpack.c.l.b16 %v1384
        %v1482 = vunpack.c.h.b16 %v1384
        %v1483 = vunpack.c.l.b16 %v1385
        %v1484 = vunpack.c.h.b16 %v1385
        %v1485 = vunpack.c.l.b16 %v1386
        %v1486 = vunpack.c.h.b16 %v1386
        %v1487 = vunpack.c.l.b16 %v1387
        %v1488 = vunpack.c.h.b16 %v1387
        %v1489 = vunpack.c.l.b16 %v1388
        %v1490 = vunpack.c.h.b16 %v1388
        %v1491 = vunpack.c.l.b16 %v1389
        %v1492 = vunpack.c.h.b16 %v1389
        %v1493 = vunpack.c.l.b16 %v1390
        %v1494 = vunpack.c.h.b16 %v1390
        %v1495 = vunpack.c.l.b16 %v1391
        %v1496 = vunpack.c.h.b16 %v1391
        %v1497 = vunpack.c.l.b16 %v1392
        %v1498 = vunpack.c.h.b16 %v1392
        %v1499 = vunpack.c.l.b16 %v1393
        %v1500 = vunpack.c.h.b16 %v1393
        %v1501 = vunpack.c.l.b16 %v1394
        %v1502 = vunpack.c.h.b16 %v1394
        %v1503 = vunpack.c.l.b16 %v1395
        %v1504 = vunpack.c.h.b16 %v1395
        %v1505 = vunpack.c.l.b16 %v1396
        %v1506 = vunpack.c.h.b16 %v1396
        %v1507 = vunpack.c.l.b16 %v1397
        %v1508 = vunpack.c.h.b16 %v1397
        %v1509 = vunpack.c.l.b16 %v1398
        %v1510 = vunpack.c.h.b16 %v1398
        %v1511 = vunpack.c.l.b16 %v1399
        %v1512 = vunpack.c.h.b16 %v1399
        %v1513 = vunpack.c.l.b16 %v1400
        %v1514 = vunpack.c.h.b16 %v1400
        %v1515 = vunpack.c.l.b16 %v1401
        %v1516 = vunpack.c.h.b16 %v1401
        %v1517 = vunpack.c.l.b16 %v1402
        %v1518 = vunpack.c.h.b16 %v1402
        %v1519 = vunpack.c.l.b16 %v1403
        %v1520 = vunpack.c.h.b16 %v1403
        %v1521 = vunpack.c.l.b16 %v1404
        %v1522 = vunpack.c.h.b16 %v1404
        %v1523 = vunpack.c.l.b16 %v1405
        %v1524 = vunpack.c.h.b16 %v1405
        %v1525 = vunpack.c.l.b16 %v1406
        %v1526 = vunpack.c.h.b16 %v1406
        %v1527 = vunpack.c.l.b16 %v1407
        %v1528 = vunpack.c.h.b16 %v1407
        %v1529 = vunpack.c.l.b16 %v1408
        %v1530 = vunpack.c.h.b16 %v1408
        %v1531 = vunpack.c.l.b16 %v1409
        %v1532 = vunpack.c.h.b16 %v1409
        %v1533 = vunpack.c.l.b16 %v1410
        %v1534 = vunpack.c.h.b16 %v1410
        %v1535 = vunpack.c.l.b16 %v1411
        %v1536 = vunpack.c.h.b16 %v1411
        %v1537 = vunpack.c.l.b16 %v1412
        %v1538 = vunpack.c.h.b16 %v1412
        %v1539 = vunpack.c.l.b16 %v1413
        %v1540 = vunpack.c.h.b16 %v1413
        %v1541 = vunpack.c.l.b16 %v1414
        %v1542 = vunpack.c.h.b16 %v1414
        %v1543 = vpack.c.b16 %v1481, %v1479
        %v1544 = vpack.c.b16 %v1482, %v1480
        %v1545 = vpack.c.b16 %v1485, %v1483
        %v1546 = vpack.c.b16 %v1486, %v1484
        %v1547 = vpack.c.b16 %v1489, %v1487
        %v1548 = vpack.c.b16 %v1490, %v1488
        %v1549 = vpack.c.b16 %v1493, %v1491
        %v1550 = vpack.c.b16 %v1494, %v1492
        %v1551 = vpack.c.b16 %v1497, %v1495
        %v1552 = vpack.c.b16 %v1498, %v1496
        %v1553 = vpack.c.b16 %v1501, %v1499
        %v1554 = vpack.c.b16 %v1502, %v1500
        %v1555 = vpack.c.b16 %v1505, %v1503
        %v1556 = vpack.c.b16 %v1506, %v1504
        %v1557 = vpack.c.b16 %v1509, %v1507
        %v1558 = vpack.c.b16 %v1510, %v1508
        %v1559 = vpack.c.b16 %v1513, %v1511
        %v1560 = vpack.c.b16 %v1514, %v1512
        %v1561 = vpack.c.b16 %v1517, %v1515
        %v1562 = vpack.c.b16 %v1518, %v1516
        %v1563 = vpack.c.b16 %v1521, %v1519
        %v1564 = vpack.c.b16 %v1522, %v1520
        %v1565 = vpack.c.b16 %v1525, %v1523
        %v1566 = vpack.c.b16 %v1526, %v1524
        %v1567 = vpack.c.b16 %v1529, %v1527
        %v1568 = vpack.c.b16 %v1530, %v1528
        %v1569 = vpack.c.b16 %v1533, %v1531
        %v1570 = vpack.c.b16 %v1534, %v1532
        %v1571 = vpack.c.b16 %v1537, %v1535
        %v1572 = vpack.c.b16 %v1538, %v1536
        %v1573 = vpack.c.b16 %v1541, %v1539
        %v1574 = vpack.c.b16 %v1542, %v1540
        %1607 = vmatpush.bf16.msra.mxu0 %v1557
        %1608 = vmatpush.bf16.msra.mxu0 %v1555
        %1609 = vmatpush.bf16.msra.mxu0 %v1553
        %1610 = vmatpush.bf16.msra.mxu0 %v1551
        %1611 = vmatpush.bf16.msra.mxu0 %v1549
        %1612 = vmatpush.bf16.msra.mxu0 %v1547
        %1613 = vmatpush.bf16.msra.mxu0 %v1545
        %1614 = vmatpush.bf16.msra.mxu0 %v1543
        %1615 = vmatmul.bf16.gmra.mxu0 %v1431
        %v1616 = vpop.f32.mrf.mxu0
        %v1617 = vadd.f32 0.0, %v1616
        %v1618 = vpop.f32.mrf.mxu0
        %v1619 = vadd.f32 0.0, %v1618
        %1620 = vmatmul.bf16.gmra.mxu0 %v1433
        %v1621 = vpop.f32.mrf.mxu0
        %v1622 = vadd.f32 0.0, %v1621
        %v1623 = vpop.f32.mrf.mxu0
        %v1624 = vadd.f32 0.0, %v1623
        %1625 = vmatmul.bf16.gmra.mxu0 %v1435
        %v1626 = vpop.f32.mrf.mxu0
        %v1627 = vadd.f32 0.0, %v1626
        %v1628 = vpop.f32.mrf.mxu0
        %v1629 = vadd.f32 0.0, %v1628
        %1630 = vmatmul.bf16.gmra.mxu0 %v1437
        %v1631 = vpop.f32.mrf.mxu0
        %v1632 = vadd.f32 0.0, %v1631
        %v1633 = vpop.f32.mrf.mxu0
        %v1634 = vadd.f32 0.0, %v1633
        %1635 = vdwg.mxu0
        %1636 = vmatpush.bf16.msra.mxu0 %v1573
        %1637 = vmatpush.bf16.msra.mxu0 %v1571
        %1638 = vmatpush.bf16.msra.mxu0 %v1569
        %1639 = vmatpush.bf16.msra.mxu0 %v1567
        %1640 = vmatpush.bf16.msra.mxu0 %v1565
        %1641 = vmatpush.bf16.msra.mxu0 %v1563
        %1642 = vmatpush.bf16.msra.mxu0 %v1561
        %1643 = vmatpush.bf16.msra.mxu0 %v1559
        %1644 = vmatmul.bf16.gmra.mxu0 %v1432
        %v1645 = vpop.f32.mrf.mxu0
        %v1646 = vadd.f32 %v1617, %v1645
        %v1647 = vpop.f32.mrf.mxu0
        %v1648 = vadd.f32 %v1619, %v1647
        %1649 = vmatmul.bf16.gmra.mxu0 %v1434
        %v1650 = vpop.f32.mrf.mxu0
        %v1651 = vadd.f32 %v1622, %v1650
        %v1652 = vpop.f32.mrf.mxu0
        %v1653 = vadd.f32 %v1624, %v1652
        %1654 = vmatmul.bf16.gmra.mxu0 %v1436
        %v1655 = vpop.f32.mrf.mxu0
        %v1656 = vadd.f32 %v1627, %v1655
        %v1657 = vpop.f32.mrf.mxu0
        %v1658 = vadd.f32 %v1629, %v1657
        %1659 = vmatmul.bf16.gmra.mxu0 %v1438
        %v1660 = vpop.f32.mrf.mxu0
        %v1661 = vadd.f32 %v1632, %v1660
        %v1662 = vpop.f32.mrf.mxu0
        %v1663 = vadd.f32 %v1634, %v1662
        %1664 = vdwg.mxu0
        %1665 = vmatpush.bf16.msra.mxu0 %v1558
        %1666 = vmatpush.bf16.msra.mxu0 %v1556
        %1667 = vmatpush.bf16.msra.mxu0 %v1554
        %1668 = vmatpush.bf16.msra.mxu0 %v1552
        %1669 = vmatpush.bf16.msra.mxu0 %v1550
        %1670 = vmatpush.bf16.msra.mxu0 %v1548
        %1671 = vmatpush.bf16.msra.mxu0 %v1546
        %1672 = vmatpush.bf16.msra.mxu0 %v1544
        %1673 = vmatmul.bf16.gmra.mxu0 %v1431
        %v1674 = vpop.f32.mrf.mxu0
        %v1675 = vadd.f32 0.0, %v1674
        %v1676 = vpop.f32.mrf.mxu0
        %v1677 = vadd.f32 0.0, %v1676
        %1678 = vmatmul.bf16.gmra.mxu0 %v1433
        %v1679 = vpop.f32.mrf.mxu0
        %v1680 = vadd.f32 0.0, %v1679
        %v1681 = vpop.f32.mrf.mxu0
        %v1682 = vadd.f32 0.0, %v1681
        %1683 = vmatmul.bf16.gmra.mxu0 %v1435
        %v1684 = vpop.f32.mrf.mxu0
        %v1685 = vadd.f32 0.0, %v1684
        %v1686 = vpop.f32.mrf.mxu0
        %v1687 = vadd.f32 0.0, %v1686
        %1688 = vmatmul.bf16.gmra.mxu0 %v1437
        %v1689 = vpop.f32.mrf.mxu0
        %v1690 = vadd.f32 0.0, %v1689
        %v1691 = vpop.f32.mrf.mxu0
        %v1692 = vadd.f32 0.0, %v1691
        %1693 = vdwg.mxu0
        %1694 = vmatpush.bf16.msra.mxu0 %v1574
        %1695 = vmatpush.bf16.msra.mxu0 %v1572
        %1696 = vmatpush.bf16.msra.mxu0 %v1570
        %1697 = vmatpush.bf16.msra.mxu0 %v1568
        %1698 = vmatpush.bf16.msra.mxu0 %v1566
        %1699 = vmatpush.bf16.msra.mxu0 %v1564
        %1700 = vmatpush.bf16.msra.mxu0 %v1562
        %1701 = vmatpush.bf16.msra.mxu0 %v1560
        %1702 = vmatmul.bf16.gmra.mxu0 %v1432
        %v1703 = vpop.f32.mrf.mxu0
        %v1704 = vadd.f32 %v1675, %v1703
        %v1705 = vpop.f32.mrf.mxu0
        %v1706 = vadd.f32 %v1677, %v1705
        %1707 = vmatmul.bf16.gmra.mxu0 %v1434
        %v1708 = vpop.f32.mrf.mxu0
        %v1709 = vadd.f32 %v1680, %v1708
        %v1710 = vpop.f32.mrf.mxu0
        %v1711 = vadd.f32 %v1682, %v1710
        %1712 = vmatmul.bf16.gmra.mxu0 %v1436
        %v1713 = vpop.f32.mrf.mxu0
        %v1714 = vadd.f32 %v1685, %v1713
        %v1715 = vpop.f32.mrf.mxu0
        %v1716 = vadd.f32 %v1687, %v1715
        %1717 = vmatmul.bf16.gmra.mxu0 %v1438
        %v1718 = vpop.f32.mrf.mxu0
        %v1719 = vadd.f32 %v1690, %v1718
        %v1720 = vpop.f32.mrf.mxu0
        %v1721 = vadd.f32 %v1692, %v1720
        %1722 = vdwg.mxu0
        %v1723 = vadd.f32 %v1246, %v1646
        %v1724 = vadd.f32 %v1304, %v1704
        %v1725 = vadd.f32 %v1248, %v1648
        %v1726 = vadd.f32 %v1306, %v1706
        %v1727 = vadd.f32 %v1251, %v1651
        %v1728 = vadd.f32 %v1309, %v1709
        %v1729 = vadd.f32 %v1253, %v1653
        %v1730 = vadd.f32 %v1311, %v1711
        %v1731 = vadd.f32 %v1256, %v1656
        %v1732 = vadd.f32 %v1314, %v1714
        %v1733 = vadd.f32 %v1258, %v1658
        %v1734 = vadd.f32 %v1316, %v1716
        %v1735 = vadd.f32 %v1261, %v1661
        %v1736 = vadd.f32 %v1319, %v1719
        %v1737 = vadd.f32 %v1263, %v1663
        %v1738 = vadd.f32 %v1321, %v1721
        %v1739 = vld [vmem:[%s440] sm:$0xff]
        %v1740 = vld [vmem:[%s440 + $0x10] sm:$0xff]
        %v1741 = vld [vmem:[%s440 + $0x20] sm:$0xff]
        %v1742 = vld [vmem:[%s440 + $0x30] sm:$0xff]
        %v1743 = vld [vmem:[%s440 + $0x40] sm:$0xff]
        %v1744 = vld [vmem:[%s440 + $0x50] sm:$0xff]
        %v1745 = vld [vmem:[%s440 + $0x60] sm:$0xff]
        %v1746 = vld [vmem:[%s440 + $0x70] sm:$0xff]
        %s1747 = scalar_lea.vmem [#allocation3], 768
        %v1748 = vld [vmem:[%s1747] sm:$0xff]
        %v1749 = vld [vmem:[%s1747 + $0x8] sm:$0xff]
        %v1750 = vld [vmem:[%s1747 + $0x10] sm:$0xff]
        %v1751 = vld [vmem:[%s1747 + $0x18] sm:$0xff]
        %v1752 = vld [vmem:[%s1747 + $0x20] sm:$0xff]
        %v1753 = vld [vmem:[%s1747 + $0x28] sm:$0xff]
        %v1754 = vld [vmem:[%s1747 + $0x30] sm:$0xff]
        %v1755 = vld [vmem:[%s1747 + $0x38] sm:$0xff]
        %v1756 = vld [vmem:[%s1747 + $0x40] sm:$0xff]
        %v1757 = vld [vmem:[%s1747 + $0x48] sm:$0xff]
        %v1758 = vld [vmem:[%s1747 + $0x50] sm:$0xff]
        %v1759 = vld [vmem:[%s1747 + $0x58] sm:$0xff]
        %v1760 = vld [vmem:[%s1747 + $0x60] sm:$0xff]
        %v1761 = vld [vmem:[%s1747 + $0x68] sm:$0xff]
        %v1762 = vld [vmem:[%s1747 + $0x70] sm:$0xff]
        %v1763 = vld [vmem:[%s1747 + $0x78] sm:$0xff]
        %v1764 = vld [vmem:[%s1747 + $0x80] sm:$0xff]
        %v1765 = vld [vmem:[%s1747 + $0x88] sm:$0xff]
        %v1766 = vld [vmem:[%s1747 + $0x90] sm:$0xff]
        %v1767 = vld [vmem:[%s1747 + $0x98] sm:$0xff]
        %v1768 = vld [vmem:[%s1747 + $0xa0] sm:$0xff]
        %v1769 = vld [vmem:[%s1747 + $0xa8] sm:$0xff]
        %v1770 = vld [vmem:[%s1747 + $0xb0] sm:$0xff]
        %v1771 = vld [vmem:[%s1747 + $0xb8] sm:$0xff]
        %v1772 = vld [vmem:[%s1747 + $0xc0] sm:$0xff]
        %v1773 = vld [vmem:[%s1747 + $0xc8] sm:$0xff]
        %v1774 = vld [vmem:[%s1747 + $0xd0] sm:$0xff]
        %v1775 = vld [vmem:[%s1747 + $0xd8] sm:$0xff]
        %v1776 = vld [vmem:[%s1747 + $0xe0] sm:$0xff]
        %v1777 = vld [vmem:[%s1747 + $0xe8] sm:$0xff]
        %v1778 = vld [vmem:[%s1747 + $0xf0] sm:$0xff]
        %v1779 = vld [vmem:[%s1747 + $0xf8] sm:$0xff]
        %v1788 = vunpack.c.l.b16 %v1739
        %v1789 = vunpack.c.h.b16 %v1739
        %v1790 = vunpack.c.l.b16 %v1740
        %v1791 = vunpack.c.h.b16 %v1740
        %v1792 = vunpack.c.l.b16 %v1741
        %v1793 = vunpack.c.h.b16 %v1741
        %v1794 = vunpack.c.l.b16 %v1742
        %v1795 = vunpack.c.h.b16 %v1742
        %v1796 = vunpack.c.l.b16 %v1743
        %v1797 = vunpack.c.h.b16 %v1743
        %v1798 = vunpack.c.l.b16 %v1744
        %v1799 = vunpack.c.h.b16 %v1744
        %v1800 = vunpack.c.l.b16 %v1745
        %v1801 = vunpack.c.h.b16 %v1745
        %v1802 = vunpack.c.l.b16 %v1746
        %v1803 = vunpack.c.h.b16 %v1746
        %v1804 = vpack.c.b16 %v1790, %v1788
        %v1805 = vpack.c.b16 %v1791, %v1789
        %v1806 = vpack.c.b16 %v1794, %v1792
        %v1807 = vpack.c.b16 %v1795, %v1793
        %v1808 = vpack.c.b16 %v1798, %v1796
        %v1809 = vpack.c.b16 %v1799, %v1797
        %v1810 = vpack.c.b16 %v1802, %v1800
        %v1811 = vpack.c.b16 %v1803, %v1801
        %v1852 = vunpack.c.l.b16 %v1748
        %v1853 = vunpack.c.h.b16 %v1748
        %v1854 = vunpack.c.l.b16 %v1749
        %v1855 = vunpack.c.h.b16 %v1749
        %v1856 = vunpack.c.l.b16 %v1750
        %v1857 = vunpack.c.h.b16 %v1750
        %v1858 = vunpack.c.l.b16 %v1751
        %v1859 = vunpack.c.h.b16 %v1751
        %v1860 = vunpack.c.l.b16 %v1752
        %v1861 = vunpack.c.h.b16 %v1752
        %v1862 = vunpack.c.l.b16 %v1753
        %v1863 = vunpack.c.h.b16 %v1753
        %v1864 = vunpack.c.l.b16 %v1754
        %v1865 = vunpack.c.h.b16 %v1754
        %v1866 = vunpack.c.l.b16 %v1755
        %v1867 = vunpack.c.h.b16 %v1755
        %v1868 = vunpack.c.l.b16 %v1756
        %v1869 = vunpack.c.h.b16 %v1756
        %v1870 = vunpack.c.l.b16 %v1757
        %v1871 = vunpack.c.h.b16 %v1757
        %v1872 = vunpack.c.l.b16 %v1758
        %v1873 = vunpack.c.h.b16 %v1758
        %v1874 = vunpack.c.l.b16 %v1759
        %v1875 = vunpack.c.h.b16 %v1759
        %v1876 = vunpack.c.l.b16 %v1760
        %v1877 = vunpack.c.h.b16 %v1760
        %v1878 = vunpack.c.l.b16 %v1761
        %v1879 = vunpack.c.h.b16 %v1761
        %v1880 = vunpack.c.l.b16 %v1762
        %v1881 = vunpack.c.h.b16 %v1762
        %v1882 = vunpack.c.l.b16 %v1763
        %v1883 = vunpack.c.h.b16 %v1763
        %v1884 = vunpack.c.l.b16 %v1764
        %v1885 = vunpack.c.h.b16 %v1764
        %v1886 = vunpack.c.l.b16 %v1765
        %v1887 = vunpack.c.h.b16 %v1765
        %v1888 = vunpack.c.l.b16 %v1766
        %v1889 = vunpack.c.h.b16 %v1766
        %v1890 = vunpack.c.l.b16 %v1767
        %v1891 = vunpack.c.h.b16 %v1767
        %v1892 = vunpack.c.l.b16 %v1768
        %v1893 = vunpack.c.h.b16 %v1768
        %v1894 = vunpack.c.l.b16 %v1769
        %v1895 = vunpack.c.h.b16 %v1769
        %v1896 = vunpack.c.l.b16 %v1770
        %v1897 = vunpack.c.h.b16 %v1770
        %v1898 = vunpack.c.l.b16 %v1771
        %v1899 = vunpack.c.h.b16 %v1771
        %v1900 = vunpack.c.l.b16 %v1772
        %v1901 = vunpack.c.h.b16 %v1772
        %v1902 = vunpack.c.l.b16 %v1773
        %v1903 = vunpack.c.h.b16 %v1773
        %v1904 = vunpack.c.l.b16 %v1774
        %v1905 = vunpack.c.h.b16 %v1774
        %v1906 = vunpack.c.l.b16 %v1775
        %v1907 = vunpack.c.h.b16 %v1775
        %v1908 = vunpack.c.l.b16 %v1776
        %v1909 = vunpack.c.h.b16 %v1776
        %v1910 = vunpack.c.l.b16 %v1777
        %v1911 = vunpack.c.h.b16 %v1777
        %v1912 = vunpack.c.l.b16 %v1778
        %v1913 = vunpack.c.h.b16 %v1778
        %v1914 = vunpack.c.l.b16 %v1779
        %v1915 = vunpack.c.h.b16 %v1779
        %v1916 = vpack.c.b16 %v1854, %v1852
        %v1917 = vpack.c.b16 %v1855, %v1853
        %v1918 = vpack.c.b16 %v1858, %v1856
        %v1919 = vpack.c.b16 %v1859, %v1857
        %v1920 = vpack.c.b16 %v1862, %v1860
        %v1921 = vpack.c.b16 %v1863, %v1861
        %v1922 = vpack.c.b16 %v1866, %v1864
        %v1923 = vpack.c.b16 %v1867, %v1865
        %v1924 = vpack.c.b16 %v1870, %v1868
        %v1925 = vpack.c.b16 %v1871, %v1869
        %v1926 = vpack.c.b16 %v1874, %v1872
        %v1927 = vpack.c.b16 %v1875, %v1873
        %v1928 = vpack.c.b16 %v1878, %v1876
        %v1929 = vpack.c.b16 %v1879, %v1877
        %v1930 = vpack.c.b16 %v1882, %v1880
        %v1931 = vpack.c.b16 %v1883, %v1881
        %v1932 = vpack.c.b16 %v1886, %v1884
        %v1933 = vpack.c.b16 %v1887, %v1885
        %v1934 = vpack.c.b16 %v1890, %v1888
        %v1935 = vpack.c.b16 %v1891, %v1889
        %v1936 = vpack.c.b16 %v1894, %v1892
        %v1937 = vpack.c.b16 %v1895, %v1893
        %v1938 = vpack.c.b16 %v1898, %v1896
        %v1939 = vpack.c.b16 %v1899, %v1897
        %v1940 = vpack.c.b16 %v1902, %v1900
        %v1941 = vpack.c.b16 %v1903, %v1901
        %v1942 = vpack.c.b16 %v1906, %v1904
        %v1943 = vpack.c.b16 %v1907, %v1905
        %v1944 = vpack.c.b16 %v1910, %v1908
        %v1945 = vpack.c.b16 %v1911, %v1909
        %v1946 = vpack.c.b16 %v1914, %v1912
        %v1947 = vpack.c.b16 %v1915, %v1913
        %1980 = vmatpush.bf16.msra.mxu0 %v1930
        %1981 = vmatpush.bf16.msra.mxu0 %v1928
        %1982 = vmatpush.bf16.msra.mxu0 %v1926
        %1983 = vmatpush.bf16.msra.mxu0 %v1924
        %1984 = vmatpush.bf16.msra.mxu0 %v1922
        %1985 = vmatpush.bf16.msra.mxu0 %v1920
        %1986 = vmatpush.bf16.msra.mxu0 %v1918
        %1987 = vmatpush.bf16.msra.mxu0 %v1916
        %1988 = vmatmul.bf16.gmra.mxu0 %v1804
        %v1989 = vpop.f32.mrf.mxu0
        %v1990 = vadd.f32 0.0, %v1989
        %v1991 = vpop.f32.mrf.mxu0
        %v1992 = vadd.f32 0.0, %v1991
        %1993 = vmatmul.bf16.gmra.mxu0 %v1806
        %v1994 = vpop.f32.mrf.mxu0
        %v1995 = vadd.f32 0.0, %v1994
        %v1996 = vpop.f32.mrf.mxu0
        %v1997 = vadd.f32 0.0, %v1996
        %1998 = vmatmul.bf16.gmra.mxu0 %v1808
        %v1999 = vpop.f32.mrf.mxu0
        %v2000 = vadd.f32 0.0, %v1999
        %v2001 = vpop.f32.mrf.mxu0
        %v2002 = vadd.f32 0.0, %v2001
        %2003 = vmatmul.bf16.gmra.mxu0 %v1810
        %v2004 = vpop.f32.mrf.mxu0
        %v2005 = vadd.f32 0.0, %v2004
        %v2006 = vpop.f32.mrf.mxu0
        %v2007 = vadd.f32 0.0, %v2006
        %2008 = vdwg.mxu0
        %2009 = vmatpush.bf16.msra.mxu0 %v1946
        %2010 = vmatpush.bf16.msra.mxu0 %v1944
        %2011 = vmatpush.bf16.msra.mxu0 %v1942
        %2012 = vmatpush.bf16.msra.mxu0 %v1940
        %2013 = vmatpush.bf16.msra.mxu0 %v1938
        %2014 = vmatpush.bf16.msra.mxu0 %v1936
        %2015 = vmatpush.bf16.msra.mxu0 %v1934
        %2016 = vmatpush.bf16.msra.mxu0 %v1932
        %2017 = vmatmul.bf16.gmra.mxu0 %v1805
        %v2018 = vpop.f32.mrf.mxu0
        %v2019 = vadd.f32 %v1990, %v2018
        %v2020 = vpop.f32.mrf.mxu0
        %v2021 = vadd.f32 %v1992, %v2020
        %2022 = vmatmul.bf16.gmra.mxu0 %v1807
        %v2023 = vpop.f32.mrf.mxu0
        %v2024 = vadd.f32 %v1995, %v2023
        %v2025 = vpop.f32.mrf.mxu0
        %v2026 = vadd.f32 %v1997, %v2025
        %2027 = vmatmul.bf16.gmra.mxu0 %v1809
        %v2028 = vpop.f32.mrf.mxu0
        %v2029 = vadd.f32 %v2000, %v2028
        %v2030 = vpop.f32.mrf.mxu0
        %v2031 = vadd.f32 %v2002, %v2030
        %2032 = vmatmul.bf16.gmra.mxu0 %v1811
        %v2033 = vpop.f32.mrf.mxu0
        %v2034 = vadd.f32 %v2005, %v2033
        %v2035 = vpop.f32.mrf.mxu0
        %v2036 = vadd.f32 %v2007, %v2035
        %2037 = vdwg.mxu0
        %2038 = vmatpush.bf16.msra.mxu0 %v1931
        %2039 = vmatpush.bf16.msra.mxu0 %v1929
        %2040 = vmatpush.bf16.msra.mxu0 %v1927
        %2041 = vmatpush.bf16.msra.mxu0 %v1925
        %2042 = vmatpush.bf16.msra.mxu0 %v1923
        %2043 = vmatpush.bf16.msra.mxu0 %v1921
        %2044 = vmatpush.bf16.msra.mxu0 %v1919
        %2045 = vmatpush.bf16.msra.mxu0 %v1917
        %2046 = vmatmul.bf16.gmra.mxu0 %v1804
        %v2047 = vpop.f32.mrf.mxu0
        %v2048 = vadd.f32 0.0, %v2047
        %v2049 = vpop.f32.mrf.mxu0
        %v2050 = vadd.f32 0.0, %v2049
        %2051 = vmatmul.bf16.gmra.mxu0 %v1806
        %v2052 = vpop.f32.mrf.mxu0
        %v2053 = vadd.f32 0.0, %v2052
        %v2054 = vpop.f32.mrf.mxu0
        %v2055 = vadd.f32 0.0, %v2054
        %2056 = vmatmul.bf16.gmra.mxu0 %v1808
        %v2057 = vpop.f32.mrf.mxu0
        %v2058 = vadd.f32 0.0, %v2057
        %v2059 = vpop.f32.mrf.mxu0
        %v2060 = vadd.f32 0.0, %v2059
        %2061 = vmatmul.bf16.gmra.mxu0 %v1810
        %v2062 = vpop.f32.mrf.mxu0
        %v2063 = vadd.f32 0.0, %v2062
        %v2064 = vpop.f32.mrf.mxu0
        %v2065 = vadd.f32 0.0, %v2064
        %2066 = vdwg.mxu0
        %2067 = vmatpush.bf16.msra.mxu0 %v1947
        %2068 = vmatpush.bf16.msra.mxu0 %v1945
        %2069 = vmatpush.bf16.msra.mxu0 %v1943
        %2070 = vmatpush.bf16.msra.mxu0 %v1941
        %2071 = vmatpush.bf16.msra.mxu0 %v1939
        %2072 = vmatpush.bf16.msra.mxu0 %v1937
        %2073 = vmatpush.bf16.msra.mxu0 %v1935
        %2074 = vmatpush.bf16.msra.mxu0 %v1933
        %2075 = vmatmul.bf16.gmra.mxu0 %v1805
        %v2076 = vpop.f32.mrf.mxu0
        %v2077 = vadd.f32 %v2048, %v2076
        %v2078 = vpop.f32.mrf.mxu0
        %v2079 = vadd.f32 %v2050, %v2078
        %2080 = vmatmul.bf16.gmra.mxu0 %v1807
        %v2081 = vpop.f32.mrf.mxu0
        %v2082 = vadd.f32 %v2053, %v2081
        %v2083 = vpop.f32.mrf.mxu0
        %v2084 = vadd.f32 %v2055, %v2083
        %2085 = vmatmul.bf16.gmra.mxu0 %v1809
        %v2086 = vpop.f32.mrf.mxu0
        %v2087 = vadd.f32 %v2058, %v2086
        %v2088 = vpop.f32.mrf.mxu0
        %v2089 = vadd.f32 %v2060, %v2088
        %2090 = vmatmul.bf16.gmra.mxu0 %v1811
        %v2091 = vpop.f32.mrf.mxu0
        %v2092 = vadd.f32 %v2063, %v2091
        %v2093 = vpop.f32.mrf.mxu0
        %v2094 = vadd.f32 %v2065, %v2093
        %2095 = vdwg.mxu0
        %v2096 = vadd.f32 %v1723, %v2019
        %v2097 = vadd.f32 %v1724, %v2077
        %v2098 = vadd.f32 %v1725, %v2021
        %v2099 = vadd.f32 %v1726, %v2079
        %v2100 = vadd.f32 %v1727, %v2024
        %v2101 = vadd.f32 %v1728, %v2082
        %v2102 = vadd.f32 %v1729, %v2026
        %v2103 = vadd.f32 %v1730, %v2084
        %v2104 = vadd.f32 %v1731, %v2029
        %v2105 = vadd.f32 %v1732, %v2087
        %v2106 = vadd.f32 %v1733, %v2031
        %v2107 = vadd.f32 %v1734, %v2089
        %v2108 = vadd.f32 %v1735, %v2034
        %v2109 = vadd.f32 %v1736, %v2092
        %v2110 = vadd.f32 %v1737, %v2036
        %v2111 = vadd.f32 %v1738, %v2094
        %v2112 = vld [vmem:[%s440] sm:$0xff]
        %v2113 = vld [vmem:[%s440 + $0x8] sm:$0x11]
        %v2114 = vld [vmem:[%s440 + $0x10] sm:$0xff]
        %v2115 = vld [vmem:[%s440 + $0x18] sm:$0x11]
        %v2116 = vld [vmem:[%s440 + $0x20] sm:$0xff]
        %v2117 = vld [vmem:[%s440 + $0x28] sm:$0x11]
        %v2118 = vld [vmem:[%s440 + $0x30] sm:$0xff]
        %v2119 = vld [vmem:[%s440 + $0x38] sm:$0x11]
        %v2120 = vld [vmem:[%s440 + $0x40] sm:$0xff]
        %v2121 = vld [vmem:[%s440 + $0x48] sm:$0x11]
        %v2122 = vld [vmem:[%s440 + $0x50] sm:$0xff]
        %v2123 = vld [vmem:[%s440 + $0x58] sm:$0x11]
        %v2124 = vld [vmem:[%s440 + $0x60] sm:$0xff]
        %v2125 = vld [vmem:[%s440 + $0x68] sm:$0x11]
        %v2126 = vld [vmem:[%s440 + $0x70] sm:$0xff]
        %v2127 = vld [vmem:[%s440 + $0x78] sm:$0x11]
        %v2129 = vshrl.u32 %v2112, 16
        %v2131 = vrot.slane %v2129, 4
        %v2132 = vshll.u32 %v2112, 16
        %v2134 = vrot.slane %v2132, 5
        %v2135 = vor.u32 %v2131, %v2134
        %v2136 = vrot.slane %v2135, 4
        %v2138 = vshll.u32 %v2113, 16
        %v2140 = vrot.slane %v2138, 5
        %v2141 = vsel %vm553, %v2136, %v2140
        %v2143 = vshrl.u32 %v2114, 16
        %v2145 = vrot.slane %v2143, 4
        %v2146 = vshll.u32 %v2114, 16
        %v2148 = vrot.slane %v2146, 5
        %v2149 = vor.u32 %v2145, %v2148
        %v2150 = vrot.slane %v2149, 4
        %v2152 = vshll.u32 %v2115, 16
        %v2154 = vrot.slane %v2152, 5
        %v2155 = vsel %vm553, %v2150, %v2154
        %v2157 = vshrl.u32 %v2116, 16
        %v2159 = vrot.slane %v2157, 4
        %v2160 = vshll.u32 %v2116, 16
        %v2162 = vrot.slane %v2160, 5
        %v2163 = vor.u32 %v2159, %v2162
        %v2164 = vrot.slane %v2163, 4
        %v2166 = vshll.u32 %v2117, 16
        %v2168 = vrot.slane %v2166, 5
        %v2169 = vsel %vm553, %v2164, %v2168
        %v2171 = vshrl.u32 %v2118, 16
        %v2173 = vrot.slane %v2171, 4
        %v2174 = vshll.u32 %v2118, 16
        %v2176 = vrot.slane %v2174, 5
        %v2177 = vor.u32 %v2173, %v2176
        %v2178 = vrot.slane %v2177, 4
        %v2180 = vshll.u32 %v2119, 16
        %v2182 = vrot.slane %v2180, 5
        %v2183 = vsel %vm553, %v2178, %v2182
        %v2185 = vshrl.u32 %v2120, 16
        %v2187 = vrot.slane %v2185, 4
        %v2188 = vshll.u32 %v2120, 16
        %v2190 = vrot.slane %v2188, 5
        %v2191 = vor.u32 %v2187, %v2190
        %v2192 = vrot.slane %v2191, 4
        %v2194 = vshll.u32 %v2121, 16
        %v2196 = vrot.slane %v2194, 5
        %v2197 = vsel %vm553, %v2192, %v2196
        %v2199 = vshrl.u32 %v2122, 16
        %v2201 = vrot.slane %v2199, 4
        %v2202 = vshll.u32 %v2122, 16
        %v2204 = vrot.slane %v2202, 5
        %v2205 = vor.u32 %v2201, %v2204
        %v2206 = vrot.slane %v2205, 4
        %v2208 = vshll.u32 %v2123, 16
        %v2210 = vrot.slane %v2208, 5
        %v2211 = vsel %vm553, %v2206, %v2210
        %v2213 = vshrl.u32 %v2124, 16
        %v2215 = vrot.slane %v2213, 4
        %v2216 = vshll.u32 %v2124, 16
        %v2218 = vrot.slane %v2216, 5
        %v2219 = vor.u32 %v2215, %v2218
        %v2220 = vrot.slane %v2219, 4
        %v2222 = vshll.u32 %v2125, 16
        %v2224 = vrot.slane %v2222, 5
        %v2225 = vsel %vm553, %v2220, %v2224
        %v2227 = vshrl.u32 %v2126, 16
        %v2229 = vrot.slane %v2227, 4
        %v2230 = vshll.u32 %v2126, 16
        %v2232 = vrot.slane %v2230, 5
        %v2233 = vor.u32 %v2229, %v2232
        %v2234 = vrot.slane %v2233, 4
        %v2236 = vshll.u32 %v2127, 16
        %v2238 = vrot.slane %v2236, 5
        %v2239 = vsel %vm553, %v2234, %v2238
        %s2240 = scalar_lea.vmem [#allocation3], 1024
        %v2241 = vld [vmem:[%s2240] sm:$0xff]
        %v2242 = vld [vmem:[%s2240 + $0x8] sm:$0xff]
        %v2243 = vld [vmem:[%s2240 + $0x10] sm:$0xff]
        %v2244 = vld [vmem:[%s2240 + $0x18] sm:$0xff]
        %v2245 = vld [vmem:[%s2240 + $0x20] sm:$0xff]
        %v2246 = vld [vmem:[%s2240 + $0x28] sm:$0xff]
        %v2247 = vld [vmem:[%s2240 + $0x30] sm:$0xff]
        %v2248 = vld [vmem:[%s2240 + $0x38] sm:$0xff]
        %v2249 = vld [vmem:[%s2240 + $0x40] sm:$0xff]
        %v2250 = vld [vmem:[%s2240 + $0x48] sm:$0xff]
        %v2251 = vld [vmem:[%s2240 + $0x50] sm:$0xff]
        %v2252 = vld [vmem:[%s2240 + $0x58] sm:$0xff]
        %v2253 = vld [vmem:[%s2240 + $0x60] sm:$0xff]
        %v2254 = vld [vmem:[%s2240 + $0x68] sm:$0xff]
        %v2255 = vld [vmem:[%s2240 + $0x70] sm:$0xff]
        %v2256 = vld [vmem:[%s2240 + $0x78] sm:$0xff]
        %v2257 = vld [vmem:[%s2240 + $0x80] sm:$0xff]
        %v2258 = vld [vmem:[%s2240 + $0x88] sm:$0xff]
        %v2259 = vld [vmem:[%s2240 + $0x90] sm:$0xff]
        %v2260 = vld [vmem:[%s2240 + $0x98] sm:$0xff]
        %v2261 = vld [vmem:[%s2240 + $0xa0] sm:$0xff]
        %v2262 = vld [vmem:[%s2240 + $0xa8] sm:$0xff]
        %v2263 = vld [vmem:[%s2240 + $0xb0] sm:$0xff]
        %v2264 = vld [vmem:[%s2240 + $0xb8] sm:$0xff]
        %v2265 = vld [vmem:[%s2240 + $0xc0] sm:$0xff]
        %v2266 = vld [vmem:[%s2240 + $0xc8] sm:$0xff]
        %v2267 = vld [vmem:[%s2240 + $0xd0] sm:$0xff]
        %v2268 = vld [vmem:[%s2240 + $0xd8] sm:$0xff]
        %v2269 = vld [vmem:[%s2240 + $0xe0] sm:$0xff]
        %v2270 = vld [vmem:[%s2240 + $0xe8] sm:$0xff]
        %v2271 = vld [vmem:[%s2240 + $0xf0] sm:$0xff]
        %v2272 = vld [vmem:[%s2240 + $0xf8] sm:$0xff]
        %v2273 = vunpack.c.l.b16 %v2141
        %v2274 = vunpack.c.h.b16 %v2141
        %v2275 = vunpack.c.l.b16 %v2155
        %v2276 = vunpack.c.h.b16 %v2155
        %v2277 = vunpack.c.l.b16 %v2169
        %v2278 = vunpack.c.h.b16 %v2169
        %v2279 = vunpack.c.l.b16 %v2183
        %v2280 = vunpack.c.h.b16 %v2183
        %v2281 = vunpack.c.l.b16 %v2197
        %v2282 = vunpack.c.h.b16 %v2197
        %v2283 = vunpack.c.l.b16 %v2211
        %v2284 = vunpack.c.h.b16 %v2211
        %v2285 = vunpack.c.l.b16 %v2225
        %v2286 = vunpack.c.h.b16 %v2225
        %v2287 = vunpack.c.l.b16 %v2239
        %v2288 = vunpack.c.h.b16 %v2239
        %v2289 = vpack.c.b16 %v2275, %v2273
        %v2290 = vpack.c.b16 %v2276, %v2274
        %v2291 = vpack.c.b16 %v2279, %v2277
        %v2292 = vpack.c.b16 %v2280, %v2278
        %v2293 = vpack.c.b16 %v2283, %v2281
        %v2294 = vpack.c.b16 %v2284, %v2282
        %v2295 = vpack.c.b16 %v2287, %v2285
        %v2296 = vpack.c.b16 %v2288, %v2286
        %v2337 = vunpack.c.l.b16 %v2241
        %v2338 = vunpack.c.h.b16 %v2241
        %v2339 = vunpack.c.l.b16 %v2242
        %v2340 = vunpack.c.h.b16 %v2242
        %v2341 = vunpack.c.l.b16 %v2243
        %v2342 = vunpack.c.h.b16 %v2243
        %v2343 = vunpack.c.l.b16 %v2244
        %v2344 = vunpack.c.h.b16 %v2244
        %v2345 = vunpack.c.l.b16 %v2245
        %v2346 = vunpack.c.h.b16 %v2245
        %v2347 = vunpack.c.l.b16 %v2246
        %v2348 = vunpack.c.h.b16 %v2246
        %v2349 = vunpack.c.l.b16 %v2247
        %v2350 = vunpack.c.h.b16 %v2247
        %v2351 = vunpack.c.l.b16 %v2248
        %v2352 = vunpack.c.h.b16 %v2248
        %v2353 = vunpack.c.l.b16 %v2249
        %v2354 = vunpack.c.h.b16 %v2249
        %v2355 = vunpack.c.l.b16 %v2250
        %v2356 = vunpack.c.h.b16 %v2250
        %v2357 = vunpack.c.l.b16 %v2251
        %v2358 = vunpack.c.h.b16 %v2251
        %v2359 = vunpack.c.l.b16 %v2252
        %v2360 = vunpack.c.h.b16 %v2252
        %v2361 = vunpack.c.l.b16 %v2253
        %v2362 = vunpack.c.h.b16 %v2253
        %v2363 = vunpack.c.l.b16 %v2254
        %v2364 = vunpack.c.h.b16 %v2254
        %v2365 = vunpack.c.l.b16 %v2255
        %v2366 = vunpack.c.h.b16 %v2255
        %v2367 = vunpack.c.l.b16 %v2256
        %v2368 = vunpack.c.h.b16 %v2256
        %v2369 = vunpack.c.l.b16 %v2257
        %v2370 = vunpack.c.h.b16 %v2257
        %v2371 = vunpack.c.l.b16 %v2258
        %v2372 = vunpack.c.h.b16 %v2258
        %v2373 = vunpack.c.l.b16 %v2259
        %v2374 = vunpack.c.h.b16 %v2259
        %v2375 = vunpack.c.l.b16 %v2260
        %v2376 = vunpack.c.h.b16 %v2260
        %v2377 = vunpack.c.l.b16 %v2261
        %v2378 = vunpack.c.h.b16 %v2261
        %v2379 = vunpack.c.l.b16 %v2262
        %v2380 = vunpack.c.h.b16 %v2262
        %v2381 = vunpack.c.l.b16 %v2263
        %v2382 = vunpack.c.h.b16 %v2263
        %v2383 = vunpack.c.l.b16 %v2264
        %v2384 = vunpack.c.h.b16 %v2264
        %v2385 = vunpack.c.l.b16 %v2265
        %v2386 = vunpack.c.h.b16 %v2265
        %v2387 = vunpack.c.l.b16 %v2266
        %v2388 = vunpack.c.h.b16 %v2266
        %v2389 = vunpack.c.l.b16 %v2267
        %v2390 = vunpack.c.h.b16 %v2267
        %v2391 = vunpack.c.l.b16 %v2268
        %v2392 = vunpack.c.h.b16 %v2268
        %v2393 = vunpack.c.l.b16 %v2269
        %v2394 = vunpack.c.h.b16 %v2269
        %v2395 = vunpack.c.l.b16 %v2270
        %v2396 = vunpack.c.h.b16 %v2270
        %v2397 = vunpack.c.l.b16 %v2271
        %v2398 = vunpack.c.h.b16 %v2271
        %v2399 = vunpack.c.l.b16 %v2272
        %v2400 = vunpack.c.h.b16 %v2272
        %v2401 = vpack.c.b16 %v2339, %v2337
        %v2402 = vpack.c.b16 %v2340, %v2338
        %v2403 = vpack.c.b16 %v2343, %v2341
        %v2404 = vpack.c.b16 %v2344, %v2342
        %v2405 = vpack.c.b16 %v2347, %v2345
        %v2406 = vpack.c.b16 %v2348, %v2346
        %v2407 = vpack.c.b16 %v2351, %v2349
        %v2408 = vpack.c.b16 %v2352, %v2350
        %v2409 = vpack.c.b16 %v2355, %v2353
        %v2410 = vpack.c.b16 %v2356, %v2354
        %v2411 = vpack.c.b16 %v2359, %v2357
        %v2412 = vpack.c.b16 %v2360, %v2358
        %v2413 = vpack.c.b16 %v2363, %v2361
        %v2414 = vpack.c.b16 %v2364, %v2362
        %v2415 = vpack.c.b16 %v2367, %v2365
        %v2416 = vpack.c.b16 %v2368, %v2366
        %v2417 = vpack.c.b16 %v2371, %v2369
        %v2418 = vpack.c.b16 %v2372, %v2370
        %v2419 = vpack.c.b16 %v2375, %v2373
        %v2420 = vpack.c.b16 %v2376, %v2374
        %v2421 = vpack.c.b16 %v2379, %v2377
        %v2422 = vpack.c.b16 %v2380, %v2378
        %v2423 = vpack.c.b16 %v2383, %v2381
        %v2424 = vpack.c.b16 %v2384, %v2382
        %v2425 = vpack.c.b16 %v2387, %v2385
        %v2426 = vpack.c.b16 %v2388, %v2386
        %v2427 = vpack.c.b16 %v2391, %v2389
        %v2428 = vpack.c.b16 %v2392, %v2390
        %v2429 = vpack.c.b16 %v2395, %v2393
        %v2430 = vpack.c.b16 %v2396, %v2394
        %v2431 = vpack.c.b16 %v2399, %v2397
        %v2432 = vpack.c.b16 %v2400, %v2398
        %2465 = vmatpush.bf16.msra.mxu0 %v2415
        %2466 = vmatpush.bf16.msra.mxu0 %v2413
        %2467 = vmatpush.bf16.msra.mxu0 %v2411
        %2468 = vmatpush.bf16.msra.mxu0 %v2409
        %2469 = vmatpush.bf16.msra.mxu0 %v2407
        %2470 = vmatpush.bf16.msra.mxu0 %v2405
        %2471 = vmatpush.bf16.msra.mxu0 %v2403
        %2472 = vmatpush.bf16.msra.mxu0 %v2401
        %2473 = vmatmul.bf16.gmra.mxu0 %v2289
        %v2474 = vpop.f32.mrf.mxu0
        %v2475 = vadd.f32 0.0, %v2474
        %v2476 = vpop.f32.mrf.mxu0
        %v2477 = vadd.f32 0.0, %v2476
        %2478 = vmatmul.bf16.gmra.mxu0 %v2291
        %v2479 = vpop.f32.mrf.mxu0
        %v2480 = vadd.f32 0.0, %v2479
        %v2481 = vpop.f32.mrf.mxu0
        %v2482 = vadd.f32 0.0, %v2481
        %2483 = vmatmul.bf16.gmra.mxu0 %v2293
        %v2484 = vpop.f32.mrf.mxu0
        %v2485 = vadd.f32 0.0, %v2484
        %v2486 = vpop.f32.mrf.mxu0
        %v2487 = vadd.f32 0.0, %v2486
        %2488 = vmatmul.bf16.gmra.mxu0 %v2295
        %v2489 = vpop.f32.mrf.mxu0
        %v2490 = vadd.f32 0.0, %v2489
        %v2491 = vpop.f32.mrf.mxu0
        %v2492 = vadd.f32 0.0, %v2491
        %2493 = vdwg.mxu0
        %2494 = vmatpush.bf16.msra.mxu0 %v2431
        %2495 = vmatpush.bf16.msra.mxu0 %v2429
        %2496 = vmatpush.bf16.msra.mxu0 %v2427
        %2497 = vmatpush.bf16.msra.mxu0 %v2425
        %2498 = vmatpush.bf16.msra.mxu0 %v2423
        %2499 = vmatpush.bf16.msra.mxu0 %v2421
        %2500 = vmatpush.bf16.msra.mxu0 %v2419
        %2501 = vmatpush.bf16.msra.mxu0 %v2417
        %2502 = vmatmul.bf16.gmra.mxu0 %v2290
        %v2503 = vpop.f32.mrf.mxu0
        %v2504 = vadd.f32 %v2475, %v2503
        %v2505 = vpop.f32.mrf.mxu0
        %v2506 = vadd.f32 %v2477, %v2505
        %2507 = vmatmul.bf16.gmra.mxu0 %v2292
        %v2508 = vpop.f32.mrf.mxu0
        %v2509 = vadd.f32 %v2480, %v2508
        %v2510 = vpop.f32.mrf.mxu0
        %v2511 = vadd.f32 %v2482, %v2510
        %2512 = vmatmul.bf16.gmra.mxu0 %v2294
        %v2513 = vpop.f32.mrf.mxu0
        %v2514 = vadd.f32 %v2485, %v2513
        %v2515 = vpop.f32.mrf.mxu0
        %v2516 = vadd.f32 %v2487, %v2515
        %2517 = vmatmul.bf16.gmra.mxu0 %v2296
        %v2518 = vpop.f32.mrf.mxu0
        %v2519 = vadd.f32 %v2490, %v2518
        %v2520 = vpop.f32.mrf.mxu0
        %v2521 = vadd.f32 %v2492, %v2520
        %2522 = vdwg.mxu0
        %2523 = vmatpush.bf16.msra.mxu0 %v2416
        %2524 = vmatpush.bf16.msra.mxu0 %v2414
        %2525 = vmatpush.bf16.msra.mxu0 %v2412
        %2526 = vmatpush.bf16.msra.mxu0 %v2410
        %2527 = vmatpush.bf16.msra.mxu0 %v2408
        %2528 = vmatpush.bf16.msra.mxu0 %v2406
        %2529 = vmatpush.bf16.msra.mxu0 %v2404
        %2530 = vmatpush.bf16.msra.mxu0 %v2402
        %2531 = vmatmul.bf16.gmra.mxu0 %v2289
        %v2532 = vpop.f32.mrf.mxu0
        %v2533 = vadd.f32 0.0, %v2532
        %v2534 = vpop.f32.mrf.mxu0
        %v2535 = vadd.f32 0.0, %v2534
        %2536 = vmatmul.bf16.gmra.mxu0 %v2291
        %v2537 = vpop.f32.mrf.mxu0
        %v2538 = vadd.f32 0.0, %v2537
        %v2539 = vpop.f32.mrf.mxu0
        %v2540 = vadd.f32 0.0, %v2539
        %2541 = vmatmul.bf16.gmra.mxu0 %v2293
        %v2542 = vpop.f32.mrf.mxu0
        %v2543 = vadd.f32 0.0, %v2542
        %v2544 = vpop.f32.mrf.mxu0
        %v2545 = vadd.f32 0.0, %v2544
        %2546 = vmatmul.bf16.gmra.mxu0 %v2295
        %v2547 = vpop.f32.mrf.mxu0
        %v2548 = vadd.f32 0.0, %v2547
        %v2549 = vpop.f32.mrf.mxu0
        %v2550 = vadd.f32 0.0, %v2549
        %2551 = vdwg.mxu0
        %2552 = vmatpush.bf16.msra.mxu0 %v2432
        %2553 = vmatpush.bf16.msra.mxu0 %v2430
        %2554 = vmatpush.bf16.msra.mxu0 %v2428
        %2555 = vmatpush.bf16.msra.mxu0 %v2426
        %2556 = vmatpush.bf16.msra.mxu0 %v2424
        %2557 = vmatpush.bf16.msra.mxu0 %v2422
        %2558 = vmatpush.bf16.msra.mxu0 %v2420
        %2559 = vmatpush.bf16.msra.mxu0 %v2418
        %2560 = vmatmul.bf16.gmra.mxu0 %v2290
        %v2561 = vpop.f32.mrf.mxu0
        %v2562 = vadd.f32 %v2533, %v2561
        %v2563 = vpop.f32.mrf.mxu0
        %v2564 = vadd.f32 %v2535, %v2563
        %2565 = vmatmul.bf16.gmra.mxu0 %v2292
        %v2566 = vpop.f32.mrf.mxu0
        %v2567 = vadd.f32 %v2538, %v2566
        %v2568 = vpop.f32.mrf.mxu0
        %v2569 = vadd.f32 %v2540, %v2568
        %2570 = vmatmul.bf16.gmra.mxu0 %v2294
        %v2571 = vpop.f32.mrf.mxu0
        %v2572 = vadd.f32 %v2543, %v2571
        %v2573 = vpop.f32.mrf.mxu0
        %v2574 = vadd.f32 %v2545, %v2573
        %2575 = vmatmul.bf16.gmra.mxu0 %v2296
        %v2576 = vpop.f32.mrf.mxu0
        %v2577 = vadd.f32 %v2548, %v2576
        %v2578 = vpop.f32.mrf.mxu0
        %v2579 = vadd.f32 %v2550, %v2578
        %2580 = vdwg.mxu0
        %v2581 = vadd.f32 %v2096, %v2504
        %v2582 = vadd.f32 %v2097, %v2562
        %v2583 = vadd.f32 %v2098, %v2506
        %v2584 = vadd.f32 %v2099, %v2564
        %v2585 = vadd.f32 %v2100, %v2509
        %v2586 = vadd.f32 %v2101, %v2567
        %v2587 = vadd.f32 %v2102, %v2511
        %v2588 = vadd.f32 %v2103, %v2569
        %v2589 = vadd.f32 %v2104, %v2514
        %v2590 = vadd.f32 %v2105, %v2572
        %v2591 = vadd.f32 %v2106, %v2516
        %v2592 = vadd.f32 %v2107, %v2574
        %v2593 = vadd.f32 %v2108, %v2519
        %v2594 = vadd.f32 %v2109, %v2577
        %v2595 = vadd.f32 %v2110, %v2521
        %v2596 = vadd.f32 %v2111, %v2579
        %v2597 = vld [vmem:[%s440] sm:$0xee]
        %v2598 = vld [vmem:[%s440 + $0x10] sm:$0xee]
        %v2599 = vld [vmem:[%s440 + $0x20] sm:$0xee]
        %v2600 = vld [vmem:[%s440 + $0x30] sm:$0xee]
        %v2601 = vld [vmem:[%s440 + $0x40] sm:$0xee]
        %v2602 = vld [vmem:[%s440 + $0x50] sm:$0xee]
        %v2603 = vld [vmem:[%s440 + $0x60] sm:$0xee]
        %v2604 = vld [vmem:[%s440 + $0x70] sm:$0xee]
        %v2621 = vrot.slane %v2597, 5
        %v2622 = vrot.slane %v2621, 4
        %v2623 = vrot.slane %v2113, 5
        %v2624 = vsel %vm1349, %v2622, %v2623
        %v2625 = vrot.slane %v2598, 5
        %v2626 = vrot.slane %v2625, 4
        %v2627 = vrot.slane %v2115, 5
        %v2628 = vsel %vm1349, %v2626, %v2627
        %v2629 = vrot.slane %v2599, 5
        %v2630 = vrot.slane %v2629, 4
        %v2631 = vrot.slane %v2117, 5
        %v2632 = vsel %vm1349, %v2630, %v2631
        %v2633 = vrot.slane %v2600, 5
        %v2634 = vrot.slane %v2633, 4
        %v2635 = vrot.slane %v2119, 5
        %v2636 = vsel %vm1349, %v2634, %v2635
        %v2637 = vrot.slane %v2601, 5
        %v2638 = vrot.slane %v2637, 4
        %v2639 = vrot.slane %v2121, 5
        %v2640 = vsel %vm1349, %v2638, %v2639
        %v2641 = vrot.slane %v2602, 5
        %v2642 = vrot.slane %v2641, 4
        %v2643 = vrot.slane %v2123, 5
        %v2644 = vsel %vm1349, %v2642, %v2643
        %v2645 = vrot.slane %v2603, 5
        %v2646 = vrot.slane %v2645, 4
        %v2647 = vrot.slane %v2125, 5
        %v2648 = vsel %vm1349, %v2646, %v2647
        %v2649 = vrot.slane %v2604, 5
        %v2650 = vrot.slane %v2649, 4
        %v2651 = vrot.slane %v2127, 5
        %v2652 = vsel %vm1349, %v2650, %v2651
        %s2653 = scalar_lea.vmem [#allocation3], 1280
        %v2654 = vld [vmem:[%s2653] sm:$0xff]
        %v2655 = vld [vmem:[%s2653 + $0x8] sm:$0xff]
        %v2656 = vld [vmem:[%s2653 + $0x10] sm:$0xff]
        %v2657 = vld [vmem:[%s2653 + $0x18] sm:$0xff]
        %v2658 = vld [vmem:[%s2653 + $0x20] sm:$0xff]
        %v2659 = vld [vmem:[%s2653 + $0x28] sm:$0xff]
        %v2660 = vld [vmem:[%s2653 + $0x30] sm:$0xff]
        %v2661 = vld [vmem:[%s2653 + $0x38] sm:$0xff]
        %v2662 = vld [vmem:[%s2653 + $0x40] sm:$0xff]
        %v2663 = vld [vmem:[%s2653 + $0x48] sm:$0xff]
        %v2664 = vld [vmem:[%s2653 + $0x50] sm:$0xff]
        %v2665 = vld [vmem:[%s2653 + $0x58] sm:$0xff]
        %v2666 = vld [vmem:[%s2653 + $0x60] sm:$0xff]
        %v2667 = vld [vmem:[%s2653 + $0x68] sm:$0xff]
        %v2668 = vld [vmem:[%s2653 + $0x70] sm:$0xff]
        %v2669 = vld [vmem:[%s2653 + $0x78] sm:$0xff]
        %v2670 = vld [vmem:[%s2653 + $0x80] sm:$0xff]
        %v2671 = vld [vmem:[%s2653 + $0x88] sm:$0xff]
        %v2672 = vld [vmem:[%s2653 + $0x90] sm:$0xff]
        %v2673 = vld [vmem:[%s2653 + $0x98] sm:$0xff]
        %v2674 = vld [vmem:[%s2653 + $0xa0] sm:$0xff]
        %v2675 = vld [vmem:[%s2653 + $0xa8] sm:$0xff]
        %v2676 = vld [vmem:[%s2653 + $0xb0] sm:$0xff]
        %v2677 = vld [vmem:[%s2653 + $0xb8] sm:$0xff]
        %v2678 = vld [vmem:[%s2653 + $0xc0] sm:$0xff]
        %v2679 = vld [vmem:[%s2653 + $0xc8] sm:$0xff]
        %v2680 = vld [vmem:[%s2653 + $0xd0] sm:$0xff]
        %v2681 = vld [vmem:[%s2653 + $0xd8] sm:$0xff]
        %v2682 = vld [vmem:[%s2653 + $0xe0] sm:$0xff]
        %v2683 = vld [vmem:[%s2653 + $0xe8] sm:$0xff]
        %v2684 = vld [vmem:[%s2653 + $0xf0] sm:$0xff]
        %v2685 = vld [vmem:[%s2653 + $0xf8] sm:$0xff]
        %v2686 = vunpack.c.l.b16 %v2624
        %v2687 = vunpack.c.h.b16 %v2624
        %v2688 = vunpack.c.l.b16 %v2628
        %v2689 = vunpack.c.h.b16 %v2628
        %v2690 = vunpack.c.l.b16 %v2632
        %v2691 = vunpack.c.h.b16 %v2632
        %v2692 = vunpack.c.l.b16 %v2636
        %v2693 = vunpack.c.h.b16 %v2636
        %v2694 = vunpack.c.l.b16 %v2640
        %v2695 = vunpack.c.h.b16 %v2640
        %v2696 = vunpack.c.l.b16 %v2644
        %v2697 = vunpack.c.h.b16 %v2644
        %v2698 = vunpack.c.l.b16 %v2648
        %v2699 = vunpack.c.h.b16 %v2648
        %v2700 = vunpack.c.l.b16 %v2652
        %v2701 = vunpack.c.h.b16 %v2652
        %v2702 = vpack.c.b16 %v2688, %v2686
        %v2703 = vpack.c.b16 %v2689, %v2687
        %v2704 = vpack.c.b16 %v2692, %v2690
        %v2705 = vpack.c.b16 %v2693, %v2691
        %v2706 = vpack.c.b16 %v2696, %v2694
        %v2707 = vpack.c.b16 %v2697, %v2695
        %v2708 = vpack.c.b16 %v2700, %v2698
        %v2709 = vpack.c.b16 %v2701, %v2699
        %v2750 = vunpack.c.l.b16 %v2654
        %v2751 = vunpack.c.h.b16 %v2654
        %v2752 = vunpack.c.l.b16 %v2655
        %v2753 = vunpack.c.h.b16 %v2655
        %v2754 = vunpack.c.l.b16 %v2656
        %v2755 = vunpack.c.h.b16 %v2656
        %v2756 = vunpack.c.l.b16 %v2657
        %v2757 = vunpack.c.h.b16 %v2657
        %v2758 = vunpack.c.l.b16 %v2658
        %v2759 = vunpack.c.h.b16 %v2658
        %v2760 = vunpack.c.l.b16 %v2659
        %v2761 = vunpack.c.h.b16 %v2659
        %v2762 = vunpack.c.l.b16 %v2660
        %v2763 = vunpack.c.h.b16 %v2660
        %v2764 = vunpack.c.l.b16 %v2661
        %v2765 = vunpack.c.h.b16 %v2661
        %v2766 = vunpack.c.l.b16 %v2662
        %v2767 = vunpack.c.h.b16 %v2662
        %v2768 = vunpack.c.l.b16 %v2663
        %v2769 = vunpack.c.h.b16 %v2663
        %v2770 = vunpack.c.l.b16 %v2664
        %v2771 = vunpack.c.h.b16 %v2664
        %v2772 = vunpack.c.l.b16 %v2665
        %v2773 = vunpack.c.h.b16 %v2665
        %v2774 = vunpack.c.l.b16 %v2666
        %v2775 = vunpack.c.h.b16 %v2666
        %v2776 = vunpack.c.l.b16 %v2667
        %v2777 = vunpack.c.h.b16 %v2667
        %v2778 = vunpack.c.l.b16 %v2668
        %v2779 = vunpack.c.h.b16 %v2668
        %v2780 = vunpack.c.l.b16 %v2669
        %v2781 = vunpack.c.h.b16 %v2669
        %v2782 = vunpack.c.l.b16 %v2670
        %v2783 = vunpack.c.h.b16 %v2670
        %v2784 = vunpack.c.l.b16 %v2671
        %v2785 = vunpack.c.h.b16 %v2671
        %v2786 = vunpack.c.l.b16 %v2672
        %v2787 = vunpack.c.h.b16 %v2672
        %v2788 = vunpack.c.l.b16 %v2673
        %v2789 = vunpack.c.h.b16 %v2673
        %v2790 = vunpack.c.l.b16 %v2674
        %v2791 = vunpack.c.h.b16 %v2674
        %v2792 = vunpack.c.l.b16 %v2675
        %v2793 = vunpack.c.h.b16 %v2675
        %v2794 = vunpack.c.l.b16 %v2676
        %v2795 = vunpack.c.h.b16 %v2676
        %v2796 = vunpack.c.l.b16 %v2677
        %v2797 = vunpack.c.h.b16 %v2677
        %v2798 = vunpack.c.l.b16 %v2678
        %v2799 = vunpack.c.h.b16 %v2678
        %v2800 = vunpack.c.l.b16 %v2679
        %v2801 = vunpack.c.h.b16 %v2679
        %v2802 = vunpack.c.l.b16 %v2680
        %v2803 = vunpack.c.h.b16 %v2680
        %v2804 = vunpack.c.l.b16 %v2681
        %v2805 = vunpack.c.h.b16 %v2681
        %v2806 = vunpack.c.l.b16 %v2682
        %v2807 = vunpack.c.h.b16 %v2682
        %v2808 = vunpack.c.l.b16 %v2683
        %v2809 = vunpack.c.h.b16 %v2683
        %v2810 = vunpack.c.l.b16 %v2684
        %v2811 = vunpack.c.h.b16 %v2684
        %v2812 = vunpack.c.l.b16 %v2685
        %v2813 = vunpack.c.h.b16 %v2685
        %v2814 = vpack.c.b16 %v2752, %v2750
        %v2815 = vpack.c.b16 %v2753, %v2751
        %v2816 = vpack.c.b16 %v2756, %v2754
        %v2817 = vpack.c.b16 %v2757, %v2755
        %v2818 = vpack.c.b16 %v2760, %v2758
        %v2819 = vpack.c.b16 %v2761, %v2759
        %v2820 = vpack.c.b16 %v2764, %v2762
        %v2821 = vpack.c.b16 %v2765, %v2763
        %v2822 = vpack.c.b16 %v2768, %v2766
        %v2823 = vpack.c.b16 %v2769, %v2767
        %v2824 = vpack.c.b16 %v2772, %v2770
        %v2825 = vpack.c.b16 %v2773, %v2771
        %v2826 = vpack.c.b16 %v2776, %v2774
        %v2827 = vpack.c.b16 %v2777, %v2775
        %v2828 = vpack.c.b16 %v2780, %v2778
        %v2829 = vpack.c.b16 %v2781, %v2779
        %v2830 = vpack.c.b16 %v2784, %v2782
        %v2831 = vpack.c.b16 %v2785, %v2783
        %v2832 = vpack.c.b16 %v2788, %v2786
        %v2833 = vpack.c.b16 %v2789, %v2787
        %v2834 = vpack.c.b16 %v2792, %v2790
        %v2835 = vpack.c.b16 %v2793, %v2791
        %v2836 = vpack.c.b16 %v2796, %v2794
        %v2837 = vpack.c.b16 %v2797, %v2795
        %v2838 = vpack.c.b16 %v2800, %v2798
        %v2839 = vpack.c.b16 %v2801, %v2799
        %v2840 = vpack.c.b16 %v2804, %v2802
        %v2841 = vpack.c.b16 %v2805, %v2803
        %v2842 = vpack.c.b16 %v2808, %v2806
        %v2843 = vpack.c.b16 %v2809, %v2807
        %v2844 = vpack.c.b16 %v2812, %v2810
        %v2845 = vpack.c.b16 %v2813, %v2811
        %2878 = vmatpush.bf16.msra.mxu0 %v2828
        %2879 = vmatpush.bf16.msra.mxu0 %v2826
        %2880 = vmatpush.bf16.msra.mxu0 %v2824
        %2881 = vmatpush.bf16.msra.mxu0 %v2822
        %2882 = vmatpush.bf16.msra.mxu0 %v2820
        %2883 = vmatpush.bf16.msra.mxu0 %v2818
        %2884 = vmatpush.bf16.msra.mxu0 %v2816
        %2885 = vmatpush.bf16.msra.mxu0 %v2814
        %2886 = vmatmul.bf16.gmra.mxu0 %v2702
        %v2887 = vpop.f32.mrf.mxu0
        %v2888 = vadd.f32 0.0, %v2887
        %v2889 = vpop.f32.mrf.mxu0
        %v2890 = vadd.f32 0.0, %v2889
        %2891 = vmatmul.bf16.gmra.mxu0 %v2704
        %v2892 = vpop.f32.mrf.mxu0
        %v2893 = vadd.f32 0.0, %v2892
        %v2894 = vpop.f32.mrf.mxu0
        %v2895 = vadd.f32 0.0, %v2894
        %2896 = vmatmul.bf16.gmra.mxu0 %v2706
        %v2897 = vpop.f32.mrf.mxu0
        %v2898 = vadd.f32 0.0, %v2897
        %v2899 = vpop.f32.mrf.mxu0
        %v2900 = vadd.f32 0.0, %v2899
        %2901 = vmatmul.bf16.gmra.mxu0 %v2708
        %v2902 = vpop.f32.mrf.mxu0
        %v2903 = vadd.f32 0.0, %v2902
        %v2904 = vpop.f32.mrf.mxu0
        %v2905 = vadd.f32 0.0, %v2904
        %2906 = vdwg.mxu0
        %2907 = vmatpush.bf16.msra.mxu0 %v2844
        %2908 = vmatpush.bf16.msra.mxu0 %v2842
        %2909 = vmatpush.bf16.msra.mxu0 %v2840
        %2910 = vmatpush.bf16.msra.mxu0 %v2838
        %2911 = vmatpush.bf16.msra.mxu0 %v2836
        %2912 = vmatpush.bf16.msra.mxu0 %v2834
        %2913 = vmatpush.bf16.msra.mxu0 %v2832
        %2914 = vmatpush.bf16.msra.mxu0 %v2830
        %2915 = vmatmul.bf16.gmra.mxu0 %v2703
        %v2916 = vpop.f32.mrf.mxu0
        %v2917 = vadd.f32 %v2888, %v2916
        %v2918 = vpop.f32.mrf.mxu0
        %v2919 = vadd.f32 %v2890, %v2918
        %2920 = vmatmul.bf16.gmra.mxu0 %v2705
        %v2921 = vpop.f32.mrf.mxu0
        %v2922 = vadd.f32 %v2893, %v2921
        %v2923 = vpop.f32.mrf.mxu0
        %v2924 = vadd.f32 %v2895, %v2923
        %2925 = vmatmul.bf16.gmra.mxu0 %v2707
        %v2926 = vpop.f32.mrf.mxu0
        %v2927 = vadd.f32 %v2898, %v2926
        %v2928 = vpop.f32.mrf.mxu0
        %v2929 = vadd.f32 %v2900, %v2928
        %2930 = vmatmul.bf16.gmra.mxu0 %v2709
        %v2931 = vpop.f32.mrf.mxu0
        %v2932 = vadd.f32 %v2903, %v2931
        %v2933 = vpop.f32.mrf.mxu0
        %v2934 = vadd.f32 %v2905, %v2933
        %2935 = vdwg.mxu0
        %2936 = vmatpush.bf16.msra.mxu0 %v2829
        %2937 = vmatpush.bf16.msra.mxu0 %v2827
        %2938 = vmatpush.bf16.msra.mxu0 %v2825
        %2939 = vmatpush.bf16.msra.mxu0 %v2823
        %2940 = vmatpush.bf16.msra.mxu0 %v2821
        %2941 = vmatpush.bf16.msra.mxu0 %v2819
        %2942 = vmatpush.bf16.msra.mxu0 %v2817
        %2943 = vmatpush.bf16.msra.mxu0 %v2815
        %2944 = vmatmul.bf16.gmra.mxu0 %v2702
        %v2945 = vpop.f32.mrf.mxu0
        %v2946 = vadd.f32 0.0, %v2945
        %v2947 = vpop.f32.mrf.mxu0
        %v2948 = vadd.f32 0.0, %v2947
        %2949 = vmatmul.bf16.gmra.mxu0 %v2704
        %v2950 = vpop.f32.mrf.mxu0
        %v2951 = vadd.f32 0.0, %v2950
        %v2952 = vpop.f32.mrf.mxu0
        %v2953 = vadd.f32 0.0, %v2952
        %2954 = vmatmul.bf16.gmra.mxu0 %v2706
        %v2955 = vpop.f32.mrf.mxu0
        %v2956 = vadd.f32 0.0, %v2955
        %v2957 = vpop.f32.mrf.mxu0
        %v2958 = vadd.f32 0.0, %v2957
        %2959 = vmatmul.bf16.gmra.mxu0 %v2708
        %v2960 = vpop.f32.mrf.mxu0
        %v2961 = vadd.f32 0.0, %v2960
        %v2962 = vpop.f32.mrf.mxu0
        %v2963 = vadd.f32 0.0, %v2962
        %2964 = vdwg.mxu0
        %2965 = vmatpush.bf16.msra.mxu0 %v2845
        %2966 = vmatpush.bf16.msra.mxu0 %v2843
        %2967 = vmatpush.bf16.msra.mxu0 %v2841
        %2968 = vmatpush.bf16.msra.mxu0 %v2839
        %2969 = vmatpush.bf16.msra.mxu0 %v2837
        %2970 = vmatpush.bf16.msra.mxu0 %v2835
        %2971 = vmatpush.bf16.msra.mxu0 %v2833
        %2972 = vmatpush.bf16.msra.mxu0 %v2831
        %2973 = vmatmul.bf16.gmra.mxu0 %v2703
        %v2974 = vpop.f32.mrf.mxu0
        %v2975 = vadd.f32 %v2946, %v2974
        %v2976 = vpop.f32.mrf.mxu0
        %v2977 = vadd.f32 %v2948, %v2976
        %2978 = vmatmul.bf16.gmra.mxu0 %v2705
        %v2979 = vpop.f32.mrf.mxu0
        %v2980 = vadd.f32 %v2951, %v2979
        %v2981 = vpop.f32.mrf.mxu0
        %v2982 = vadd.f32 %v2953, %v2981
        %2983 = vmatmul.bf16.gmra.mxu0 %v2707
        %v2984 = vpop.f32.mrf.mxu0
        %v2985 = vadd.f32 %v2956, %v2984
        %v2986 = vpop.f32.mrf.mxu0
        %v2987 = vadd.f32 %v2958, %v2986
        %2988 = vmatmul.bf16.gmra.mxu0 %v2709
        %v2989 = vpop.f32.mrf.mxu0
        %v2990 = vadd.f32 %v2961, %v2989
        %v2991 = vpop.f32.mrf.mxu0
        %v2992 = vadd.f32 %v2963, %v2991
        %2993 = vdwg.mxu0
        %v2994 = vadd.f32 %v2581, %v2917
        %v2995 = vadd.f32 %v2582, %v2975
        %v2996 = vadd.f32 %v2583, %v2919
        %v2997 = vadd.f32 %v2584, %v2977
        %v2998 = vadd.f32 %v2585, %v2922
        %v2999 = vadd.f32 %v2586, %v2980
        %v3000 = vadd.f32 %v2587, %v2924
        %v3001 = vadd.f32 %v2588, %v2982
        %v3002 = vadd.f32 %v2589, %v2927
        %v3003 = vadd.f32 %v2590, %v2985
        %v3004 = vadd.f32 %v2591, %v2929
        %v3005 = vadd.f32 %v2592, %v2987
        %v3006 = vadd.f32 %v2593, %v2932
        %v3007 = vadd.f32 %v2594, %v2990
        %v3008 = vadd.f32 %v2595, %v2934
        %v3009 = vadd.f32 %v2596, %v2992
        %s3010 = scalar_lea.vmem [#allocation2], 32
        %v3011 = vld [vmem:[%s3010] sm:$0xff]
        %v3012 = vld [vmem:[%s3010 + $0x10] sm:$0xff]
        %v3013 = vld [vmem:[%s3010 + $0x20] sm:$0xff]
        %v3014 = vld [vmem:[%s3010 + $0x30] sm:$0xff]
        %v3015 = vld [vmem:[%s3010 + $0x40] sm:$0xff]
        %v3016 = vld [vmem:[%s3010 + $0x50] sm:$0xff]
        %v3017 = vld [vmem:[%s3010 + $0x60] sm:$0xff]
        %v3018 = vld [vmem:[%s3010 + $0x70] sm:$0xff]
        %s3019 = scalar_lea.vmem [#allocation3], 1536
        %v3020 = vld [vmem:[%s3019] sm:$0xff]
        %v3021 = vld [vmem:[%s3019 + $0x8] sm:$0xff]
        %v3022 = vld [vmem:[%s3019 + $0x10] sm:$0xff]
        %v3023 = vld [vmem:[%s3019 + $0x18] sm:$0xff]
        %v3024 = vld [vmem:[%s3019 + $0x20] sm:$0xff]
        %v3025 = vld [vmem:[%s3019 + $0x28] sm:$0xff]
        %v3026 = vld [vmem:[%s3019 + $0x30] sm:$0xff]
        %v3027 = vld [vmem:[%s3019 + $0x38] sm:$0xff]
        %v3028 = vld [vmem:[%s3019 + $0x40] sm:$0xff]
        %v3029 = vld [vmem:[%s3019 + $0x48] sm:$0xff]
        %v3030 = vld [vmem:[%s3019 + $0x50] sm:$0xff]
        %v3031 = vld [vmem:[%s3019 + $0x58] sm:$0xff]
        %v3032 = vld [vmem:[%s3019 + $0x60] sm:$0xff]
        %v3033 = vld [vmem:[%s3019 + $0x68] sm:$0xff]
        %v3034 = vld [vmem:[%s3019 + $0x70] sm:$0xff]
        %v3035 = vld [vmem:[%s3019 + $0x78] sm:$0xff]
        %v3036 = vld [vmem:[%s3019 + $0x80] sm:$0xff]
        %v3037 = vld [vmem:[%s3019 + $0x88] sm:$0xff]
        %v3038 = vld [vmem:[%s3019 + $0x90] sm:$0xff]
        %v3039 = vld [vmem:[%s3019 + $0x98] sm:$0xff]
        %v3040 = vld [vmem:[%s3019 + $0xa0] sm:$0xff]
        %v3041 = vld [vmem:[%s3019 + $0xa8] sm:$0xff]
        %v3042 = vld [vmem:[%s3019 + $0xb0] sm:$0xff]
        %v3043 = vld [vmem:[%s3019 + $0xb8] sm:$0xff]
        %v3044 = vld [vmem:[%s3019 + $0xc0] sm:$0xff]
        %v3045 = vld [vmem:[%s3019 + $0xc8] sm:$0xff]
        %v3046 = vld [vmem:[%s3019 + $0xd0] sm:$0xff]
        %v3047 = vld [vmem:[%s3019 + $0xd8] sm:$0xff]
        %v3048 = vld [vmem:[%s3019 + $0xe0] sm:$0xff]
        %v3049 = vld [vmem:[%s3019 + $0xe8] sm:$0xff]
        %v3050 = vld [vmem:[%s3019 + $0xf0] sm:$0xff]
        %v3051 = vld [vmem:[%s3019 + $0xf8] sm:$0xff]
        %v3060 = vunpack.c.l.b16 %v3011
        %v3061 = vunpack.c.h.b16 %v3011
        %v3062 = vunpack.c.l.b16 %v3012
        %v3063 = vunpack.c.h.b16 %v3012
        %v3064 = vunpack.c.l.b16 %v3013
        %v3065 = vunpack.c.h.b16 %v3013
        %v3066 = vunpack.c.l.b16 %v3014
        %v3067 = vunpack.c.h.b16 %v3014
        %v3068 = vunpack.c.l.b16 %v3015
        %v3069 = vunpack.c.h.b16 %v3015
        %v3070 = vunpack.c.l.b16 %v3016
        %v3071 = vunpack.c.h.b16 %v3016
        %v3072 = vunpack.c.l.b16 %v3017
        %v3073 = vunpack.c.h.b16 %v3017
        %v3074 = vunpack.c.l.b16 %v3018
        %v3075 = vunpack.c.h.b16 %v3018
        %v3076 = vpack.c.b16 %v3062, %v3060
        %v3077 = vpack.c.b16 %v3063, %v3061
        %v3078 = vpack.c.b16 %v3066, %v3064
        %v3079 = vpack.c.b16 %v3067, %v3065
        %v3080 = vpack.c.b16 %v3070, %v3068
        %v3081 = vpack.c.b16 %v3071, %v3069
        %v3082 = vpack.c.b16 %v3074, %v3072
        %v3083 = vpack.c.b16 %v3075, %v3073
        %v3124 = vunpack.c.l.b16 %v3020
        %v3125 = vunpack.c.h.b16 %v3020
        %v3126 = vunpack.c.l.b16 %v3021
        %v3127 = vunpack.c.h.b16 %v3021
        %v3128 = vunpack.c.l.b16 %v3022
        %v3129 = vunpack.c.h.b16 %v3022
        %v3130 = vunpack.c.l.b16 %v3023
        %v3131 = vunpack.c.h.b16 %v3023
        %v3132 = vunpack.c.l.b16 %v3024
        %v3133 = vunpack.c.h.b16 %v3024
        %v3134 = vunpack.c.l.b16 %v3025
        %v3135 = vunpack.c.h.b16 %v3025
        %v3136 = vunpack.c.l.b16 %v3026
        %v3137 = vunpack.c.h.b16 %v3026
        %v3138 = vunpack.c.l.b16 %v3027
        %v3139 = vunpack.c.h.b16 %v3027
        %v3140 = vunpack.c.l.b16 %v3028
        %v3141 = vunpack.c.h.b16 %v3028
        %v3142 = vunpack.c.l.b16 %v3029
        %v3143 = vunpack.c.h.b16 %v3029
        %v3144 = vunpack.c.l.b16 %v3030
        %v3145 = vunpack.c.h.b16 %v3030
        %v3146 = vunpack.c.l.b16 %v3031
        %v3147 = vunpack.c.h.b16 %v3031
        %v3148 = vunpack.c.l.b16 %v3032
        %v3149 = vunpack.c.h.b16 %v3032
        %v3150 = vunpack.c.l.b16 %v3033
        %v3151 = vunpack.c.h.b16 %v3033
        %v3152 = vunpack.c.l.b16 %v3034
        %v3153 = vunpack.c.h.b16 %v3034
        %v3154 = vunpack.c.l.b16 %v3035
        %v3155 = vunpack.c.h.b16 %v3035
        %v3156 = vunpack.c.l.b16 %v3036
        %v3157 = vunpack.c.h.b16 %v3036
        %v3158 = vunpack.c.l.b16 %v3037
        %v3159 = vunpack.c.h.b16 %v3037
        %v3160 = vunpack.c.l.b16 %v3038
        %v3161 = vunpack.c.h.b16 %v3038
        %v3162 = vunpack.c.l.b16 %v3039
        %v3163 = vunpack.c.h.b16 %v3039
        %v3164 = vunpack.c.l.b16 %v3040
        %v3165 = vunpack.c.h.b16 %v3040
        %v3166 = vunpack.c.l.b16 %v3041
        %v3167 = vunpack.c.h.b16 %v3041
        %v3168 = vunpack.c.l.b16 %v3042
        %v3169 = vunpack.c.h.b16 %v3042
        %v3170 = vunpack.c.l.b16 %v3043
        %v3171 = vunpack.c.h.b16 %v3043
        %v3172 = vunpack.c.l.b16 %v3044
        %v3173 = vunpack.c.h.b16 %v3044
        %v3174 = vunpack.c.l.b16 %v3045
        %v3175 = vunpack.c.h.b16 %v3045
        %v3176 = vunpack.c.l.b16 %v3046
        %v3177 = vunpack.c.h.b16 %v3046
        %v3178 = vunpack.c.l.b16 %v3047
        %v3179 = vunpack.c.h.b16 %v3047
        %v3180 = vunpack.c.l.b16 %v3048
        %v3181 = vunpack.c.h.b16 %v3048
        %v3182 = vunpack.c.l.b16 %v3049
        %v3183 = vunpack.c.h.b16 %v3049
        %v3184 = vunpack.c.l.b16 %v3050
        %v3185 = vunpack.c.h.b16 %v3050
        %v3186 = vunpack.c.l.b16 %v3051
        %v3187 = vunpack.c.h.b16 %v3051
        %v3188 = vpack.c.b16 %v3126, %v3124
        %v3189 = vpack.c.b16 %v3127, %v3125
        %v3190 = vpack.c.b16 %v3130, %v3128
        %v3191 = vpack.c.b16 %v3131, %v3129
        %v3192 = vpack.c.b16 %v3134, %v3132
        %v3193 = vpack.c.b16 %v3135, %v3133
        %v3194 = vpack.c.b16 %v3138, %v3136
        %v3195 = vpack.c.b16 %v3139, %v3137
        %v3196 = vpack.c.b16 %v3142, %v3140
        %v3197 = vpack.c.b16 %v3143, %v3141
        %v3198 = vpack.c.b16 %v3146, %v3144
        %v3199 = vpack.c.b16 %v3147, %v3145
        %v3200 = vpack.c.b16 %v3150, %v3148
        %v3201 = vpack.c.b16 %v3151, %v3149
        %v3202 = vpack.c.b16 %v3154, %v3152
        %v3203 = vpack.c.b16 %v3155, %v3153
        %v3204 = vpack.c.b16 %v3158, %v3156
        %v3205 = vpack.c.b16 %v3159, %v3157
        %v3206 = vpack.c.b16 %v3162, %v3160
        %v3207 = vpack.c.b16 %v3163, %v3161
        %v3208 = vpack.c.b16 %v3166, %v3164
        %v3209 = vpack.c.b16 %v3167, %v3165
        %v3210 = vpack.c.b16 %v3170, %v3168
        %v3211 = vpack.c.b16 %v3171, %v3169
        %v3212 = vpack.c.b16 %v3174, %v3172
        %v3213 = vpack.c.b16 %v3175, %v3173
        %v3214 = vpack.c.b16 %v3178, %v3176
        %v3215 = vpack.c.b16 %v3179, %v3177
        %v3216 = vpack.c.b16 %v3182, %v3180
        %v3217 = vpack.c.b16 %v3183, %v3181
        %v3218 = vpack.c.b16 %v3186, %v3184
        %v3219 = vpack.c.b16 %v3187, %v3185
        %3252 = vmatpush.bf16.msra.mxu0 %v3202
        %3253 = vmatpush.bf16.msra.mxu0 %v3200
        %3254 = vmatpush.bf16.msra.mxu0 %v3198
        %3255 = vmatpush.bf16.msra.mxu0 %v3196
        %3256 = vmatpush.bf16.msra.mxu0 %v3194
        %3257 = vmatpush.bf16.msra.mxu0 %v3192
        %3258 = vmatpush.bf16.msra.mxu0 %v3190
        %3259 = vmatpush.bf16.msra.mxu0 %v3188
        %3260 = vmatmul.bf16.gmra.mxu0 %v3076
        %v3261 = vpop.f32.mrf.mxu0
        %v3262 = vadd.f32 0.0, %v3261
        %v3263 = vpop.f32.mrf.mxu0
        %v3264 = vadd.f32 0.0, %v3263
        %3265 = vmatmul.bf16.gmra.mxu0 %v3078
        %v3266 = vpop.f32.mrf.mxu0
        %v3267 = vadd.f32 0.0, %v3266
        %v3268 = vpop.f32.mrf.mxu0
        %v3269 = vadd.f32 0.0, %v3268
        %3270 = vmatmul.bf16.gmra.mxu0 %v3080
        %v3271 = vpop.f32.mrf.mxu0
        %v3272 = vadd.f32 0.0, %v3271
        %v3273 = vpop.f32.mrf.mxu0
        %v3274 = vadd.f32 0.0, %v3273
        %3275 = vmatmul.bf16.gmra.mxu0 %v3082
        %v3276 = vpop.f32.mrf.mxu0
        %v3277 = vadd.f32 0.0, %v3276
        %v3278 = vpop.f32.mrf.mxu0
        %v3279 = vadd.f32 0.0, %v3278
        %3280 = vdwg.mxu0
        %3281 = vmatpush.bf16.msra.mxu0 %v3218
        %3282 = vmatpush.bf16.msra.mxu0 %v3216
        %3283 = vmatpush.bf16.msra.mxu0 %v3214
        %3284 = vmatpush.bf16.msra.mxu0 %v3212
        %3285 = vmatpush.bf16.msra.mxu0 %v3210
        %3286 = vmatpush.bf16.msra.mxu0 %v3208
        %3287 = vmatpush.bf16.msra.mxu0 %v3206
        %3288 = vmatpush.bf16.msra.mxu0 %v3204
        %3289 = vmatmul.bf16.gmra.mxu0 %v3077
        %v3290 = vpop.f32.mrf.mxu0
        %v3291 = vadd.f32 %v3262, %v3290
        %v3292 = vpop.f32.mrf.mxu0
        %v3293 = vadd.f32 %v3264, %v3292
        %3294 = vmatmul.bf16.gmra.mxu0 %v3079
        %v3295 = vpop.f32.mrf.mxu0
        %v3296 = vadd.f32 %v3267, %v3295
        %v3297 = vpop.f32.mrf.mxu0
        %v3298 = vadd.f32 %v3269, %v3297
        %3299 = vmatmul.bf16.gmra.mxu0 %v3081
        %v3300 = vpop.f32.mrf.mxu0
        %v3301 = vadd.f32 %v3272, %v3300
        %v3302 = vpop.f32.mrf.mxu0
        %v3303 = vadd.f32 %v3274, %v3302
        %3304 = vmatmul.bf16.gmra.mxu0 %v3083
        %v3305 = vpop.f32.mrf.mxu0
        %v3306 = vadd.f32 %v3277, %v3305
        %v3307 = vpop.f32.mrf.mxu0
        %v3308 = vadd.f32 %v3279, %v3307
        %3309 = vdwg.mxu0
        %3310 = vmatpush.bf16.msra.mxu0 %v3203
        %3311 = vmatpush.bf16.msra.mxu0 %v3201
        %3312 = vmatpush.bf16.msra.mxu0 %v3199
        %3313 = vmatpush.bf16.msra.mxu0 %v3197
        %3314 = vmatpush.bf16.msra.mxu0 %v3195
        %3315 = vmatpush.bf16.msra.mxu0 %v3193
        %3316 = vmatpush.bf16.msra.mxu0 %v3191
        %3317 = vmatpush.bf16.msra.mxu0 %v3189
        %3318 = vmatmul.bf16.gmra.mxu0 %v3076
        %v3319 = vpop.f32.mrf.mxu0
        %v3320 = vadd.f32 0.0, %v3319
        %v3321 = vpop.f32.mrf.mxu0
        %v3322 = vadd.f32 0.0, %v3321
        %3323 = vmatmul.bf16.gmra.mxu0 %v3078
        %v3324 = vpop.f32.mrf.mxu0
        %v3325 = vadd.f32 0.0, %v3324
        %v3326 = vpop.f32.mrf.mxu0
        %v3327 = vadd.f32 0.0, %v3326
        %3328 = vmatmul.bf16.gmra.mxu0 %v3080
        %v3329 = vpop.f32.mrf.mxu0
        %v3330 = vadd.f32 0.0, %v3329
        %v3331 = vpop.f32.mrf.mxu0
        %v3332 = vadd.f32 0.0, %v3331
        %3333 = vmatmul.bf16.gmra.mxu0 %v3082
        %v3334 = vpop.f32.mrf.mxu0
        %v3335 = vadd.f32 0.0, %v3334
        %v3336 = vpop.f32.mrf.mxu0
        %v3337 = vadd.f32 0.0, %v3336
        %3338 = vdwg.mxu0
        %3339 = vmatpush.bf16.msra.mxu0 %v3219
        %3340 = vmatpush.bf16.msra.mxu0 %v3217
        %3341 = vmatpush.bf16.msra.mxu0 %v3215
        %3342 = vmatpush.bf16.msra.mxu0 %v3213
        %3343 = vmatpush.bf16.msra.mxu0 %v3211
        %3344 = vmatpush.bf16.msra.mxu0 %v3209
        %3345 = vmatpush.bf16.msra.mxu0 %v3207
        %3346 = vmatpush.bf16.msra.mxu0 %v3205
        %3347 = vmatmul.bf16.gmra.mxu0 %v3077
        %v3348 = vpop.f32.mrf.mxu0
        %v3349 = vadd.f32 %v3320, %v3348
        %v3350 = vpop.f32.mrf.mxu0
        %v3351 = vadd.f32 %v3322, %v3350
        %3352 = vmatmul.bf16.gmra.mxu0 %v3079
        %v3353 = vpop.f32.mrf.mxu0
        %v3354 = vadd.f32 %v3325, %v3353
        %v3355 = vpop.f32.mrf.mxu0
        %v3356 = vadd.f32 %v3327, %v3355
        %3357 = vmatmul.bf16.gmra.mxu0 %v3081
        %v3358 = vpop.f32.mrf.mxu0
        %v3359 = vadd.f32 %v3330, %v3358
        %v3360 = vpop.f32.mrf.mxu0
        %v3361 = vadd.f32 %v3332, %v3360
        %3362 = vmatmul.bf16.gmra.mxu0 %v3083
        %v3363 = vpop.f32.mrf.mxu0
        %v3364 = vadd.f32 %v3335, %v3363
        %v3365 = vpop.f32.mrf.mxu0
        %v3366 = vadd.f32 %v3337, %v3365
        %3367 = vdwg.mxu0
        %v3368 = vadd.f32 %v2994, %v3291
        %v3369 = vadd.f32 %v2995, %v3349
        %v3370 = vadd.f32 %v2996, %v3293
        %v3371 = vadd.f32 %v2997, %v3351
        %v3372 = vadd.f32 %v2998, %v3296
        %v3373 = vadd.f32 %v2999, %v3354
        %v3374 = vadd.f32 %v3000, %v3298
        %v3375 = vadd.f32 %v3001, %v3356
        %v3376 = vadd.f32 %v3002, %v3301
        %v3377 = vadd.f32 %v3003, %v3359
        %v3378 = vadd.f32 %v3004, %v3303
        %v3379 = vadd.f32 %v3005, %v3361
        %v3380 = vadd.f32 %v3006, %v3306
        %v3381 = vadd.f32 %v3007, %v3364
        %v3382 = vadd.f32 %v3008, %v3308
        %v3383 = vadd.f32 %v3009, %v3366
        %v3384 = vld [vmem:[%s3010] sm:$0xff]
        %v3385 = vld [vmem:[%s3010 + $0x8] sm:$0x11]
        %v3386 = vld [vmem:[%s3010 + $0x10] sm:$0xff]
        %v3387 = vld [vmem:[%s3010 + $0x18] sm:$0x11]
        %v3388 = vld [vmem:[%s3010 + $0x20] sm:$0xff]
        %v3389 = vld [vmem:[%s3010 + $0x28] sm:$0x11]
        %v3390 = vld [vmem:[%s3010 + $0x30] sm:$0xff]
        %v3391 = vld [vmem:[%s3010 + $0x38] sm:$0x11]
        %v3392 = vld [vmem:[%s3010 + $0x40] sm:$0xff]
        %v3393 = vld [vmem:[%s3010 + $0x48] sm:$0x11]
        %v3394 = vld [vmem:[%s3010 + $0x50] sm:$0xff]
        %v3395 = vld [vmem:[%s3010 + $0x58] sm:$0x11]
        %v3396 = vld [vmem:[%s3010 + $0x60] sm:$0xff]
        %v3397 = vld [vmem:[%s3010 + $0x68] sm:$0x11]
        %v3398 = vld [vmem:[%s3010 + $0x70] sm:$0xff]
        %v3399 = vld [vmem:[%s3010 + $0x78] sm:$0x11]
        %v3401 = vshrl.u32 %v3384, 16
        %v3403 = vrot.slane %v3401, 4
        %v3404 = vshll.u32 %v3384, 16
        %v3406 = vrot.slane %v3404, 5
        %v3407 = vor.u32 %v3403, %v3406
        %v3408 = vrot.slane %v3407, 4
        %v3410 = vshll.u32 %v3385, 16
        %v3412 = vrot.slane %v3410, 5
        %v3413 = vsel %vm553, %v3408, %v3412
        %v3415 = vshrl.u32 %v3386, 16
        %v3417 = vrot.slane %v3415, 4
        %v3418 = vshll.u32 %v3386, 16
        %v3420 = vrot.slane %v3418, 5
        %v3421 = vor.u32 %v3417, %v3420
        %v3422 = vrot.slane %v3421, 4
        %v3424 = vshll.u32 %v3387, 16
        %v3426 = vrot.slane %v3424, 5
        %v3427 = vsel %vm553, %v3422, %v3426
        %v3429 = vshrl.u32 %v3388, 16
        %v3431 = vrot.slane %v3429, 4
        %v3432 = vshll.u32 %v3388, 16
        %v3434 = vrot.slane %v3432, 5
        %v3435 = vor.u32 %v3431, %v3434
        %v3436 = vrot.slane %v3435, 4
        %v3438 = vshll.u32 %v3389, 16
        %v3440 = vrot.slane %v3438, 5
        %v3441 = vsel %vm553, %v3436, %v3440
        %v3443 = vshrl.u32 %v3390, 16
        %v3445 = vrot.slane %v3443, 4
        %v3446 = vshll.u32 %v3390, 16
        %v3448 = vrot.slane %v3446, 5
        %v3449 = vor.u32 %v3445, %v3448
        %v3450 = vrot.slane %v3449, 4
        %v3452 = vshll.u32 %v3391, 16
        %v3454 = vrot.slane %v3452, 5
        %v3455 = vsel %vm553, %v3450, %v3454
        %v3457 = vshrl.u32 %v3392, 16
        %v3459 = vrot.slane %v3457, 4
        %v3460 = vshll.u32 %v3392, 16
        %v3462 = vrot.slane %v3460, 5
        %v3463 = vor.u32 %v3459, %v3462
        %v3464 = vrot.slane %v3463, 4
        %v3466 = vshll.u32 %v3393, 16
        %v3468 = vrot.slane %v3466, 5
        %v3469 = vsel %vm553, %v3464, %v3468
        %v3471 = vshrl.u32 %v3394, 16
        %v3473 = vrot.slane %v3471, 4
        %v3474 = vshll.u32 %v3394, 16
        %v3476 = vrot.slane %v3474, 5
        %v3477 = vor.u32 %v3473, %v3476
        %v3478 = vrot.slane %v3477, 4
        %v3480 = vshll.u32 %v3395, 16
        %v3482 = vrot.slane %v3480, 5
        %v3483 = vsel %vm553, %v3478, %v3482
        %v3485 = vshrl.u32 %v3396, 16
        %v3487 = vrot.slane %v3485, 4
        %v3488 = vshll.u32 %v3396, 16
        %v3490 = vrot.slane %v3488, 5
        %v3491 = vor.u32 %v3487, %v3490
        %v3492 = vrot.slane %v3491, 4
        %v3494 = vshll.u32 %v3397, 16
        %v3496 = vrot.slane %v3494, 5
        %v3497 = vsel %vm553, %v3492, %v3496
        %v3499 = vshrl.u32 %v3398, 16
        %v3501 = vrot.slane %v3499, 4
        %v3502 = vshll.u32 %v3398, 16
        %v3504 = vrot.slane %v3502, 5
        %v3505 = vor.u32 %v3501, %v3504
        %v3506 = vrot.slane %v3505, 4
        %v3508 = vshll.u32 %v3399, 16
        %v3510 = vrot.slane %v3508, 5
        %v3511 = vsel %vm553, %v3506, %v3510
        %s3512 = scalar_lea.vmem [#allocation3], 1792
        %v3513 = vld [vmem:[%s3512] sm:$0xff]
        %v3514 = vld [vmem:[%s3512 + $0x8] sm:$0xff]
        %v3515 = vld [vmem:[%s3512 + $0x10] sm:$0xff]
        %v3516 = vld [vmem:[%s3512 + $0x18] sm:$0xff]
        %v3517 = vld [vmem:[%s3512 + $0x20] sm:$0xff]
        %v3518 = vld [vmem:[%s3512 + $0x28] sm:$0xff]
        %v3519 = vld [vmem:[%s3512 + $0x30] sm:$0xff]
        %v3520 = vld [vmem:[%s3512 + $0x38] sm:$0xff]
        %v3521 = vld [vmem:[%s3512 + $0x40] sm:$0xff]
        %v3522 = vld [vmem:[%s3512 + $0x48] sm:$0xff]
        %v3523 = vld [vmem:[%s3512 + $0x50] sm:$0xff]
        %v3524 = vld [vmem:[%s3512 + $0x58] sm:$0xff]
        %v3525 = vld [vmem:[%s3512 + $0x60] sm:$0xff]
        %v3526 = vld [vmem:[%s3512 + $0x68] sm:$0xff]
        %v3527 = vld [vmem:[%s3512 + $0x70] sm:$0xff]
        %v3528 = vld [vmem:[%s3512 + $0x78] sm:$0xff]
        %v3529 = vld [vmem:[%s3512 + $0x80] sm:$0xff]
        %v3530 = vld [vmem:[%s3512 + $0x88] sm:$0xff]
        %v3531 = vld [vmem:[%s3512 + $0x90] sm:$0xff]
        %v3532 = vld [vmem:[%s3512 + $0x98] sm:$0xff]
        %v3533 = vld [vmem:[%s3512 + $0xa0] sm:$0xff]
        %v3534 = vld [vmem:[%s3512 + $0xa8] sm:$0xff]
        %v3535 = vld [vmem:[%s3512 + $0xb0] sm:$0xff]
        %v3536 = vld [vmem:[%s3512 + $0xb8] sm:$0xff]
        %v3537 = vld [vmem:[%s3512 + $0xc0] sm:$0xff]
        %v3538 = vld [vmem:[%s3512 + $0xc8] sm:$0xff]
        %v3539 = vld [vmem:[%s3512 + $0xd0] sm:$0xff]
        %v3540 = vld [vmem:[%s3512 + $0xd8] sm:$0xff]
        %v3541 = vld [vmem:[%s3512 + $0xe0] sm:$0xff]
        %v3542 = vld [vmem:[%s3512 + $0xe8] sm:$0xff]
        %v3543 = vld [vmem:[%s3512 + $0xf0] sm:$0xff]
        %v3544 = vld [vmem:[%s3512 + $0xf8] sm:$0xff]
        %v3545 = vunpack.c.l.b16 %v3413
        %v3546 = vunpack.c.h.b16 %v3413
        %v3547 = vunpack.c.l.b16 %v3427
        %v3548 = vunpack.c.h.b16 %v3427
        %v3549 = vunpack.c.l.b16 %v3441
        %v3550 = vunpack.c.h.b16 %v3441
        %v3551 = vunpack.c.l.b16 %v3455
        %v3552 = vunpack.c.h.b16 %v3455
        %v3553 = vunpack.c.l.b16 %v3469
        %v3554 = vunpack.c.h.b16 %v3469
        %v3555 = vunpack.c.l.b16 %v3483
        %v3556 = vunpack.c.h.b16 %v3483
        %v3557 = vunpack.c.l.b16 %v3497
        %v3558 = vunpack.c.h.b16 %v3497
        %v3559 = vunpack.c.l.b16 %v3511
        %v3560 = vunpack.c.h.b16 %v3511
        %v3561 = vpack.c.b16 %v3547, %v3545
        %v3562 = vpack.c.b16 %v3548, %v3546
        %v3563 = vpack.c.b16 %v3551, %v3549
        %v3564 = vpack.c.b16 %v3552, %v3550
        %v3565 = vpack.c.b16 %v3555, %v3553
        %v3566 = vpack.c.b16 %v3556, %v3554
        %v3567 = vpack.c.b16 %v3559, %v3557
        %v3568 = vpack.c.b16 %v3560, %v3558
        %v3609 = vunpack.c.l.b16 %v3513
        %v3610 = vunpack.c.h.b16 %v3513
        %v3611 = vunpack.c.l.b16 %v3514
        %v3612 = vunpack.c.h.b16 %v3514
        %v3613 = vunpack.c.l.b16 %v3515
        %v3614 = vunpack.c.h.b16 %v3515
        %v3615 = vunpack.c.l.b16 %v3516
        %v3616 = vunpack.c.h.b16 %v3516
        %v3617 = vunpack.c.l.b16 %v3517
        %v3618 = vunpack.c.h.b16 %v3517
        %v3619 = vunpack.c.l.b16 %v3518
        %v3620 = vunpack.c.h.b16 %v3518
        %v3621 = vunpack.c.l.b16 %v3519
        %v3622 = vunpack.c.h.b16 %v3519
        %v3623 = vunpack.c.l.b16 %v3520
        %v3624 = vunpack.c.h.b16 %v3520
        %v3625 = vunpack.c.l.b16 %v3521
        %v3626 = vunpack.c.h.b16 %v3521
        %v3627 = vunpack.c.l.b16 %v3522
        %v3628 = vunpack.c.h.b16 %v3522
        %v3629 = vunpack.c.l.b16 %v3523
        %v3630 = vunpack.c.h.b16 %v3523
        %v3631 = vunpack.c.l.b16 %v3524
        %v3632 = vunpack.c.h.b16 %v3524
        %v3633 = vunpack.c.l.b16 %v3525
        %v3634 = vunpack.c.h.b16 %v3525
        %v3635 = vunpack.c.l.b16 %v3526
        %v3636 = vunpack.c.h.b16 %v3526
        %v3637 = vunpack.c.l.b16 %v3527
        %v3638 = vunpack.c.h.b16 %v3527
        %v3639 = vunpack.c.l.b16 %v3528
        %v3640 = vunpack.c.h.b16 %v3528
        %v3641 = vunpack.c.l.b16 %v3529
        %v3642 = vunpack.c.h.b16 %v3529
        %v3643 = vunpack.c.l.b16 %v3530
        %v3644 = vunpack.c.h.b16 %v3530
        %v3645 = vunpack.c.l.b16 %v3531
        %v3646 = vunpack.c.h.b16 %v3531
        %v3647 = vunpack.c.l.b16 %v3532
        %v3648 = vunpack.c.h.b16 %v3532
        %v3649 = vunpack.c.l.b16 %v3533
        %v3650 = vunpack.c.h.b16 %v3533
        %v3651 = vunpack.c.l.b16 %v3534
        %v3652 = vunpack.c.h.b16 %v3534
        %v3653 = vunpack.c.l.b16 %v3535
        %v3654 = vunpack.c.h.b16 %v3535
        %v3655 = vunpack.c.l.b16 %v3536
        %v3656 = vunpack.c.h.b16 %v3536
        %v3657 = vunpack.c.l.b16 %v3537
        %v3658 = vunpack.c.h.b16 %v3537
        %v3659 = vunpack.c.l.b16 %v3538
        %v3660 = vunpack.c.h.b16 %v3538
        %v3661 = vunpack.c.l.b16 %v3539
        %v3662 = vunpack.c.h.b16 %v3539
        %v3663 = vunpack.c.l.b16 %v3540
        %v3664 = vunpack.c.h.b16 %v3540
        %v3665 = vunpack.c.l.b16 %v3541
        %v3666 = vunpack.c.h.b16 %v3541
        %v3667 = vunpack.c.l.b16 %v3542
        %v3668 = vunpack.c.h.b16 %v3542
        %v3669 = vunpack.c.l.b16 %v3543
        %v3670 = vunpack.c.h.b16 %v3543
        %v3671 = vunpack.c.l.b16 %v3544
        %v3672 = vunpack.c.h.b16 %v3544
        %v3673 = vpack.c.b16 %v3611, %v3609
        %v3674 = vpack.c.b16 %v3612, %v3610
        %v3675 = vpack.c.b16 %v3615, %v3613
        %v3676 = vpack.c.b16 %v3616, %v3614
        %v3677 = vpack.c.b16 %v3619, %v3617
        %v3678 = vpack.c.b16 %v3620, %v3618
        %v3679 = vpack.c.b16 %v3623, %v3621
        %v3680 = vpack.c.b16 %v3624, %v3622
        %v3681 = vpack.c.b16 %v3627, %v3625
        %v3682 = vpack.c.b16 %v3628, %v3626
        %v3683 = vpack.c.b16 %v3631, %v3629
        %v3684 = vpack.c.b16 %v3632, %v3630
        %v3685 = vpack.c.b16 %v3635, %v3633
        %v3686 = vpack.c.b16 %v3636, %v3634
        %v3687 = vpack.c.b16 %v3639, %v3637
        %v3688 = vpack.c.b16 %v3640, %v3638
        %v3689 = vpack.c.b16 %v3643, %v3641
        %v3690 = vpack.c.b16 %v3644, %v3642
        %v3691 = vpack.c.b16 %v3647, %v3645
        %v3692 = vpack.c.b16 %v3648, %v3646
        %v3693 = vpack.c.b16 %v3651, %v3649
        %v3694 = vpack.c.b16 %v3652, %v3650
        %v3695 = vpack.c.b16 %v3655, %v3653
        %v3696 = vpack.c.b16 %v3656, %v3654
        %v3697 = vpack.c.b16 %v3659, %v3657
        %v3698 = vpack.c.b16 %v3660, %v3658
        %v3699 = vpack.c.b16 %v3663, %v3661
        %v3700 = vpack.c.b16 %v3664, %v3662
        %v3701 = vpack.c.b16 %v3667, %v3665
        %v3702 = vpack.c.b16 %v3668, %v3666
        %v3703 = vpack.c.b16 %v3671, %v3669
        %v3704 = vpack.c.b16 %v3672, %v3670
        %3737 = vmatpush.bf16.msra.mxu0 %v3687
        %3738 = vmatpush.bf16.msra.mxu0 %v3685
        %3739 = vmatpush.bf16.msra.mxu0 %v3683
        %3740 = vmatpush.bf16.msra.mxu0 %v3681
        %3741 = vmatpush.bf16.msra.mxu0 %v3679
        %3742 = vmatpush.bf16.msra.mxu0 %v3677
        %3743 = vmatpush.bf16.msra.mxu0 %v3675
        %3744 = vmatpush.bf16.msra.mxu0 %v3673
        %3745 = vmatmul.bf16.gmra.mxu0 %v3561
        %v3746 = vpop.f32.mrf.mxu0
        %v3747 = vadd.f32 0.0, %v3746
        %v3748 = vpop.f32.mrf.mxu0
        %v3749 = vadd.f32 0.0, %v3748
        %3750 = vmatmul.bf16.gmra.mxu0 %v3563
        %v3751 = vpop.f32.mrf.mxu0
        %v3752 = vadd.f32 0.0, %v3751
        %v3753 = vpop.f32.mrf.mxu0
        %v3754 = vadd.f32 0.0, %v3753
        %3755 = vmatmul.bf16.gmra.mxu0 %v3565
        %v3756 = vpop.f32.mrf.mxu0
        %v3757 = vadd.f32 0.0, %v3756
        %v3758 = vpop.f32.mrf.mxu0
        %v3759 = vadd.f32 0.0, %v3758
        %3760 = vmatmul.bf16.gmra.mxu0 %v3567
        %v3761 = vpop.f32.mrf.mxu0
        %v3762 = vadd.f32 0.0, %v3761
        %v3763 = vpop.f32.mrf.mxu0
        %v3764 = vadd.f32 0.0, %v3763
        %3765 = vdwg.mxu0
        %3766 = vmatpush.bf16.msra.mxu0 %v3703
        %3767 = vmatpush.bf16.msra.mxu0 %v3701
        %3768 = vmatpush.bf16.msra.mxu0 %v3699
        %3769 = vmatpush.bf16.msra.mxu0 %v3697
        %3770 = vmatpush.bf16.msra.mxu0 %v3695
        %3771 = vmatpush.bf16.msra.mxu0 %v3693
        %3772 = vmatpush.bf16.msra.mxu0 %v3691
        %3773 = vmatpush.bf16.msra.mxu0 %v3689
        %3774 = vmatmul.bf16.gmra.mxu0 %v3562
        %v3775 = vpop.f32.mrf.mxu0
        %v3776 = vadd.f32 %v3747, %v3775
        %v3777 = vpop.f32.mrf.mxu0
        %v3778 = vadd.f32 %v3749, %v3777
        %3779 = vmatmul.bf16.gmra.mxu0 %v3564
        %v3780 = vpop.f32.mrf.mxu0
        %v3781 = vadd.f32 %v3752, %v3780
        %v3782 = vpop.f32.mrf.mxu0
        %v3783 = vadd.f32 %v3754, %v3782
        %3784 = vmatmul.bf16.gmra.mxu0 %v3566
        %v3785 = vpop.f32.mrf.mxu0
        %v3786 = vadd.f32 %v3757, %v3785
        %v3787 = vpop.f32.mrf.mxu0
        %v3788 = vadd.f32 %v3759, %v3787
        %3789 = vmatmul.bf16.gmra.mxu0 %v3568
        %v3790 = vpop.f32.mrf.mxu0
        %v3791 = vadd.f32 %v3762, %v3790
        %v3792 = vpop.f32.mrf.mxu0
        %v3793 = vadd.f32 %v3764, %v3792
        %3794 = vdwg.mxu0
        %3795 = vmatpush.bf16.msra.mxu0 %v3688
        %3796 = vmatpush.bf16.msra.mxu0 %v3686
        %3797 = vmatpush.bf16.msra.mxu0 %v3684
        %3798 = vmatpush.bf16.msra.mxu0 %v3682
        %3799 = vmatpush.bf16.msra.mxu0 %v3680
        %3800 = vmatpush.bf16.msra.mxu0 %v3678
        %3801 = vmatpush.bf16.msra.mxu0 %v3676
        %3802 = vmatpush.bf16.msra.mxu0 %v3674
        %3803 = vmatmul.bf16.gmra.mxu0 %v3561
        %v3804 = vpop.f32.mrf.mxu0
        %v3805 = vadd.f32 0.0, %v3804
        %v3806 = vpop.f32.mrf.mxu0
        %v3807 = vadd.f32 0.0, %v3806
        %3808 = vmatmul.bf16.gmra.mxu0 %v3563
        %v3809 = vpop.f32.mrf.mxu0
        %v3810 = vadd.f32 0.0, %v3809
        %v3811 = vpop.f32.mrf.mxu0
        %v3812 = vadd.f32 0.0, %v3811
        %3813 = vmatmul.bf16.gmra.mxu0 %v3565
        %v3814 = vpop.f32.mrf.mxu0
        %v3815 = vadd.f32 0.0, %v3814
        %v3816 = vpop.f32.mrf.mxu0
        %v3817 = vadd.f32 0.0, %v3816
        %3818 = vmatmul.bf16.gmra.mxu0 %v3567
        %v3819 = vpop.f32.mrf.mxu0
        %v3820 = vadd.f32 0.0, %v3819
        %v3821 = vpop.f32.mrf.mxu0
        %v3822 = vadd.f32 0.0, %v3821
        %3823 = vdwg.mxu0
        %3824 = vmatpush.bf16.msra.mxu0 %v3704
        %3825 = vmatpush.bf16.msra.mxu0 %v3702
        %3826 = vmatpush.bf16.msra.mxu0 %v3700
        %3827 = vmatpush.bf16.msra.mxu0 %v3698
        %3828 = vmatpush.bf16.msra.mxu0 %v3696
        %3829 = vmatpush.bf16.msra.mxu0 %v3694
        %3830 = vmatpush.bf16.msra.mxu0 %v3692
        %3831 = vmatpush.bf16.msra.mxu0 %v3690
        %3832 = vmatmul.bf16.gmra.mxu0 %v3562
        %v3833 = vpop.f32.mrf.mxu0
        %v3834 = vadd.f32 %v3805, %v3833
        %v3835 = vpop.f32.mrf.mxu0
        %v3836 = vadd.f32 %v3807, %v3835
        %3837 = vmatmul.bf16.gmra.mxu0 %v3564
        %v3838 = vpop.f32.mrf.mxu0
        %v3839 = vadd.f32 %v3810, %v3838
        %v3840 = vpop.f32.mrf.mxu0
        %v3841 = vadd.f32 %v3812, %v3840
        %3842 = vmatmul.bf16.gmra.mxu0 %v3566
        %v3843 = vpop.f32.mrf.mxu0
        %v3844 = vadd.f32 %v3815, %v3843
        %v3845 = vpop.f32.mrf.mxu0
        %v3846 = vadd.f32 %v3817, %v3845
        %3847 = vmatmul.bf16.gmra.mxu0 %v3568
        %v3848 = vpop.f32.mrf.mxu0
        %v3849 = vadd.f32 %v3820, %v3848
        %v3850 = vpop.f32.mrf.mxu0
        %v3851 = vadd.f32 %v3822, %v3850
        %3852 = vdwg.mxu0
        %v3853 = vadd.f32 %v3368, %v3776
        %v3854 = vadd.f32 %v3369, %v3834
        %v3855 = vadd.f32 %v3370, %v3778
        %v3856 = vadd.f32 %v3371, %v3836
        %v3857 = vadd.f32 %v3372, %v3781
        %v3858 = vadd.f32 %v3373, %v3839
        %v3859 = vadd.f32 %v3374, %v3783
        %v3860 = vadd.f32 %v3375, %v3841
        %v3861 = vadd.f32 %v3376, %v3786
        %v3862 = vadd.f32 %v3377, %v3844
        %v3863 = vadd.f32 %v3378, %v3788
        %v3864 = vadd.f32 %v3379, %v3846
        %v3865 = vadd.f32 %v3380, %v3791
        %v3866 = vadd.f32 %v3381, %v3849
        %v3867 = vadd.f32 %v3382, %v3793
        %v3868 = vadd.f32 %v3383, %v3851
        %v3869 = vld [vmem:[%s3010] sm:$0xee]
        %v3870 = vld [vmem:[%s3010 + $0x10] sm:$0xee]
        %v3871 = vld [vmem:[%s3010 + $0x20] sm:$0xee]
        %v3872 = vld [vmem:[%s3010 + $0x30] sm:$0xee]
        %v3873 = vld [vmem:[%s3010 + $0x40] sm:$0xee]
        %v3874 = vld [vmem:[%s3010 + $0x50] sm:$0xee]
        %v3875 = vld [vmem:[%s3010 + $0x60] sm:$0xee]
        %v3876 = vld [vmem:[%s3010 + $0x70] sm:$0xee]
        %v3893 = vrot.slane %v3869, 5
        %v3894 = vrot.slane %v3893, 4
        %v3895 = vrot.slane %v3385, 5
        %v3896 = vsel %vm1349, %v3894, %v3895
        %v3897 = vrot.slane %v3870, 5
        %v3898 = vrot.slane %v3897, 4
        %v3899 = vrot.slane %v3387, 5
        %v3900 = vsel %vm1349, %v3898, %v3899
        %v3901 = vrot.slane %v3871, 5
        %v3902 = vrot.slane %v3901, 4
        %v3903 = vrot.slane %v3389, 5
        %v3904 = vsel %vm1349, %v3902, %v3903
        %v3905 = vrot.slane %v3872, 5
        %v3906 = vrot.slane %v3905, 4
        %v3907 = vrot.slane %v3391, 5
        %v3908 = vsel %vm1349, %v3906, %v3907
        %v3909 = vrot.slane %v3873, 5
        %v3910 = vrot.slane %v3909, 4
        %v3911 = vrot.slane %v3393, 5
        %v3912 = vsel %vm1349, %v3910, %v3911
        %v3913 = vrot.slane %v3874, 5
        %v3914 = vrot.slane %v3913, 4
        %v3915 = vrot.slane %v3395, 5
        %v3916 = vsel %vm1349, %v3914, %v3915
        %v3917 = vrot.slane %v3875, 5
        %v3918 = vrot.slane %v3917, 4
        %v3919 = vrot.slane %v3397, 5
        %v3920 = vsel %vm1349, %v3918, %v3919
        %v3921 = vrot.slane %v3876, 5
        %v3922 = vrot.slane %v3921, 4
        %v3923 = vrot.slane %v3399, 5
        %v3924 = vsel %vm1349, %v3922, %v3923
        %s3925 = scalar_lea.vmem [#allocation3], 2048
        %v3926 = vld [vmem:[%s3925] sm:$0xff]
        %v3927 = vld [vmem:[%s3925 + $0x8] sm:$0xff]
        %v3928 = vld [vmem:[%s3925 + $0x10] sm:$0xff]
        %v3929 = vld [vmem:[%s3925 + $0x18] sm:$0xff]
        %v3930 = vld [vmem:[%s3925 + $0x20] sm:$0xff]
        %v3931 = vld [vmem:[%s3925 + $0x28] sm:$0xff]
        %v3932 = vld [vmem:[%s3925 + $0x30] sm:$0xff]
        %v3933 = vld [vmem:[%s3925 + $0x38] sm:$0xff]
        %v3934 = vld [vmem:[%s3925 + $0x40] sm:$0xff]
        %v3935 = vld [vmem:[%s3925 + $0x48] sm:$0xff]
        %v3936 = vld [vmem:[%s3925 + $0x50] sm:$0xff]
        %v3937 = vld [vmem:[%s3925 + $0x58] sm:$0xff]
        %v3938 = vld [vmem:[%s3925 + $0x60] sm:$0xff]
        %v3939 = vld [vmem:[%s3925 + $0x68] sm:$0xff]
        %v3940 = vld [vmem:[%s3925 + $0x70] sm:$0xff]
        %v3941 = vld [vmem:[%s3925 + $0x78] sm:$0xff]
        %v3942 = vld [vmem:[%s3925 + $0x80] sm:$0xff]
        %v3943 = vld [vmem:[%s3925 + $0x88] sm:$0xff]
        %v3944 = vld [vmem:[%s3925 + $0x90] sm:$0xff]
        %v3945 = vld [vmem:[%s3925 + $0x98] sm:$0xff]
        %v3946 = vld [vmem:[%s3925 + $0xa0] sm:$0xff]
        %v3947 = vld [vmem:[%s3925 + $0xa8] sm:$0xff]
        %v3948 = vld [vmem:[%s3925 + $0xb0] sm:$0xff]
        %v3949 = vld [vmem:[%s3925 + $0xb8] sm:$0xff]
        %v3950 = vld [vmem:[%s3925 + $0xc0] sm:$0xff]
        %v3951 = vld [vmem:[%s3925 + $0xc8] sm:$0xff]
        %v3952 = vld [vmem:[%s3925 + $0xd0] sm:$0xff]
        %v3953 = vld [vmem:[%s3925 + $0xd8] sm:$0xff]
        %v3954 = vld [vmem:[%s3925 + $0xe0] sm:$0xff]
        %v3955 = vld [vmem:[%s3925 + $0xe8] sm:$0xff]
        %v3956 = vld [vmem:[%s3925 + $0xf0] sm:$0xff]
        %v3957 = vld [vmem:[%s3925 + $0xf8] sm:$0xff]
        %v3958 = vunpack.c.l.b16 %v3896
        %v3959 = vunpack.c.h.b16 %v3896
        %v3960 = vunpack.c.l.b16 %v3900
        %v3961 = vunpack.c.h.b16 %v3900
        %v3962 = vunpack.c.l.b16 %v3904
        %v3963 = vunpack.c.h.b16 %v3904
        %v3964 = vunpack.c.l.b16 %v3908
        %v3965 = vunpack.c.h.b16 %v3908
        %v3966 = vunpack.c.l.b16 %v3912
        %v3967 = vunpack.c.h.b16 %v3912
        %v3968 = vunpack.c.l.b16 %v3916
        %v3969 = vunpack.c.h.b16 %v3916
        %v3970 = vunpack.c.l.b16 %v3920
        %v3971 = vunpack.c.h.b16 %v3920
        %v3972 = vunpack.c.l.b16 %v3924
        %v3973 = vunpack.c.h.b16 %v3924
        %v3974 = vpack.c.b16 %v3960, %v3958
        %v3975 = vpack.c.b16 %v3961, %v3959
        %v3976 = vpack.c.b16 %v3964, %v3962
        %v3977 = vpack.c.b16 %v3965, %v3963
        %v3978 = vpack.c.b16 %v3968, %v3966
        %v3979 = vpack.c.b16 %v3969, %v3967
        %v3980 = vpack.c.b16 %v3972, %v3970
        %v3981 = vpack.c.b16 %v3973, %v3971
        %v4022 = vunpack.c.l.b16 %v3926
        %v4023 = vunpack.c.h.b16 %v3926
        %v4024 = vunpack.c.l.b16 %v3927
        %v4025 = vunpack.c.h.b16 %v3927
        %v4026 = vunpack.c.l.b16 %v3928
        %v4027 = vunpack.c.h.b16 %v3928
        %v4028 = vunpack.c.l.b16 %v3929
        %v4029 = vunpack.c.h.b16 %v3929
        %v4030 = vunpack.c.l.b16 %v3930
        %v4031 = vunpack.c.h.b16 %v3930
        %v4032 = vunpack.c.l.b16 %v3931
        %v4033 = vunpack.c.h.b16 %v3931
        %v4034 = vunpack.c.l.b16 %v3932
        %v4035 = vunpack.c.h.b16 %v3932
        %v4036 = vunpack.c.l.b16 %v3933
        %v4037 = vunpack.c.h.b16 %v3933
        %v4038 = vunpack.c.l.b16 %v3934
        %v4039 = vunpack.c.h.b16 %v3934
        %v4040 = vunpack.c.l.b16 %v3935
        %v4041 = vunpack.c.h.b16 %v3935
        %v4042 = vunpack.c.l.b16 %v3936
        %v4043 = vunpack.c.h.b16 %v3936
        %v4044 = vunpack.c.l.b16 %v3937
        %v4045 = vunpack.c.h.b16 %v3937
        %v4046 = vunpack.c.l.b16 %v3938
        %v4047 = vunpack.c.h.b16 %v3938
        %v4048 = vunpack.c.l.b16 %v3939
        %v4049 = vunpack.c.h.b16 %v3939
        %v4050 = vunpack.c.l.b16 %v3940
        %v4051 = vunpack.c.h.b16 %v3940
        %v4052 = vunpack.c.l.b16 %v3941
        %v4053 = vunpack.c.h.b16 %v3941
        %v4054 = vunpack.c.l.b16 %v3942
        %v4055 = vunpack.c.h.b16 %v3942
        %v4056 = vunpack.c.l.b16 %v3943
        %v4057 = vunpack.c.h.b16 %v3943
        %v4058 = vunpack.c.l.b16 %v3944
        %v4059 = vunpack.c.h.b16 %v3944
        %v4060 = vunpack.c.l.b16 %v3945
        %v4061 = vunpack.c.h.b16 %v3945
        %v4062 = vunpack.c.l.b16 %v3946
        %v4063 = vunpack.c.h.b16 %v3946
        %v4064 = vunpack.c.l.b16 %v3947
        %v4065 = vunpack.c.h.b16 %v3947
        %v4066 = vunpack.c.l.b16 %v3948
        %v4067 = vunpack.c.h.b16 %v3948
        %v4068 = vunpack.c.l.b16 %v3949
        %v4069 = vunpack.c.h.b16 %v3949
        %v4070 = vunpack.c.l.b16 %v3950
        %v4071 = vunpack.c.h.b16 %v3950
        %v4072 = vunpack.c.l.b16 %v3951
        %v4073 = vunpack.c.h.b16 %v3951
        %v4074 = vunpack.c.l.b16 %v3952
        %v4075 = vunpack.c.h.b16 %v3952
        %v4076 = vunpack.c.l.b16 %v3953
        %v4077 = vunpack.c.h.b16 %v3953
        %v4078 = vunpack.c.l.b16 %v3954
        %v4079 = vunpack.c.h.b16 %v3954
        %v4080 = vunpack.c.l.b16 %v3955
        %v4081 = vunpack.c.h.b16 %v3955
        %v4082 = vunpack.c.l.b16 %v3956
        %v4083 = vunpack.c.h.b16 %v3956
        %v4084 = vunpack.c.l.b16 %v3957
        %v4085 = vunpack.c.h.b16 %v3957
        %v4086 = vpack.c.b16 %v4024, %v4022
        %v4087 = vpack.c.b16 %v4025, %v4023
        %v4088 = vpack.c.b16 %v4028, %v4026
        %v4089 = vpack.c.b16 %v4029, %v4027
        %v4090 = vpack.c.b16 %v4032, %v4030
        %v4091 = vpack.c.b16 %v4033, %v4031
        %v4092 = vpack.c.b16 %v4036, %v4034
        %v4093 = vpack.c.b16 %v4037, %v4035
        %v4094 = vpack.c.b16 %v4040, %v4038
        %v4095 = vpack.c.b16 %v4041, %v4039
        %v4096 = vpack.c.b16 %v4044, %v4042
        %v4097 = vpack.c.b16 %v4045, %v4043
        %v4098 = vpack.c.b16 %v4048, %v4046
        %v4099 = vpack.c.b16 %v4049, %v4047
        %v4100 = vpack.c.b16 %v4052, %v4050
        %v4101 = vpack.c.b16 %v4053, %v4051
        %v4102 = vpack.c.b16 %v4056, %v4054
        %v4103 = vpack.c.b16 %v4057, %v4055
        %v4104 = vpack.c.b16 %v4060, %v4058
        %v4105 = vpack.c.b16 %v4061, %v4059
        %v4106 = vpack.c.b16 %v4064, %v4062
        %v4107 = vpack.c.b16 %v4065, %v4063
        %v4108 = vpack.c.b16 %v4068, %v4066
        %v4109 = vpack.c.b16 %v4069, %v4067
        %v4110 = vpack.c.b16 %v4072, %v4070
        %v4111 = vpack.c.b16 %v4073, %v4071
        %v4112 = vpack.c.b16 %v4076, %v4074
        %v4113 = vpack.c.b16 %v4077, %v4075
        %v4114 = vpack.c.b16 %v4080, %v4078
        %v4115 = vpack.c.b16 %v4081, %v4079
        %v4116 = vpack.c.b16 %v4084, %v4082
        %v4117 = vpack.c.b16 %v4085, %v4083
        %4150 = vmatpush.bf16.msra.mxu0 %v4100
        %4151 = vmatpush.bf16.msra.mxu0 %v4098
        %4152 = vmatpush.bf16.msra.mxu0 %v4096
        %4153 = vmatpush.bf16.msra.mxu0 %v4094
        %4154 = vmatpush.bf16.msra.mxu0 %v4092
        %4155 = vmatpush.bf16.msra.mxu0 %v4090
        %4156 = vmatpush.bf16.msra.mxu0 %v4088
        %4157 = vmatpush.bf16.msra.mxu0 %v4086
        %4158 = vmatmul.bf16.gmra.mxu0 %v3974
        %v4159 = vpop.f32.mrf.mxu0
        %v4160 = vadd.f32 0.0, %v4159
        %v4161 = vpop.f32.mrf.mxu0
        %v4162 = vadd.f32 0.0, %v4161
        %4163 = vmatmul.bf16.gmra.mxu0 %v3976
        %v4164 = vpop.f32.mrf.mxu0
        %v4165 = vadd.f32 0.0, %v4164
        %v4166 = vpop.f32.mrf.mxu0
        %v4167 = vadd.f32 0.0, %v4166
        %4168 = vmatmul.bf16.gmra.mxu0 %v3978
        %v4169 = vpop.f32.mrf.mxu0
        %v4170 = vadd.f32 0.0, %v4169
        %v4171 = vpop.f32.mrf.mxu0
        %v4172 = vadd.f32 0.0, %v4171
        %4173 = vmatmul.bf16.gmra.mxu0 %v3980
        %v4174 = vpop.f32.mrf.mxu0
        %v4175 = vadd.f32 0.0, %v4174
        %v4176 = vpop.f32.mrf.mxu0
        %v4177 = vadd.f32 0.0, %v4176
        %4178 = vdwg.mxu0
        %4179 = vmatpush.bf16.msra.mxu0 %v4116
        %4180 = vmatpush.bf16.msra.mxu0 %v4114
        %4181 = vmatpush.bf16.msra.mxu0 %v4112
        %4182 = vmatpush.bf16.msra.mxu0 %v4110
        %4183 = vmatpush.bf16.msra.mxu0 %v4108
        %4184 = vmatpush.bf16.msra.mxu0 %v4106
        %4185 = vmatpush.bf16.msra.mxu0 %v4104
        %4186 = vmatpush.bf16.msra.mxu0 %v4102
        %4187 = vmatmul.bf16.gmra.mxu0 %v3975
        %v4188 = vpop.f32.mrf.mxu0
        %v4189 = vadd.f32 %v4160, %v4188
        %v4190 = vpop.f32.mrf.mxu0
        %v4191 = vadd.f32 %v4162, %v4190
        %4192 = vmatmul.bf16.gmra.mxu0 %v3977
        %v4193 = vpop.f32.mrf.mxu0
        %v4194 = vadd.f32 %v4165, %v4193
        %v4195 = vpop.f32.mrf.mxu0
        %v4196 = vadd.f32 %v4167, %v4195
        %4197 = vmatmul.bf16.gmra.mxu0 %v3979
        %v4198 = vpop.f32.mrf.mxu0
        %v4199 = vadd.f32 %v4170, %v4198
        %v4200 = vpop.f32.mrf.mxu0
        %v4201 = vadd.f32 %v4172, %v4200
        %4202 = vmatmul.bf16.gmra.mxu0 %v3981
        %v4203 = vpop.f32.mrf.mxu0
        %v4204 = vadd.f32 %v4175, %v4203
        %v4205 = vpop.f32.mrf.mxu0
        %v4206 = vadd.f32 %v4177, %v4205
        %4207 = vdwg.mxu0
        %4208 = vmatpush.bf16.msra.mxu0 %v4101
        %4209 = vmatpush.bf16.msra.mxu0 %v4099
        %4210 = vmatpush.bf16.msra.mxu0 %v4097
        %4211 = vmatpush.bf16.msra.mxu0 %v4095
        %4212 = vmatpush.bf16.msra.mxu0 %v4093
        %4213 = vmatpush.bf16.msra.mxu0 %v4091
        %4214 = vmatpush.bf16.msra.mxu0 %v4089
        %4215 = vmatpush.bf16.msra.mxu0 %v4087
        %4216 = vmatmul.bf16.gmra.mxu0 %v3974
        %v4217 = vpop.f32.mrf.mxu0
        %v4218 = vadd.f32 0.0, %v4217
        %v4219 = vpop.f32.mrf.mxu0
        %v4220 = vadd.f32 0.0, %v4219
        %4221 = vmatmul.bf16.gmra.mxu0 %v3976
        %v4222 = vpop.f32.mrf.mxu0
        %v4223 = vadd.f32 0.0, %v4222
        %v4224 = vpop.f32.mrf.mxu0
        %v4225 = vadd.f32 0.0, %v4224
        %4226 = vmatmul.bf16.gmra.mxu0 %v3978
        %v4227 = vpop.f32.mrf.mxu0
        %v4228 = vadd.f32 0.0, %v4227
        %v4229 = vpop.f32.mrf.mxu0
        %v4230 = vadd.f32 0.0, %v4229
        %4231 = vmatmul.bf16.gmra.mxu0 %v3980
        %v4232 = vpop.f32.mrf.mxu0
        %v4233 = vadd.f32 0.0, %v4232
        %v4234 = vpop.f32.mrf.mxu0
        %v4235 = vadd.f32 0.0, %v4234
        %4236 = vdwg.mxu0
        %4237 = vmatpush.bf16.msra.mxu0 %v4117
        %4238 = vmatpush.bf16.msra.mxu0 %v4115
        %4239 = vmatpush.bf16.msra.mxu0 %v4113
        %4240 = vmatpush.bf16.msra.mxu0 %v4111
        %4241 = vmatpush.bf16.msra.mxu0 %v4109
        %4242 = vmatpush.bf16.msra.mxu0 %v4107
        %4243 = vmatpush.bf16.msra.mxu0 %v4105
        %4244 = vmatpush.bf16.msra.mxu0 %v4103
        %4245 = vmatmul.bf16.gmra.mxu0 %v3975
        %v4246 = vpop.f32.mrf.mxu0
        %v4247 = vadd.f32 %v4218, %v4246
        %v4248 = vpop.f32.mrf.mxu0
        %v4249 = vadd.f32 %v4220, %v4248
        %4250 = vmatmul.bf16.gmra.mxu0 %v3977
        %v4251 = vpop.f32.mrf.mxu0
        %v4252 = vadd.f32 %v4223, %v4251
        %v4253 = vpop.f32.mrf.mxu0
        %v4254 = vadd.f32 %v4225, %v4253
        %4255 = vmatmul.bf16.gmra.mxu0 %v3979
        %v4256 = vpop.f32.mrf.mxu0
        %v4257 = vadd.f32 %v4228, %v4256
        %v4258 = vpop.f32.mrf.mxu0
        %v4259 = vadd.f32 %v4230, %v4258
        %4260 = vmatmul.bf16.gmra.mxu0 %v3981
        %v4261 = vpop.f32.mrf.mxu0
        %v4262 = vadd.f32 %v4233, %v4261
        %v4263 = vpop.f32.mrf.mxu0
        %v4264 = vadd.f32 %v4235, %v4263
        %4265 = vdwg.mxu0
        %v4266 = vadd.f32 %v3853, %v4189
        %v4267 = vadd.f32 %v3854, %v4247
        %v4268 = vadd.f32 %v3855, %v4191
        %v4269 = vadd.f32 %v3856, %v4249
        %v4270 = vadd.f32 %v3857, %v4194
        %v4271 = vadd.f32 %v3858, %v4252
        %v4272 = vadd.f32 %v3859, %v4196
        %v4273 = vadd.f32 %v3860, %v4254
        %v4274 = vadd.f32 %v3861, %v4199
        %v4275 = vadd.f32 %v3862, %v4257
        %v4276 = vadd.f32 %v3863, %v4201
        %v4277 = vadd.f32 %v3864, %v4259
        %v4278 = vadd.f32 %v3865, %v4204
        %v4279 = vadd.f32 %v3866, %v4262
        %v4280 = vadd.f32 %v3867, %v4206
        %v4281 = vadd.f32 %v3868, %v4264
        %4282 = vst [vmem:[%s249] sm:$0xff] %v4266
        %4283 = vst [vmem:[%s249 + $0x8] sm:$0xff] %v4267
        %4284 = vst [vmem:[%s249 + $0x10] sm:$0xff] %v4268
        %4285 = vst [vmem:[%s249 + $0x18] sm:$0xff] %v4269
        %4286 = vst [vmem:[%s249 + $0x20] sm:$0xff] %v4270
        %4287 = vst [vmem:[%s249 + $0x28] sm:$0xff] %v4271
        %4288 = vst [vmem:[%s249 + $0x30] sm:$0xff] %v4272
        %4289 = vst [vmem:[%s249 + $0x38] sm:$0xff] %v4273
        %4290 = vst [vmem:[%s249 + $0x40] sm:$0xff] %v4274
        %4291 = vst [vmem:[%s249 + $0x48] sm:$0xff] %v4275
        %4292 = vst [vmem:[%s249 + $0x50] sm:$0xff] %v4276
        %4293 = vst [vmem:[%s249 + $0x58] sm:$0xff] %v4277
        %4294 = vst [vmem:[%s249 + $0x60] sm:$0xff] %v4278
        %4295 = vst [vmem:[%s249 + $0x68] sm:$0xff] %v4279
        %4296 = vst [vmem:[%s249 + $0x70] sm:$0xff] %v4280
        %4297 = vst [vmem:[%s249 + $0x78] sm:$0xff] %v4281
        %v4298 = vadd.f32 %v4266, %v4268
        %v4299 = vadd.f32 %v4298, %v4270
        %v4300 = vadd.f32 %v4299, %v4272
        %v4301 = vadd.f32 %v4300, %v4274
        %v4302 = vadd.f32 %v4301, %v4276
        %v4303 = vadd.f32 %v4302, %v4278
        %v4304 = vadd.f32 %v4303, %v4280
        %v4305 = vrot.slane %v4304, 4
        %v4306 = vadd.f32 %v4304, %v4305
        %v4307 = vrot.slane %v4306, 2
        %v4308 = vadd.f32 %v4306, %v4307
        %v4309 = vrot.slane %v4308, 1
        %v4310 = vadd.f32 %v4308, %v4309
        %v4311 = vadd.f32 %v4267, %v4269
        %v4312 = vadd.f32 %v4311, %v4271
        %v4313 = vadd.f32 %v4312, %v4273
        %v4314 = vadd.f32 %v4313, %v4275
        %v4315 = vadd.f32 %v4314, %v4277
        %v4316 = vadd.f32 %v4315, %v4279
        %v4317 = vadd.f32 %v4316, %v4281
        %v4318 = vrot.slane %v4317, 4
        %v4319 = vadd.f32 %v4317, %v4318
        %v4320 = vrot.slane %v4319, 2
        %v4321 = vadd.f32 %v4319, %v4320
        %v4322 = vrot.slane %v4321, 1
        %v4323 = vadd.f32 %v4321, %v4322
        %v4326 = vrot.slane %v4323, 7
        %vm4327 = vcmask 1040384
        %v4328 = vsel %vm4327, %v4310, %v4326
        %v4330 = vlaneseq
        %vm4331 = vcmp.ge.s32.totalorder %v4330, 0
        %vm4332 = vcmp.lt.s32.totalorder %v4330, 256
        %vm4333 = vmand %vm4331, %vm4332
        %4334 = vst.msk [vmem:[%s254] ss:$2 sm:$0x3] %vm4333, %v4328
        %v4335 = vmul.f32 %v4266, %v4266
        %v4336 = vmul.f32 %v4267, %v4267
        %v4337 = vmul.f32 %v4268, %v4268
        %v4338 = vmul.f32 %v4269, %v4269
        %v4339 = vmul.f32 %v4270, %v4270
        %v4340 = vmul.f32 %v4271, %v4271
        %v4341 = vmul.f32 %v4272, %v4272
        %v4342 = vmul.f32 %v4273, %v4273
        %v4343 = vmul.f32 %v4274, %v4274
        %v4344 = vmul.f32 %v4275, %v4275
        %v4345 = vmul.f32 %v4276, %v4276
        %v4346 = vmul.f32 %v4277, %v4277
        %v4347 = vmul.f32 %v4278, %v4278
        %v4348 = vmul.f32 %v4279, %v4279
        %v4349 = vmul.f32 %v4280, %v4280
        %v4350 = vmul.f32 %v4281, %v4281
        %v4351 = vadd.f32 %v4335, %v4337
        %v4352 = vadd.f32 %v4351, %v4339
        %v4353 = vadd.f32 %v4352, %v4341
        %v4354 = vadd.f32 %v4353, %v4343
        %v4355 = vadd.f32 %v4354, %v4345
        %v4356 = vadd.f32 %v4355, %v4347
        %v4357 = vadd.f32 %v4356, %v4349
        %v4358 = vrot.slane %v4357, 4
        %v4359 = vadd.f32 %v4357, %v4358
        %v4360 = vrot.slane %v4359, 2
        %v4361 = vadd.f32 %v4359, %v4360
        %v4362 = vrot.slane %v4361, 1
        %v4363 = vadd.f32 %v4361, %v4362
        %v4364 = vadd.f32 %v4336, %v4338
        %v4365 = vadd.f32 %v4364, %v4340
        %v4366 = vadd.f32 %v4365, %v4342
        %v4367 = vadd.f32 %v4366, %v4344
        %v4368 = vadd.f32 %v4367, %v4346
        %v4369 = vadd.f32 %v4368, %v4348
        %v4370 = vadd.f32 %v4369, %v4350
        %v4371 = vrot.slane %v4370, 4
        %v4372 = vadd.f32 %v4370, %v4371
        %v4373 = vrot.slane %v4372, 2
        %v4374 = vadd.f32 %v4372, %v4373
        %v4375 = vrot.slane %v4374, 1
        %v4376 = vadd.f32 %v4374, %v4375
        %v4379 = vrot.slane %v4376, 7
        %v4380 = vsel %vm4327, %v4363, %v4379
        %s4382 = scalar_lea.vmem %s254, 1
        %4383 = vst.msk [vmem:[%s4382] ss:$2 sm:$0x3] %vm4333, %v4380
        %p4384 = scmp.lt.s32.totalorder %s18, 1
        %s4385 = scalar_select %p4384, %s18, 1
        %s4386 = smul.addr %s4385, 16
        %s4387 = smul.addr %s4386, 8
        %s4388 = scalar_lea.vmem %s4, %s4387
        %p4389 = scmp.lt.s32.totalorder %s18, 1
        %s4390 = scalar_select %p4389, %s18, 1
        %s4391 = smul.addr %s4390, 2
        %s4392 = smul.addr %s4391, 2
        %s4393 = scalar_lea.vmem %s5, %s4392
        // Predicated region
        $region41: #{basic_block_forward.4} parent=35 // pred_check
          %p4394 = pneg %p125
        $region42: #{basic_block_forward.4} parent=35 // pred_check_branch
          %4396 = sbr.rel (%p4394) target = $region44
        $region43: #{basic_block_forward.4} parent=35 // pred_region
          _
        $region44: #{basic_block_forward.4} parent=35 // pred_fallthru
          _
        // Predicated region
        $region45: #{basic_block_forward.4} parent=35 // pred_check
          %p4397 = pneg %p151
        $region46: #{basic_block_forward.4} parent=35 // pred_check_branch
          %4399 = sbr.rel (%p4397) target = $region48
        $region47: #{basic_block_forward.4} parent=35 // pred_region
          _
        $region48: #{basic_block_forward.4} parent=35 // pred_fallthru
          _
      $region36: #{basic_block_forward.4} parent=5 // pred_fallthru
        _
      %p4400 = scmp.le.s32.totalorder 2, %s13
      // Predicated region
      $region49: #{basic_block_forward.4} parent=5 // pred_check
        %p4401 = pneg %p4400
      $region50: #{basic_block_forward.4} parent=5 // pred_check_branch
        %4403 = sbr.rel (%p4401) target = $region52
      $region51: #{basic_block_forward.4} parent=5 // pred_region
        %s4404 = ssub.s32 %s13, 2
        // Predicated region
        $region53: #{basic_block_forward.4} parent=51 // pred_check
          %p4405 = pneg %p131
        $region54: #{basic_block_forward.4} parent=51 // pred_check_branch
          %4407 = sbr.rel (%p4405) target = $region56
        $region55: #{basic_block_forward.4} parent=51 // pred_region
          %p4408 = scmp.lt.s32.totalorder %s19, 1
          %s4409 = scalar_select %p4408, %s19, 1
          %s4410 = smul.addr %s4409, 16
          %s4411 = smul.addr %s4410, 8
          %s4412 = scalar_lea.vmem %s4, %s4411
        $region56: #{basic_block_forward.4} parent=51 // pred_fallthru
          _
        // Predicated region
        $region57: #{basic_block_forward.4} parent=51 // pred_check
          %p4413 = pneg %p157
        $region58: #{basic_block_forward.4} parent=51 // pred_check_branch
          %4415 = sbr.rel (%p4413) target = $region60
        $region59: #{basic_block_forward.4} parent=51 // pred_region
          %p4416 = scmp.lt.s32.totalorder %s19, 1
          %s4417 = scalar_select %p4416, %s19, 1
          %s4418 = smul.addr %s4417, 2
          %s4419 = smul.addr %s4418, 2
          %s4420 = scalar_lea.vmem %s5, %s4419
        $region60: #{basic_block_forward.4} parent=51 // pred_fallthru
          _
      $region52: #{basic_block_forward.4} parent=5 // pred_fallthru
        _
    $region6: #{basic_block_forward.4} parent=1 // loop_footer
      %s17 = sadd.s32 1, %s13
    $region7: #{basic_block_forward.4} parent=1 // loop_footer_branch
      %12 = sbr.rel target = $region3
    $region8: #{basic_block_forward.4} parent=1 // loop_exit
      _
    %4421 = vsyncpa [#allocation4], 1
    %s4422 = scalar_lea.sflag [#allocation4], 1
    %4423 = vsyncpa %s4422, 1

// kernel: basic_block_forward.3
$region0: #{basic_block_forward.3}
  #allocation0 [shape = 'u32[]', space=smem, size = 0x4, offset = 0x4, fixed_abs, tag = 'smem constant byte address 0x4 - core index']
  #allocation1 [shape = 'u32[72,128]{1,0:T(1,128)}', space=vmem, size = 0x9000, scoped, tag = 'internal scratch']
  #allocation2 [shape = 'bf16[10,10,256]{2,1,0:T(8,128)(2,1)}', space=vmem, size = 0x14000, scoped, tag = 'scratch operand']
  %s0 = inlined_call_operand.vmem [shape: bf16[2,64,256], index: 0, kind: input, shape index: {}]
  %s1 = inlined_call_operand.hbm [shape: bf16[9,256,256], index: 1, kind: input, shape index: {}]
  %s2 = inlined_call_operand.vmem [shape: f32[2,64,256], index: 2, kind: output, shape index: {0}]
  %s3 = inlined_call_operand.vmem [shape: f32[2,2,256], index: 3, kind: output, shape index: {1}]
  %4 = xla_tuple %s2, %s3
  %s5 = sld [smem:[#allocation0]]
  $region53: #{basic_block_forward.3} parent=0
    _
  %s7 = ssub.s32 1, %s5
  %s8 = scalar_select 0, %s7, %s5
  $region1: #{basic_block_forward.3} parent=0
    #allocation3 [shape = 'u8[1179648]{0}', space=vmem, size = 0x120000, scoped, tag = 'input window, operand 1, single buffered']
    #allocation4 [shape = 's32[2]{0}', space=sflag, size = 0x8, scoped, tag = 'scoped memory for basic_block_forward.3']
    %9 = vsyncpa [#allocation4], 0
    loop: start=0, step=1, limit=4
    $region2: #{basic_block_forward.3} parent=1 // loop_pre_header
      _
    $region3: #{basic_block_forward.3} parent=1 // loop_header
      %s11 = sphi 0, %s15
      %p12 = scmp.ge.s32.totalorder %s11, 4
      %s21 = sphi 0, %s23
      %s24 = sphi 0, %s21
      %s25 = sphi 0, %s24
      %s41 = sphi 0, %s25
      %s45 = sphi 0, %s45
      %s47 = sphi 0, %s45
      %s48 = sphi 0, %s47
      %s62 = sphi 0, %s48
      %s68 = sphi 0, %s70
      %s71 = sphi 0, %s68
      %s72 = sphi 0, %s71
      %s88 = sphi 0, %s72
      %s94 = sphi 0, %s96
      %s97 = sphi 0, %s94
      %s98 = sphi 0, %s97
      %s114 = sphi 0, %s98
    $region4: #{basic_block_forward.3} parent=1 // loop_header_branch
      %14 = sbr.rel (%p12) target = $region8
    $region5: #{basic_block_forward.3} parent=1 // loop_body
      %s16 = ssub.s32 %s11, 1
      %s17 = ssub.s32 %s11, 2
      %s18 = sadd.s32 %s11, 1
      %s19 = ssub.s32 %s11, %s18
      %p20 = scmp.eq.s32.totalorder %s19, 0
      %s22 = sadd.s32 %s21, 1
      %s23 = scalar_select %p20, %s21, %s22
      %p26 = pneg %p20
      %p27 = scmp.eq.s32.totalorder %s11, 1
      %p28 = por %p26, %p27
      %p29 = scmp.ne.s32.totalorder %s21, %s24
      %p30 = scmp.eq.s32.totalorder %s11, 0
      %p31 = por %p29, %p30
      %p32 = scmp.ne.s32.totalorder %s21, %s24
      %p33 = scmp.eq.s32.totalorder %s16, 1
      %p34 = por %p32, %p33
      %p35 = scmp.ne.s32.totalorder %s24, %s25
      %p36 = scmp.eq.s32.totalorder %s16, 0
      %p37 = por %p35, %p36
      %p38 = scmp.ne.s32.totalorder %s24, %s25
      %p39 = scmp.eq.s32.totalorder %s17, 1
      %p40 = por %p38, %p39
      %p42 = scmp.ne.s32.totalorder %s25, %s41
      %p43 = scmp.eq.s32.totalorder %s17, 0
      %p44 = por %p42, %p43
      %s46 = sadd.s32 %s45, 1
      %p49 = scmp.eq.s32.totalorder %s11, 1
      %p50 = scmp.ne.s32.totalorder %s45, %s47
      %p51 = scmp.eq.s32.totalorder %s11, 0
      %p52 = por %p50, %p51
      %p53 = scmp.ne.s32.totalorder %s45, %s47
      %p54 = scmp.eq.s32.totalorder %s16, 1
      %p55 = por %p53, %p54
      %p56 = scmp.ne.s32.totalorder %s47, %s48
      %p57 = scmp.eq.s32.totalorder %s16, 0
      %p58 = por %p56, %p57
      %p59 = scmp.ne.s32.totalorder %s47, %s48
      %p60 = scmp.eq.s32.totalorder %s17, 1
      %p61 = por %p59, %p60
      %p63 = scmp.ne.s32.totalorder %s48, %s62
      %p64 = scmp.eq.s32.totalorder %s17, 0
      %p65 = por %p63, %p64
      %s66 = ssub.s32 %s11, %s18
      %p67 = scmp.eq.s32.totalorder %s66, 0
      %s69 = sadd.s32 %s68, 1
      %s70 = scalar_select %p67, %s68, %s69
      %p73 = pneg %p67
      %p74 = scmp.eq.s32.totalorder %s11, 1
      %p75 = por %p73, %p74
      %p76 = scmp.ne.s32.totalorder %s68, %s71
      %p77 = scmp.eq.s32.totalorder %s11, 0
      %p78 = por %p76, %p77
      %p79 = scmp.ne.s32.totalorder %s68, %s71
      %p80 = scmp.eq.s32.totalorder %s16, 1
      %p81 = por %p79, %p80
      %p82 = scmp.ne.s32.totalorder %s71, %s72
      %p83 = scmp.eq.s32.totalorder %s16, 0
      %p84 = por %p82, %p83
      %p85 = scmp.ne.s32.totalorder %s71, %s72
      %p86 = scmp.eq.s32.totalorder %s17, 1
      %p87 = por %p85, %p86
      %p89 = scmp.ne.s32.totalorder %s72, %s88
      %p90 = scmp.eq.s32.totalorder %s17, 0
      %p91 = por %p89, %p90
      %s92 = ssub.s32 %s11, %s18
      %p93 = scmp.eq.s32.totalorder %s92, 0
      %s95 = sadd.s32 %s94, 1
      %s96 = scalar_select %p93, %s94, %s95
      %p99 = pneg %p93
      %p100 = scmp.eq.s32.totalorder %s11, 1
      %p101 = por %p99, %p100
      %p102 = scmp.ne.s32.totalorder %s94, %s97
      %p103 = scmp.eq.s32.totalorder %s11, 0
      %p104 = por %p102, %p103
      %p105 = scmp.ne.s32.totalorder %s94, %s97
      %p106 = scmp.eq.s32.totalorder %s16, 1
      %p107 = por %p105, %p106
      %p108 = scmp.ne.s32.totalorder %s97, %s98
      %p109 = scmp.eq.s32.totalorder %s16, 0
      %p110 = por %p108, %p109
      %p111 = scmp.ne.s32.totalorder %s97, %s98
      %p112 = scmp.eq.s32.totalorder %s17, 1
      %p113 = por %p111, %p112
      %p115 = scmp.ne.s32.totalorder %s98, %s114
      %p116 = scmp.eq.s32.totalorder %s17, 0
      %p117 = por %p115, %p116
      %p118 = scmp.le.s32.totalorder 1, %s11
      %p119 = scmp.lt.s32.totalorder %s11, 3
      %p120 = pnand %p118, %p119
      %p121 = pneg %p120
      // Predicated region
      $region9: #{basic_block_forward.3} parent=5 // pred_check
        _
      $region10: #{basic_block_forward.3} parent=5 // pred_check_branch
        %123 = sbr.rel (%p120) target = $region12
      $region11: #{basic_block_forward.3} parent=5 // pred_region
        %s124 = ssub.s32 %s11, 1
        // Predicated region
        $region13: #{basic_block_forward.3} parent=11 // pred_check
          %p125 = pneg %p58
        $region14: #{basic_block_forward.3} parent=11 // pred_check_branch
          %127 = sbr.rel (%p125) target = $region16
        $region15: #{basic_block_forward.3} parent=11 // pred_region
          %129 = vsyncadd [#allocation4], 0
          %s130 = sshll.u32 %s1, 4
          %s131 = int_to_ptr.hbm [resolvable:$true] %s130
          %s132 = sshll.u32 [#allocation3], 4
          %s133 = int_to_ptr.vmem [resolvable:$true] %s132
          %138 = dma.hbm_to_vmem [thread:$0]  %s131, 36864, %s133, [#allocation4], 128, 128, 8
        $region16: #{basic_block_forward.3} parent=11 // pred_fallthru
          _
      $region12: #{basic_block_forward.3} parent=5 // pred_fallthru
        _
      %p139 = scmp.lt.s32.totalorder %s11, 2
      // Predicated region
      $region17: #{basic_block_forward.3} parent=5 // pred_check
        %p140 = pneg %p139
      $region18: #{basic_block_forward.3} parent=5 // pred_check_branch
        %142 = sbr.rel (%p140) target = $region20
      $region19: #{basic_block_forward.3} parent=5 // pred_region
        // Predicated region
        $region21: #{basic_block_forward.3} parent=19 // pred_check
          %p143 = pneg %p31
        $region22: #{basic_block_forward.3} parent=19 // pred_check_branch
          %145 = sbr.rel (%p143) target = $region24
        $region23: #{basic_block_forward.3} parent=19 // pred_region
          %p146 = scmp.lt.s32.totalorder %s11, 1
          %s147 = scalar_select %p146, %s11, 1
          %s148 = smul.addr %s147, 16
          %s149 = smul.addr %s148, 4
          %s150 = scalar_lea.vmem %s0, %s149
        $region24: #{basic_block_forward.3} parent=19 // pred_fallthru
          _
      $region20: #{basic_block_forward.3} parent=5 // pred_fallthru
        _
      %p151 = scmp.le.s32.totalorder 1, %s11
      %p152 = scmp.lt.s32.totalorder %s11, 3
      %p153 = pnand %p151, %p152
      %p154 = pneg %p153
      // Predicated region
      $region25: #{basic_block_forward.3} parent=5 // pred_check
        _
      $region26: #{basic_block_forward.3} parent=5 // pred_check_branch
        %156 = sbr.rel (%p153) target = $region28
      $region27: #{basic_block_forward.3} parent=5 // pred_region
        %s157 = ssub.s32 %s11, 1
        // Predicated region
        $region29: #{basic_block_forward.3} parent=27 // pred_check
          %p158 = pneg %p58
        $region30: #{basic_block_forward.3} parent=27 // pred_check_branch
          %160 = sbr.rel (%p158) target = $region32
        $region31: #{basic_block_forward.3} parent=27 // pred_region
          %162 = dma.done [#allocation4], 36864
        $region32: #{basic_block_forward.3} parent=27 // pred_fallthru
          _
        %p163 = scmp.lt.s32.totalorder %s16, 1
        %s164 = scalar_select %p163, %s16, 1
        %s165 = smul.addr %s164, 16
        %s166 = smul.addr %s165, 4
        %s167 = scalar_lea.vmem %s0, %s166
        %p168 = pneg %p37
        %p169 = pneg %p34
        %p170 = pneg %p58
        %p171 = pneg %p55
        %p172 = pneg %p84
        %p173 = pneg %p81
        %p174 = scmp.lt.s32.totalorder %s16, 1
        %s175 = scalar_select %p174, %s16, 1
        %s176 = smul.addr %s175, 16
        %s177 = smul.addr %s176, 8
        %s178 = scalar_lea.vmem %s2, %s177
        %p179 = pneg %p110
        %p180 = pneg %p107
        %p181 = scmp.lt.s32.totalorder %s16, 1
        %s182 = scalar_select %p181, %s16, 1
        %s183 = smul.addr %s182, 2
        %s184 = smul.addr %s183, 2
        %s185 = scalar_lea.vmem %s3, %s184
        %p186 = scmp.lt.s32.totalorder %s16, 1
        %s187 = scalar_select %p186, %s16, 1
        %s188 = smul.addr %s187, 16
        %s189 = smul.addr %s188, 4
        %s190 = scalar_lea.vmem %s0, %s189
        %p191 = scmp.lt.s32.totalorder %s16, 1
        %s192 = scalar_select %p191, %s16, 1
        %s193 = smul.addr %s192, 16
        %s194 = smul.addr %s193, 8
        %s195 = scalar_lea.vmem %s2, %s194
        %p196 = scmp.lt.s32.totalorder %s16, 1
        %s197 = scalar_select %p196, %s16, 1
        %s198 = smul.addr %s197, 2
        %s199 = smul.addr %s198, 2
        %s200 = scalar_lea.vmem %s3, %s199
        %202 = vst [vmem:[#allocation2] sm:$0xff] 0
        %203 = vst [vmem:[#allocation2 + $0x8] sm:$0x11] 0
        %204 = vst [vmem:[#allocation2 + $0x10] sm:$0xff] 0
        %205 = vst [vmem:[#allocation2 + $0x18] sm:$0x11] 0
        %206 = vst [vmem:[#allocation2 + $0x20] sm:$0xff] 0
        %207 = vst [vmem:[#allocation2 + $0x28] sm:$0x11] 0
        %208 = vst [vmem:[#allocation2 + $0x30] sm:$0xff] 0
        %209 = vst [vmem:[#allocation2 + $0x38] sm:$0x11] 0
        %210 = vst [vmem:[#allocation2 + $0x40] sm:$0xff] 0
        %211 = vst [vmem:[#allocation2 + $0x48] sm:$0x11] 0
        %212 = vst [vmem:[#allocation2 + $0x50] sm:$0xff] 0
        %213 = vst [vmem:[#allocation2 + $0x58] sm:$0x11] 0
        %214 = vst [vmem:[#allocation2 + $0x60] sm:$0xff] 0
        %215 = vst [vmem:[#allocation2 + $0x68] sm:$0x11] 0
        %216 = vst [vmem:[#allocation2 + $0x70] sm:$0xff] 0
        %217 = vst [vmem:[#allocation2 + $0x78] sm:$0x11] 0
        %218 = vst [vmem:[#allocation2 + $0x80] sm:$0xff] 0
        %219 = vst [vmem:[#allocation2 + $0x88] sm:$0x11] 0
        %220 = vst [vmem:[#allocation2 + $0x90] sm:$0xff] 0
        %221 = vst [vmem:[#allocation2 + $0x98] sm:$0x11] 0
        %v222 = vld [vmem:[%s190] sm:$0xff]
        %v223 = vld [vmem:[%s190 + $0x8] sm:$0xff]
        %v224 = vld [vmem:[%s190 + $0x10] sm:$0xff]
        %v225 = vld [vmem:[%s190 + $0x18] sm:$0xff]
        %v226 = vld [vmem:[%s190 + $0x20] sm:$0xff]
        %v227 = vld [vmem:[%s190 + $0x28] sm:$0xff]
        %v228 = vld [vmem:[%s190 + $0x30] sm:$0xff]
        %v229 = vld [vmem:[%s190 + $0x38] sm:$0xff]
        %v231 = vshrl.u32 %v222, 16
        %v233 = vrot.slane %v231, 7
        %v234 = vshll.u32 %v222, 16
        %v236 = vor.u32 %v233, %v234
        %v237 = vrot.slane %v233, 4
        %v239 = vshrl.u32 %v223, 16
        %v241 = vrot.slane %v239, 7
        %v242 = vshll.u32 %v223, 16
        %v244 = vor.u32 %v241, %v242
        %v245 = vrot.slane %v241, 4
        %v247 = vshrl.u32 %v224, 16
        %v249 = vrot.slane %v247, 7
        %v250 = vshll.u32 %v224, 16
        %v252 = vor.u32 %v249, %v250
        %v253 = vrot.slane %v249, 4
        %v255 = vshrl.u32 %v225, 16
        %v257 = vrot.slane %v255, 7
        %v258 = vshll.u32 %v225, 16
        %v260 = vor.u32 %v257, %v258
        %v261 = vrot.slane %v257, 4
        %v263 = vshrl.u32 %v226, 16
        %v265 = vrot.slane %v263, 7
        %v266 = vshll.u32 %v226, 16
        %v268 = vor.u32 %v265, %v266
        %v269 = vrot.slane %v265, 4
        %v271 = vshrl.u32 %v227, 16
        %v273 = vrot.slane %v271, 7
        %v274 = vshll.u32 %v227, 16
        %v276 = vor.u32 %v273, %v274
        %v277 = vrot.slane %v273, 4
        %v279 = vshrl.u32 %v228, 16
        %v281 = vrot.slane %v279, 7
        %v282 = vshll.u32 %v228, 16
        %v284 = vor.u32 %v281, %v282
        %v285 = vrot.slane %v281, 4
        %v287 = vshrl.u32 %v229, 16
        %v289 = vrot.slane %v287, 7
        %v290 = vshll.u32 %v229, 16
        %v292 = vor.u32 %v289, %v290
        %v293 = vrot.slane %v289, 4
        %s310 = scalar_lea.vmem [#allocation2], 16
        %vm311 = vcmask 1043456
        %vm312 = vsmask.f32 7938
        %vm313 = vmand %vm311, %vm312
        %vm314 = vcmask 1047556
        %vm315 = vsmask.f32 7954
        %vm316 = vmand %vm314, %vm315
        %vm317 = vmor %vm316, %vm313
        %v318 = vld [vmem:[%s310] sm:$0xff]
        %v319 = vsel %vm317, %v236, %v318
        %320 = vst [vmem:[%s310] sm:$0xff] %v319
        %vm321 = vcmask 1040384
        %vm322 = vsmask.f32 256
        %vm323 = vmand %vm321, %vm322
        %vm324 = vcmask 1044484
        %vm325 = vsmask.f32 4352
        %vm326 = vmand %vm324, %vm325
        %vm327 = vmor %vm326, %vm323
        %v328 = vld [vmem:[%s310 + $0x8] sm:$0x11]
        %v329 = vsel %vm327, %v237, %v328
        %330 = vst [vmem:[%s310 + $0x8] sm:$0x11] %v329
        %v331 = vld [vmem:[%s310 + $0x10] sm:$0xff]
        %v332 = vsel %vm317, %v244, %v331
        %333 = vst [vmem:[%s310 + $0x10] sm:$0xff] %v332
        %v334 = vld [vmem:[%s310 + $0x18] sm:$0x11]
        %v335 = vsel %vm327, %v245, %v334
        %336 = vst [vmem:[%s310 + $0x18] sm:$0x11] %v335
        %v337 = vld [vmem:[%s310 + $0x20] sm:$0xff]
        %v338 = vsel %vm317, %v252, %v337
        %339 = vst [vmem:[%s310 + $0x20] sm:$0xff] %v338
        %v340 = vld [vmem:[%s310 + $0x28] sm:$0x11]
        %v341 = vsel %vm327, %v253, %v340
        %342 = vst [vmem:[%s310 + $0x28] sm:$0x11] %v341
        %v343 = vld [vmem:[%s310 + $0x30] sm:$0xff]
        %v344 = vsel %vm317, %v260, %v343
        %345 = vst [vmem:[%s310 + $0x30] sm:$0xff] %v344
        %v346 = vld [vmem:[%s310 + $0x38] sm:$0x11]
        %v347 = vsel %vm327, %v261, %v346
        %348 = vst [vmem:[%s310 + $0x38] sm:$0x11] %v347
        %v349 = vld [vmem:[%s310 + $0x40] sm:$0xff]
        %v350 = vsel %vm317, %v268, %v349
        %351 = vst [vmem:[%s310 + $0x40] sm:$0xff] %v350
        %v352 = vld [vmem:[%s310 + $0x48] sm:$0x11]
        %v353 = vsel %vm327, %v269, %v352
        %354 = vst [vmem:[%s310 + $0x48] sm:$0x11] %v353
        %v355 = vld [vmem:[%s310 + $0x50] sm:$0xff]
        %v356 = vsel %vm317, %v276, %v355
        %357 = vst [vmem:[%s310 + $0x50] sm:$0xff] %v356
        %v358 = vld [vmem:[%s310 + $0x58] sm:$0x11]
        %v359 = vsel %vm327, %v277, %v358
        %360 = vst [vmem:[%s310 + $0x58] sm:$0x11] %v359
        %v361 = vld [vmem:[%s310 + $0x60] sm:$0xff]
        %v362 = vsel %vm317, %v284, %v361
        %363 = vst [vmem:[%s310 + $0x60] sm:$0xff] %v362
        %v364 = vld [vmem:[%s310 + $0x68] sm:$0x11]
        %v365 = vsel %vm327, %v285, %v364
        %366 = vst [vmem:[%s310 + $0x68] sm:$0x11] %v365
        %v367 = vld [vmem:[%s310 + $0x70] sm:$0xff]
        %v368 = vsel %vm317, %v292, %v367
        %369 = vst [vmem:[%s310 + $0x70] sm:$0xff] %v368
        %v370 = vld [vmem:[%s310 + $0x78] sm:$0x11]
        %v371 = vsel %vm327, %v293, %v370
        %372 = vst [vmem:[%s310 + $0x78] sm:$0x11] %v371
        %v373 = vld [vmem:[#allocation2] sm:$0xff]
        %v374 = vld [vmem:[#allocation2 + $0x10] sm:$0xff]
        %v375 = vld [vmem:[#allocation2 + $0x20] sm:$0xff]
        %v376 = vld [vmem:[#allocation2 + $0x30] sm:$0xff]
        %v377 = vld [vmem:[#allocation2 + $0x40] sm:$0xff]
        %v378 = vld [vmem:[#allocation2 + $0x50] sm:$0xff]
        %v379 = vld [vmem:[#allocation2 + $0x60] sm:$0xff]
        %v380 = vld [vmem:[#allocation2 + $0x70] sm:$0xff]
        %v381 = vld [vmem:[#allocation3] sm:$0xff]
        %v382 = vld [vmem:[#allocation3 + $0x8] sm:$0xff]
        %v383 = vld [vmem:[#allocation3 + $0x10] sm:$0xff]
        %v384 = vld [vmem:[#allocation3 + $0x18] sm:$0xff]
        %v385 = vld [vmem:[#allocation3 + $0x20] sm:$0xff]
        %v386 = vld [vmem:[#allocation3 + $0x28] sm:$0xff]
        %v387 = vld [vmem:[#allocation3 + $0x30] sm:$0xff]
        %v388 = vld [vmem:[#allocation3 + $0x38] sm:$0xff]
        %v389 = vld [vmem:[#allocation3 + $0x40] sm:$0xff]
        %v390 = vld [vmem:[#allocation3 + $0x48] sm:$0xff]
        %v391 = vld [vmem:[#allocation3 + $0x50] sm:$0xff]
        %v392 = vld [vmem:[#allocation3 + $0x58] sm:$0xff]
        %v393 = vld [vmem:[#allocation3 + $0x60] sm:$0xff]
        %v394 = vld [vmem:[#allocation3 + $0x68] sm:$0xff]
        %v395 = vld [vmem:[#allocation3 + $0x70] sm:$0xff]
        %v396 = vld [vmem:[#allocation3 + $0x78] sm:$0xff]
        %v397 = vld [vmem:[#allocation3 + $0x80] sm:$0xff]
        %v398 = vld [vmem:[#allocation3 + $0x88] sm:$0xff]
        %v399 = vld [vmem:[#allocation3 + $0x90] sm:$0xff]
        %v400 = vld [vmem:[#allocation3 + $0x98] sm:$0xff]
        %v401 = vld [vmem:[#allocation3 + $0xa0] sm:$0xff]
        %v402 = vld [vmem:[#allocation3 + $0xa8] sm:$0xff]
        %v403 = vld [vmem:[#allocation3 + $0xb0] sm:$0xff]
        %v404 = vld [vmem:[#allocation3 + $0xb8] sm:$0xff]
        %v405 = vld [vmem:[#allocation3 + $0xc0] sm:$0xff]
        %v406 = vld [vmem:[#allocation3 + $0xc8] sm:$0xff]
        %v407 = vld [vmem:[#allocation3 + $0xd0] sm:$0xff]
        %v408 = vld [vmem:[#allocation3 + $0xd8] sm:$0xff]
        %v409 = vld [vmem:[#allocation3 + $0xe0] sm:$0xff]
        %v410 = vld [vmem:[#allocation3 + $0xe8] sm:$0xff]
        %v411 = vld [vmem:[#allocation3 + $0xf0] sm:$0xff]
        %v412 = vld [vmem:[#allocation3 + $0xf8] sm:$0xff]
        %v413 = vld [vmem:[#allocation2 + $0x8] sm:$0x11]
        %v414 = vld [vmem:[#allocation2 + $0x18] sm:$0x11]
        %v415 = vld [vmem:[#allocation2 + $0x28] sm:$0x11]
        %v416 = vld [vmem:[#allocation2 + $0x38] sm:$0x11]
        %v417 = vld [vmem:[#allocation2 + $0x48] sm:$0x11]
        %v418 = vld [vmem:[#allocation2 + $0x58] sm:$0x11]
        %v419 = vld [vmem:[#allocation2 + $0x68] sm:$0x11]
        %v420 = vld [vmem:[#allocation2 + $0x78] sm:$0x11]
        %vm421 = vsmask.f32 3328
        %vm422 = vsmask.f32 7440
        %vm423 = vmor %vm421, %vm422
        %v425 = vshrl.u32 %v373, 16
        %v427 = vrot.slane %v425, 4
        %v428 = vshll.u32 %v373, 16
        %v430 = vrot.slane %v428, 5
        %v431 = vor.u32 %v427, %v430
        %v432 = vrot.slane %v431, 4
        %v434 = vshll.u32 %v413, 16
        %v436 = vrot.slane %v434, 5
        %v437 = vsel %vm423, %v432, %v436
        %v439 = vshrl.u32 %v374, 16
        %v441 = vrot.slane %v439, 4
        %v442 = vshll.u32 %v374, 16
        %v444 = vrot.slane %v442, 5
        %v445 = vor.u32 %v441, %v444
        %v446 = vrot.slane %v445, 4
        %v448 = vshll.u32 %v414, 16
        %v450 = vrot.slane %v448, 5
        %v451 = vsel %vm423, %v446, %v450
        %v453 = vshrl.u32 %v375, 16
        %v455 = vrot.slane %v453, 4
        %v456 = vshll.u32 %v375, 16
        %v458 = vrot.slane %v456, 5
        %v459 = vor.u32 %v455, %v458
        %v460 = vrot.slane %v459, 4
        %v462 = vshll.u32 %v415, 16
        %v464 = vrot.slane %v462, 5
        %v465 = vsel %vm423, %v460, %v464
        %v467 = vshrl.u32 %v376, 16
        %v469 = vrot.slane %v467, 4
        %v470 = vshll.u32 %v376, 16
        %v472 = vrot.slane %v470, 5
        %v473 = vor.u32 %v469, %v472
        %v474 = vrot.slane %v473, 4
        %v476 = vshll.u32 %v416, 16
        %v478 = vrot.slane %v476, 5
        %v479 = vsel %vm423, %v474, %v478
        %v481 = vshrl.u32 %v377, 16
        %v483 = vrot.slane %v481, 4
        %v484 = vshll.u32 %v377, 16
        %v486 = vrot.slane %v484, 5
        %v487 = vor.u32 %v483, %v486
        %v488 = vrot.slane %v487, 4
        %v490 = vshll.u32 %v417, 16
        %v492 = vrot.slane %v490, 5
        %v493 = vsel %vm423, %v488, %v492
        %v495 = vshrl.u32 %v378, 16
        %v497 = vrot.slane %v495, 4
        %v498 = vshll.u32 %v378, 16
        %v500 = vrot.slane %v498, 5
        %v501 = vor.u32 %v497, %v500
        %v502 = vrot.slane %v501, 4
        %v504 = vshll.u32 %v418, 16
        %v506 = vrot.slane %v504, 5
        %v507 = vsel %vm423, %v502, %v506
        %v509 = vshrl.u32 %v379, 16
        %v511 = vrot.slane %v509, 4
        %v512 = vshll.u32 %v379, 16
        %v514 = vrot.slane %v512, 5
        %v515 = vor.u32 %v511, %v514
        %v516 = vrot.slane %v515, 4
        %v518 = vshll.u32 %v419, 16
        %v520 = vrot.slane %v518, 5
        %v521 = vsel %vm423, %v516, %v520
        %v523 = vshrl.u32 %v380, 16
        %v525 = vrot.slane %v523, 4
        %v526 = vshll.u32 %v380, 16
        %v528 = vrot.slane %v526, 5
        %v529 = vor.u32 %v525, %v528
        %v530 = vrot.slane %v529, 4
        %v532 = vshll.u32 %v420, 16
        %v534 = vrot.slane %v532, 5
        %v535 = vsel %vm423, %v530, %v534
        %s536 = scalar_lea.vmem [#allocation3], 256
        %v537 = vld [vmem:[%s536] sm:$0xff]
        %v538 = vld [vmem:[%s536 + $0x8] sm:$0xff]
        %v539 = vld [vmem:[%s536 + $0x10] sm:$0xff]
        %v540 = vld [vmem:[%s536 + $0x18] sm:$0xff]
        %v541 = vld [vmem:[%s536 + $0x20] sm:$0xff]
        %v542 = vld [vmem:[%s536 + $0x28] sm:$0xff]
        %v543 = vld [vmem:[%s536 + $0x30] sm:$0xff]
        %v544 = vld [vmem:[%s536 + $0x38] sm:$0xff]
        %v545 = vld [vmem:[%s536 + $0x40] sm:$0xff]
        %v546 = vld [vmem:[%s536 + $0x48] sm:$0xff]
        %v547 = vld [vmem:[%s536 + $0x50] sm:$0xff]
        %v548 = vld [vmem:[%s536 + $0x58] sm:$0xff]
        %v549 = vld [vmem:[%s536 + $0x60] sm:$0xff]
        %v550 = vld [vmem:[%s536 + $0x68] sm:$0xff]
        %v551 = vld [vmem:[%s536 + $0x70] sm:$0xff]
        %v552 = vld [vmem:[%s536 + $0x78] sm:$0xff]
        %v553 = vld [vmem:[%s536 + $0x80] sm:$0xff]
        %v554 = vld [vmem:[%s536 + $0x88] sm:$0xff]
        %v555 = vld [vmem:[%s536 + $0x90] sm:$0xff]
        %v556 = vld [vmem:[%s536 + $0x98] sm:$0xff]
        %v557 = vld [vmem:[%s536 + $0xa0] sm:$0xff]
        %v558 = vld [vmem:[%s536 + $0xa8] sm:$0xff]
        %v559 = vld [vmem:[%s536 + $0xb0] sm:$0xff]
        %v560 = vld [vmem:[%s536 + $0xb8] sm:$0xff]
        %v561 = vld [vmem:[%s536 + $0xc0] sm:$0xff]
        %v562 = vld [vmem:[%s536 + $0xc8] sm:$0xff]
        %v563 = vld [vmem:[%s536 + $0xd0] sm:$0xff]
        %v564 = vld [vmem:[%s536 + $0xd8] sm:$0xff]
        %v565 = vld [vmem:[%s536 + $0xe0] sm:$0xff]
        %v566 = vld [vmem:[%s536 + $0xe8] sm:$0xff]
        %v567 = vld [vmem:[%s536 + $0xf0] sm:$0xff]
        %v568 = vld [vmem:[%s536 + $0xf8] sm:$0xff]
        %v569 = vunpack.c.l.b16 %v437
        %v570 = vunpack.c.h.b16 %v437
        %v571 = vunpack.c.l.b16 %v451
        %v572 = vunpack.c.h.b16 %v451
        %v573 = vunpack.c.l.b16 %v465
        %v574 = vunpack.c.h.b16 %v465
        %v575 = vunpack.c.l.b16 %v479
        %v576 = vunpack.c.h.b16 %v479
        %v577 = vunpack.c.l.b16 %v493
        %v578 = vunpack.c.h.b16 %v493
        %v579 = vunpack.c.l.b16 %v507
        %v580 = vunpack.c.h.b16 %v507
        %v581 = vunpack.c.l.b16 %v521
        %v582 = vunpack.c.h.b16 %v521
        %v583 = vunpack.c.l.b16 %v535
        %v584 = vunpack.c.h.b16 %v535
        %v585 = vpack.c.b16 %v571, %v569
        %v586 = vpack.c.b16 %v572, %v570
        %v587 = vpack.c.b16 %v575, %v573
        %v588 = vpack.c.b16 %v576, %v574
        %v589 = vpack.c.b16 %v579, %v577
        %v590 = vpack.c.b16 %v580, %v578
        %v591 = vpack.c.b16 %v583, %v581
        %v592 = vpack.c.b16 %v584, %v582
        %v633 = vunpack.c.l.b16 %v537
        %v634 = vunpack.c.h.b16 %v537
        %v635 = vunpack.c.l.b16 %v538
        %v636 = vunpack.c.h.b16 %v538
        %v637 = vunpack.c.l.b16 %v539
        %v638 = vunpack.c.h.b16 %v539
        %v639 = vunpack.c.l.b16 %v540
        %v640 = vunpack.c.h.b16 %v540
        %v641 = vunpack.c.l.b16 %v541
        %v642 = vunpack.c.h.b16 %v541
        %v643 = vunpack.c.l.b16 %v542
        %v644 = vunpack.c.h.b16 %v542
        %v645 = vunpack.c.l.b16 %v543
        %v646 = vunpack.c.h.b16 %v543
        %v647 = vunpack.c.l.b16 %v544
        %v648 = vunpack.c.h.b16 %v544
        %v649 = vunpack.c.l.b16 %v545
        %v650 = vunpack.c.h.b16 %v545
        %v651 = vunpack.c.l.b16 %v546
        %v652 = vunpack.c.h.b16 %v546
        %v653 = vunpack.c.l.b16 %v547
        %v654 = vunpack.c.h.b16 %v547
        %v655 = vunpack.c.l.b16 %v548
        %v656 = vunpack.c.h.b16 %v548
        %v657 = vunpack.c.l.b16 %v549
        %v658 = vunpack.c.h.b16 %v549
        %v659 = vunpack.c.l.b16 %v550
        %v660 = vunpack.c.h.b16 %v550
        %v661 = vunpack.c.l.b16 %v551
        %v662 = vunpack.c.h.b16 %v551
        %v663 = vunpack.c.l.b16 %v552
        %v664 = vunpack.c.h.b16 %v552
        %v665 = vunpack.c.l.b16 %v553
        %v666 = vunpack.c.h.b16 %v553
        %v667 = vunpack.c.l.b16 %v554
        %v668 = vunpack.c.h.b16 %v554
        %v669 = vunpack.c.l.b16 %v555
        %v670 = vunpack.c.h.b16 %v555
        %v671 = vunpack.c.l.b16 %v556
        %v672 = vunpack.c.h.b16 %v556
        %v673 = vunpack.c.l.b16 %v557
        %v674 = vunpack.c.h.b16 %v557
        %v675 = vunpack.c.l.b16 %v558
        %v676 = vunpack.c.h.b16 %v558
        %v677 = vunpack.c.l.b16 %v559
        %v678 = vunpack.c.h.b16 %v559
        %v679 = vunpack.c.l.b16 %v560
        %v680 = vunpack.c.h.b16 %v560
        %v681 = vunpack.c.l.b16 %v561
        %v682 = vunpack.c.h.b16 %v561
        %v683 = vunpack.c.l.b16 %v562
        %v684 = vunpack.c.h.b16 %v562
        %v685 = vunpack.c.l.b16 %v563
        %v686 = vunpack.c.h.b16 %v563
        %v687 = vunpack.c.l.b16 %v564
        %v688 = vunpack.c.h.b16 %v564
        %v689 = vunpack.c.l.b16 %v565
        %v690 = vunpack.c.h.b16 %v565
        %v691 = vunpack.c.l.b16 %v566
        %v692 = vunpack.c.h.b16 %v566
        %v693 = vunpack.c.l.b16 %v567
        %v694 = vunpack.c.h.b16 %v567
        %v695 = vunpack.c.l.b16 %v568
        %v696 = vunpack.c.h.b16 %v568
        %v697 = vpack.c.b16 %v635, %v633
        %v698 = vpack.c.b16 %v636, %v634
        %v699 = vpack.c.b16 %v639, %v637
        %v700 = vpack.c.b16 %v640, %v638
        %v701 = vpack.c.b16 %v643, %v641
        %v702 = vpack.c.b16 %v644, %v642
        %v703 = vpack.c.b16 %v647, %v645
        %v704 = vpack.c.b16 %v648, %v646
        %v705 = vpack.c.b16 %v651, %v649
        %v706 = vpack.c.b16 %v652, %v650
        %v707 = vpack.c.b16 %v655, %v653
        %v708 = vpack.c.b16 %v656, %v654
        %v709 = vpack.c.b16 %v659, %v657
        %v710 = vpack.c.b16 %v660, %v658
        %v711 = vpack.c.b16 %v663, %v661
        %v712 = vpack.c.b16 %v664, %v662
        %v713 = vpack.c.b16 %v667, %v665
        %v714 = vpack.c.b16 %v668, %v666
        %v715 = vpack.c.b16 %v671, %v669
        %v716 = vpack.c.b16 %v672, %v670
        %v717 = vpack.c.b16 %v675, %v673
        %v718 = vpack.c.b16 %v676, %v674
        %v719 = vpack.c.b16 %v679, %v677
        %v720 = vpack.c.b16 %v680, %v678
        %v721 = vpack.c.b16 %v683, %v681
        %v722 = vpack.c.b16 %v684, %v682
        %v723 = vpack.c.b16 %v687, %v685
        %v724 = vpack.c.b16 %v688, %v686
        %v725 = vpack.c.b16 %v691, %v689
        %v726 = vpack.c.b16 %v692, %v690
        %v727 = vpack.c.b16 %v695, %v693
        %v728 = vpack.c.b16 %v696, %v694
        %761 = vmatpush.bf16.msra.mxu0 %v711
        %762 = vmatpush.bf16.msra.mxu0 %v709
        %763 = vmatpush.bf16.msra.mxu0 %v707
        %764 = vmatpush.bf16.msra.mxu0 %v705
        %765 = vmatpush.bf16.msra.mxu0 %v703
        %766 = vmatpush.bf16.msra.mxu0 %v701
        %767 = vmatpush.bf16.msra.mxu0 %v699
        %768 = vmatpush.bf16.msra.mxu0 %v697
        %769 = vmatmul.bf16.gmra.mxu0 %v585
        %v770 = vpop.f32.mrf.mxu0
        %v771 = vadd.f32 0.0, %v770
        %v772 = vpop.f32.mrf.mxu0
        %v773 = vadd.f32 0.0, %v772
        %774 = vmatmul.bf16.gmra.mxu0 %v587
        %v775 = vpop.f32.mrf.mxu0
        %v776 = vadd.f32 0.0, %v775
        %v777 = vpop.f32.mrf.mxu0
        %v778 = vadd.f32 0.0, %v777
        %779 = vmatmul.bf16.gmra.mxu0 %v589
        %v780 = vpop.f32.mrf.mxu0
        %v781 = vadd.f32 0.0, %v780
        %v782 = vpop.f32.mrf.mxu0
        %v783 = vadd.f32 0.0, %v782
        %784 = vmatmul.bf16.gmra.mxu0 %v591
        %v785 = vpop.f32.mrf.mxu0
        %v786 = vadd.f32 0.0, %v785
        %v787 = vpop.f32.mrf.mxu0
        %v788 = vadd.f32 0.0, %v787
        %789 = vdwg.mxu0
        %790 = vmatpush.bf16.msra.mxu0 %v727
        %791 = vmatpush.bf16.msra.mxu0 %v725
        %792 = vmatpush.bf16.msra.mxu0 %v723
        %793 = vmatpush.bf16.msra.mxu0 %v721
        %794 = vmatpush.bf16.msra.mxu0 %v719
        %795 = vmatpush.bf16.msra.mxu0 %v717
        %796 = vmatpush.bf16.msra.mxu0 %v715
        %797 = vmatpush.bf16.msra.mxu0 %v713
        %798 = vmatmul.bf16.gmra.mxu0 %v586
        %v799 = vpop.f32.mrf.mxu0
        %v800 = vadd.f32 %v771, %v799
        %v801 = vpop.f32.mrf.mxu0
        %v802 = vadd.f32 %v773, %v801
        %803 = vmatmul.bf16.gmra.mxu0 %v588
        %v804 = vpop.f32.mrf.mxu0
        %v805 = vadd.f32 %v776, %v804
        %v806 = vpop.f32.mrf.mxu0
        %v807 = vadd.f32 %v778, %v806
        %808 = vmatmul.bf16.gmra.mxu0 %v590
        %v809 = vpop.f32.mrf.mxu0
        %v810 = vadd.f32 %v781, %v809
        %v811 = vpop.f32.mrf.mxu0
        %v812 = vadd.f32 %v783, %v811
        %813 = vmatmul.bf16.gmra.mxu0 %v592
        %v814 = vpop.f32.mrf.mxu0
        %v815 = vadd.f32 %v786, %v814
        %v816 = vpop.f32.mrf.mxu0
        %v817 = vadd.f32 %v788, %v816
        %818 = vdwg.mxu0
        %819 = vmatpush.bf16.msra.mxu0 %v712
        %820 = vmatpush.bf16.msra.mxu0 %v710
        %821 = vmatpush.bf16.msra.mxu0 %v708
        %822 = vmatpush.bf16.msra.mxu0 %v706
        %823 = vmatpush.bf16.msra.mxu0 %v704
        %824 = vmatpush.bf16.msra.mxu0 %v702
        %825 = vmatpush.bf16.msra.mxu0 %v700
        %826 = vmatpush.bf16.msra.mxu0 %v698
        %827 = vmatmul.bf16.gmra.mxu0 %v585
        %v828 = vpop.f32.mrf.mxu0
        %v829 = vadd.f32 0.0, %v828
        %v830 = vpop.f32.mrf.mxu0
        %v831 = vadd.f32 0.0, %v830
        %832 = vmatmul.bf16.gmra.mxu0 %v587
        %v833 = vpop.f32.mrf.mxu0
        %v834 = vadd.f32 0.0, %v833
        %v835 = vpop.f32.mrf.mxu0
        %v836 = vadd.f32 0.0, %v835
        %837 = vmatmul.bf16.gmra.mxu0 %v589
        %v838 = vpop.f32.mrf.mxu0
        %v839 = vadd.f32 0.0, %v838
        %v840 = vpop.f32.mrf.mxu0
        %v841 = vadd.f32 0.0, %v840
        %842 = vmatmul.bf16.gmra.mxu0 %v591
        %v843 = vpop.f32.mrf.mxu0
        %v844 = vadd.f32 0.0, %v843
        %v845 = vpop.f32.mrf.mxu0
        %v846 = vadd.f32 0.0, %v845
        %847 = vdwg.mxu0
        %848 = vmatpush.bf16.msra.mxu0 %v728
        %849 = vmatpush.bf16.msra.mxu0 %v726
        %850 = vmatpush.bf16.msra.mxu0 %v724
        %851 = vmatpush.bf16.msra.mxu0 %v722
        %852 = vmatpush.bf16.msra.mxu0 %v720
        %853 = vmatpush.bf16.msra.mxu0 %v718
        %854 = vmatpush.bf16.msra.mxu0 %v716
        %855 = vmatpush.bf16.msra.mxu0 %v714
        %856 = vmatmul.bf16.gmra.mxu0 %v586
        %v857 = vpop.f32.mrf.mxu0
        %v858 = vadd.f32 %v829, %v857
        %v859 = vpop.f32.mrf.mxu0
        %v860 = vadd.f32 %v831, %v859
        %861 = vmatmul.bf16.gmra.mxu0 %v588
        %v862 = vpop.f32.mrf.mxu0
        %v863 = vadd.f32 %v834, %v862
        %v864 = vpop.f32.mrf.mxu0
        %v865 = vadd.f32 %v836, %v864
        %866 = vmatmul.bf16.gmra.mxu0 %v590
        %v867 = vpop.f32.mrf.mxu0
        %v868 = vadd.f32 %v839, %v867
        %v869 = vpop.f32.mrf.mxu0
        %v870 = vadd.f32 %v841, %v869
        %871 = vmatmul.bf16.gmra.mxu0 %v592
        %v872 = vpop.f32.mrf.mxu0
        %v873 = vadd.f32 %v844, %v872
        %v874 = vpop.f32.mrf.mxu0
        %v875 = vadd.f32 %v846, %v874
        %876 = vdwg.mxu0
        %v885 = vunpack.c.l.b16 %v373
        %v886 = vunpack.c.h.b16 %v373
        %v887 = vunpack.c.l.b16 %v374
        %v888 = vunpack.c.h.b16 %v374
        %v889 = vunpack.c.l.b16 %v375
        %v890 = vunpack.c.h.b16 %v375
        %v891 = vunpack.c.l.b16 %v376
        %v892 = vunpack.c.h.b16 %v376
        %v893 = vunpack.c.l.b16 %v377
        %v894 = vunpack.c.h.b16 %v377
        %v895 = vunpack.c.l.b16 %v378
        %v896 = vunpack.c.h.b16 %v378
        %v897 = vunpack.c.l.b16 %v379
        %v898 = vunpack.c.h.b16 %v379
        %v899 = vunpack.c.l.b16 %v380
        %v900 = vunpack.c.h.b16 %v380
        %v901 = vpack.c.b16 %v887, %v885
        %v902 = vpack.c.b16 %v888, %v886
        %v903 = vpack.c.b16 %v891, %v889
        %v904 = vpack.c.b16 %v892, %v890
        %v905 = vpack.c.b16 %v895, %v893
        %v906 = vpack.c.b16 %v896, %v894
        %v907 = vpack.c.b16 %v899, %v897
        %v908 = vpack.c.b16 %v900, %v898
        %v949 = vunpack.c.l.b16 %v381
        %v950 = vunpack.c.h.b16 %v381
        %v951 = vunpack.c.l.b16 %v382
        %v952 = vunpack.c.h.b16 %v382
        %v953 = vunpack.c.l.b16 %v383
        %v954 = vunpack.c.h.b16 %v383
        %v955 = vunpack.c.l.b16 %v384
        %v956 = vunpack.c.h.b16 %v384
        %v957 = vunpack.c.l.b16 %v385
        %v958 = vunpack.c.h.b16 %v385
        %v959 = vunpack.c.l.b16 %v386
        %v960 = vunpack.c.h.b16 %v386
        %v961 = vunpack.c.l.b16 %v387
        %v962 = vunpack.c.h.b16 %v387
        %v963 = vunpack.c.l.b16 %v388
        %v964 = vunpack.c.h.b16 %v388
        %v965 = vunpack.c.l.b16 %v389
        %v966 = vunpack.c.h.b16 %v389
        %v967 = vunpack.c.l.b16 %v390
        %v968 = vunpack.c.h.b16 %v390
        %v969 = vunpack.c.l.b16 %v391
        %v970 = vunpack.c.h.b16 %v391
        %v971 = vunpack.c.l.b16 %v392
        %v972 = vunpack.c.h.b16 %v392
        %v973 = vunpack.c.l.b16 %v393
        %v974 = vunpack.c.h.b16 %v393
        %v975 = vunpack.c.l.b16 %v394
        %v976 = vunpack.c.h.b16 %v394
        %v977 = vunpack.c.l.b16 %v395
        %v978 = vunpack.c.h.b16 %v395
        %v979 = vunpack.c.l.b16 %v396
        %v980 = vunpack.c.h.b16 %v396
        %v981 = vunpack.c.l.b16 %v397
        %v982 = vunpack.c.h.b16 %v397
        %v983 = vunpack.c.l.b16 %v398
        %v984 = vunpack.c.h.b16 %v398
        %v985 = vunpack.c.l.b16 %v399
        %v986 = vunpack.c.h.b16 %v399
        %v987 = vunpack.c.l.b16 %v400
        %v988 = vunpack.c.h.b16 %v400
        %v989 = vunpack.c.l.b16 %v401
        %v990 = vunpack.c.h.b16 %v401
        %v991 = vunpack.c.l.b16 %v402
        %v992 = vunpack.c.h.b16 %v402
        %v993 = vunpack.c.l.b16 %v403
        %v994 = vunpack.c.h.b16 %v403
        %v995 = vunpack.c.l.b16 %v404
        %v996 = vunpack.c.h.b16 %v404
        %v997 = vunpack.c.l.b16 %v405
        %v998 = vunpack.c.h.b16 %v405
        %v999 = vunpack.c.l.b16 %v406
        %v1000 = vunpack.c.h.b16 %v406
        %v1001 = vunpack.c.l.b16 %v407
        %v1002 = vunpack.c.h.b16 %v407
        %v1003 = vunpack.c.l.b16 %v408
        %v1004 = vunpack.c.h.b16 %v408
        %v1005 = vunpack.c.l.b16 %v409
        %v1006 = vunpack.c.h.b16 %v409
        %v1007 = vunpack.c.l.b16 %v410
        %v1008 = vunpack.c.h.b16 %v410
        %v1009 = vunpack.c.l.b16 %v411
        %v1010 = vunpack.c.h.b16 %v411
        %v1011 = vunpack.c.l.b16 %v412
        %v1012 = vunpack.c.h.b16 %v412
        %v1013 = vpack.c.b16 %v951, %v949
        %v1014 = vpack.c.b16 %v952, %v950
        %v1015 = vpack.c.b16 %v955, %v953
        %v1016 = vpack.c.b16 %v956, %v954
        %v1017 = vpack.c.b16 %v959, %v957
        %v1018 = vpack.c.b16 %v960, %v958
        %v1019 = vpack.c.b16 %v963, %v961
        %v1020 = vpack.c.b16 %v964, %v962
        %v1021 = vpack.c.b16 %v967, %v965
        %v1022 = vpack.c.b16 %v968, %v966
        %v1023 = vpack.c.b16 %v971, %v969
        %v1024 = vpack.c.b16 %v972, %v970
        %v1025 = vpack.c.b16 %v975, %v973
        %v1026 = vpack.c.b16 %v976, %v974
        %v1027 = vpack.c.b16 %v979, %v977
        %v1028 = vpack.c.b16 %v980, %v978
        %v1029 = vpack.c.b16 %v983, %v981
        %v1030 = vpack.c.b16 %v984, %v982
        %v1031 = vpack.c.b16 %v987, %v985
        %v1032 = vpack.c.b16 %v988, %v986
        %v1033 = vpack.c.b16 %v991, %v989
        %v1034 = vpack.c.b16 %v992, %v990
        %v1035 = vpack.c.b16 %v995, %v993
        %v1036 = vpack.c.b16 %v996, %v994
        %v1037 = vpack.c.b16 %v999, %v997
        %v1038 = vpack.c.b16 %v1000, %v998
        %v1039 = vpack.c.b16 %v1003, %v1001
        %v1040 = vpack.c.b16 %v1004, %v1002
        %v1041 = vpack.c.b16 %v1007, %v1005
        %v1042 = vpack.c.b16 %v1008, %v1006
        %v1043 = vpack.c.b16 %v1011, %v1009
        %v1044 = vpack.c.b16 %v1012, %v1010
        %1077 = vmatpush.bf16.msra.mxu0 %v1027
        %1078 = vmatpush.bf16.msra.mxu0 %v1025
        %1079 = vmatpush.bf16.msra.mxu0 %v1023
        %1080 = vmatpush.bf16.msra.mxu0 %v1021
        %1081 = vmatpush.bf16.msra.mxu0 %v1019
        %1082 = vmatpush.bf16.msra.mxu0 %v1017
        %1083 = vmatpush.bf16.msra.mxu0 %v1015
        %1084 = vmatpush.bf16.msra.mxu0 %v1013
        %1085 = vmatmul.bf16.gmra.mxu0 %v901
        %v1086 = vpop.f32.mrf.mxu0
        %v1087 = vadd.f32 %v800, %v1086
        %v1088 = vpop.f32.mrf.mxu0
        %v1089 = vadd.f32 %v802, %v1088
        %1090 = vmatmul.bf16.gmra.mxu0 %v903
        %v1091 = vpop.f32.mrf.mxu0
        %v1092 = vadd.f32 %v805, %v1091
        %v1093 = vpop.f32.mrf.mxu0
        %v1094 = vadd.f32 %v807, %v1093
        %1095 = vmatmul.bf16.gmra.mxu0 %v905
        %v1096 = vpop.f32.mrf.mxu0
        %v1097 = vadd.f32 %v810, %v1096
        %v1098 = vpop.f32.mrf.mxu0
        %v1099 = vadd.f32 %v812, %v1098
        %1100 = vmatmul.bf16.gmra.mxu0 %v907
        %v1101 = vpop.f32.mrf.mxu0
        %v1102 = vadd.f32 %v815, %v1101
        %v1103 = vpop.f32.mrf.mxu0
        %v1104 = vadd.f32 %v817, %v1103
        %1105 = vdwg.mxu0
        %1106 = vmatpush.bf16.msra.mxu0 %v1043
        %1107 = vmatpush.bf16.msra.mxu0 %v1041
        %1108 = vmatpush.bf16.msra.mxu0 %v1039
        %1109 = vmatpush.bf16.msra.mxu0 %v1037
        %1110 = vmatpush.bf16.msra.mxu0 %v1035
        %1111 = vmatpush.bf16.msra.mxu0 %v1033
        %1112 = vmatpush.bf16.msra.mxu0 %v1031
        %1113 = vmatpush.bf16.msra.mxu0 %v1029
        %1114 = vmatmul.bf16.gmra.mxu0 %v902
        %v1115 = vpop.f32.mrf.mxu0
        %v1116 = vadd.f32 %v1087, %v1115
        %v1117 = vpop.f32.mrf.mxu0
        %v1118 = vadd.f32 %v1089, %v1117
        %1119 = vmatmul.bf16.gmra.mxu0 %v904
        %v1120 = vpop.f32.mrf.mxu0
        %v1121 = vadd.f32 %v1092, %v1120
        %v1122 = vpop.f32.mrf.mxu0
        %v1123 = vadd.f32 %v1094, %v1122
        %1124 = vmatmul.bf16.gmra.mxu0 %v906
        %v1125 = vpop.f32.mrf.mxu0
        %v1126 = vadd.f32 %v1097, %v1125
        %v1127 = vpop.f32.mrf.mxu0
        %v1128 = vadd.f32 %v1099, %v1127
        %1129 = vmatmul.bf16.gmra.mxu0 %v908
        %v1130 = vpop.f32.mrf.mxu0
        %v1131 = vadd.f32 %v1102, %v1130
        %v1132 = vpop.f32.mrf.mxu0
        %v1133 = vadd.f32 %v1104, %v1132
        %1134 = vdwg.mxu0
        %1135 = vmatpush.bf16.msra.mxu0 %v1028
        %1136 = vmatpush.bf16.msra.mxu0 %v1026
        %1137 = vmatpush.bf16.msra.mxu0 %v1024
        %1138 = vmatpush.bf16.msra.mxu0 %v1022
        %1139 = vmatpush.bf16.msra.mxu0 %v1020
        %1140 = vmatpush.bf16.msra.mxu0 %v1018
        %1141 = vmatpush.bf16.msra.mxu0 %v1016
        %1142 = vmatpush.bf16.msra.mxu0 %v1014
        %1143 = vmatmul.bf16.gmra.mxu0 %v901
        %v1144 = vpop.f32.mrf.mxu0
        %v1145 = vadd.f32 %v858, %v1144
        %v1146 = vpop.f32.mrf.mxu0
        %v1147 = vadd.f32 %v860, %v1146
        %1148 = vmatmul.bf16.gmra.mxu0 %v903
        %v1149 = vpop.f32.mrf.mxu0
        %v1150 = vadd.f32 %v863, %v1149
        %v1151 = vpop.f32.mrf.mxu0
        %v1152 = vadd.f32 %v865, %v1151
        %1153 = vmatmul.bf16.gmra.mxu0 %v905
        %v1154 = vpop.f32.mrf.mxu0
        %v1155 = vadd.f32 %v868, %v1154
        %v1156 = vpop.f32.mrf.mxu0
        %v1157 = vadd.f32 %v870, %v1156
        %1158 = vmatmul.bf16.gmra.mxu0 %v907
        %v1159 = vpop.f32.mrf.mxu0
        %v1160 = vadd.f32 %v873, %v1159
        %v1161 = vpop.f32.mrf.mxu0
        %v1162 = vadd.f32 %v875, %v1161
        %1163 = vdwg.mxu0
        %1164 = vmatpush.bf16.msra.mxu0 %v1044
        %1165 = vmatpush.bf16.msra.mxu0 %v1042
        %1166 = vmatpush.bf16.msra.mxu0 %v1040
        %1167 = vmatpush.bf16.msra.mxu0 %v1038
        %1168 = vmatpush.bf16.msra.mxu0 %v1036
        %1169 = vmatpush.bf16.msra.mxu0 %v1034
        %1170 = vmatpush.bf16.msra.mxu0 %v1032
        %1171 = vmatpush.bf16.msra.mxu0 %v1030
        %1172 = vmatmul.bf16.gmra.mxu0 %v902
        %v1173 = vpop.f32.mrf.mxu0
        %v1174 = vadd.f32 %v1145, %v1173
        %v1175 = vpop.f32.mrf.mxu0
        %v1176 = vadd.f32 %v1147, %v1175
        %1177 = vmatmul.bf16.gmra.mxu0 %v904
        %v1178 = vpop.f32.mrf.mxu0
        %v1179 = vadd.f32 %v1150, %v1178
        %v1180 = vpop.f32.mrf.mxu0
        %v1181 = vadd.f32 %v1152, %v1180
        %1182 = vmatmul.bf16.gmra.mxu0 %v906
        %v1183 = vpop.f32.mrf.mxu0
        %v1184 = vadd.f32 %v1155, %v1183
        %v1185 = vpop.f32.mrf.mxu0
        %v1186 = vadd.f32 %v1157, %v1185
        %1187 = vmatmul.bf16.gmra.mxu0 %v908
        %v1188 = vpop.f32.mrf.mxu0
        %v1189 = vadd.f32 %v1160, %v1188
        %v1190 = vpop.f32.mrf.mxu0
        %v1191 = vadd.f32 %v1162, %v1190
        %1192 = vdwg.mxu0
        %v1193 = vld [vmem:[#allocation2] sm:$0xee]
        %v1194 = vld [vmem:[#allocation2 + $0x10] sm:$0xee]
        %v1195 = vld [vmem:[#allocation2 + $0x20] sm:$0xee]
        %v1196 = vld [vmem:[#allocation2 + $0x30] sm:$0xee]
        %v1197 = vld [vmem:[#allocation2 + $0x40] sm:$0xee]
        %v1198 = vld [vmem:[#allocation2 + $0x50] sm:$0xee]
        %v1199 = vld [vmem:[#allocation2 + $0x60] sm:$0xee]
        %v1200 = vld [vmem:[#allocation2 + $0x70] sm:$0xee]
        %vm1217 = vcmask 1042432
        %vm1218 = vcmask 1046532
        %vm1219 = vmor %vm1217, %vm1218
        %v1220 = vrot.slane %v1193, 5
        %v1221 = vrot.slane %v1220, 4
        %v1222 = vrot.slane %v413, 5
        %v1223 = vsel %vm1219, %v1221, %v1222
        %v1224 = vrot.slane %v1194, 5
        %v1225 = vrot.slane %v1224, 4
        %v1226 = vrot.slane %v414, 5
        %v1227 = vsel %vm1219, %v1225, %v1226
        %v1228 = vrot.slane %v1195, 5
        %v1229 = vrot.slane %v1228, 4
        %v1230 = vrot.slane %v415, 5
        %v1231 = vsel %vm1219, %v1229, %v1230
        %v1232 = vrot.slane %v1196, 5
        %v1233 = vrot.slane %v1232, 4
        %v1234 = vrot.slane %v416, 5
        %v1235 = vsel %vm1219, %v1233, %v1234
        %v1236 = vrot.slane %v1197, 5
        %v1237 = vrot.slane %v1236, 4
        %v1238 = vrot.slane %v417, 5
        %v1239 = vsel %vm1219, %v1237, %v1238
        %v1240 = vrot.slane %v1198, 5
        %v1241 = vrot.slane %v1240, 4
        %v1242 = vrot.slane %v418, 5
        %v1243 = vsel %vm1219, %v1241, %v1242
        %v1244 = vrot.slane %v1199, 5
        %v1245 = vrot.slane %v1244, 4
        %v1246 = vrot.slane %v419, 5
        %v1247 = vsel %vm1219, %v1245, %v1246
        %v1248 = vrot.slane %v1200, 5
        %v1249 = vrot.slane %v1248, 4
        %v1250 = vrot.slane %v420, 5
        %v1251 = vsel %vm1219, %v1249, %v1250
        %s1252 = scalar_lea.vmem [#allocation3], 512
        %v1253 = vld [vmem:[%s1252] sm:$0xff]
        %v1254 = vld [vmem:[%s1252 + $0x8] sm:$0xff]
        %v1255 = vld [vmem:[%s1252 + $0x10] sm:$0xff]
        %v1256 = vld [vmem:[%s1252 + $0x18] sm:$0xff]
        %v1257 = vld [vmem:[%s1252 + $0x20] sm:$0xff]
        %v1258 = vld [vmem:[%s1252 + $0x28] sm:$0xff]
        %v1259 = vld [vmem:[%s1252 + $0x30] sm:$0xff]
        %v1260 = vld [vmem:[%s1252 + $0x38] sm:$0xff]
        %v1261 = vld [vmem:[%s1252 + $0x40] sm:$0xff]
        %v1262 = vld [vmem:[%s1252 + $0x48] sm:$0xff]
        %v1263 = vld [vmem:[%s1252 + $0x50] sm:$0xff]
        %v1264 = vld [vmem:[%s1252 + $0x58] sm:$0xff]
        %v1265 = vld [vmem:[%s1252 + $0x60] sm:$0xff]
        %v1266 = vld [vmem:[%s1252 + $0x68] sm:$0xff]
        %v1267 = vld [vmem:[%s1252 + $0x70] sm:$0xff]
        %v1268 = vld [vmem:[%s1252 + $0x78] sm:$0xff]
        %v1269 = vld [vmem:[%s1252 + $0x80] sm:$0xff]
        %v1270 = vld [vmem:[%s1252 + $0x88] sm:$0xff]
        %v1271 = vld [vmem:[%s1252 + $0x90] sm:$0xff]
        %v1272 = vld [vmem:[%s1252 + $0x98] sm:$0xff]
        %v1273 = vld [vmem:[%s1252 + $0xa0] sm:$0xff]
        %v1274 = vld [vmem:[%s1252 + $0xa8] sm:$0xff]
        %v1275 = vld [vmem:[%s1252 + $0xb0] sm:$0xff]
        %v1276 = vld [vmem:[%s1252 + $0xb8] sm:$0xff]
        %v1277 = vld [vmem:[%s1252 + $0xc0] sm:$0xff]
        %v1278 = vld [vmem:[%s1252 + $0xc8] sm:$0xff]
        %v1279 = vld [vmem:[%s1252 + $0xd0] sm:$0xff]
        %v1280 = vld [vmem:[%s1252 + $0xd8] sm:$0xff]
        %v1281 = vld [vmem:[%s1252 + $0xe0] sm:$0xff]
        %v1282 = vld [vmem:[%s1252 + $0xe8] sm:$0xff]
        %v1283 = vld [vmem:[%s1252 + $0xf0] sm:$0xff]
        %v1284 = vld [vmem:[%s1252 + $0xf8] sm:$0xff]
        %v1285 = vunpack.c.l.b16 %v1223
        %v1286 = vunpack.c.h.b16 %v1223
        %v1287 = vunpack.c.l.b16 %v1227
        %v1288 = vunpack.c.h.b16 %v1227
        %v1289 = vunpack.c.l.b16 %v1231
        %v1290 = vunpack.c.h.b16 %v1231
        %v1291 = vunpack.c.l.b16 %v1235
        %v1292 = vunpack.c.h.b16 %v1235
        %v1293 = vunpack.c.l.b16 %v1239
        %v1294 = vunpack.c.h.b16 %v1239
        %v1295 = vunpack.c.l.b16 %v1243
        %v1296 = vunpack.c.h.b16 %v1243
        %v1297 = vunpack.c.l.b16 %v1247
        %v1298 = vunpack.c.h.b16 %v1247
        %v1299 = vunpack.c.l.b16 %v1251
        %v1300 = vunpack.c.h.b16 %v1251
        %v1301 = vpack.c.b16 %v1287, %v1285
        %v1302 = vpack.c.b16 %v1288, %v1286
        %v1303 = vpack.c.b16 %v1291, %v1289
        %v1304 = vpack.c.b16 %v1292, %v1290
        %v1305 = vpack.c.b16 %v1295, %v1293
        %v1306 = vpack.c.b16 %v1296, %v1294
        %v1307 = vpack.c.b16 %v1299, %v1297
        %v1308 = vpack.c.b16 %v1300, %v1298
        %v1349 = vunpack.c.l.b16 %v1253
        %v1350 = vunpack.c.h.b16 %v1253
        %v1351 = vunpack.c.l.b16 %v1254
        %v1352 = vunpack.c.h.b16 %v1254
        %v1353 = vunpack.c.l.b16 %v1255
        %v1354 = vunpack.c.h.b16 %v1255
        %v1355 = vunpack.c.l.b16 %v1256
        %v1356 = vunpack.c.h.b16 %v1256
        %v1357 = vunpack.c.l.b16 %v1257
        %v1358 = vunpack.c.h.b16 %v1257
        %v1359 = vunpack.c.l.b16 %v1258
        %v1360 = vunpack.c.h.b16 %v1258
        %v1361 = vunpack.c.l.b16 %v1259
        %v1362 = vunpack.c.h.b16 %v1259
        %v1363 = vunpack.c.l.b16 %v1260
        %v1364 = vunpack.c.h.b16 %v1260
        %v1365 = vunpack.c.l.b16 %v1261
        %v1366 = vunpack.c.h.b16 %v1261
        %v1367 = vunpack.c.l.b16 %v1262
        %v1368 = vunpack.c.h.b16 %v1262
        %v1369 = vunpack.c.l.b16 %v1263
        %v1370 = vunpack.c.h.b16 %v1263
        %v1371 = vunpack.c.l.b16 %v1264
        %v1372 = vunpack.c.h.b16 %v1264
        %v1373 = vunpack.c.l.b16 %v1265
        %v1374 = vunpack.c.h.b16 %v1265
        %v1375 = vunpack.c.l.b16 %v1266
        %v1376 = vunpack.c.h.b16 %v1266
        %v1377 = vunpack.c.l.b16 %v1267
        %v1378 = vunpack.c.h.b16 %v1267
        %v1379 = vunpack.c.l.b16 %v1268
        %v1380 = vunpack.c.h.b16 %v1268
        %v1381 = vunpack.c.l.b16 %v1269
        %v1382 = vunpack.c.h.b16 %v1269
        %v1383 = vunpack.c.l.b16 %v1270
        %v1384 = vunpack.c.h.b16 %v1270
        %v1385 = vunpack.c.l.b16 %v1271
        %v1386 = vunpack.c.h.b16 %v1271
        %v1387 = vunpack.c.l.b16 %v1272
        %v1388 = vunpack.c.h.b16 %v1272
        %v1389 = vunpack.c.l.b16 %v1273
        %v1390 = vunpack.c.h.b16 %v1273
        %v1391 = vunpack.c.l.b16 %v1274
        %v1392 = vunpack.c.h.b16 %v1274
        %v1393 = vunpack.c.l.b16 %v1275
        %v1394 = vunpack.c.h.b16 %v1275
        %v1395 = vunpack.c.l.b16 %v1276
        %v1396 = vunpack.c.h.b16 %v1276
        %v1397 = vunpack.c.l.b16 %v1277
        %v1398 = vunpack.c.h.b16 %v1277
        %v1399 = vunpack.c.l.b16 %v1278
        %v1400 = vunpack.c.h.b16 %v1278
        %v1401 = vunpack.c.l.b16 %v1279
        %v1402 = vunpack.c.h.b16 %v1279
        %v1403 = vunpack.c.l.b16 %v1280
        %v1404 = vunpack.c.h.b16 %v1280
        %v1405 = vunpack.c.l.b16 %v1281
        %v1406 = vunpack.c.h.b16 %v1281
        %v1407 = vunpack.c.l.b16 %v1282
        %v1408 = vunpack.c.h.b16 %v1282
        %v1409 = vunpack.c.l.b16 %v1283
        %v1410 = vunpack.c.h.b16 %v1283
        %v1411 = vunpack.c.l.b16 %v1284
        %v1412 = vunpack.c.h.b16 %v1284
        %v1413 = vpack.c.b16 %v1351, %v1349
        %v1414 = vpack.c.b16 %v1352, %v1350
        %v1415 = vpack.c.b16 %v1355, %v1353
        %v1416 = vpack.c.b16 %v1356, %v1354
        %v1417 = vpack.c.b16 %v1359, %v1357
        %v1418 = vpack.c.b16 %v1360, %v1358
        %v1419 = vpack.c.b16 %v1363, %v1361
        %v1420 = vpack.c.b16 %v1364, %v1362
        %v1421 = vpack.c.b16 %v1367, %v1365
        %v1422 = vpack.c.b16 %v1368, %v1366
        %v1423 = vpack.c.b16 %v1371, %v1369
        %v1424 = vpack.c.b16 %v1372, %v1370
        %v1425 = vpack.c.b16 %v1375, %v1373
        %v1426 = vpack.c.b16 %v1376, %v1374
        %v1427 = vpack.c.b16 %v1379, %v1377
        %v1428 = vpack.c.b16 %v1380, %v1378
        %v1429 = vpack.c.b16 %v1383, %v1381
        %v1430 = vpack.c.b16 %v1384, %v1382
        %v1431 = vpack.c.b16 %v1387, %v1385
        %v1432 = vpack.c.b16 %v1388, %v1386
        %v1433 = vpack.c.b16 %v1391, %v1389
        %v1434 = vpack.c.b16 %v1392, %v1390
        %v1435 = vpack.c.b16 %v1395, %v1393
        %v1436 = vpack.c.b16 %v1396, %v1394
        %v1437 = vpack.c.b16 %v1399, %v1397
        %v1438 = vpack.c.b16 %v1400, %v1398
        %v1439 = vpack.c.b16 %v1403, %v1401
        %v1440 = vpack.c.b16 %v1404, %v1402
        %v1441 = vpack.c.b16 %v1407, %v1405
        %v1442 = vpack.c.b16 %v1408, %v1406
        %v1443 = vpack.c.b16 %v1411, %v1409
        %v1444 = vpack.c.b16 %v1412, %v1410
        %1477 = vmatpush.bf16.msra.mxu0 %v1427
        %1478 = vmatpush.bf16.msra.mxu0 %v1425
        %1479 = vmatpush.bf16.msra.mxu0 %v1423
        %1480 = vmatpush.bf16.msra.mxu0 %v1421
        %1481 = vmatpush.bf16.msra.mxu0 %v1419
        %1482 = vmatpush.bf16.msra.mxu0 %v1417
        %1483 = vmatpush.bf16.msra.mxu0 %v1415
        %1484 = vmatpush.bf16.msra.mxu0 %v1413
        %1485 = vmatmul.bf16.gmra.mxu0 %v1301
        %v1486 = vpop.f32.mrf.mxu0
        %v1487 = vadd.f32 0.0, %v1486
        %v1488 = vpop.f32.mrf.mxu0
        %v1489 = vadd.f32 0.0, %v1488
        %1490 = vmatmul.bf16.gmra.mxu0 %v1303
        %v1491 = vpop.f32.mrf.mxu0
        %v1492 = vadd.f32 0.0, %v1491
        %v1493 = vpop.f32.mrf.mxu0
        %v1494 = vadd.f32 0.0, %v1493
        %1495 = vmatmul.bf16.gmra.mxu0 %v1305
        %v1496 = vpop.f32.mrf.mxu0
        %v1497 = vadd.f32 0.0, %v1496
        %v1498 = vpop.f32.mrf.mxu0
        %v1499 = vadd.f32 0.0, %v1498
        %1500 = vmatmul.bf16.gmra.mxu0 %v1307
        %v1501 = vpop.f32.mrf.mxu0
        %v1502 = vadd.f32 0.0, %v1501
        %v1503 = vpop.f32.mrf.mxu0
        %v1504 = vadd.f32 0.0, %v1503
        %1505 = vdwg.mxu0
        %1506 = vmatpush.bf16.msra.mxu0 %v1443
        %1507 = vmatpush.bf16.msra.mxu0 %v1441
        %1508 = vmatpush.bf16.msra.mxu0 %v1439
        %1509 = vmatpush.bf16.msra.mxu0 %v1437
        %1510 = vmatpush.bf16.msra.mxu0 %v1435
        %1511 = vmatpush.bf16.msra.mxu0 %v1433
        %1512 = vmatpush.bf16.msra.mxu0 %v1431
        %1513 = vmatpush.bf16.msra.mxu0 %v1429
        %1514 = vmatmul.bf16.gmra.mxu0 %v1302
        %v1515 = vpop.f32.mrf.mxu0
        %v1516 = vadd.f32 %v1487, %v1515
        %v1517 = vpop.f32.mrf.mxu0
        %v1518 = vadd.f32 %v1489, %v1517
        %1519 = vmatmul.bf16.gmra.mxu0 %v1304
        %v1520 = vpop.f32.mrf.mxu0
        %v1521 = vadd.f32 %v1492, %v1520
        %v1522 = vpop.f32.mrf.mxu0
        %v1523 = vadd.f32 %v1494, %v1522
        %1524 = vmatmul.bf16.gmra.mxu0 %v1306
        %v1525 = vpop.f32.mrf.mxu0
        %v1526 = vadd.f32 %v1497, %v1525
        %v1527 = vpop.f32.mrf.mxu0
        %v1528 = vadd.f32 %v1499, %v1527
        %1529 = vmatmul.bf16.gmra.mxu0 %v1308
        %v1530 = vpop.f32.mrf.mxu0
        %v1531 = vadd.f32 %v1502, %v1530
        %v1532 = vpop.f32.mrf.mxu0
        %v1533 = vadd.f32 %v1504, %v1532
        %1534 = vdwg.mxu0
        %1535 = vmatpush.bf16.msra.mxu0 %v1428
        %1536 = vmatpush.bf16.msra.mxu0 %v1426
        %1537 = vmatpush.bf16.msra.mxu0 %v1424
        %1538 = vmatpush.bf16.msra.mxu0 %v1422
        %1539 = vmatpush.bf16.msra.mxu0 %v1420
        %1540 = vmatpush.bf16.msra.mxu0 %v1418
        %1541 = vmatpush.bf16.msra.mxu0 %v1416
        %1542 = vmatpush.bf16.msra.mxu0 %v1414
        %1543 = vmatmul.bf16.gmra.mxu0 %v1301
        %v1544 = vpop.f32.mrf.mxu0
        %v1545 = vadd.f32 0.0, %v1544
        %v1546 = vpop.f32.mrf.mxu0
        %v1547 = vadd.f32 0.0, %v1546
        %1548 = vmatmul.bf16.gmra.mxu0 %v1303
        %v1549 = vpop.f32.mrf.mxu0
        %v1550 = vadd.f32 0.0, %v1549
        %v1551 = vpop.f32.mrf.mxu0
        %v1552 = vadd.f32 0.0, %v1551
        %1553 = vmatmul.bf16.gmra.mxu0 %v1305
        %v1554 = vpop.f32.mrf.mxu0
        %v1555 = vadd.f32 0.0, %v1554
        %v1556 = vpop.f32.mrf.mxu0
        %v1557 = vadd.f32 0.0, %v1556
        %1558 = vmatmul.bf16.gmra.mxu0 %v1307
        %v1559 = vpop.f32.mrf.mxu0
        %v1560 = vadd.f32 0.0, %v1559
        %v1561 = vpop.f32.mrf.mxu0
        %v1562 = vadd.f32 0.0, %v1561
        %1563 = vdwg.mxu0
        %1564 = vmatpush.bf16.msra.mxu0 %v1444
        %1565 = vmatpush.bf16.msra.mxu0 %v1442
        %1566 = vmatpush.bf16.msra.mxu0 %v1440
        %1567 = vmatpush.bf16.msra.mxu0 %v1438
        %1568 = vmatpush.bf16.msra.mxu0 %v1436
        %1569 = vmatpush.bf16.msra.mxu0 %v1434
        %1570 = vmatpush.bf16.msra.mxu0 %v1432
        %1571 = vmatpush.bf16.msra.mxu0 %v1430
        %1572 = vmatmul.bf16.gmra.mxu0 %v1302
        %v1573 = vpop.f32.mrf.mxu0
        %v1574 = vadd.f32 %v1545, %v1573
        %v1575 = vpop.f32.mrf.mxu0
        %v1576 = vadd.f32 %v1547, %v1575
        %1577 = vmatmul.bf16.gmra.mxu0 %v1304
        %v1578 = vpop.f32.mrf.mxu0
        %v1579 = vadd.f32 %v1550, %v1578
        %v1580 = vpop.f32.mrf.mxu0
        %v1581 = vadd.f32 %v1552, %v1580
        %1582 = vmatmul.bf16.gmra.mxu0 %v1306
        %v1583 = vpop.f32.mrf.mxu0
        %v1584 = vadd.f32 %v1555, %v1583
        %v1585 = vpop.f32.mrf.mxu0
        %v1586 = vadd.f32 %v1557, %v1585
        %1587 = vmatmul.bf16.gmra.mxu0 %v1308
        %v1588 = vpop.f32.mrf.mxu0
        %v1589 = vadd.f32 %v1560, %v1588
        %v1590 = vpop.f32.mrf.mxu0
        %v1591 = vadd.f32 %v1562, %v1590
        %1592 = vdwg.mxu0
        %v1593 = vadd.f32 %v1116, %v1516
        %v1594 = vadd.f32 %v1174, %v1574
        %v1595 = vadd.f32 %v1118, %v1518
        %v1596 = vadd.f32 %v1176, %v1576
        %v1597 = vadd.f32 %v1121, %v1521
        %v1598 = vadd.f32 %v1179, %v1579
        %v1599 = vadd.f32 %v1123, %v1523
        %v1600 = vadd.f32 %v1181, %v1581
        %v1601 = vadd.f32 %v1126, %v1526
        %v1602 = vadd.f32 %v1184, %v1584
        %v1603 = vadd.f32 %v1128, %v1528
        %v1604 = vadd.f32 %v1186, %v1586
        %v1605 = vadd.f32 %v1131, %v1531
        %v1606 = vadd.f32 %v1189, %v1589
        %v1607 = vadd.f32 %v1133, %v1533
        %v1608 = vadd.f32 %v1191, %v1591
        %v1609 = vld [vmem:[%s310] sm:$0xff]
        %v1610 = vld [vmem:[%s310 + $0x10] sm:$0xff]
        %v1611 = vld [vmem:[%s310 + $0x20] sm:$0xff]
        %v1612 = vld [vmem:[%s310 + $0x30] sm:$0xff]
        %v1613 = vld [vmem:[%s310 + $0x40] sm:$0xff]
        %v1614 = vld [vmem:[%s310 + $0x50] sm:$0xff]
        %v1615 = vld [vmem:[%s310 + $0x60] sm:$0xff]
        %v1616 = vld [vmem:[%s310 + $0x70] sm:$0xff]
        %s1617 = scalar_lea.vmem [#allocation3], 768
        %v1618 = vld [vmem:[%s1617] sm:$0xff]
        %v1619 = vld [vmem:[%s1617 + $0x8] sm:$0xff]
        %v1620 = vld [vmem:[%s1617 + $0x10] sm:$0xff]
        %v1621 = vld [vmem:[%s1617 + $0x18] sm:$0xff]
        %v1622 = vld [vmem:[%s1617 + $0x20] sm:$0xff]
        %v1623 = vld [vmem:[%s1617 + $0x28] sm:$0xff]
        %v1624 = vld [vmem:[%s1617 + $0x30] sm:$0xff]
        %v1625 = vld [vmem:[%s1617 + $0x38] sm:$0xff]
        %v1626 = vld [vmem:[%s1617 + $0x40] sm:$0xff]
        %v1627 = vld [vmem:[%s1617 + $0x48] sm:$0xff]
        %v1628 = vld [vmem:[%s1617 + $0x50] sm:$0xff]
        %v1629 = vld [vmem:[%s1617 + $0x58] sm:$0xff]
        %v1630 = vld [vmem:[%s1617 + $0x60] sm:$0xff]
        %v1631 = vld [vmem:[%s1617 + $0x68] sm:$0xff]
        %v1632 = vld [vmem:[%s1617 + $0x70] sm:$0xff]
        %v1633 = vld [vmem:[%s1617 + $0x78] sm:$0xff]
        %v1634 = vld [vmem:[%s1617 + $0x80] sm:$0xff]
        %v1635 = vld [vmem:[%s1617 + $0x88] sm:$0xff]
        %v1636 = vld [vmem:[%s1617 + $0x90] sm:$0xff]
        %v1637 = vld [vmem:[%s1617 + $0x98] sm:$0xff]
        %v1638 = vld [vmem:[%s1617 + $0xa0] sm:$0xff]
        %v1639 = vld [vmem:[%s1617 + $0xa8] sm:$0xff]
        %v1640 = vld [vmem:[%s1617 + $0xb0] sm:$0xff]
        %v1641 = vld [vmem:[%s1617 + $0xb8] sm:$0xff]
        %v1642 = vld [vmem:[%s1617 + $0xc0] sm:$0xff]
        %v1643 = vld [vmem:[%s1617 + $0xc8] sm:$0xff]
        %v1644 = vld [vmem:[%s1617 + $0xd0] sm:$0xff]
        %v1645 = vld [vmem:[%s1617 + $0xd8] sm:$0xff]
        %v1646 = vld [vmem:[%s1617 + $0xe0] sm:$0xff]
        %v1647 = vld [vmem:[%s1617 + $0xe8] sm:$0xff]
        %v1648 = vld [vmem:[%s1617 + $0xf0] sm:$0xff]
        %v1649 = vld [vmem:[%s1617 + $0xf8] sm:$0xff]
        %v1658 = vunpack.c.l.b16 %v1609
        %v1659 = vunpack.c.h.b16 %v1609
        %v1660 = vunpack.c.l.b16 %v1610
        %v1661 = vunpack.c.h.b16 %v1610
        %v1662 = vunpack.c.l.b16 %v1611
        %v1663 = vunpack.c.h.b16 %v1611
        %v1664 = vunpack.c.l.b16 %v1612
        %v1665 = vunpack.c.h.b16 %v1612
        %v1666 = vunpack.c.l.b16 %v1613
        %v1667 = vunpack.c.h.b16 %v1613
        %v1668 = vunpack.c.l.b16 %v1614
        %v1669 = vunpack.c.h.b16 %v1614
        %v1670 = vunpack.c.l.b16 %v1615
        %v1671 = vunpack.c.h.b16 %v1615
        %v1672 = vunpack.c.l.b16 %v1616
        %v1673 = vunpack.c.h.b16 %v1616
        %v1674 = vpack.c.b16 %v1660, %v1658
        %v1675 = vpack.c.b16 %v1661, %v1659
        %v1676 = vpack.c.b16 %v1664, %v1662
        %v1677 = vpack.c.b16 %v1665, %v1663
        %v1678 = vpack.c.b16 %v1668, %v1666
        %v1679 = vpack.c.b16 %v1669, %v1667
        %v1680 = vpack.c.b16 %v1672, %v1670
        %v1681 = vpack.c.b16 %v1673, %v1671
        %v1722 = vunpack.c.l.b16 %v1618
        %v1723 = vunpack.c.h.b16 %v1618
        %v1724 = vunpack.c.l.b16 %v1619
        %v1725 = vunpack.c.h.b16 %v1619
        %v1726 = vunpack.c.l.b16 %v1620
        %v1727 = vunpack.c.h.b16 %v1620
        %v1728 = vunpack.c.l.b16 %v1621
        %v1729 = vunpack.c.h.b16 %v1621
        %v1730 = vunpack.c.l.b16 %v1622
        %v1731 = vunpack.c.h.b16 %v1622
        %v1732 = vunpack.c.l.b16 %v1623
        %v1733 = vunpack.c.h.b16 %v1623
        %v1734 = vunpack.c.l.b16 %v1624
        %v1735 = vunpack.c.h.b16 %v1624
        %v1736 = vunpack.c.l.b16 %v1625
        %v1737 = vunpack.c.h.b16 %v1625
        %v1738 = vunpack.c.l.b16 %v1626
        %v1739 = vunpack.c.h.b16 %v1626
        %v1740 = vunpack.c.l.b16 %v1627
        %v1741 = vunpack.c.h.b16 %v1627
        %v1742 = vunpack.c.l.b16 %v1628
        %v1743 = vunpack.c.h.b16 %v1628
        %v1744 = vunpack.c.l.b16 %v1629
        %v1745 = vunpack.c.h.b16 %v1629
        %v1746 = vunpack.c.l.b16 %v1630
        %v1747 = vunpack.c.h.b16 %v1630
        %v1748 = vunpack.c.l.b16 %v1631
        %v1749 = vunpack.c.h.b16 %v1631
        %v1750 = vunpack.c.l.b16 %v1632
        %v1751 = vunpack.c.h.b16 %v1632
        %v1752 = vunpack.c.l.b16 %v1633
        %v1753 = vunpack.c.h.b16 %v1633
        %v1754 = vunpack.c.l.b16 %v1634
        %v1755 = vunpack.c.h.b16 %v1634
        %v1756 = vunpack.c.l.b16 %v1635
        %v1757 = vunpack.c.h.b16 %v1635
        %v1758 = vunpack.c.l.b16 %v1636
        %v1759 = vunpack.c.h.b16 %v1636
        %v1760 = vunpack.c.l.b16 %v1637
        %v1761 = vunpack.c.h.b16 %v1637
        %v1762 = vunpack.c.l.b16 %v1638
        %v1763 = vunpack.c.h.b16 %v1638
        %v1764 = vunpack.c.l.b16 %v1639
        %v1765 = vunpack.c.h.b16 %v1639
        %v1766 = vunpack.c.l.b16 %v1640
        %v1767 = vunpack.c.h.b16 %v1640
        %v1768 = vunpack.c.l.b16 %v1641
        %v1769 = vunpack.c.h.b16 %v1641
        %v1770 = vunpack.c.l.b16 %v1642
        %v1771 = vunpack.c.h.b16 %v1642
        %v1772 = vunpack.c.l.b16 %v1643
        %v1773 = vunpack.c.h.b16 %v1643
        %v1774 = vunpack.c.l.b16 %v1644
        %v1775 = vunpack.c.h.b16 %v1644
        %v1776 = vunpack.c.l.b16 %v1645
        %v1777 = vunpack.c.h.b16 %v1645
        %v1778 = vunpack.c.l.b16 %v1646
        %v1779 = vunpack.c.h.b16 %v1646
        %v1780 = vunpack.c.l.b16 %v1647
        %v1781 = vunpack.c.h.b16 %v1647
        %v1782 = vunpack.c.l.b16 %v1648
        %v1783 = vunpack.c.h.b16 %v1648
        %v1784 = vunpack.c.l.b16 %v1649
        %v1785 = vunpack.c.h.b16 %v1649
        %v1786 = vpack.c.b16 %v1724, %v1722
        %v1787 = vpack.c.b16 %v1725, %v1723
        %v1788 = vpack.c.b16 %v1728, %v1726
        %v1789 = vpack.c.b16 %v1729, %v1727
        %v1790 = vpack.c.b16 %v1732, %v1730
        %v1791 = vpack.c.b16 %v1733, %v1731
        %v1792 = vpack.c.b16 %v1736, %v1734
        %v1793 = vpack.c.b16 %v1737, %v1735
        %v1794 = vpack.c.b16 %v1740, %v1738
        %v1795 = vpack.c.b16 %v1741, %v1739
        %v1796 = vpack.c.b16 %v1744, %v1742
        %v1797 = vpack.c.b16 %v1745, %v1743
        %v1798 = vpack.c.b16 %v1748, %v1746
        %v1799 = vpack.c.b16 %v1749, %v1747
        %v1800 = vpack.c.b16 %v1752, %v1750
        %v1801 = vpack.c.b16 %v1753, %v1751
        %v1802 = vpack.c.b16 %v1756, %v1754
        %v1803 = vpack.c.b16 %v1757, %v1755
        %v1804 = vpack.c.b16 %v1760, %v1758
        %v1805 = vpack.c.b16 %v1761, %v1759
        %v1806 = vpack.c.b16 %v1764, %v1762
        %v1807 = vpack.c.b16 %v1765, %v1763
        %v1808 = vpack.c.b16 %v1768, %v1766
        %v1809 = vpack.c.b16 %v1769, %v1767
        %v1810 = vpack.c.b16 %v1772, %v1770
        %v1811 = vpack.c.b16 %v1773, %v1771
        %v1812 = vpack.c.b16 %v1776, %v1774
        %v1813 = vpack.c.b16 %v1777, %v1775
        %v1814 = vpack.c.b16 %v1780, %v1778
        %v1815 = vpack.c.b16 %v1781, %v1779
        %v1816 = vpack.c.b16 %v1784, %v1782
        %v1817 = vpack.c.b16 %v1785, %v1783
        %1850 = vmatpush.bf16.msra.mxu0 %v1800
        %1851 = vmatpush.bf16.msra.mxu0 %v1798
        %1852 = vmatpush.bf16.msra.mxu0 %v1796
        %1853 = vmatpush.bf16.msra.mxu0 %v1794
        %1854 = vmatpush.bf16.msra.mxu0 %v1792
        %1855 = vmatpush.bf16.msra.mxu0 %v1790
        %1856 = vmatpush.bf16.msra.mxu0 %v1788
        %1857 = vmatpush.bf16.msra.mxu0 %v1786
        %1858 = vmatmul.bf16.gmra.mxu0 %v1674
        %v1859 = vpop.f32.mrf.mxu0
        %v1860 = vadd.f32 0.0, %v1859
        %v1861 = vpop.f32.mrf.mxu0
        %v1862 = vadd.f32 0.0, %v1861
        %1863 = vmatmul.bf16.gmra.mxu0 %v1676
        %v1864 = vpop.f32.mrf.mxu0
        %v1865 = vadd.f32 0.0, %v1864
        %v1866 = vpop.f32.mrf.mxu0
        %v1867 = vadd.f32 0.0, %v1866
        %1868 = vmatmul.bf16.gmra.mxu0 %v1678
        %v1869 = vpop.f32.mrf.mxu0
        %v1870 = vadd.f32 0.0, %v1869
        %v1871 = vpop.f32.mrf.mxu0
        %v1872 = vadd.f32 0.0, %v1871
        %1873 = vmatmul.bf16.gmra.mxu0 %v1680
        %v1874 = vpop.f32.mrf.mxu0
        %v1875 = vadd.f32 0.0, %v1874
        %v1876 = vpop.f32.mrf.mxu0
        %v1877 = vadd.f32 0.0, %v1876
        %1878 = vdwg.mxu0
        %1879 = vmatpush.bf16.msra.mxu0 %v1816
        %1880 = vmatpush.bf16.msra.mxu0 %v1814
        %1881 = vmatpush.bf16.msra.mxu0 %v1812
        %1882 = vmatpush.bf16.msra.mxu0 %v1810
        %1883 = vmatpush.bf16.msra.mxu0 %v1808
        %1884 = vmatpush.bf16.msra.mxu0 %v1806
        %1885 = vmatpush.bf16.msra.mxu0 %v1804
        %1886 = vmatpush.bf16.msra.mxu0 %v1802
        %1887 = vmatmul.bf16.gmra.mxu0 %v1675
        %v1888 = vpop.f32.mrf.mxu0
        %v1889 = vadd.f32 %v1860, %v1888
        %v1890 = vpop.f32.mrf.mxu0
        %v1891 = vadd.f32 %v1862, %v1890
        %1892 = vmatmul.bf16.gmra.mxu0 %v1677
        %v1893 = vpop.f32.mrf.mxu0
        %v1894 = vadd.f32 %v1865, %v1893
        %v1895 = vpop.f32.mrf.mxu0
        %v1896 = vadd.f32 %v1867, %v1895
        %1897 = vmatmul.bf16.gmra.mxu0 %v1679
        %v1898 = vpop.f32.mrf.mxu0
        %v1899 = vadd.f32 %v1870, %v1898
        %v1900 = vpop.f32.mrf.mxu0
        %v1901 = vadd.f32 %v1872, %v1900
        %1902 = vmatmul.bf16.gmra.mxu0 %v1681
        %v1903 = vpop.f32.mrf.mxu0
        %v1904 = vadd.f32 %v1875, %v1903
        %v1905 = vpop.f32.mrf.mxu0
        %v1906 = vadd.f32 %v1877, %v1905
        %1907 = vdwg.mxu0
        %1908 = vmatpush.bf16.msra.mxu0 %v1801
        %1909 = vmatpush.bf16.msra.mxu0 %v1799
        %1910 = vmatpush.bf16.msra.mxu0 %v1797
        %1911 = vmatpush.bf16.msra.mxu0 %v1795
        %1912 = vmatpush.bf16.msra.mxu0 %v1793
        %1913 = vmatpush.bf16.msra.mxu0 %v1791
        %1914 = vmatpush.bf16.msra.mxu0 %v1789
        %1915 = vmatpush.bf16.msra.mxu0 %v1787
        %1916 = vmatmul.bf16.gmra.mxu0 %v1674
        %v1917 = vpop.f32.mrf.mxu0
        %v1918 = vadd.f32 0.0, %v1917
        %v1919 = vpop.f32.mrf.mxu0
        %v1920 = vadd.f32 0.0, %v1919
        %1921 = vmatmul.bf16.gmra.mxu0 %v1676
        %v1922 = vpop.f32.mrf.mxu0
        %v1923 = vadd.f32 0.0, %v1922
        %v1924 = vpop.f32.mrf.mxu0
        %v1925 = vadd.f32 0.0, %v1924
        %1926 = vmatmul.bf16.gmra.mxu0 %v1678
        %v1927 = vpop.f32.mrf.mxu0
        %v1928 = vadd.f32 0.0, %v1927
        %v1929 = vpop.f32.mrf.mxu0
        %v1930 = vadd.f32 0.0, %v1929
        %1931 = vmatmul.bf16.gmra.mxu0 %v1680
        %v1932 = vpop.f32.mrf.mxu0
        %v1933 = vadd.f32 0.0, %v1932
        %v1934 = vpop.f32.mrf.mxu0
        %v1935 = vadd.f32 0.0, %v1934
        %1936 = vdwg.mxu0
        %1937 = vmatpush.bf16.msra.mxu0 %v1817
        %1938 = vmatpush.bf16.msra.mxu0 %v1815
        %1939 = vmatpush.bf16.msra.mxu0 %v1813
        %1940 = vmatpush.bf16.msra.mxu0 %v1811
        %1941 = vmatpush.bf16.msra.mxu0 %v1809
        %1942 = vmatpush.bf16.msra.mxu0 %v1807
        %1943 = vmatpush.bf16.msra.mxu0 %v1805
        %1944 = vmatpush.bf16.msra.mxu0 %v1803
        %1945 = vmatmul.bf16.gmra.mxu0 %v1675
        %v1946 = vpop.f32.mrf.mxu0
        %v1947 = vadd.f32 %v1918, %v1946
        %v1948 = vpop.f32.mrf.mxu0
        %v1949 = vadd.f32 %v1920, %v1948
        %1950 = vmatmul.bf16.gmra.mxu0 %v1677
        %v1951 = vpop.f32.mrf.mxu0
        %v1952 = vadd.f32 %v1923, %v1951
        %v1953 = vpop.f32.mrf.mxu0
        %v1954 = vadd.f32 %v1925, %v1953
        %1955 = vmatmul.bf16.gmra.mxu0 %v1679
        %v1956 = vpop.f32.mrf.mxu0
        %v1957 = vadd.f32 %v1928, %v1956
        %v1958 = vpop.f32.mrf.mxu0
        %v1959 = vadd.f32 %v1930, %v1958
        %1960 = vmatmul.bf16.gmra.mxu0 %v1681
        %v1961 = vpop.f32.mrf.mxu0
        %v1962 = vadd.f32 %v1933, %v1961
        %v1963 = vpop.f32.mrf.mxu0
        %v1964 = vadd.f32 %v1935, %v1963
        %1965 = vdwg.mxu0
        %v1966 = vadd.f32 %v1593, %v1889
        %v1967 = vadd.f32 %v1594, %v1947
        %v1968 = vadd.f32 %v1595, %v1891
        %v1969 = vadd.f32 %v1596, %v1949
        %v1970 = vadd.f32 %v1597, %v1894
        %v1971 = vadd.f32 %v1598, %v1952
        %v1972 = vadd.f32 %v1599, %v1896
        %v1973 = vadd.f32 %v1600, %v1954
        %v1974 = vadd.f32 %v1601, %v1899
        %v1975 = vadd.f32 %v1602, %v1957
        %v1976 = vadd.f32 %v1603, %v1901
        %v1977 = vadd.f32 %v1604, %v1959
        %v1978 = vadd.f32 %v1605, %v1904
        %v1979 = vadd.f32 %v1606, %v1962
        %v1980 = vadd.f32 %v1607, %v1906
        %v1981 = vadd.f32 %v1608, %v1964
        %v1982 = vld [vmem:[%s310] sm:$0xff]
        %v1983 = vld [vmem:[%s310 + $0x8] sm:$0x11]
        %v1984 = vld [vmem:[%s310 + $0x10] sm:$0xff]
        %v1985 = vld [vmem:[%s310 + $0x18] sm:$0x11]
        %v1986 = vld [vmem:[%s310 + $0x20] sm:$0xff]
        %v1987 = vld [vmem:[%s310 + $0x28] sm:$0x11]
        %v1988 = vld [vmem:[%s310 + $0x30] sm:$0xff]
        %v1989 = vld [vmem:[%s310 + $0x38] sm:$0x11]
        %v1990 = vld [vmem:[%s310 + $0x40] sm:$0xff]
        %v1991 = vld [vmem:[%s310 + $0x48] sm:$0x11]
        %v1992 = vld [vmem:[%s310 + $0x50] sm:$0xff]
        %v1993 = vld [vmem:[%s310 + $0x58] sm:$0x11]
        %v1994 = vld [vmem:[%s310 + $0x60] sm:$0xff]
        %v1995 = vld [vmem:[%s310 + $0x68] sm:$0x11]
        %v1996 = vld [vmem:[%s310 + $0x70] sm:$0xff]
        %v1997 = vld [vmem:[%s310 + $0x78] sm:$0x11]
        %v1999 = vshrl.u32 %v1982, 16
        %v2001 = vrot.slane %v1999, 4
        %v2002 = vshll.u32 %v1982, 16
        %v2004 = vrot.slane %v2002, 5
        %v2005 = vor.u32 %v2001, %v2004
        %v2006 = vrot.slane %v2005, 4
        %v2008 = vshll.u32 %v1983, 16
        %v2010 = vrot.slane %v2008, 5
        %v2011 = vsel %vm423, %v2006, %v2010
        %v2013 = vshrl.u32 %v1984, 16
        %v2015 = vrot.slane %v2013, 4
        %v2016 = vshll.u32 %v1984, 16
        %v2018 = vrot.slane %v2016, 5
        %v2019 = vor.u32 %v2015, %v2018
        %v2020 = vrot.slane %v2019, 4
        %v2022 = vshll.u32 %v1985, 16
        %v2024 = vrot.slane %v2022, 5
        %v2025 = vsel %vm423, %v2020, %v2024
        %v2027 = vshrl.u32 %v1986, 16
        %v2029 = vrot.slane %v2027, 4
        %v2030 = vshll.u32 %v1986, 16
        %v2032 = vrot.slane %v2030, 5
        %v2033 = vor.u32 %v2029, %v2032
        %v2034 = vrot.slane %v2033, 4
        %v2036 = vshll.u32 %v1987, 16
        %v2038 = vrot.slane %v2036, 5
        %v2039 = vsel %vm423, %v2034, %v2038
        %v2041 = vshrl.u32 %v1988, 16
        %v2043 = vrot.slane %v2041, 4
        %v2044 = vshll.u32 %v1988, 16
        %v2046 = vrot.slane %v2044, 5
        %v2047 = vor.u32 %v2043, %v2046
        %v2048 = vrot.slane %v2047, 4
        %v2050 = vshll.u32 %v1989, 16
        %v2052 = vrot.slane %v2050, 5
        %v2053 = vsel %vm423, %v2048, %v2052
        %v2055 = vshrl.u32 %v1990, 16
        %v2057 = vrot.slane %v2055, 4
        %v2058 = vshll.u32 %v1990, 16
        %v2060 = vrot.slane %v2058, 5
        %v2061 = vor.u32 %v2057, %v2060
        %v2062 = vrot.slane %v2061, 4
        %v2064 = vshll.u32 %v1991, 16
        %v2066 = vrot.slane %v2064, 5
        %v2067 = vsel %vm423, %v2062, %v2066
        %v2069 = vshrl.u32 %v1992, 16
        %v2071 = vrot.slane %v2069, 4
        %v2072 = vshll.u32 %v1992, 16
        %v2074 = vrot.slane %v2072, 5
        %v2075 = vor.u32 %v2071, %v2074
        %v2076 = vrot.slane %v2075, 4
        %v2078 = vshll.u32 %v1993, 16
        %v2080 = vrot.slane %v2078, 5
        %v2081 = vsel %vm423, %v2076, %v2080
        %v2083 = vshrl.u32 %v1994, 16
        %v2085 = vrot.slane %v2083, 4
        %v2086 = vshll.u32 %v1994, 16
        %v2088 = vrot.slane %v2086, 5
        %v2089 = vor.u32 %v2085, %v2088
        %v2090 = vrot.slane %v2089, 4
        %v2092 = vshll.u32 %v1995, 16
        %v2094 = vrot.slane %v2092, 5
        %v2095 = vsel %vm423, %v2090, %v2094
        %v2097 = vshrl.u32 %v1996, 16
        %v2099 = vrot.slane %v2097, 4
        %v2100 = vshll.u32 %v1996, 16
        %v2102 = vrot.slane %v2100, 5
        %v2103 = vor.u32 %v2099, %v2102
        %v2104 = vrot.slane %v2103, 4
        %v2106 = vshll.u32 %v1997, 16
        %v2108 = vrot.slane %v2106, 5
        %v2109 = vsel %vm423, %v2104, %v2108
        %s2110 = scalar_lea.vmem [#allocation3], 1024
        %v2111 = vld [vmem:[%s2110] sm:$0xff]
        %v2112 = vld [vmem:[%s2110 + $0x8] sm:$0xff]
        %v2113 = vld [vmem:[%s2110 + $0x10] sm:$0xff]
        %v2114 = vld [vmem:[%s2110 + $0x18] sm:$0xff]
        %v2115 = vld [vmem:[%s2110 + $0x20] sm:$0xff]
        %v2116 = vld [vmem:[%s2110 + $0x28] sm:$0xff]
        %v2117 = vld [vmem:[%s2110 + $0x30] sm:$0xff]
        %v2118 = vld [vmem:[%s2110 + $0x38] sm:$0xff]
        %v2119 = vld [vmem:[%s2110 + $0x40] sm:$0xff]
        %v2120 = vld [vmem:[%s2110 + $0x48] sm:$0xff]
        %v2121 = vld [vmem:[%s2110 + $0x50] sm:$0xff]
        %v2122 = vld [vmem:[%s2110 + $0x58] sm:$0xff]
        %v2123 = vld [vmem:[%s2110 + $0x60] sm:$0xff]
        %v2124 = vld [vmem:[%s2110 + $0x68] sm:$0xff]
        %v2125 = vld [vmem:[%s2110 + $0x70] sm:$0xff]
        %v2126 = vld [vmem:[%s2110 + $0x78] sm:$0xff]
        %v2127 = vld [vmem:[%s2110 + $0x80] sm:$0xff]
        %v2128 = vld [vmem:[%s2110 + $0x88] sm:$0xff]
        %v2129 = vld [vmem:[%s2110 + $0x90] sm:$0xff]
        %v2130 = vld [vmem:[%s2110 + $0x98] sm:$0xff]
        %v2131 = vld [vmem:[%s2110 + $0xa0] sm:$0xff]
        %v2132 = vld [vmem:[%s2110 + $0xa8] sm:$0xff]
        %v2133 = vld [vmem:[%s2110 + $0xb0] sm:$0xff]
        %v2134 = vld [vmem:[%s2110 + $0xb8] sm:$0xff]
        %v2135 = vld [vmem:[%s2110 + $0xc0] sm:$0xff]
        %v2136 = vld [vmem:[%s2110 + $0xc8] sm:$0xff]
        %v2137 = vld [vmem:[%s2110 + $0xd0] sm:$0xff]
        %v2138 = vld [vmem:[%s2110 + $0xd8] sm:$0xff]
        %v2139 = vld [vmem:[%s2110 + $0xe0] sm:$0xff]
        %v2140 = vld [vmem:[%s2110 + $0xe8] sm:$0xff]
        %v2141 = vld [vmem:[%s2110 + $0xf0] sm:$0xff]
        %v2142 = vld [vmem:[%s2110 + $0xf8] sm:$0xff]
        %v2143 = vunpack.c.l.b16 %v2011
        %v2144 = vunpack.c.h.b16 %v2011
        %v2145 = vunpack.c.l.b16 %v2025
        %v2146 = vunpack.c.h.b16 %v2025
        %v2147 = vunpack.c.l.b16 %v2039
        %v2148 = vunpack.c.h.b16 %v2039
        %v2149 = vunpack.c.l.b16 %v2053
        %v2150 = vunpack.c.h.b16 %v2053
        %v2151 = vunpack.c.l.b16 %v2067
        %v2152 = vunpack.c.h.b16 %v2067
        %v2153 = vunpack.c.l.b16 %v2081
        %v2154 = vunpack.c.h.b16 %v2081
        %v2155 = vunpack.c.l.b16 %v2095
        %v2156 = vunpack.c.h.b16 %v2095
        %v2157 = vunpack.c.l.b16 %v2109
        %v2158 = vunpack.c.h.b16 %v2109
        %v2159 = vpack.c.b16 %v2145, %v2143
        %v2160 = vpack.c.b16 %v2146, %v2144
        %v2161 = vpack.c.b16 %v2149, %v2147
        %v2162 = vpack.c.b16 %v2150, %v2148
        %v2163 = vpack.c.b16 %v2153, %v2151
        %v2164 = vpack.c.b16 %v2154, %v2152
        %v2165 = vpack.c.b16 %v2157, %v2155
        %v2166 = vpack.c.b16 %v2158, %v2156
        %v2207 = vunpack.c.l.b16 %v2111
        %v2208 = vunpack.c.h.b16 %v2111
        %v2209 = vunpack.c.l.b16 %v2112
        %v2210 = vunpack.c.h.b16 %v2112
        %v2211 = vunpack.c.l.b16 %v2113
        %v2212 = vunpack.c.h.b16 %v2113
        %v2213 = vunpack.c.l.b16 %v2114
        %v2214 = vunpack.c.h.b16 %v2114
        %v2215 = vunpack.c.l.b16 %v2115
        %v2216 = vunpack.c.h.b16 %v2115
        %v2217 = vunpack.c.l.b16 %v2116
        %v2218 = vunpack.c.h.b16 %v2116
        %v2219 = vunpack.c.l.b16 %v2117
        %v2220 = vunpack.c.h.b16 %v2117
        %v2221 = vunpack.c.l.b16 %v2118
        %v2222 = vunpack.c.h.b16 %v2118
        %v2223 = vunpack.c.l.b16 %v2119
        %v2224 = vunpack.c.h.b16 %v2119
        %v2225 = vunpack.c.l.b16 %v2120
        %v2226 = vunpack.c.h.b16 %v2120
        %v2227 = vunpack.c.l.b16 %v2121
        %v2228 = vunpack.c.h.b16 %v2121
        %v2229 = vunpack.c.l.b16 %v2122
        %v2230 = vunpack.c.h.b16 %v2122
        %v2231 = vunpack.c.l.b16 %v2123
        %v2232 = vunpack.c.h.b16 %v2123
        %v2233 = vunpack.c.l.b16 %v2124
        %v2234 = vunpack.c.h.b16 %v2124
        %v2235 = vunpack.c.l.b16 %v2125
        %v2236 = vunpack.c.h.b16 %v2125
        %v2237 = vunpack.c.l.b16 %v2126
        %v2238 = vunpack.c.h.b16 %v2126
        %v2239 = vunpack.c.l.b16 %v2127
        %v2240 = vunpack.c.h.b16 %v2127
        %v2241 = vunpack.c.l.b16 %v2128
        %v2242 = vunpack.c.h.b16 %v2128
        %v2243 = vunpack.c.l.b16 %v2129
        %v2244 = vunpack.c.h.b16 %v2129
        %v2245 = vunpack.c.l.b16 %v2130
        %v2246 = vunpack.c.h.b16 %v2130
        %v2247 = vunpack.c.l.b16 %v2131
        %v2248 = vunpack.c.h.b16 %v2131
        %v2249 = vunpack.c.l.b16 %v2132
        %v2250 = vunpack.c.h.b16 %v2132
        %v2251 = vunpack.c.l.b16 %v2133
        %v2252 = vunpack.c.h.b16 %v2133
        %v2253 = vunpack.c.l.b16 %v2134
        %v2254 = vunpack.c.h.b16 %v2134
        %v2255 = vunpack.c.l.b16 %v2135
        %v2256 = vunpack.c.h.b16 %v2135
        %v2257 = vunpack.c.l.b16 %v2136
        %v2258 = vunpack.c.h.b16 %v2136
        %v2259 = vunpack.c.l.b16 %v2137
        %v2260 = vunpack.c.h.b16 %v2137
        %v2261 = vunpack.c.l.b16 %v2138
        %v2262 = vunpack.c.h.b16 %v2138
        %v2263 = vunpack.c.l.b16 %v2139
        %v2264 = vunpack.c.h.b16 %v2139
        %v2265 = vunpack.c.l.b16 %v2140
        %v2266 = vunpack.c.h.b16 %v2140
        %v2267 = vunpack.c.l.b16 %v2141
        %v2268 = vunpack.c.h.b16 %v2141
        %v2269 = vunpack.c.l.b16 %v2142
        %v2270 = vunpack.c.h.b16 %v2142
        %v2271 = vpack.c.b16 %v2209, %v2207
        %v2272 = vpack.c.b16 %v2210, %v2208
        %v2273 = vpack.c.b16 %v2213, %v2211
        %v2274 = vpack.c.b16 %v2214, %v2212
        %v2275 = vpack.c.b16 %v2217, %v2215
        %v2276 = vpack.c.b16 %v2218, %v2216
        %v2277 = vpack.c.b16 %v2221, %v2219
        %v2278 = vpack.c.b16 %v2222, %v2220
        %v2279 = vpack.c.b16 %v2225, %v2223
        %v2280 = vpack.c.b16 %v2226, %v2224
        %v2281 = vpack.c.b16 %v2229, %v2227
        %v2282 = vpack.c.b16 %v2230, %v2228
        %v2283 = vpack.c.b16 %v2233, %v2231
        %v2284 = vpack.c.b16 %v2234, %v2232
        %v2285 = vpack.c.b16 %v2237, %v2235
        %v2286 = vpack.c.b16 %v2238, %v2236
        %v2287 = vpack.c.b16 %v2241, %v2239
        %v2288 = vpack.c.b16 %v2242, %v2240
        %v2289 = vpack.c.b16 %v2245, %v2243
        %v2290 = vpack.c.b16 %v2246, %v2244
        %v2291 = vpack.c.b16 %v2249, %v2247
        %v2292 = vpack.c.b16 %v2250, %v2248
        %v2293 = vpack.c.b16 %v2253, %v2251
        %v2294 = vpack.c.b16 %v2254, %v2252
        %v2295 = vpack.c.b16 %v2257, %v2255
        %v2296 = vpack.c.b16 %v2258, %v2256
        %v2297 = vpack.c.b16 %v2261, %v2259
        %v2298 = vpack.c.b16 %v2262, %v2260
        %v2299 = vpack.c.b16 %v2265, %v2263
        %v2300 = vpack.c.b16 %v2266, %v2264
        %v2301 = vpack.c.b16 %v2269, %v2267
        %v2302 = vpack.c.b16 %v2270, %v2268
        %2335 = vmatpush.bf16.msra.mxu0 %v2285
        %2336 = vmatpush.bf16.msra.mxu0 %v2283
        %2337 = vmatpush.bf16.msra.mxu0 %v2281
        %2338 = vmatpush.bf16.msra.mxu0 %v2279
        %2339 = vmatpush.bf16.msra.mxu0 %v2277
        %2340 = vmatpush.bf16.msra.mxu0 %v2275
        %2341 = vmatpush.bf16.msra.mxu0 %v2273
        %2342 = vmatpush.bf16.msra.mxu0 %v2271
        %2343 = vmatmul.bf16.gmra.mxu0 %v2159
        %v2344 = vpop.f32.mrf.mxu0
        %v2345 = vadd.f32 0.0, %v2344
        %v2346 = vpop.f32.mrf.mxu0
        %v2347 = vadd.f32 0.0, %v2346
        %2348 = vmatmul.bf16.gmra.mxu0 %v2161
        %v2349 = vpop.f32.mrf.mxu0
        %v2350 = vadd.f32 0.0, %v2349
        %v2351 = vpop.f32.mrf.mxu0
        %v2352 = vadd.f32 0.0, %v2351
        %2353 = vmatmul.bf16.gmra.mxu0 %v2163
        %v2354 = vpop.f32.mrf.mxu0
        %v2355 = vadd.f32 0.0, %v2354
        %v2356 = vpop.f32.mrf.mxu0
        %v2357 = vadd.f32 0.0, %v2356
        %2358 = vmatmul.bf16.gmra.mxu0 %v2165
        %v2359 = vpop.f32.mrf.mxu0
        %v2360 = vadd.f32 0.0, %v2359
        %v2361 = vpop.f32.mrf.mxu0
        %v2362 = vadd.f32 0.0, %v2361
        %2363 = vdwg.mxu0
        %2364 = vmatpush.bf16.msra.mxu0 %v2301
        %2365 = vmatpush.bf16.msra.mxu0 %v2299
        %2366 = vmatpush.bf16.msra.mxu0 %v2297
        %2367 = vmatpush.bf16.msra.mxu0 %v2295
        %2368 = vmatpush.bf16.msra.mxu0 %v2293
        %2369 = vmatpush.bf16.msra.mxu0 %v2291
        %2370 = vmatpush.bf16.msra.mxu0 %v2289
        %2371 = vmatpush.bf16.msra.mxu0 %v2287
        %2372 = vmatmul.bf16.gmra.mxu0 %v2160
        %v2373 = vpop.f32.mrf.mxu0
        %v2374 = vadd.f32 %v2345, %v2373
        %v2375 = vpop.f32.mrf.mxu0
        %v2376 = vadd.f32 %v2347, %v2375
        %2377 = vmatmul.bf16.gmra.mxu0 %v2162
        %v2378 = vpop.f32.mrf.mxu0
        %v2379 = vadd.f32 %v2350, %v2378
        %v2380 = vpop.f32.mrf.mxu0
        %v2381 = vadd.f32 %v2352, %v2380
        %2382 = vmatmul.bf16.gmra.mxu0 %v2164
        %v2383 = vpop.f32.mrf.mxu0
        %v2384 = vadd.f32 %v2355, %v2383
        %v2385 = vpop.f32.mrf.mxu0
        %v2386 = vadd.f32 %v2357, %v2385
        %2387 = vmatmul.bf16.gmra.mxu0 %v2166
        %v2388 = vpop.f32.mrf.mxu0
        %v2389 = vadd.f32 %v2360, %v2388
        %v2390 = vpop.f32.mrf.mxu0
        %v2391 = vadd.f32 %v2362, %v2390
        %2392 = vdwg.mxu0
        %2393 = vmatpush.bf16.msra.mxu0 %v2286
        %2394 = vmatpush.bf16.msra.mxu0 %v2284
        %2395 = vmatpush.bf16.msra.mxu0 %v2282
        %2396 = vmatpush.bf16.msra.mxu0 %v2280
        %2397 = vmatpush.bf16.msra.mxu0 %v2278
        %2398 = vmatpush.bf16.msra.mxu0 %v2276
        %2399 = vmatpush.bf16.msra.mxu0 %v2274
        %2400 = vmatpush.bf16.msra.mxu0 %v2272
        %2401 = vmatmul.bf16.gmra.mxu0 %v2159
        %v2402 = vpop.f32.mrf.mxu0
        %v2403 = vadd.f32 0.0, %v2402
        %v2404 = vpop.f32.mrf.mxu0
        %v2405 = vadd.f32 0.0, %v2404
        %2406 = vmatmul.bf16.gmra.mxu0 %v2161
        %v2407 = vpop.f32.mrf.mxu0
        %v2408 = vadd.f32 0.0, %v2407
        %v2409 = vpop.f32.mrf.mxu0
        %v2410 = vadd.f32 0.0, %v2409
        %2411 = vmatmul.bf16.gmra.mxu0 %v2163
        %v2412 = vpop.f32.mrf.mxu0
        %v2413 = vadd.f32 0.0, %v2412
        %v2414 = vpop.f32.mrf.mxu0
        %v2415 = vadd.f32 0.0, %v2414
        %2416 = vmatmul.bf16.gmra.mxu0 %v2165
        %v2417 = vpop.f32.mrf.mxu0
        %v2418 = vadd.f32 0.0, %v2417
        %v2419 = vpop.f32.mrf.mxu0
        %v2420 = vadd.f32 0.0, %v2419
        %2421 = vdwg.mxu0
        %2422 = vmatpush.bf16.msra.mxu0 %v2302
        %2423 = vmatpush.bf16.msra.mxu0 %v2300
        %2424 = vmatpush.bf16.msra.mxu0 %v2298
        %2425 = vmatpush.bf16.msra.mxu0 %v2296
        %2426 = vmatpush.bf16.msra.mxu0 %v2294
        %2427 = vmatpush.bf16.msra.mxu0 %v2292
        %2428 = vmatpush.bf16.msra.mxu0 %v2290
        %2429 = vmatpush.bf16.msra.mxu0 %v2288
        %2430 = vmatmul.bf16.gmra.mxu0 %v2160
        %v2431 = vpop.f32.mrf.mxu0
        %v2432 = vadd.f32 %v2403, %v2431
        %v2433 = vpop.f32.mrf.mxu0
        %v2434 = vadd.f32 %v2405, %v2433
        %2435 = vmatmul.bf16.gmra.mxu0 %v2162
        %v2436 = vpop.f32.mrf.mxu0
        %v2437 = vadd.f32 %v2408, %v2436
        %v2438 = vpop.f32.mrf.mxu0
        %v2439 = vadd.f32 %v2410, %v2438
        %2440 = vmatmul.bf16.gmra.mxu0 %v2164
        %v2441 = vpop.f32.mrf.mxu0
        %v2442 = vadd.f32 %v2413, %v2441
        %v2443 = vpop.f32.mrf.mxu0
        %v2444 = vadd.f32 %v2415, %v2443
        %2445 = vmatmul.bf16.gmra.mxu0 %v2166
        %v2446 = vpop.f32.mrf.mxu0
        %v2447 = vadd.f32 %v2418, %v2446
        %v2448 = vpop.f32.mrf.mxu0
        %v2449 = vadd.f32 %v2420, %v2448
        %2450 = vdwg.mxu0
        %v2451 = vadd.f32 %v1966, %v2374
        %v2452 = vadd.f32 %v1967, %v2432
        %v2453 = vadd.f32 %v1968, %v2376
        %v2454 = vadd.f32 %v1969, %v2434
        %v2455 = vadd.f32 %v1970, %v2379
        %v2456 = vadd.f32 %v1971, %v2437
        %v2457 = vadd.f32 %v1972, %v2381
        %v2458 = vadd.f32 %v1973, %v2439
        %v2459 = vadd.f32 %v1974, %v2384
        %v2460 = vadd.f32 %v1975, %v2442
        %v2461 = vadd.f32 %v1976, %v2386
        %v2462 = vadd.f32 %v1977, %v2444
        %v2463 = vadd.f32 %v1978, %v2389
        %v2464 = vadd.f32 %v1979, %v2447
        %v2465 = vadd.f32 %v1980, %v2391
        %v2466 = vadd.f32 %v1981, %v2449
        %v2467 = vld [vmem:[%s310] sm:$0xee]
        %v2468 = vld [vmem:[%s310 + $0x10] sm:$0xee]
        %v2469 = vld [vmem:[%s310 + $0x20] sm:$0xee]
        %v2470 = vld [vmem:[%s310 + $0x30] sm:$0xee]
        %v2471 = vld [vmem:[%s310 + $0x40] sm:$0xee]
        %v2472 = vld [vmem:[%s310 + $0x50] sm:$0xee]
        %v2473 = vld [vmem:[%s310 + $0x60] sm:$0xee]
        %v2474 = vld [vmem:[%s310 + $0x70] sm:$0xee]
        %v2491 = vrot.slane %v2467, 5
        %v2492 = vrot.slane %v2491, 4
        %v2493 = vrot.slane %v1983, 5
        %v2494 = vsel %vm1219, %v2492, %v2493
        %v2495 = vrot.slane %v2468, 5
        %v2496 = vrot.slane %v2495, 4
        %v2497 = vrot.slane %v1985, 5
        %v2498 = vsel %vm1219, %v2496, %v2497
        %v2499 = vrot.slane %v2469, 5
        %v2500 = vrot.slane %v2499, 4
        %v2501 = vrot.slane %v1987, 5
        %v2502 = vsel %vm1219, %v2500, %v2501
        %v2503 = vrot.slane %v2470, 5
        %v2504 = vrot.slane %v2503, 4
        %v2505 = vrot.slane %v1989, 5
        %v2506 = vsel %vm1219, %v2504, %v2505
        %v2507 = vrot.slane %v2471, 5
        %v2508 = vrot.slane %v2507, 4
        %v2509 = vrot.slane %v1991, 5
        %v2510 = vsel %vm1219, %v2508, %v2509
        %v2511 = vrot.slane %v2472, 5
        %v2512 = vrot.slane %v2511, 4
        %v2513 = vrot.slane %v1993, 5
        %v2514 = vsel %vm1219, %v2512, %v2513
        %v2515 = vrot.slane %v2473, 5
        %v2516 = vrot.slane %v2515, 4
        %v2517 = vrot.slane %v1995, 5
        %v2518 = vsel %vm1219, %v2516, %v2517
        %v2519 = vrot.slane %v2474, 5
        %v2520 = vrot.slane %v2519, 4
        %v2521 = vrot.slane %v1997, 5
        %v2522 = vsel %vm1219, %v2520, %v2521
        %s2523 = scalar_lea.vmem [#allocation3], 1280
        %v2524 = vld [vmem:[%s2523] sm:$0xff]
        %v2525 = vld [vmem:[%s2523 + $0x8] sm:$0xff]
        %v2526 = vld [vmem:[%s2523 + $0x10] sm:$0xff]
        %v2527 = vld [vmem:[%s2523 + $0x18] sm:$0xff]
        %v2528 = vld [vmem:[%s2523 + $0x20] sm:$0xff]
        %v2529 = vld [vmem:[%s2523 + $0x28] sm:$0xff]
        %v2530 = vld [vmem:[%s2523 + $0x30] sm:$0xff]
        %v2531 = vld [vmem:[%s2523 + $0x38] sm:$0xff]
        %v2532 = vld [vmem:[%s2523 + $0x40] sm:$0xff]
        %v2533 = vld [vmem:[%s2523 + $0x48] sm:$0xff]
        %v2534 = vld [vmem:[%s2523 + $0x50] sm:$0xff]
        %v2535 = vld [vmem:[%s2523 + $0x58] sm:$0xff]
        %v2536 = vld [vmem:[%s2523 + $0x60] sm:$0xff]
        %v2537 = vld [vmem:[%s2523 + $0x68] sm:$0xff]
        %v2538 = vld [vmem:[%s2523 + $0x70] sm:$0xff]
        %v2539 = vld [vmem:[%s2523 + $0x78] sm:$0xff]
        %v2540 = vld [vmem:[%s2523 + $0x80] sm:$0xff]
        %v2541 = vld [vmem:[%s2523 + $0x88] sm:$0xff]
        %v2542 = vld [vmem:[%s2523 + $0x90] sm:$0xff]
        %v2543 = vld [vmem:[%s2523 + $0x98] sm:$0xff]
        %v2544 = vld [vmem:[%s2523 + $0xa0] sm:$0xff]
        %v2545 = vld [vmem:[%s2523 + $0xa8] sm:$0xff]
        %v2546 = vld [vmem:[%s2523 + $0xb0] sm:$0xff]
        %v2547 = vld [vmem:[%s2523 + $0xb8] sm:$0xff]
        %v2548 = vld [vmem:[%s2523 + $0xc0] sm:$0xff]
        %v2549 = vld [vmem:[%s2523 + $0xc8] sm:$0xff]
        %v2550 = vld [vmem:[%s2523 + $0xd0] sm:$0xff]
        %v2551 = vld [vmem:[%s2523 + $0xd8] sm:$0xff]
        %v2552 = vld [vmem:[%s2523 + $0xe0] sm:$0xff]
        %v2553 = vld [vmem:[%s2523 + $0xe8] sm:$0xff]
        %v2554 = vld [vmem:[%s2523 + $0xf0] sm:$0xff]
        %v2555 = vld [vmem:[%s2523 + $0xf8] sm:$0xff]
        %v2556 = vunpack.c.l.b16 %v2494
        %v2557 = vunpack.c.h.b16 %v2494
        %v2558 = vunpack.c.l.b16 %v2498
        %v2559 = vunpack.c.h.b16 %v2498
        %v2560 = vunpack.c.l.b16 %v2502
        %v2561 = vunpack.c.h.b16 %v2502
        %v2562 = vunpack.c.l.b16 %v2506
        %v2563 = vunpack.c.h.b16 %v2506
        %v2564 = vunpack.c.l.b16 %v2510
        %v2565 = vunpack.c.h.b16 %v2510
        %v2566 = vunpack.c.l.b16 %v2514
        %v2567 = vunpack.c.h.b16 %v2514
        %v2568 = vunpack.c.l.b16 %v2518
        %v2569 = vunpack.c.h.b16 %v2518
        %v2570 = vunpack.c.l.b16 %v2522
        %v2571 = vunpack.c.h.b16 %v2522
        %v2572 = vpack.c.b16 %v2558, %v2556
        %v2573 = vpack.c.b16 %v2559, %v2557
        %v2574 = vpack.c.b16 %v2562, %v2560
        %v2575 = vpack.c.b16 %v2563, %v2561
        %v2576 = vpack.c.b16 %v2566, %v2564
        %v2577 = vpack.c.b16 %v2567, %v2565
        %v2578 = vpack.c.b16 %v2570, %v2568
        %v2579 = vpack.c.b16 %v2571, %v2569
        %v2620 = vunpack.c.l.b16 %v2524
        %v2621 = vunpack.c.h.b16 %v2524
        %v2622 = vunpack.c.l.b16 %v2525
        %v2623 = vunpack.c.h.b16 %v2525
        %v2624 = vunpack.c.l.b16 %v2526
        %v2625 = vunpack.c.h.b16 %v2526
        %v2626 = vunpack.c.l.b16 %v2527
        %v2627 = vunpack.c.h.b16 %v2527
        %v2628 = vunpack.c.l.b16 %v2528
        %v2629 = vunpack.c.h.b16 %v2528
        %v2630 = vunpack.c.l.b16 %v2529
        %v2631 = vunpack.c.h.b16 %v2529
        %v2632 = vunpack.c.l.b16 %v2530
        %v2633 = vunpack.c.h.b16 %v2530
        %v2634 = vunpack.c.l.b16 %v2531
        %v2635 = vunpack.c.h.b16 %v2531
        %v2636 = vunpack.c.l.b16 %v2532
        %v2637 = vunpack.c.h.b16 %v2532
        %v2638 = vunpack.c.l.b16 %v2533
        %v2639 = vunpack.c.h.b16 %v2533
        %v2640 = vunpack.c.l.b16 %v2534
        %v2641 = vunpack.c.h.b16 %v2534
        %v2642 = vunpack.c.l.b16 %v2535
        %v2643 = vunpack.c.h.b16 %v2535
        %v2644 = vunpack.c.l.b16 %v2536
        %v2645 = vunpack.c.h.b16 %v2536
        %v2646 = vunpack.c.l.b16 %v2537
        %v2647 = vunpack.c.h.b16 %v2537
        %v2648 = vunpack.c.l.b16 %v2538
        %v2649 = vunpack.c.h.b16 %v2538
        %v2650 = vunpack.c.l.b16 %v2539
        %v2651 = vunpack.c.h.b16 %v2539
        %v2652 = vunpack.c.l.b16 %v2540
        %v2653 = vunpack.c.h.b16 %v2540
        %v2654 = vunpack.c.l.b16 %v2541
        %v2655 = vunpack.c.h.b16 %v2541
        %v2656 = vunpack.c.l.b16 %v2542
        %v2657 = vunpack.c.h.b16 %v2542
        %v2658 = vunpack.c.l.b16 %v2543
        %v2659 = vunpack.c.h.b16 %v2543
        %v2660 = vunpack.c.l.b16 %v2544
        %v2661 = vunpack.c.h.b16 %v2544
        %v2662 = vunpack.c.l.b16 %v2545
        %v2663 = vunpack.c.h.b16 %v2545
        %v2664 = vunpack.c.l.b16 %v2546
        %v2665 = vunpack.c.h.b16 %v2546
        %v2666 = vunpack.c.l.b16 %v2547
        %v2667 = vunpack.c.h.b16 %v2547
        %v2668 = vunpack.c.l.b16 %v2548
        %v2669 = vunpack.c.h.b16 %v2548
        %v2670 = vunpack.c.l.b16 %v2549
        %v2671 = vunpack.c.h.b16 %v2549
        %v2672 = vunpack.c.l.b16 %v2550
        %v2673 = vunpack.c.h.b16 %v2550
        %v2674 = vunpack.c.l.b16 %v2551
        %v2675 = vunpack.c.h.b16 %v2551
        %v2676 = vunpack.c.l.b16 %v2552
        %v2677 = vunpack.c.h.b16 %v2552
        %v2678 = vunpack.c.l.b16 %v2553
        %v2679 = vunpack.c.h.b16 %v2553
        %v2680 = vunpack.c.l.b16 %v2554
        %v2681 = vunpack.c.h.b16 %v2554
        %v2682 = vunpack.c.l.b16 %v2555
        %v2683 = vunpack.c.h.b16 %v2555
        %v2684 = vpack.c.b16 %v2622, %v2620
        %v2685 = vpack.c.b16 %v2623, %v2621
        %v2686 = vpack.c.b16 %v2626, %v2624
        %v2687 = vpack.c.b16 %v2627, %v2625
        %v2688 = vpack.c.b16 %v2630, %v2628
        %v2689 = vpack.c.b16 %v2631, %v2629
        %v2690 = vpack.c.b16 %v2634, %v2632
        %v2691 = vpack.c.b16 %v2635, %v2633
        %v2692 = vpack.c.b16 %v2638, %v2636
        %v2693 = vpack.c.b16 %v2639, %v2637
        %v2694 = vpack.c.b16 %v2642, %v2640
        %v2695 = vpack.c.b16 %v2643, %v2641
        %v2696 = vpack.c.b16 %v2646, %v2644
        %v2697 = vpack.c.b16 %v2647, %v2645
        %v2698 = vpack.c.b16 %v2650, %v2648
        %v2699 = vpack.c.b16 %v2651, %v2649
        %v2700 = vpack.c.b16 %v2654, %v2652
        %v2701 = vpack.c.b16 %v2655, %v2653
        %v2702 = vpack.c.b16 %v2658, %v2656
        %v2703 = vpack.c.b16 %v2659, %v2657
        %v2704 = vpack.c.b16 %v2662, %v2660
        %v2705 = vpack.c.b16 %v2663, %v2661
        %v2706 = vpack.c.b16 %v2666, %v2664
        %v2707 = vpack.c.b16 %v2667, %v2665
        %v2708 = vpack.c.b16 %v2670, %v2668
        %v2709 = vpack.c.b16 %v2671, %v2669
        %v2710 = vpack.c.b16 %v2674, %v2672
        %v2711 = vpack.c.b16 %v2675, %v2673
        %v2712 = vpack.c.b16 %v2678, %v2676
        %v2713 = vpack.c.b16 %v2679, %v2677
        %v2714 = vpack.c.b16 %v2682, %v2680
        %v2715 = vpack.c.b16 %v2683, %v2681
        %2748 = vmatpush.bf16.msra.mxu0 %v2698
        %2749 = vmatpush.bf16.msra.mxu0 %v2696
        %2750 = vmatpush.bf16.msra.mxu0 %v2694
        %2751 = vmatpush.bf16.msra.mxu0 %v2692
        %2752 = vmatpush.bf16.msra.mxu0 %v2690
        %2753 = vmatpush.bf16.msra.mxu0 %v2688
        %2754 = vmatpush.bf16.msra.mxu0 %v2686
        %2755 = vmatpush.bf16.msra.mxu0 %v2684
        %2756 = vmatmul.bf16.gmra.mxu0 %v2572
        %v2757 = vpop.f32.mrf.mxu0
        %v2758 = vadd.f32 0.0, %v2757
        %v2759 = vpop.f32.mrf.mxu0
        %v2760 = vadd.f32 0.0, %v2759
        %2761 = vmatmul.bf16.gmra.mxu0 %v2574
        %v2762 = vpop.f32.mrf.mxu0
        %v2763 = vadd.f32 0.0, %v2762
        %v2764 = vpop.f32.mrf.mxu0
        %v2765 = vadd.f32 0.0, %v2764
        %2766 = vmatmul.bf16.gmra.mxu0 %v2576
        %v2767 = vpop.f32.mrf.mxu0
        %v2768 = vadd.f32 0.0, %v2767
        %v2769 = vpop.f32.mrf.mxu0
        %v2770 = vadd.f32 0.0, %v2769
        %2771 = vmatmul.bf16.gmra.mxu0 %v2578
        %v2772 = vpop.f32.mrf.mxu0
        %v2773 = vadd.f32 0.0, %v2772
        %v2774 = vpop.f32.mrf.mxu0
        %v2775 = vadd.f32 0.0, %v2774
        %2776 = vdwg.mxu0
        %2777 = vmatpush.bf16.msra.mxu0 %v2714
        %2778 = vmatpush.bf16.msra.mxu0 %v2712
        %2779 = vmatpush.bf16.msra.mxu0 %v2710
        %2780 = vmatpush.bf16.msra.mxu0 %v2708
        %2781 = vmatpush.bf16.msra.mxu0 %v2706
        %2782 = vmatpush.bf16.msra.mxu0 %v2704
        %2783 = vmatpush.bf16.msra.mxu0 %v2702
        %2784 = vmatpush.bf16.msra.mxu0 %v2700
        %2785 = vmatmul.bf16.gmra.mxu0 %v2573
        %v2786 = vpop.f32.mrf.mxu0
        %v2787 = vadd.f32 %v2758, %v2786
        %v2788 = vpop.f32.mrf.mxu0
        %v2789 = vadd.f32 %v2760, %v2788
        %2790 = vmatmul.bf16.gmra.mxu0 %v2575
        %v2791 = vpop.f32.mrf.mxu0
        %v2792 = vadd.f32 %v2763, %v2791
        %v2793 = vpop.f32.mrf.mxu0
        %v2794 = vadd.f32 %v2765, %v2793
        %2795 = vmatmul.bf16.gmra.mxu0 %v2577
        %v2796 = vpop.f32.mrf.mxu0
        %v2797 = vadd.f32 %v2768, %v2796
        %v2798 = vpop.f32.mrf.mxu0
        %v2799 = vadd.f32 %v2770, %v2798
        %2800 = vmatmul.bf16.gmra.mxu0 %v2579
        %v2801 = vpop.f32.mrf.mxu0
        %v2802 = vadd.f32 %v2773, %v2801
        %v2803 = vpop.f32.mrf.mxu0
        %v2804 = vadd.f32 %v2775, %v2803
        %2805 = vdwg.mxu0
        %2806 = vmatpush.bf16.msra.mxu0 %v2699
        %2807 = vmatpush.bf16.msra.mxu0 %v2697
        %2808 = vmatpush.bf16.msra.mxu0 %v2695
        %2809 = vmatpush.bf16.msra.mxu0 %v2693
        %2810 = vmatpush.bf16.msra.mxu0 %v2691
        %2811 = vmatpush.bf16.msra.mxu0 %v2689
        %2812 = vmatpush.bf16.msra.mxu0 %v2687
        %2813 = vmatpush.bf16.msra.mxu0 %v2685
        %2814 = vmatmul.bf16.gmra.mxu0 %v2572
        %v2815 = vpop.f32.mrf.mxu0
        %v2816 = vadd.f32 0.0, %v2815
        %v2817 = vpop.f32.mrf.mxu0
        %v2818 = vadd.f32 0.0, %v2817
        %2819 = vmatmul.bf16.gmra.mxu0 %v2574
        %v2820 = vpop.f32.mrf.mxu0
        %v2821 = vadd.f32 0.0, %v2820
        %v2822 = vpop.f32.mrf.mxu0
        %v2823 = vadd.f32 0.0, %v2822
        %2824 = vmatmul.bf16.gmra.mxu0 %v2576
        %v2825 = vpop.f32.mrf.mxu0
        %v2826 = vadd.f32 0.0, %v2825
        %v2827 = vpop.f32.mrf.mxu0
        %v2828 = vadd.f32 0.0, %v2827
        %2829 = vmatmul.bf16.gmra.mxu0 %v2578
        %v2830 = vpop.f32.mrf.mxu0
        %v2831 = vadd.f32 0.0, %v2830
        %v2832 = vpop.f32.mrf.mxu0
        %v2833 = vadd.f32 0.0, %v2832
        %2834 = vdwg.mxu0
        %2835 = vmatpush.bf16.msra.mxu0 %v2715
        %2836 = vmatpush.bf16.msra.mxu0 %v2713
        %2837 = vmatpush.bf16.msra.mxu0 %v2711
        %2838 = vmatpush.bf16.msra.mxu0 %v2709
        %2839 = vmatpush.bf16.msra.mxu0 %v2707
        %2840 = vmatpush.bf16.msra.mxu0 %v2705
        %2841 = vmatpush.bf16.msra.mxu0 %v2703
        %2842 = vmatpush.bf16.msra.mxu0 %v2701
        %2843 = vmatmul.bf16.gmra.mxu0 %v2573
        %v2844 = vpop.f32.mrf.mxu0
        %v2845 = vadd.f32 %v2816, %v2844
        %v2846 = vpop.f32.mrf.mxu0
        %v2847 = vadd.f32 %v2818, %v2846
        %2848 = vmatmul.bf16.gmra.mxu0 %v2575
        %v2849 = vpop.f32.mrf.mxu0
        %v2850 = vadd.f32 %v2821, %v2849
        %v2851 = vpop.f32.mrf.mxu0
        %v2852 = vadd.f32 %v2823, %v2851
        %2853 = vmatmul.bf16.gmra.mxu0 %v2577
        %v2854 = vpop.f32.mrf.mxu0
        %v2855 = vadd.f32 %v2826, %v2854
        %v2856 = vpop.f32.mrf.mxu0
        %v2857 = vadd.f32 %v2828, %v2856
        %2858 = vmatmul.bf16.gmra.mxu0 %v2579
        %v2859 = vpop.f32.mrf.mxu0
        %v2860 = vadd.f32 %v2831, %v2859
        %v2861 = vpop.f32.mrf.mxu0
        %v2862 = vadd.f32 %v2833, %v2861
        %2863 = vdwg.mxu0
        %v2864 = vadd.f32 %v2451, %v2787
        %v2865 = vadd.f32 %v2452, %v2845
        %v2866 = vadd.f32 %v2453, %v2789
        %v2867 = vadd.f32 %v2454, %v2847
        %v2868 = vadd.f32 %v2455, %v2792
        %v2869 = vadd.f32 %v2456, %v2850
        %v2870 = vadd.f32 %v2457, %v2794
        %v2871 = vadd.f32 %v2458, %v2852
        %v2872 = vadd.f32 %v2459, %v2797
        %v2873 = vadd.f32 %v2460, %v2855
        %v2874 = vadd.f32 %v2461, %v2799
        %v2875 = vadd.f32 %v2462, %v2857
        %v2876 = vadd.f32 %v2463, %v2802
        %v2877 = vadd.f32 %v2464, %v2860
        %v2878 = vadd.f32 %v2465, %v2804
        %v2879 = vadd.f32 %v2466, %v2862
        %s2880 = scalar_lea.vmem [#allocation2], 32
        %v2881 = vld [vmem:[%s2880] sm:$0xff]
        %v2882 = vld [vmem:[%s2880 + $0x10] sm:$0xff]
        %v2883 = vld [vmem:[%s2880 + $0x20] sm:$0xff]
        %v2884 = vld [vmem:[%s2880 + $0x30] sm:$0xff]
        %v2885 = vld [vmem:[%s2880 + $0x40] sm:$0xff]
        %v2886 = vld [vmem:[%s2880 + $0x50] sm:$0xff]
        %v2887 = vld [vmem:[%s2880 + $0x60] sm:$0xff]
        %v2888 = vld [vmem:[%s2880 + $0x70] sm:$0xff]
        %s2889 = scalar_lea.vmem [#allocation3], 1536
        %v2890 = vld [vmem:[%s2889] sm:$0xff]
        %v2891 = vld [vmem:[%s2889 + $0x8] sm:$0xff]
        %v2892 = vld [vmem:[%s2889 + $0x10] sm:$0xff]
        %v2893 = vld [vmem:[%s2889 + $0x18] sm:$0xff]
        %v2894 = vld [vmem:[%s2889 + $0x20] sm:$0xff]
        %v2895 = vld [vmem:[%s2889 + $0x28] sm:$0xff]
        %v2896 = vld [vmem:[%s2889 + $0x30] sm:$0xff]
        %v2897 = vld [vmem:[%s2889 + $0x38] sm:$0xff]
        %v2898 = vld [vmem:[%s2889 + $0x40] sm:$0xff]
        %v2899 = vld [vmem:[%s2889 + $0x48] sm:$0xff]
        %v2900 = vld [vmem:[%s2889 + $0x50] sm:$0xff]
        %v2901 = vld [vmem:[%s2889 + $0x58] sm:$0xff]
        %v2902 = vld [vmem:[%s2889 + $0x60] sm:$0xff]
        %v2903 = vld [vmem:[%s2889 + $0x68] sm:$0xff]
        %v2904 = vld [vmem:[%s2889 + $0x70] sm:$0xff]
        %v2905 = vld [vmem:[%s2889 + $0x78] sm:$0xff]
        %v2906 = vld [vmem:[%s2889 + $0x80] sm:$0xff]
        %v2907 = vld [vmem:[%s2889 + $0x88] sm:$0xff]
        %v2908 = vld [vmem:[%s2889 + $0x90] sm:$0xff]
        %v2909 = vld [vmem:[%s2889 + $0x98] sm:$0xff]
        %v2910 = vld [vmem:[%s2889 + $0xa0] sm:$0xff]
        %v2911 = vld [vmem:[%s2889 + $0xa8] sm:$0xff]
        %v2912 = vld [vmem:[%s2889 + $0xb0] sm:$0xff]
        %v2913 = vld [vmem:[%s2889 + $0xb8] sm:$0xff]
        %v2914 = vld [vmem:[%s2889 + $0xc0] sm:$0xff]
        %v2915 = vld [vmem:[%s2889 + $0xc8] sm:$0xff]
        %v2916 = vld [vmem:[%s2889 + $0xd0] sm:$0xff]
        %v2917 = vld [vmem:[%s2889 + $0xd8] sm:$0xff]
        %v2918 = vld [vmem:[%s2889 + $0xe0] sm:$0xff]
        %v2919 = vld [vmem:[%s2889 + $0xe8] sm:$0xff]
        %v2920 = vld [vmem:[%s2889 + $0xf0] sm:$0xff]
        %v2921 = vld [vmem:[%s2889 + $0xf8] sm:$0xff]
        %v2930 = vunpack.c.l.b16 %v2881
        %v2931 = vunpack.c.h.b16 %v2881
        %v2932 = vunpack.c.l.b16 %v2882
        %v2933 = vunpack.c.h.b16 %v2882
        %v2934 = vunpack.c.l.b16 %v2883
        %v2935 = vunpack.c.h.b16 %v2883
        %v2936 = vunpack.c.l.b16 %v2884
        %v2937 = vunpack.c.h.b16 %v2884
        %v2938 = vunpack.c.l.b16 %v2885
        %v2939 = vunpack.c.h.b16 %v2885
        %v2940 = vunpack.c.l.b16 %v2886
        %v2941 = vunpack.c.h.b16 %v2886
        %v2942 = vunpack.c.l.b16 %v2887
        %v2943 = vunpack.c.h.b16 %v2887
        %v2944 = vunpack.c.l.b16 %v2888
        %v2945 = vunpack.c.h.b16 %v2888
        %v2946 = vpack.c.b16 %v2932, %v2930
        %v2947 = vpack.c.b16 %v2933, %v2931
        %v2948 = vpack.c.b16 %v2936, %v2934
        %v2949 = vpack.c.b16 %v2937, %v2935
        %v2950 = vpack.c.b16 %v2940, %v2938
        %v2951 = vpack.c.b16 %v2941, %v2939
        %v2952 = vpack.c.b16 %v2944, %v2942
        %v2953 = vpack.c.b16 %v2945, %v2943
        %v2994 = vunpack.c.l.b16 %v2890
        %v2995 = vunpack.c.h.b16 %v2890
        %v2996 = vunpack.c.l.b16 %v2891
        %v2997 = vunpack.c.h.b16 %v2891
        %v2998 = vunpack.c.l.b16 %v2892
        %v2999 = vunpack.c.h.b16 %v2892
        %v3000 = vunpack.c.l.b16 %v2893
        %v3001 = vunpack.c.h.b16 %v2893
        %v3002 = vunpack.c.l.b16 %v2894
        %v3003 = vunpack.c.h.b16 %v2894
        %v3004 = vunpack.c.l.b16 %v2895
        %v3005 = vunpack.c.h.b16 %v2895
        %v3006 = vunpack.c.l.b16 %v2896
        %v3007 = vunpack.c.h.b16 %v2896
        %v3008 = vunpack.c.l.b16 %v2897
        %v3009 = vunpack.c.h.b16 %v2897
        %v3010 = vunpack.c.l.b16 %v2898
        %v3011 = vunpack.c.h.b16 %v2898
        %v3012 = vunpack.c.l.b16 %v2899
        %v3013 = vunpack.c.h.b16 %v2899
        %v3014 = vunpack.c.l.b16 %v2900
        %v3015 = vunpack.c.h.b16 %v2900
        %v3016 = vunpack.c.l.b16 %v2901
        %v3017 = vunpack.c.h.b16 %v2901
        %v3018 = vunpack.c.l.b16 %v2902
        %v3019 = vunpack.c.h.b16 %v2902
        %v3020 = vunpack.c.l.b16 %v2903
        %v3021 = vunpack.c.h.b16 %v2903
        %v3022 = vunpack.c.l.b16 %v2904
        %v3023 = vunpack.c.h.b16 %v2904
        %v3024 = vunpack.c.l.b16 %v2905
        %v3025 = vunpack.c.h.b16 %v2905
        %v3026 = vunpack.c.l.b16 %v2906
        %v3027 = vunpack.c.h.b16 %v2906
        %v3028 = vunpack.c.l.b16 %v2907
        %v3029 = vunpack.c.h.b16 %v2907
        %v3030 = vunpack.c.l.b16 %v2908
        %v3031 = vunpack.c.h.b16 %v2908
        %v3032 = vunpack.c.l.b16 %v2909
        %v3033 = vunpack.c.h.b16 %v2909
        %v3034 = vunpack.c.l.b16 %v2910
        %v3035 = vunpack.c.h.b16 %v2910
        %v3036 = vunpack.c.l.b16 %v2911
        %v3037 = vunpack.c.h.b16 %v2911
        %v3038 = vunpack.c.l.b16 %v2912
        %v3039 = vunpack.c.h.b16 %v2912
        %v3040 = vunpack.c.l.b16 %v2913
        %v3041 = vunpack.c.h.b16 %v2913
        %v3042 = vunpack.c.l.b16 %v2914
        %v3043 = vunpack.c.h.b16 %v2914
        %v3044 = vunpack.c.l.b16 %v2915
        %v3045 = vunpack.c.h.b16 %v2915
        %v3046 = vunpack.c.l.b16 %v2916
        %v3047 = vunpack.c.h.b16 %v2916
        %v3048 = vunpack.c.l.b16 %v2917
        %v3049 = vunpack.c.h.b16 %v2917
        %v3050 = vunpack.c.l.b16 %v2918
        %v3051 = vunpack.c.h.b16 %v2918
        %v3052 = vunpack.c.l.b16 %v2919
        %v3053 = vunpack.c.h.b16 %v2919
        %v3054 = vunpack.c.l.b16 %v2920
        %v3055 = vunpack.c.h.b16 %v2920
        %v3056 = vunpack.c.l.b16 %v2921
        %v3057 = vunpack.c.h.b16 %v2921
        %v3058 = vpack.c.b16 %v2996, %v2994
        %v3059 = vpack.c.b16 %v2997, %v2995
        %v3060 = vpack.c.b16 %v3000, %v2998
        %v3061 = vpack.c.b16 %v3001, %v2999
        %v3062 = vpack.c.b16 %v3004, %v3002
        %v3063 = vpack.c.b16 %v3005, %v3003
        %v3064 = vpack.c.b16 %v3008, %v3006
        %v3065 = vpack.c.b16 %v3009, %v3007
        %v3066 = vpack.c.b16 %v3012, %v3010
        %v3067 = vpack.c.b16 %v3013, %v3011
        %v3068 = vpack.c.b16 %v3016, %v3014
        %v3069 = vpack.c.b16 %v3017, %v3015
        %v3070 = vpack.c.b16 %v3020, %v3018
        %v3071 = vpack.c.b16 %v3021, %v3019
        %v3072 = vpack.c.b16 %v3024, %v3022
        %v3073 = vpack.c.b16 %v3025, %v3023
        %v3074 = vpack.c.b16 %v3028, %v3026
        %v3075 = vpack.c.b16 %v3029, %v3027
        %v3076 = vpack.c.b16 %v3032, %v3030
        %v3077 = vpack.c.b16 %v3033, %v3031
        %v3078 = vpack.c.b16 %v3036, %v3034
        %v3079 = vpack.c.b16 %v3037, %v3035
        %v3080 = vpack.c.b16 %v3040, %v3038
        %v3081 = vpack.c.b16 %v3041, %v3039
        %v3082 = vpack.c.b16 %v3044, %v3042
        %v3083 = vpack.c.b16 %v3045, %v3043
        %v3084 = vpack.c.b16 %v3048, %v3046
        %v3085 = vpack.c.b16 %v3049, %v3047
        %v3086 = vpack.c.b16 %v3052, %v3050
        %v3087 = vpack.c.b16 %v3053, %v3051
        %v3088 = vpack.c.b16 %v3056, %v3054
        %v3089 = vpack.c.b16 %v3057, %v3055
        %3122 = vmatpush.bf16.msra.mxu0 %v3072
        %3123 = vmatpush.bf16.msra.mxu0 %v3070
        %3124 = vmatpush.bf16.msra.mxu0 %v3068
        %3125 = vmatpush.bf16.msra.mxu0 %v3066
        %3126 = vmatpush.bf16.msra.mxu0 %v3064
        %3127 = vmatpush.bf16.msra.mxu0 %v3062
        %3128 = vmatpush.bf16.msra.mxu0 %v3060
        %3129 = vmatpush.bf16.msra.mxu0 %v3058
        %3130 = vmatmul.bf16.gmra.mxu0 %v2946
        %v3131 = vpop.f32.mrf.mxu0
        %v3132 = vadd.f32 0.0, %v3131
        %v3133 = vpop.f32.mrf.mxu0
        %v3134 = vadd.f32 0.0, %v3133
        %3135 = vmatmul.bf16.gmra.mxu0 %v2948
        %v3136 = vpop.f32.mrf.mxu0
        %v3137 = vadd.f32 0.0, %v3136
        %v3138 = vpop.f32.mrf.mxu0
        %v3139 = vadd.f32 0.0, %v3138
        %3140 = vmatmul.bf16.gmra.mxu0 %v2950
        %v3141 = vpop.f32.mrf.mxu0
        %v3142 = vadd.f32 0.0, %v3141
        %v3143 = vpop.f32.mrf.mxu0
        %v3144 = vadd.f32 0.0, %v3143
        %3145 = vmatmul.bf16.gmra.mxu0 %v2952
        %v3146 = vpop.f32.mrf.mxu0
        %v3147 = vadd.f32 0.0, %v3146
        %v3148 = vpop.f32.mrf.mxu0
        %v3149 = vadd.f32 0.0, %v3148
        %3150 = vdwg.mxu0
        %3151 = vmatpush.bf16.msra.mxu0 %v3088
        %3152 = vmatpush.bf16.msra.mxu0 %v3086
        %3153 = vmatpush.bf16.msra.mxu0 %v3084
        %3154 = vmatpush.bf16.msra.mxu0 %v3082
        %3155 = vmatpush.bf16.msra.mxu0 %v3080
        %3156 = vmatpush.bf16.msra.mxu0 %v3078
        %3157 = vmatpush.bf16.msra.mxu0 %v3076
        %3158 = vmatpush.bf16.msra.mxu0 %v3074
        %3159 = vmatmul.bf16.gmra.mxu0 %v2947
        %v3160 = vpop.f32.mrf.mxu0
        %v3161 = vadd.f32 %v3132, %v3160
        %v3162 = vpop.f32.mrf.mxu0
        %v3163 = vadd.f32 %v3134, %v3162
        %3164 = vmatmul.bf16.gmra.mxu0 %v2949
        %v3165 = vpop.f32.mrf.mxu0
        %v3166 = vadd.f32 %v3137, %v3165
        %v3167 = vpop.f32.mrf.mxu0
        %v3168 = vadd.f32 %v3139, %v3167
        %3169 = vmatmul.bf16.gmra.mxu0 %v2951
        %v3170 = vpop.f32.mrf.mxu0
        %v3171 = vadd.f32 %v3142, %v3170
        %v3172 = vpop.f32.mrf.mxu0
        %v3173 = vadd.f32 %v3144, %v3172
        %3174 = vmatmul.bf16.gmra.mxu0 %v2953
        %v3175 = vpop.f32.mrf.mxu0
        %v3176 = vadd.f32 %v3147, %v3175
        %v3177 = vpop.f32.mrf.mxu0
        %v3178 = vadd.f32 %v3149, %v3177
        %3179 = vdwg.mxu0
        %3180 = vmatpush.bf16.msra.mxu0 %v3073
        %3181 = vmatpush.bf16.msra.mxu0 %v3071
        %3182 = vmatpush.bf16.msra.mxu0 %v3069
        %3183 = vmatpush.bf16.msra.mxu0 %v3067
        %3184 = vmatpush.bf16.msra.mxu0 %v3065
        %3185 = vmatpush.bf16.msra.mxu0 %v3063
        %3186 = vmatpush.bf16.msra.mxu0 %v3061
        %3187 = vmatpush.bf16.msra.mxu0 %v3059
        %3188 = vmatmul.bf16.gmra.mxu0 %v2946
        %v3189 = vpop.f32.mrf.mxu0
        %v3190 = vadd.f32 0.0, %v3189
        %v3191 = vpop.f32.mrf.mxu0
        %v3192 = vadd.f32 0.0, %v3191
        %3193 = vmatmul.bf16.gmra.mxu0 %v2948
        %v3194 = vpop.f32.mrf.mxu0
        %v3195 = vadd.f32 0.0, %v3194
        %v3196 = vpop.f32.mrf.mxu0
        %v3197 = vadd.f32 0.0, %v3196
        %3198 = vmatmul.bf16.gmra.mxu0 %v2950
        %v3199 = vpop.f32.mrf.mxu0
        %v3200 = vadd.f32 0.0, %v3199
        %v3201 = vpop.f32.mrf.mxu0
        %v3202 = vadd.f32 0.0, %v3201
        %3203 = vmatmul.bf16.gmra.mxu0 %v2952
        %v3204 = vpop.f32.mrf.mxu0
        %v3205 = vadd.f32 0.0, %v3204
        %v3206 = vpop.f32.mrf.mxu0
        %v3207 = vadd.f32 0.0, %v3206
        %3208 = vdwg.mxu0
        %3209 = vmatpush.bf16.msra.mxu0 %v3089
        %3210 = vmatpush.bf16.msra.mxu0 %v3087
        %3211 = vmatpush.bf16.msra.mxu0 %v3085
        %3212 = vmatpush.bf16.msra.mxu0 %v3083
        %3213 = vmatpush.bf16.msra.mxu0 %v3081
        %3214 = vmatpush.bf16.msra.mxu0 %v3079
        %3215 = vmatpush.bf16.msra.mxu0 %v3077
        %3216 = vmatpush.bf16.msra.mxu0 %v3075
        %3217 = vmatmul.bf16.gmra.mxu0 %v2947
        %v3218 = vpop.f32.mrf.mxu0
        %v3219 = vadd.f32 %v3190, %v3218
        %v3220 = vpop.f32.mrf.mxu0
        %v3221 = vadd.f32 %v3192, %v3220
        %3222 = vmatmul.bf16.gmra.mxu0 %v2949
        %v3223 = vpop.f32.mrf.mxu0
        %v3224 = vadd.f32 %v3195, %v3223
        %v3225 = vpop.f32.mrf.mxu0
        %v3226 = vadd.f32 %v3197, %v3225
        %3227 = vmatmul.bf16.gmra.mxu0 %v2951
        %v3228 = vpop.f32.mrf.mxu0
        %v3229 = vadd.f32 %v3200, %v3228
        %v3230 = vpop.f32.mrf.mxu0
        %v3231 = vadd.f32 %v3202, %v3230
        %3232 = vmatmul.bf16.gmra.mxu0 %v2953
        %v3233 = vpop.f32.mrf.mxu0
        %v3234 = vadd.f32 %v3205, %v3233
        %v3235 = vpop.f32.mrf.mxu0
        %v3236 = vadd.f32 %v3207, %v3235
        %3237 = vdwg.mxu0
        %v3238 = vadd.f32 %v2864, %v3161
        %v3239 = vadd.f32 %v2865, %v3219
        %v3240 = vadd.f32 %v2866, %v3163
        %v3241 = vadd.f32 %v2867, %v3221
        %v3242 = vadd.f32 %v2868, %v3166
        %v3243 = vadd.f32 %v2869, %v3224
        %v3244 = vadd.f32 %v2870, %v3168
        %v3245 = vadd.f32 %v2871, %v3226
        %v3246 = vadd.f32 %v2872, %v3171
        %v3247 = vadd.f32 %v2873, %v3229
        %v3248 = vadd.f32 %v2874, %v3173
        %v3249 = vadd.f32 %v2875, %v3231
        %v3250 = vadd.f32 %v2876, %v3176
        %v3251 = vadd.f32 %v2877, %v3234
        %v3252 = vadd.f32 %v2878, %v3178
        %v3253 = vadd.f32 %v2879, %v3236
        %v3254 = vld [vmem:[%s2880] sm:$0xff]
        %v3255 = vld [vmem:[%s2880 + $0x8] sm:$0x11]
        %v3256 = vld [vmem:[%s2880 + $0x10] sm:$0xff]
        %v3257 = vld [vmem:[%s2880 + $0x18] sm:$0x11]
        %v3258 = vld [vmem:[%s2880 + $0x20] sm:$0xff]
        %v3259 = vld [vmem:[%s2880 + $0x28] sm:$0x11]
        %v3260 = vld [vmem:[%s2880 + $0x30] sm:$0xff]
        %v3261 = vld [vmem:[%s2880 + $0x38] sm:$0x11]
        %v3262 = vld [vmem:[%s2880 + $0x40] sm:$0xff]
        %v3263 = vld [vmem:[%s2880 + $0x48] sm:$0x11]
        %v3264 = vld [vmem:[%s2880 + $0x50] sm:$0xff]
        %v3265 = vld [vmem:[%s2880 + $0x58] sm:$0x11]
        %v3266 = vld [vmem:[%s2880 + $0x60] sm:$0xff]
        %v3267 = vld [vmem:[%s2880 + $0x68] sm:$0x11]
        %v3268 = vld [vmem:[%s2880 + $0x70] sm:$0xff]
        %v3269 = vld [vmem:[%s2880 + $0x78] sm:$0x11]
        %v3271 = vshrl.u32 %v3254, 16
        %v3273 = vrot.slane %v3271, 4
        %v3274 = vshll.u32 %v3254, 16
        %v3276 = vrot.slane %v3274, 5
        %v3277 = vor.u32 %v3273, %v3276
        %v3278 = vrot.slane %v3277, 4
        %v3280 = vshll.u32 %v3255, 16
        %v3282 = vrot.slane %v3280, 5
        %v3283 = vsel %vm423, %v3278, %v3282
        %v3285 = vshrl.u32 %v3256, 16
        %v3287 = vrot.slane %v3285, 4
        %v3288 = vshll.u32 %v3256, 16
        %v3290 = vrot.slane %v3288, 5
        %v3291 = vor.u32 %v3287, %v3290
        %v3292 = vrot.slane %v3291, 4
        %v3294 = vshll.u32 %v3257, 16
        %v3296 = vrot.slane %v3294, 5
        %v3297 = vsel %vm423, %v3292, %v3296
        %v3299 = vshrl.u32 %v3258, 16
        %v3301 = vrot.slane %v3299, 4
        %v3302 = vshll.u32 %v3258, 16
        %v3304 = vrot.slane %v3302, 5
        %v3305 = vor.u32 %v3301, %v3304
        %v3306 = vrot.slane %v3305, 4
        %v3308 = vshll.u32 %v3259, 16
        %v3310 = vrot.slane %v3308, 5
        %v3311 = vsel %vm423, %v3306, %v3310
        %v3313 = vshrl.u32 %v3260, 16
        %v3315 = vrot.slane %v3313, 4
        %v3316 = vshll.u32 %v3260, 16
        %v3318 = vrot.slane %v3316, 5
        %v3319 = vor.u32 %v3315, %v3318
        %v3320 = vrot.slane %v3319, 4
        %v3322 = vshll.u32 %v3261, 16
        %v3324 = vrot.slane %v3322, 5
        %v3325 = vsel %vm423, %v3320, %v3324
        %v3327 = vshrl.u32 %v3262, 16
        %v3329 = vrot.slane %v3327, 4
        %v3330 = vshll.u32 %v3262, 16
        %v3332 = vrot.slane %v3330, 5
        %v3333 = vor.u32 %v3329, %v3332
        %v3334 = vrot.slane %v3333, 4
        %v3336 = vshll.u32 %v3263, 16
        %v3338 = vrot.slane %v3336, 5
        %v3339 = vsel %vm423, %v3334, %v3338
        %v3341 = vshrl.u32 %v3264, 16
        %v3343 = vrot.slane %v3341, 4
        %v3344 = vshll.u32 %v3264, 16
        %v3346 = vrot.slane %v3344, 5
        %v3347 = vor.u32 %v3343, %v3346
        %v3348 = vrot.slane %v3347, 4
        %v3350 = vshll.u32 %v3265, 16
        %v3352 = vrot.slane %v3350, 5
        %v3353 = vsel %vm423, %v3348, %v3352
        %v3355 = vshrl.u32 %v3266, 16
        %v3357 = vrot.slane %v3355, 4
        %v3358 = vshll.u32 %v3266, 16
        %v3360 = vrot.slane %v3358, 5
        %v3361 = vor.u32 %v3357, %v3360
        %v3362 = vrot.slane %v3361, 4
        %v3364 = vshll.u32 %v3267, 16
        %v3366 = vrot.slane %v3364, 5
        %v3367 = vsel %vm423, %v3362, %v3366
        %v3369 = vshrl.u32 %v3268, 16
        %v3371 = vrot.slane %v3369, 4
        %v3372 = vshll.u32 %v3268, 16
        %v3374 = vrot.slane %v3372, 5
        %v3375 = vor.u32 %v3371, %v3374
        %v3376 = vrot.slane %v3375, 4
        %v3378 = vshll.u32 %v3269, 16
        %v3380 = vrot.slane %v3378, 5
        %v3381 = vsel %vm423, %v3376, %v3380
        %s3382 = scalar_lea.vmem [#allocation3], 1792
        %v3383 = vld [vmem:[%s3382] sm:$0xff]
        %v3384 = vld [vmem:[%s3382 + $0x8] sm:$0xff]
        %v3385 = vld [vmem:[%s3382 + $0x10] sm:$0xff]
        %v3386 = vld [vmem:[%s3382 + $0x18] sm:$0xff]
        %v3387 = vld [vmem:[%s3382 + $0x20] sm:$0xff]
        %v3388 = vld [vmem:[%s3382 + $0x28] sm:$0xff]
        %v3389 = vld [vmem:[%s3382 + $0x30] sm:$0xff]
        %v3390 = vld [vmem:[%s3382 + $0x38] sm:$0xff]
        %v3391 = vld [vmem:[%s3382 + $0x40] sm:$0xff]
        %v3392 = vld [vmem:[%s3382 + $0x48] sm:$0xff]
        %v3393 = vld [vmem:[%s3382 + $0x50] sm:$0xff]
        %v3394 = vld [vmem:[%s3382 + $0x58] sm:$0xff]
        %v3395 = vld [vmem:[%s3382 + $0x60] sm:$0xff]
        %v3396 = vld [vmem:[%s3382 + $0x68] sm:$0xff]
        %v3397 = vld [vmem:[%s3382 + $0x70] sm:$0xff]
        %v3398 = vld [vmem:[%s3382 + $0x78] sm:$0xff]
        %v3399 = vld [vmem:[%s3382 + $0x80] sm:$0xff]
        %v3400 = vld [vmem:[%s3382 + $0x88] sm:$0xff]
        %v3401 = vld [vmem:[%s3382 + $0x90] sm:$0xff]
        %v3402 = vld [vmem:[%s3382 + $0x98] sm:$0xff]
        %v3403 = vld [vmem:[%s3382 + $0xa0] sm:$0xff]
        %v3404 = vld [vmem:[%s3382 + $0xa8] sm:$0xff]
        %v3405 = vld [vmem:[%s3382 + $0xb0] sm:$0xff]
        %v3406 = vld [vmem:[%s3382 + $0xb8] sm:$0xff]
        %v3407 = vld [vmem:[%s3382 + $0xc0] sm:$0xff]
        %v3408 = vld [vmem:[%s3382 + $0xc8] sm:$0xff]
        %v3409 = vld [vmem:[%s3382 + $0xd0] sm:$0xff]
        %v3410 = vld [vmem:[%s3382 + $0xd8] sm:$0xff]
        %v3411 = vld [vmem:[%s3382 + $0xe0] sm:$0xff]
        %v3412 = vld [vmem:[%s3382 + $0xe8] sm:$0xff]
        %v3413 = vld [vmem:[%s3382 + $0xf0] sm:$0xff]
        %v3414 = vld [vmem:[%s3382 + $0xf8] sm:$0xff]
        %v3415 = vunpack.c.l.b16 %v3283
        %v3416 = vunpack.c.h.b16 %v3283
        %v3417 = vunpack.c.l.b16 %v3297
        %v3418 = vunpack.c.h.b16 %v3297
        %v3419 = vunpack.c.l.b16 %v3311
        %v3420 = vunpack.c.h.b16 %v3311
        %v3421 = vunpack.c.l.b16 %v3325
        %v3422 = vunpack.c.h.b16 %v3325
        %v3423 = vunpack.c.l.b16 %v3339
        %v3424 = vunpack.c.h.b16 %v3339
        %v3425 = vunpack.c.l.b16 %v3353
        %v3426 = vunpack.c.h.b16 %v3353
        %v3427 = vunpack.c.l.b16 %v3367
        %v3428 = vunpack.c.h.b16 %v3367
        %v3429 = vunpack.c.l.b16 %v3381
        %v3430 = vunpack.c.h.b16 %v3381
        %v3431 = vpack.c.b16 %v3417, %v3415
        %v3432 = vpack.c.b16 %v3418, %v3416
        %v3433 = vpack.c.b16 %v3421, %v3419
        %v3434 = vpack.c.b16 %v3422, %v3420
        %v3435 = vpack.c.b16 %v3425, %v3423
        %v3436 = vpack.c.b16 %v3426, %v3424
        %v3437 = vpack.c.b16 %v3429, %v3427
        %v3438 = vpack.c.b16 %v3430, %v3428
        %v3479 = vunpack.c.l.b16 %v3383
        %v3480 = vunpack.c.h.b16 %v3383
        %v3481 = vunpack.c.l.b16 %v3384
        %v3482 = vunpack.c.h.b16 %v3384
        %v3483 = vunpack.c.l.b16 %v3385
        %v3484 = vunpack.c.h.b16 %v3385
        %v3485 = vunpack.c.l.b16 %v3386
        %v3486 = vunpack.c.h.b16 %v3386
        %v3487 = vunpack.c.l.b16 %v3387
        %v3488 = vunpack.c.h.b16 %v3387
        %v3489 = vunpack.c.l.b16 %v3388
        %v3490 = vunpack.c.h.b16 %v3388
        %v3491 = vunpack.c.l.b16 %v3389
        %v3492 = vunpack.c.h.b16 %v3389
        %v3493 = vunpack.c.l.b16 %v3390
        %v3494 = vunpack.c.h.b16 %v3390
        %v3495 = vunpack.c.l.b16 %v3391
        %v3496 = vunpack.c.h.b16 %v3391
        %v3497 = vunpack.c.l.b16 %v3392
        %v3498 = vunpack.c.h.b16 %v3392
        %v3499 = vunpack.c.l.b16 %v3393
        %v3500 = vunpack.c.h.b16 %v3393
        %v3501 = vunpack.c.l.b16 %v3394
        %v3502 = vunpack.c.h.b16 %v3394
        %v3503 = vunpack.c.l.b16 %v3395
        %v3504 = vunpack.c.h.b16 %v3395
        %v3505 = vunpack.c.l.b16 %v3396
        %v3506 = vunpack.c.h.b16 %v3396
        %v3507 = vunpack.c.l.b16 %v3397
        %v3508 = vunpack.c.h.b16 %v3397
        %v3509 = vunpack.c.l.b16 %v3398
        %v3510 = vunpack.c.h.b16 %v3398
        %v3511 = vunpack.c.l.b16 %v3399
        %v3512 = vunpack.c.h.b16 %v3399
        %v3513 = vunpack.c.l.b16 %v3400
        %v3514 = vunpack.c.h.b16 %v3400
        %v3515 = vunpack.c.l.b16 %v3401
        %v3516 = vunpack.c.h.b16 %v3401
        %v3517 = vunpack.c.l.b16 %v3402
        %v3518 = vunpack.c.h.b16 %v3402
        %v3519 = vunpack.c.l.b16 %v3403
        %v3520 = vunpack.c.h.b16 %v3403
        %v3521 = vunpack.c.l.b16 %v3404
        %v3522 = vunpack.c.h.b16 %v3404
        %v3523 = vunpack.c.l.b16 %v3405
        %v3524 = vunpack.c.h.b16 %v3405
        %v3525 = vunpack.c.l.b16 %v3406
        %v3526 = vunpack.c.h.b16 %v3406
        %v3527 = vunpack.c.l.b16 %v3407
        %v3528 = vunpack.c.h.b16 %v3407
        %v3529 = vunpack.c.l.b16 %v3408
        %v3530 = vunpack.c.h.b16 %v3408
        %v3531 = vunpack.c.l.b16 %v3409
        %v3532 = vunpack.c.h.b16 %v3409
        %v3533 = vunpack.c.l.b16 %v3410
        %v3534 = vunpack.c.h.b16 %v3410
        %v3535 = vunpack.c.l.b16 %v3411
        %v3536 = vunpack.c.h.b16 %v3411
        %v3537 = vunpack.c.l.b16 %v3412
        %v3538 = vunpack.c.h.b16 %v3412
        %v3539 = vunpack.c.l.b16 %v3413
        %v3540 = vunpack.c.h.b16 %v3413
        %v3541 = vunpack.c.l.b16 %v3414
        %v3542 = vunpack.c.h.b16 %v3414
        %v3543 = vpack.c.b16 %v3481, %v3479
        %v3544 = vpack.c.b16 %v3482, %v3480
        %v3545 = vpack.c.b16 %v3485, %v3483
        %v3546 = vpack.c.b16 %v3486, %v3484
        %v3547 = vpack.c.b16 %v3489, %v3487
        %v3548 = vpack.c.b16 %v3490, %v3488
        %v3549 = vpack.c.b16 %v3493, %v3491
        %v3550 = vpack.c.b16 %v3494, %v3492
        %v3551 = vpack.c.b16 %v3497, %v3495
        %v3552 = vpack.c.b16 %v3498, %v3496
        %v3553 = vpack.c.b16 %v3501, %v3499
        %v3554 = vpack.c.b16 %v3502, %v3500
        %v3555 = vpack.c.b16 %v3505, %v3503
        %v3556 = vpack.c.b16 %v3506, %v3504
        %v3557 = vpack.c.b16 %v3509, %v3507
        %v3558 = vpack.c.b16 %v3510, %v3508
        %v3559 = vpack.c.b16 %v3513, %v3511
        %v3560 = vpack.c.b16 %v3514, %v3512
        %v3561 = vpack.c.b16 %v3517, %v3515
        %v3562 = vpack.c.b16 %v3518, %v3516
        %v3563 = vpack.c.b16 %v3521, %v3519
        %v3564 = vpack.c.b16 %v3522, %v3520
        %v3565 = vpack.c.b16 %v3525, %v3523
        %v3566 = vpack.c.b16 %v3526, %v3524
        %v3567 = vpack.c.b16 %v3529, %v3527
        %v3568 = vpack.c.b16 %v3530, %v3528
        %v3569 = vpack.c.b16 %v3533, %v3531
        %v3570 = vpack.c.b16 %v3534, %v3532
        %v3571 = vpack.c.b16 %v3537, %v3535
        %v3572 = vpack.c.b16 %v3538, %v3536
        %v3573 = vpack.c.b16 %v3541, %v3539
        %v3574 = vpack.c.b16 %v3542, %v3540
        %3607 = vmatpush.bf16.msra.mxu0 %v3557
        %3608 = vmatpush.bf16.msra.mxu0 %v3555
        %3609 = vmatpush.bf16.msra.mxu0 %v3553
        %3610 = vmatpush.bf16.msra.mxu0 %v3551
        %3611 = vmatpush.bf16.msra.mxu0 %v3549
        %3612 = vmatpush.bf16.msra.mxu0 %v3547
        %3613 = vmatpush.bf16.msra.mxu0 %v3545
        %3614 = vmatpush.bf16.msra.mxu0 %v3543
        %3615 = vmatmul.bf16.gmra.mxu0 %v3431
        %v3616 = vpop.f32.mrf.mxu0
        %v3617 = vadd.f32 0.0, %v3616
        %v3618 = vpop.f32.mrf.mxu0
        %v3619 = vadd.f32 0.0, %v3618
        %3620 = vmatmul.bf16.gmra.mxu0 %v3433
        %v3621 = vpop.f32.mrf.mxu0
        %v3622 = vadd.f32 0.0, %v3621
        %v3623 = vpop.f32.mrf.mxu0
        %v3624 = vadd.f32 0.0, %v3623
        %3625 = vmatmul.bf16.gmra.mxu0 %v3435
        %v3626 = vpop.f32.mrf.mxu0
        %v3627 = vadd.f32 0.0, %v3626
        %v3628 = vpop.f32.mrf.mxu0
        %v3629 = vadd.f32 0.0, %v3628
        %3630 = vmatmul.bf16.gmra.mxu0 %v3437
        %v3631 = vpop.f32.mrf.mxu0
        %v3632 = vadd.f32 0.0, %v3631
        %v3633 = vpop.f32.mrf.mxu0
        %v3634 = vadd.f32 0.0, %v3633
        %3635 = vdwg.mxu0
        %3636 = vmatpush.bf16.msra.mxu0 %v3573
        %3637 = vmatpush.bf16.msra.mxu0 %v3571
        %3638 = vmatpush.bf16.msra.mxu0 %v3569
        %3639 = vmatpush.bf16.msra.mxu0 %v3567
        %3640 = vmatpush.bf16.msra.mxu0 %v3565
        %3641 = vmatpush.bf16.msra.mxu0 %v3563
        %3642 = vmatpush.bf16.msra.mxu0 %v3561
        %3643 = vmatpush.bf16.msra.mxu0 %v3559
        %3644 = vmatmul.bf16.gmra.mxu0 %v3432
        %v3645 = vpop.f32.mrf.mxu0
        %v3646 = vadd.f32 %v3617, %v3645
        %v3647 = vpop.f32.mrf.mxu0
        %v3648 = vadd.f32 %v3619, %v3647
        %3649 = vmatmul.bf16.gmra.mxu0 %v3434
        %v3650 = vpop.f32.mrf.mxu0
        %v3651 = vadd.f32 %v3622, %v3650
        %v3652 = vpop.f32.mrf.mxu0
        %v3653 = vadd.f32 %v3624, %v3652
        %3654 = vmatmul.bf16.gmra.mxu0 %v3436
        %v3655 = vpop.f32.mrf.mxu0
        %v3656 = vadd.f32 %v3627, %v3655
        %v3657 = vpop.f32.mrf.mxu0
        %v3658 = vadd.f32 %v3629, %v3657
        %3659 = vmatmul.bf16.gmra.mxu0 %v3438
        %v3660 = vpop.f32.mrf.mxu0
        %v3661 = vadd.f32 %v3632, %v3660
        %v3662 = vpop.f32.mrf.mxu0
        %v3663 = vadd.f32 %v3634, %v3662
        %3664 = vdwg.mxu0
        %3665 = vmatpush.bf16.msra.mxu0 %v3558
        %3666 = vmatpush.bf16.msra.mxu0 %v3556
        %3667 = vmatpush.bf16.msra.mxu0 %v3554
        %3668 = vmatpush.bf16.msra.mxu0 %v3552
        %3669 = vmatpush.bf16.msra.mxu0 %v3550
        %3670 = vmatpush.bf16.msra.mxu0 %v3548
        %3671 = vmatpush.bf16.msra.mxu0 %v3546
        %3672 = vmatpush.bf16.msra.mxu0 %v3544
        %3673 = vmatmul.bf16.gmra.mxu0 %v3431
        %v3674 = vpop.f32.mrf.mxu0
        %v3675 = vadd.f32 0.0, %v3674
        %v3676 = vpop.f32.mrf.mxu0
        %v3677 = vadd.f32 0.0, %v3676
        %3678 = vmatmul.bf16.gmra.mxu0 %v3433
        %v3679 = vpop.f32.mrf.mxu0
        %v3680 = vadd.f32 0.0, %v3679
        %v3681 = vpop.f32.mrf.mxu0
        %v3682 = vadd.f32 0.0, %v3681
        %3683 = vmatmul.bf16.gmra.mxu0 %v3435
        %v3684 = vpop.f32.mrf.mxu0
        %v3685 = vadd.f32 0.0, %v3684
        %v3686 = vpop.f32.mrf.mxu0
        %v3687 = vadd.f32 0.0, %v3686
        %3688 = vmatmul.bf16.gmra.mxu0 %v3437
        %v3689 = vpop.f32.mrf.mxu0
        %v3690 = vadd.f32 0.0, %v3689
        %v3691 = vpop.f32.mrf.mxu0
        %v3692 = vadd.f32 0.0, %v3691
        %3693 = vdwg.mxu0
        %3694 = vmatpush.bf16.msra.mxu0 %v3574
        %3695 = vmatpush.bf16.msra.mxu0 %v3572
        %3696 = vmatpush.bf16.msra.mxu0 %v3570
        %3697 = vmatpush.bf16.msra.mxu0 %v3568
        %3698 = vmatpush.bf16.msra.mxu0 %v3566
        %3699 = vmatpush.bf16.msra.mxu0 %v3564
        %3700 = vmatpush.bf16.msra.mxu0 %v3562
        %3701 = vmatpush.bf16.msra.mxu0 %v3560
        %3702 = vmatmul.bf16.gmra.mxu0 %v3432
        %v3703 = vpop.f32.mrf.mxu0
        %v3704 = vadd.f32 %v3675, %v3703
        %v3705 = vpop.f32.mrf.mxu0
        %v3706 = vadd.f32 %v3677, %v3705
        %3707 = vmatmul.bf16.gmra.mxu0 %v3434
        %v3708 = vpop.f32.mrf.mxu0
        %v3709 = vadd.f32 %v3680, %v3708
        %v3710 = vpop.f32.mrf.mxu0
        %v3711 = vadd.f32 %v3682, %v3710
        %3712 = vmatmul.bf16.gmra.mxu0 %v3436
        %v3713 = vpop.f32.mrf.mxu0
        %v3714 = vadd.f32 %v3685, %v3713
        %v3715 = vpop.f32.mrf.mxu0
        %v3716 = vadd.f32 %v3687, %v3715
        %3717 = vmatmul.bf16.gmra.mxu0 %v3438
        %v3718 = vpop.f32.mrf.mxu0
        %v3719 = vadd.f32 %v3690, %v3718
        %v3720 = vpop.f32.mrf.mxu0
        %v3721 = vadd.f32 %v3692, %v3720
        %3722 = vdwg.mxu0
        %v3723 = vadd.f32 %v3238, %v3646
        %v3724 = vadd.f32 %v3239, %v3704
        %v3725 = vadd.f32 %v3240, %v3648
        %v3726 = vadd.f32 %v3241, %v3706
        %v3727 = vadd.f32 %v3242, %v3651
        %v3728 = vadd.f32 %v3243, %v3709
        %v3729 = vadd.f32 %v3244, %v3653
        %v3730 = vadd.f32 %v3245, %v3711
        %v3731 = vadd.f32 %v3246, %v3656
        %v3732 = vadd.f32 %v3247, %v3714
        %v3733 = vadd.f32 %v3248, %v3658
        %v3734 = vadd.f32 %v3249, %v3716
        %v3735 = vadd.f32 %v3250, %v3661
        %v3736 = vadd.f32 %v3251, %v3719
        %v3737 = vadd.f32 %v3252, %v3663
        %v3738 = vadd.f32 %v3253, %v3721
        %v3739 = vld [vmem:[%s2880] sm:$0xee]
        %v3740 = vld [vmem:[%s2880 + $0x10] sm:$0xee]
        %v3741 = vld [vmem:[%s2880 + $0x20] sm:$0xee]
        %v3742 = vld [vmem:[%s2880 + $0x30] sm:$0xee]
        %v3743 = vld [vmem:[%s2880 + $0x40] sm:$0xee]
        %v3744 = vld [vmem:[%s2880 + $0x50] sm:$0xee]
        %v3745 = vld [vmem:[%s2880 + $0x60] sm:$0xee]
        %v3746 = vld [vmem:[%s2880 + $0x70] sm:$0xee]
        %v3763 = vrot.slane %v3739, 5
        %v3764 = vrot.slane %v3763, 4
        %v3765 = vrot.slane %v3255, 5
        %v3766 = vsel %vm1219, %v3764, %v3765
        %v3767 = vrot.slane %v3740, 5
        %v3768 = vrot.slane %v3767, 4
        %v3769 = vrot.slane %v3257, 5
        %v3770 = vsel %vm1219, %v3768, %v3769
        %v3771 = vrot.slane %v3741, 5
        %v3772 = vrot.slane %v3771, 4
        %v3773 = vrot.slane %v3259, 5
        %v3774 = vsel %vm1219, %v3772, %v3773
        %v3775 = vrot.slane %v3742, 5
        %v3776 = vrot.slane %v3775, 4
        %v3777 = vrot.slane %v3261, 5
        %v3778 = vsel %vm1219, %v3776, %v3777
        %v3779 = vrot.slane %v3743, 5
        %v3780 = vrot.slane %v3779, 4
        %v3781 = vrot.slane %v3263, 5
        %v3782 = vsel %vm1219, %v3780, %v3781
        %v3783 = vrot.slane %v3744, 5
        %v3784 = vrot.slane %v3783, 4
        %v3785 = vrot.slane %v3265, 5
        %v3786 = vsel %vm1219, %v3784, %v3785
        %v3787 = vrot.slane %v3745, 5
        %v3788 = vrot.slane %v3787, 4
        %v3789 = vrot.slane %v3267, 5
        %v3790 = vsel %vm1219, %v3788, %v3789
        %v3791 = vrot.slane %v3746, 5
        %v3792 = vrot.slane %v3791, 4
        %v3793 = vrot.slane %v3269, 5
        %v3794 = vsel %vm1219, %v3792, %v3793
        %s3795 = scalar_lea.vmem [#allocation3], 2048
        %v3796 = vld [vmem:[%s3795] sm:$0xff]
        %v3797 = vld [vmem:[%s3795 + $0x8] sm:$0xff]
        %v3798 = vld [vmem:[%s3795 + $0x10] sm:$0xff]
        %v3799 = vld [vmem:[%s3795 + $0x18] sm:$0xff]
        %v3800 = vld [vmem:[%s3795 + $0x20] sm:$0xff]
        %v3801 = vld [vmem:[%s3795 + $0x28] sm:$0xff]
        %v3802 = vld [vmem:[%s3795 + $0x30] sm:$0xff]
        %v3803 = vld [vmem:[%s3795 + $0x38] sm:$0xff]
        %v3804 = vld [vmem:[%s3795 + $0x40] sm:$0xff]
        %v3805 = vld [vmem:[%s3795 + $0x48] sm:$0xff]
        %v3806 = vld [vmem:[%s3795 + $0x50] sm:$0xff]
        %v3807 = vld [vmem:[%s3795 + $0x58] sm:$0xff]
        %v3808 = vld [vmem:[%s3795 + $0x60] sm:$0xff]
        %v3809 = vld [vmem:[%s3795 + $0x68] sm:$0xff]
        %v3810 = vld [vmem:[%s3795 + $0x70] sm:$0xff]
        %v3811 = vld [vmem:[%s3795 + $0x78] sm:$0xff]
        %v3812 = vld [vmem:[%s3795 + $0x80] sm:$0xff]
        %v3813 = vld [vmem:[%s3795 + $0x88] sm:$0xff]
        %v3814 = vld [vmem:[%s3795 + $0x90] sm:$0xff]
        %v3815 = vld [vmem:[%s3795 + $0x98] sm:$0xff]
        %v3816 = vld [vmem:[%s3795 + $0xa0] sm:$0xff]
        %v3817 = vld [vmem:[%s3795 + $0xa8] sm:$0xff]
        %v3818 = vld [vmem:[%s3795 + $0xb0] sm:$0xff]
        %v3819 = vld [vmem:[%s3795 + $0xb8] sm:$0xff]
        %v3820 = vld [vmem:[%s3795 + $0xc0] sm:$0xff]
        %v3821 = vld [vmem:[%s3795 + $0xc8] sm:$0xff]
        %v3822 = vld [vmem:[%s3795 + $0xd0] sm:$0xff]
        %v3823 = vld [vmem:[%s3795 + $0xd8] sm:$0xff]
        %v3824 = vld [vmem:[%s3795 + $0xe0] sm:$0xff]
        %v3825 = vld [vmem:[%s3795 + $0xe8] sm:$0xff]
        %v3826 = vld [vmem:[%s3795 + $0xf0] sm:$0xff]
        %v3827 = vld [vmem:[%s3795 + $0xf8] sm:$0xff]
        %v3828 = vunpack.c.l.b16 %v3766
        %v3829 = vunpack.c.h.b16 %v3766
        %v3830 = vunpack.c.l.b16 %v3770
        %v3831 = vunpack.c.h.b16 %v3770
        %v3832 = vunpack.c.l.b16 %v3774
        %v3833 = vunpack.c.h.b16 %v3774
        %v3834 = vunpack.c.l.b16 %v3778
        %v3835 = vunpack.c.h.b16 %v3778
        %v3836 = vunpack.c.l.b16 %v3782
        %v3837 = vunpack.c.h.b16 %v3782
        %v3838 = vunpack.c.l.b16 %v3786
        %v3839 = vunpack.c.h.b16 %v3786
        %v3840 = vunpack.c.l.b16 %v3790
        %v3841 = vunpack.c.h.b16 %v3790
        %v3842 = vunpack.c.l.b16 %v3794
        %v3843 = vunpack.c.h.b16 %v3794
        %v3844 = vpack.c.b16 %v3830, %v3828
        %v3845 = vpack.c.b16 %v3831, %v3829
        %v3846 = vpack.c.b16 %v3834, %v3832
        %v3847 = vpack.c.b16 %v3835, %v3833
        %v3848 = vpack.c.b16 %v3838, %v3836
        %v3849 = vpack.c.b16 %v3839, %v3837
        %v3850 = vpack.c.b16 %v3842, %v3840
        %v3851 = vpack.c.b16 %v3843, %v3841
        %v3892 = vunpack.c.l.b16 %v3796
        %v3893 = vunpack.c.h.b16 %v3796
        %v3894 = vunpack.c.l.b16 %v3797
        %v3895 = vunpack.c.h.b16 %v3797
        %v3896 = vunpack.c.l.b16 %v3798
        %v3897 = vunpack.c.h.b16 %v3798
        %v3898 = vunpack.c.l.b16 %v3799
        %v3899 = vunpack.c.h.b16 %v3799
        %v3900 = vunpack.c.l.b16 %v3800
        %v3901 = vunpack.c.h.b16 %v3800
        %v3902 = vunpack.c.l.b16 %v3801
        %v3903 = vunpack.c.h.b16 %v3801
        %v3904 = vunpack.c.l.b16 %v3802
        %v3905 = vunpack.c.h.b16 %v3802
        %v3906 = vunpack.c.l.b16 %v3803
        %v3907 = vunpack.c.h.b16 %v3803
        %v3908 = vunpack.c.l.b16 %v3804
        %v3909 = vunpack.c.h.b16 %v3804
        %v3910 = vunpack.c.l.b16 %v3805
        %v3911 = vunpack.c.h.b16 %v3805
        %v3912 = vunpack.c.l.b16 %v3806
        %v3913 = vunpack.c.h.b16 %v3806
        %v3914 = vunpack.c.l.b16 %v3807
        %v3915 = vunpack.c.h.b16 %v3807
        %v3916 = vunpack.c.l.b16 %v3808
        %v3917 = vunpack.c.h.b16 %v3808
        %v3918 = vunpack.c.l.b16 %v3809
        %v3919 = vunpack.c.h.b16 %v3809
        %v3920 = vunpack.c.l.b16 %v3810
        %v3921 = vunpack.c.h.b16 %v3810
        %v3922 = vunpack.c.l.b16 %v3811
        %v3923 = vunpack.c.h.b16 %v3811
        %v3924 = vunpack.c.l.b16 %v3812
        %v3925 = vunpack.c.h.b16 %v3812
        %v3926 = vunpack.c.l.b16 %v3813
        %v3927 = vunpack.c.h.b16 %v3813
        %v3928 = vunpack.c.l.b16 %v3814
        %v3929 = vunpack.c.h.b16 %v3814
        %v3930 = vunpack.c.l.b16 %v3815
        %v3931 = vunpack.c.h.b16 %v3815
        %v3932 = vunpack.c.l.b16 %v3816
        %v3933 = vunpack.c.h.b16 %v3816
        %v3934 = vunpack.c.l.b16 %v3817
        %v3935 = vunpack.c.h.b16 %v3817
        %v3936 = vunpack.c.l.b16 %v3818
        %v3937 = vunpack.c.h.b16 %v3818
        %v3938 = vunpack.c.l.b16 %v3819
        %v3939 = vunpack.c.h.b16 %v3819
        %v3940 = vunpack.c.l.b16 %v3820
        %v3941 = vunpack.c.h.b16 %v3820
        %v3942 = vunpack.c.l.b16 %v3821
        %v3943 = vunpack.c.h.b16 %v3821
        %v3944 = vunpack.c.l.b16 %v3822
        %v3945 = vunpack.c.h.b16 %v3822
        %v3946 = vunpack.c.l.b16 %v3823
        %v3947 = vunpack.c.h.b16 %v3823
        %v3948 = vunpack.c.l.b16 %v3824
        %v3949 = vunpack.c.h.b16 %v3824
        %v3950 = vunpack.c.l.b16 %v3825
        %v3951 = vunpack.c.h.b16 %v3825
        %v3952 = vunpack.c.l.b16 %v3826
        %v3953 = vunpack.c.h.b16 %v3826
        %v3954 = vunpack.c.l.b16 %v3827
        %v3955 = vunpack.c.h.b16 %v3827
        %v3956 = vpack.c.b16 %v3894, %v3892
        %v3957 = vpack.c.b16 %v3895, %v3893
        %v3958 = vpack.c.b16 %v3898, %v3896
        %v3959 = vpack.c.b16 %v3899, %v3897
        %v3960 = vpack.c.b16 %v3902, %v3900
        %v3961 = vpack.c.b16 %v3903, %v3901
        %v3962 = vpack.c.b16 %v3906, %v3904
        %v3963 = vpack.c.b16 %v3907, %v3905
        %v3964 = vpack.c.b16 %v3910, %v3908
        %v3965 = vpack.c.b16 %v3911, %v3909
        %v3966 = vpack.c.b16 %v3914, %v3912
        %v3967 = vpack.c.b16 %v3915, %v3913
        %v3968 = vpack.c.b16 %v3918, %v3916
        %v3969 = vpack.c.b16 %v3919, %v3917
        %v3970 = vpack.c.b16 %v3922, %v3920
        %v3971 = vpack.c.b16 %v3923, %v3921
        %v3972 = vpack.c.b16 %v3926, %v3924
        %v3973 = vpack.c.b16 %v3927, %v3925
        %v3974 = vpack.c.b16 %v3930, %v3928
        %v3975 = vpack.c.b16 %v3931, %v3929
        %v3976 = vpack.c.b16 %v3934, %v3932
        %v3977 = vpack.c.b16 %v3935, %v3933
        %v3978 = vpack.c.b16 %v3938, %v3936
        %v3979 = vpack.c.b16 %v3939, %v3937
        %v3980 = vpack.c.b16 %v3942, %v3940
        %v3981 = vpack.c.b16 %v3943, %v3941
        %v3982 = vpack.c.b16 %v3946, %v3944
        %v3983 = vpack.c.b16 %v3947, %v3945
        %v3984 = vpack.c.b16 %v3950, %v3948
        %v3985 = vpack.c.b16 %v3951, %v3949
        %v3986 = vpack.c.b16 %v3954, %v3952
        %v3987 = vpack.c.b16 %v3955, %v3953
        %4020 = vmatpush.bf16.msra.mxu0 %v3970
        %4021 = vmatpush.bf16.msra.mxu0 %v3968
        %4022 = vmatpush.bf16.msra.mxu0 %v3966
        %4023 = vmatpush.bf16.msra.mxu0 %v3964
        %4024 = vmatpush.bf16.msra.mxu0 %v3962
        %4025 = vmatpush.bf16.msra.mxu0 %v3960
        %4026 = vmatpush.bf16.msra.mxu0 %v3958
        %4027 = vmatpush.bf16.msra.mxu0 %v3956
        %4028 = vmatmul.bf16.gmra.mxu0 %v3844
        %v4029 = vpop.f32.mrf.mxu0
        %v4030 = vadd.f32 0.0, %v4029
        %v4031 = vpop.f32.mrf.mxu0
        %v4032 = vadd.f32 0.0, %v4031
        %4033 = vmatmul.bf16.gmra.mxu0 %v3846
        %v4034 = vpop.f32.mrf.mxu0
        %v4035 = vadd.f32 0.0, %v4034
        %v4036 = vpop.f32.mrf.mxu0
        %v4037 = vadd.f32 0.0, %v4036
        %4038 = vmatmul.bf16.gmra.mxu0 %v3848
        %v4039 = vpop.f32.mrf.mxu0
        %v4040 = vadd.f32 0.0, %v4039
        %v4041 = vpop.f32.mrf.mxu0
        %v4042 = vadd.f32 0.0, %v4041
        %4043 = vmatmul.bf16.gmra.mxu0 %v3850
        %v4044 = vpop.f32.mrf.mxu0
        %v4045 = vadd.f32 0.0, %v4044
        %v4046 = vpop.f32.mrf.mxu0
        %v4047 = vadd.f32 0.0, %v4046
        %4048 = vdwg.mxu0
        %4049 = vmatpush.bf16.msra.mxu0 %v3986
        %4050 = vmatpush.bf16.msra.mxu0 %v3984
        %4051 = vmatpush.bf16.msra.mxu0 %v3982
        %4052 = vmatpush.bf16.msra.mxu0 %v3980
        %4053 = vmatpush.bf16.msra.mxu0 %v3978
        %4054 = vmatpush.bf16.msra.mxu0 %v3976
        %4055 = vmatpush.bf16.msra.mxu0 %v3974
        %4056 = vmatpush.bf16.msra.mxu0 %v3972
        %4057 = vmatmul.bf16.gmra.mxu0 %v3845
        %v4058 = vpop.f32.mrf.mxu0
        %v4059 = vadd.f32 %v4030, %v4058
        %v4060 = vpop.f32.mrf.mxu0
        %v4061 = vadd.f32 %v4032, %v4060
        %4062 = vmatmul.bf16.gmra.mxu0 %v3847
        %v4063 = vpop.f32.mrf.mxu0
        %v4064 = vadd.f32 %v4035, %v4063
        %v4065 = vpop.f32.mrf.mxu0
        %v4066 = vadd.f32 %v4037, %v4065
        %4067 = vmatmul.bf16.gmra.mxu0 %v3849
        %v4068 = vpop.f32.mrf.mxu0
        %v4069 = vadd.f32 %v4040, %v4068
        %v4070 = vpop.f32.mrf.mxu0
        %v4071 = vadd.f32 %v4042, %v4070
        %4072 = vmatmul.bf16.gmra.mxu0 %v3851
        %v4073 = vpop.f32.mrf.mxu0
        %v4074 = vadd.f32 %v4045, %v4073
        %v4075 = vpop.f32.mrf.mxu0
        %v4076 = vadd.f32 %v4047, %v4075
        %4077 = vdwg.mxu0
        %4078 = vmatpush.bf16.msra.mxu0 %v3971
        %4079 = vmatpush.bf16.msra.mxu0 %v3969
        %4080 = vmatpush.bf16.msra.mxu0 %v3967
        %4081 = vmatpush.bf16.msra.mxu0 %v3965
        %4082 = vmatpush.bf16.msra.mxu0 %v3963
        %4083 = vmatpush.bf16.msra.mxu0 %v3961
        %4084 = vmatpush.bf16.msra.mxu0 %v3959
        %4085 = vmatpush.bf16.msra.mxu0 %v3957
        %4086 = vmatmul.bf16.gmra.mxu0 %v3844
        %v4087 = vpop.f32.mrf.mxu0
        %v4088 = vadd.f32 0.0, %v4087
        %v4089 = vpop.f32.mrf.mxu0
        %v4090 = vadd.f32 0.0, %v4089
        %4091 = vmatmul.bf16.gmra.mxu0 %v3846
        %v4092 = vpop.f32.mrf.mxu0
        %v4093 = vadd.f32 0.0, %v4092
        %v4094 = vpop.f32.mrf.mxu0
        %v4095 = vadd.f32 0.0, %v4094
        %4096 = vmatmul.bf16.gmra.mxu0 %v3848
        %v4097 = vpop.f32.mrf.mxu0
        %v4098 = vadd.f32 0.0, %v4097
        %v4099 = vpop.f32.mrf.mxu0
        %v4100 = vadd.f32 0.0, %v4099
        %4101 = vmatmul.bf16.gmra.mxu0 %v3850
        %v4102 = vpop.f32.mrf.mxu0
        %v4103 = vadd.f32 0.0, %v4102
        %v4104 = vpop.f32.mrf.mxu0
        %v4105 = vadd.f32 0.0, %v4104
        %4106 = vdwg.mxu0
        %4107 = vmatpush.bf16.msra.mxu0 %v3987
        %4108 = vmatpush.bf16.msra.mxu0 %v3985
        %4109 = vmatpush.bf16.msra.mxu0 %v3983
        %4110 = vmatpush.bf16.msra.mxu0 %v3981
        %4111 = vmatpush.bf16.msra.mxu0 %v3979
        %4112 = vmatpush.bf16.msra.mxu0 %v3977
        %4113 = vmatpush.bf16.msra.mxu0 %v3975
        %4114 = vmatpush.bf16.msra.mxu0 %v3973
        %4115 = vmatmul.bf16.gmra.mxu0 %v3845
        %v4116 = vpop.f32.mrf.mxu0
        %v4117 = vadd.f32 %v4088, %v4116
        %v4118 = vpop.f32.mrf.mxu0
        %v4119 = vadd.f32 %v4090, %v4118
        %4120 = vmatmul.bf16.gmra.mxu0 %v3847
        %v4121 = vpop.f32.mrf.mxu0
        %v4122 = vadd.f32 %v4093, %v4121
        %v4123 = vpop.f32.mrf.mxu0
        %v4124 = vadd.f32 %v4095, %v4123
        %4125 = vmatmul.bf16.gmra.mxu0 %v3849
        %v4126 = vpop.f32.mrf.mxu0
        %v4127 = vadd.f32 %v4098, %v4126
        %v4128 = vpop.f32.mrf.mxu0
        %v4129 = vadd.f32 %v4100, %v4128
        %4130 = vmatmul.bf16.gmra.mxu0 %v3851
        %v4131 = vpop.f32.mrf.mxu0
        %v4132 = vadd.f32 %v4103, %v4131
        %v4133 = vpop.f32.mrf.mxu0
        %v4134 = vadd.f32 %v4105, %v4133
        %4135 = vdwg.mxu0
        %v4136 = vadd.f32 %v3723, %v4059
        %v4137 = vadd.f32 %v3724, %v4117
        %v4138 = vadd.f32 %v3725, %v4061
        %v4139 = vadd.f32 %v3726, %v4119
        %v4140 = vadd.f32 %v3727, %v4064
        %v4141 = vadd.f32 %v3728, %v4122
        %v4142 = vadd.f32 %v3729, %v4066
        %v4143 = vadd.f32 %v3730, %v4124
        %v4144 = vadd.f32 %v3731, %v4069
        %v4145 = vadd.f32 %v3732, %v4127
        %v4146 = vadd.f32 %v3733, %v4071
        %v4147 = vadd.f32 %v3734, %v4129
        %v4148 = vadd.f32 %v3735, %v4074
        %v4149 = vadd.f32 %v3736, %v4132
        %v4150 = vadd.f32 %v3737, %v4076
        %v4151 = vadd.f32 %v3738, %v4134
        %4152 = vst [vmem:[%s195] sm:$0xff] %v4136
        %4153 = vst [vmem:[%s195 + $0x8] sm:$0xff] %v4137
        %4154 = vst [vmem:[%s195 + $0x10] sm:$0xff] %v4138
        %4155 = vst [vmem:[%s195 + $0x18] sm:$0xff] %v4139
        %4156 = vst [vmem:[%s195 + $0x20] sm:$0xff] %v4140
        %4157 = vst [vmem:[%s195 + $0x28] sm:$0xff] %v4141
        %4158 = vst [vmem:[%s195 + $0x30] sm:$0xff] %v4142
        %4159 = vst [vmem:[%s195 + $0x38] sm:$0xff] %v4143
        %4160 = vst [vmem:[%s195 + $0x40] sm:$0xff] %v4144
        %4161 = vst [vmem:[%s195 + $0x48] sm:$0xff] %v4145
        %4162 = vst [vmem:[%s195 + $0x50] sm:$0xff] %v4146
        %4163 = vst [vmem:[%s195 + $0x58] sm:$0xff] %v4147
        %4164 = vst [vmem:[%s195 + $0x60] sm:$0xff] %v4148
        %4165 = vst [vmem:[%s195 + $0x68] sm:$0xff] %v4149
        %4166 = vst [vmem:[%s195 + $0x70] sm:$0xff] %v4150
        %4167 = vst [vmem:[%s195 + $0x78] sm:$0xff] %v4151
        %v4168 = vadd.f32 %v4136, %v4138
        %v4169 = vadd.f32 %v4168, %v4140
        %v4170 = vadd.f32 %v4169, %v4142
        %v4171 = vadd.f32 %v4170, %v4144
        %v4172 = vadd.f32 %v4171, %v4146
        %v4173 = vadd.f32 %v4172, %v4148
        %v4174 = vadd.f32 %v4173, %v4150
        %v4175 = vrot.slane %v4174, 4
        %v4176 = vadd.f32 %v4174, %v4175
        %v4177 = vrot.slane %v4176, 2
        %v4178 = vadd.f32 %v4176, %v4177
        %v4179 = vrot.slane %v4178, 1
        %v4180 = vadd.f32 %v4178, %v4179
        %v4181 = vadd.f32 %v4137, %v4139
        %v4182 = vadd.f32 %v4181, %v4141
        %v4183 = vadd.f32 %v4182, %v4143
        %v4184 = vadd.f32 %v4183, %v4145
        %v4185 = vadd.f32 %v4184, %v4147
        %v4186 = vadd.f32 %v4185, %v4149
        %v4187 = vadd.f32 %v4186, %v4151
        %v4188 = vrot.slane %v4187, 4
        %v4189 = vadd.f32 %v4187, %v4188
        %v4190 = vrot.slane %v4189, 2
        %v4191 = vadd.f32 %v4189, %v4190
        %v4192 = vrot.slane %v4191, 1
        %v4193 = vadd.f32 %v4191, %v4192
        %v4196 = vrot.slane %v4193, 7
        %vm4197 = vcmask 1040384
        %v4198 = vsel %vm4197, %v4180, %v4196
        %v4200 = vlaneseq
        %vm4201 = vcmp.ge.s32.totalorder %v4200, 0
        %vm4202 = vcmp.lt.s32.totalorder %v4200, 256
        %vm4203 = vmand %vm4201, %vm4202
        %4204 = vst.msk [vmem:[%s200] ss:$2 sm:$0x3] %vm4203, %v4198
        %v4205 = vmul.f32 %v4136, %v4136
        %v4206 = vmul.f32 %v4137, %v4137
        %v4207 = vmul.f32 %v4138, %v4138
        %v4208 = vmul.f32 %v4139, %v4139
        %v4209 = vmul.f32 %v4140, %v4140
        %v4210 = vmul.f32 %v4141, %v4141
        %v4211 = vmul.f32 %v4142, %v4142
        %v4212 = vmul.f32 %v4143, %v4143
        %v4213 = vmul.f32 %v4144, %v4144
        %v4214 = vmul.f32 %v4145, %v4145
        %v4215 = vmul.f32 %v4146, %v4146
        %v4216 = vmul.f32 %v4147, %v4147
        %v4217 = vmul.f32 %v4148, %v4148
        %v4218 = vmul.f32 %v4149, %v4149
        %v4219 = vmul.f32 %v4150, %v4150
        %v4220 = vmul.f32 %v4151, %v4151
        %v4221 = vadd.f32 %v4205, %v4207
        %v4222 = vadd.f32 %v4221, %v4209
        %v4223 = vadd.f32 %v4222, %v4211
        %v4224 = vadd.f32 %v4223, %v4213
        %v4225 = vadd.f32 %v4224, %v4215
        %v4226 = vadd.f32 %v4225, %v4217
        %v4227 = vadd.f32 %v4226, %v4219
        %v4228 = vrot.slane %v4227, 4
        %v4229 = vadd.f32 %v4227, %v4228
        %v4230 = vrot.slane %v4229, 2
        %v4231 = vadd.f32 %v4229, %v4230
        %v4232 = vrot.slane %v4231, 1
        %v4233 = vadd.f32 %v4231, %v4232
        %v4234 = vadd.f32 %v4206, %v4208
        %v4235 = vadd.f32 %v4234, %v4210
        %v4236 = vadd.f32 %v4235, %v4212
        %v4237 = vadd.f32 %v4236, %v4214
        %v4238 = vadd.f32 %v4237, %v4216
        %v4239 = vadd.f32 %v4238, %v4218
        %v4240 = vadd.f32 %v4239, %v4220
        %v4241 = vrot.slane %v4240, 4
        %v4242 = vadd.f32 %v4240, %v4241
        %v4243 = vrot.slane %v4242, 2
        %v4244 = vadd.f32 %v4242, %v4243
        %v4245 = vrot.slane %v4244, 1
        %v4246 = vadd.f32 %v4244, %v4245
        %v4249 = vrot.slane %v4246, 7
        %v4250 = vsel %vm4197, %v4233, %v4249
        %s4252 = scalar_lea.vmem %s200, 1
        %4253 = vst.msk [vmem:[%s4252] ss:$2 sm:$0x3] %vm4203, %v4250
        %p4254 = scmp.lt.s32.totalorder %s16, 1
        %s4255 = scalar_select %p4254, %s16, 1
        %s4256 = smul.addr %s4255, 16
        %s4257 = smul.addr %s4256, 8
        %s4258 = scalar_lea.vmem %s2, %s4257
        %p4259 = scmp.lt.s32.totalorder %s16, 1
        %s4260 = scalar_select %p4259, %s16, 1
        %s4261 = smul.addr %s4260, 2
        %s4262 = smul.addr %s4261, 2
        %s4263 = scalar_lea.vmem %s3, %s4262
        // Predicated region
        $region33: #{basic_block_forward.3} parent=27 // pred_check
          %p4264 = pneg %p81
        $region34: #{basic_block_forward.3} parent=27 // pred_check_branch
          %4266 = sbr.rel (%p4264) target = $region36
        $region35: #{basic_block_forward.3} parent=27 // pred_region
          _
        $region36: #{basic_block_forward.3} parent=27 // pred_fallthru
          _
        // Predicated region
        $region37: #{basic_block_forward.3} parent=27 // pred_check
          %p4267 = pneg %p107
        $region38: #{basic_block_forward.3} parent=27 // pred_check_branch
          %4269 = sbr.rel (%p4267) target = $region40
        $region39: #{basic_block_forward.3} parent=27 // pred_region
          _
        $region40: #{basic_block_forward.3} parent=27 // pred_fallthru
          _
      $region28: #{basic_block_forward.3} parent=5 // pred_fallthru
        _
      %p4270 = scmp.le.s32.totalorder 2, %s11
      // Predicated region
      $region41: #{basic_block_forward.3} parent=5 // pred_check
        %p4271 = pneg %p4270
      $region42: #{basic_block_forward.3} parent=5 // pred_check_branch
        %4273 = sbr.rel (%p4271) target = $region44
      $region43: #{basic_block_forward.3} parent=5 // pred_region
        %s4274 = ssub.s32 %s11, 2
        // Predicated region
        $region45: #{basic_block_forward.3} parent=43 // pred_check
          %p4275 = pneg %p87
        $region46: #{basic_block_forward.3} parent=43 // pred_check_branch
          %4277 = sbr.rel (%p4275) target = $region48
        $region47: #{basic_block_forward.3} parent=43 // pred_region
          %p4278 = scmp.lt.s32.totalorder %s17, 1
          %s4279 = scalar_select %p4278, %s17, 1
          %s4280 = smul.addr %s4279, 16
          %s4281 = smul.addr %s4280, 8
          %s4282 = scalar_lea.vmem %s2, %s4281
        $region48: #{basic_block_forward.3} parent=43 // pred_fallthru
          _
        // Predicated region
        $region49: #{basic_block_forward.3} parent=43 // pred_check
          %p4283 = pneg %p113
        $region50: #{basic_block_forward.3} parent=43 // pred_check_branch
          %4285 = sbr.rel (%p4283) target = $region52
        $region51: #{basic_block_forward.3} parent=43 // pred_region
          %p4286 = scmp.lt.s32.totalorder %s17, 1
          %s4287 = scalar_select %p4286, %s17, 1
          %s4288 = smul.addr %s4287, 2
          %s4289 = smul.addr %s4288, 2
          %s4290 = scalar_lea.vmem %s3, %s4289
        $region52: #{basic_block_forward.3} parent=43 // pred_fallthru
          _
      $region44: #{basic_block_forward.3} parent=5 // pred_fallthru
        _
    $region6: #{basic_block_forward.3} parent=1 // loop_footer
      %s15 = sadd.s32 1, %s11
    $region7: #{basic_block_forward.3} parent=1 // loop_footer_branch
      %10 = sbr.rel target = $region3
    $region8: #{basic_block_forward.3} parent=1 // loop_exit
      _
    %4291 = vsyncpa [#allocation4], 1
    %s4292 = scalar_lea.sflag [#allocation4], 1
    %4293 = vsyncpa %s4292, 1

</llo_original>
